<compile_context>
chip_gen: v7x
topology: tpu7x:2x2x1
jax: 0.10.0
libtpu: 0.0.40
codegen_flags: <defaults>
</compile_context>

<pallas_src>
import functools

import jax
import jax.numpy as jnp
import numpy as np
from jax.experimental import pallas as pl
from jax.experimental.pallas import tpu as pltpu

EPS = 1e-5
LANE = 128
TARGET_PIX_PER_TILE = 2048    # output pixels per pass-1 tile (VMEM-budgeted)


def _round_up(x, m):
    return ((x + m - 1) // m) * m


@functools.lru_cache(maxsize=None)
def _vmem_limit_bytes():
    # Scale the scoped-VMEM ceiling with the chip generation
    # (v5e/v6e: 128 MiB physical -> ~96 MiB, v7x: 64 MiB -> 48 MiB).
    try:
        cap = int(pltpu.get_tpu_info().vmem_capacity_bytes)
        return max(32 * 2**20, min((cap * 3) // 4, 96 * 2**20))
    except Exception:
        return 48 * 2**20


# ---------------------------------------------------------------------------
# Pass 1: fused 3x3/s2 conv (9 tap-wise bf16 MXU dots, f32 accumulation)
#         + per-tile per-channel sum / sum-of-squares partials for BatchNorm.
# ---------------------------------------------------------------------------
def conv_stats_kernel(r0e, r0o, r1e, r1o, r2e, r2o, w_ref, y_ref, st_ref,
                      *, th, wo, cin):
    # tap planes: (th, wo+1, cin) each, bf16
    planes = (r0e[0], r0o[0], r1e[0], r1o[0], r2e[0], r2o[0])
    # tap t = kh*3 + kw  ->  (plane index, column offset)
    taps = ((0, 0), (1, 0), (0, 1),
            (2, 0), (3, 0), (2, 1),
            (4, 0), (5, 0), (4, 1))
    cpad = w_ref.shape[-1]

    acc = jnp.zeros((th * wo, cpad), jnp.float32)
    for t, (p, off) in enumerate(taps):
        x = planes[p][:, off:off + wo, :].reshape(th * wo, cin)
        acc = acc + jnp.dot(x, w_ref[t], preferred_element_type=jnp.float32)

    y_ref[0] = acc.astype(y_ref.dtype)                       # bf16 writeback
    # Per-tile partial stats: own output block per grid step, so the grid
    # stays fully "parallel" (no resident accumulator, no race).  NOTE: the
    # E[y^2] - mu^2 form can lose precision for huge M / large means; stats
    # stay f32 and var is clamped at 0 in pass 2.
    st_ref[0, 0:1, :] = jnp.sum(acc, axis=0, keepdims=True)
    st_ref[0, 1:2, :] = jnp.sum(acc * acc, axis=0, keepdims=True)


# ---------------------------------------------------------------------------
# Pass 2: BN (batch statistics) affine + ReLU, single FMA per element.
# ---------------------------------------------------------------------------
def bn_relu_kernel(stats_ref, gamma_ref, beta_ref, y_ref, o_ref, *, inv_count):
    mu = stats_ref[0:1, :] * inv_count
    ex2 = stats_ref[1:2, :] * inv_count
    var = jnp.maximum(ex2 - mu * mu, 0.0)
    scale = gamma_ref[...] * jax.lax.rsqrt(var + EPS)         # (1, C_pad) f32
    shift = beta_ref[...] - mu * scale                        # (1, C_pad) f32
    y = y_ref[0].astype(jnp.float32)
    o_ref[0] = jnp.maximum(y * scale + shift, 0.0).astype(o_ref.dtype)


# ---------------------------------------------------------------------------
# One ConvBlock: conv3x3/s2/p1 (no bias) + BN(batch stats) + ReLU.  NHWC.
# ---------------------------------------------------------------------------
def conv_block(x_nhwc, w_oihw, gamma, beta):
    cout, cin, kh, kw = w_oihw.shape
    assert (kh, kw) == (3, 3)
    n, h, w, _ = x_nhwc.shape
    ho, wo = (h + 1) // 2, (w + 1) // 2

    # ---- wrapper-side layout plumbing (bf16 from the start) ----------------
    x = x_nhwc.astype(jnp.bfloat16)
    xp = jnp.pad(x, ((0, 0), (1, 2 * ho + 1 - h), (1, 2 * wo + 1 - w), (0, 0)))

    # 6 stride-2 tap planes, each (N, Ho, Wo+1, Cin).  kw=0/2 use the even-
    # column planes at offsets 0/1; kw=1 uses the odd-column planes.
    r0e = xp[:, 0:2 * ho:2,     0::2, :]
    r0o = xp[:, 0:2 * ho:2,     1::2, :]
    r1e = xp[:, 1:2 * ho + 1:2, 0::2, :]
    r1o = xp[:, 1:2 * ho + 1:2, 1::2, :]
    r2e = xp[:, 2:2 * ho + 2:2, 0::2, :]
    r2o = xp[:, 2:2 * ho + 2:2, 1::2, :]

    th = max(1, min(ho, TARGET_PIX_PER_TILE // max(wo, 1)))   # output rows/tile
    nr = pl.cdiv(ho, th)
    ho_pad = nr * th
    taps = (r0e, r0o, r1e, r1o, r2e, r2o)
    if ho_pad != ho:   # zero rows -> exact zeros in y -> contribute 0 to stats
        taps = tuple(jnp.pad(a, ((0, 0), (0, ho_pad - ho), (0, 0), (0, 0)))
                     for a in taps)

    c_pad = _round_up(cout, LANE)
    w_taps = jnp.transpose(w_oihw, (2, 3, 1, 0)).reshape(9, cin, cout)
    w_taps = jnp.pad(w_taps, ((0, 0), (0, 0), (0, c_pad - cout))
                     ).astype(jnp.bfloat16)
    gamma_p = jnp.pad(gamma.astype(jnp.float32), (0, c_pad - cout)).reshape(1, c_pad)
    beta_p = jnp.pad(beta.astype(jnp.float32), (0, c_pad - cout)).reshape(1, c_pad)

    n_tiles = n * nr
    tile_m = th * wo
    m_true = n * ho * wo
    vmem_limit = _vmem_limit_bytes()

    tap_spec = pl.BlockSpec((1, th, wo + 1, cin), lambda b, r: (b, r, 0, 0))
    tile_map = lambda b, r, NR=nr: (b * NR + r, 0, 0)

    # ---- pass 1: fused conv + per-tile stats (fully parallel grid) ---------
    y_pad, stats_part = pl.pallas_call(
        functools.partial(conv_stats_kernel, th=th, wo=wo, cin=cin),
        grid=(n, nr),
        in_specs=[tap_spec] * 6 + [
            pl.BlockSpec((9, cin, c_pad), lambda b, r: (0, 0, 0)),  # resident
        ],
        out_specs=(
            pl.BlockSpec((1, tile_m, c_pad), tile_map),
            pl.BlockSpec((1, 2, c_pad), tile_map),
        ),
        out_shape=(
            jax.ShapeDtypeStruct((n_tiles, tile_m, c_pad), jnp.bfloat16),
            jax.ShapeDtypeStruct((n_tiles, 2, c_pad), jnp.float32),
        ),
        compiler_params=pltpu.CompilerParams(
            dimension_semantics=("parallel", "parallel"),
            vmem_limit_bytes=vmem_limit),
        cost_estimate=pl.CostEstimate(
            flops=2 * n_tiles * tile_m * 9 * cin * c_pad,
            transcendentals=0,
            bytes_accessed=(6 * n_tiles * th * (wo + 1) * cin * 2
                            + 9 * cin * c_pad * 2
                            + n_tiles * tile_m * c_pad * 2
                            + n_tiles * 2 * c_pad * 4)),
    )(*taps, w_taps)

    stats = jnp.sum(stats_part, axis=0)        # exact f32 reduce of partials

    # ---- pass 2: normalize + affine + ReLU (parallel / megacore) -----------
    out_pad = pl.pallas_call(
        functools.partial(bn_relu_kernel, inv_count=1.0 / float(m_true)),
        grid=(n_tiles,),
        in_specs=[
            pl.BlockSpec((2, c_pad), lambda i: (0, 0)),
            pl.BlockSpec((1, c_pad), lambda i: (0, 0)),
            pl.BlockSpec((1, c_pad), lambda i: (0, 0)),
            pl.BlockSpec((1, tile_m, c_pad), lambda i: (i, 0, 0)),
        ],
        out_specs=pl.BlockSpec((1, tile_m, c_pad), lambda i: (i, 0, 0)),
        out_shape=jax.ShapeDtypeStruct((n_tiles, tile_m, c_pad), jnp.bfloat16),
        compiler_params=pltpu.CompilerParams(
            dimension_semantics=("parallel",),
            vmem_limit_bytes=vmem_limit),
    )(stats, gamma_p, beta_p, y_pad)

    out = out_pad.reshape(n, ho_pad, wo, c_pad)[:, :ho, :, :cout]
    return out                                            # NHWC, bf16


def spatial_path(x_nchw, params):
    """Full Spatial_path forward.  Input/output NCHW (PyTorch convention)."""
    x = jnp.transpose(x_nchw, (0, 2, 3, 1))  # NCHW -> NHWC
    for (w, g, b) in params:
        x = conv_block(x, w, g, b)
    return jnp.transpose(x, (0, 3, 1, 2)).astype(jnp.float32)


# ---------------------------------------------------------------------------
# Pure-JAX references for validation
#   mxu_bf16=True  : bf16 conv inputs / f32 accumulation (kernel convention)
#   mxu_bf16=False : full f32 (PyTorch semantics)
# ---------------------------------------------------------------------------
def _ref_conv_block(x_nhwc, w_oihw, gamma, beta, *, mxu_bf16):
    w_hwio = jnp.transpose(w_oihw, (2, 3, 1, 0))
    if mxu_bf16:
        lhs, rhs = x_nhwc.astype(jnp.bfloat16), w_hwio.astype(jnp.bfloat16)
    else:
        lhs, rhs = x_nhwc, w_hwio
    y = jax.lax.conv_general_dilated(
        lhs, rhs, window_strides=(2, 2), padding=((1, 1), (1, 1)),
        dimension_numbers=("NHWC", "HWIO", "NHWC"),
        preferred_element_type=jnp.float32)
    mu = jnp.mean(y, axis=(0, 1, 2), keepdims=True)
    var = jnp.mean((y - mu) ** 2, axis=(0, 1, 2), keepdims=True)
    y = (y - mu) * jax.lax.rsqrt(var + EPS)
    y = y * gamma.reshape(1, 1, 1, -1) + beta.reshape(1, 1, 1, -1)
    return jnp.maximum(y, 0.0)


def _ref_spatial_path(x_nchw, params, *, mxu_bf16):
    x = jnp.transpose(x_nchw, (0, 2, 3, 1))
    for (w, g, b) in params:
        x = _ref_conv_block(x, w, g, b, mxu_bf16=mxu_bf16)
    return jnp.transpose(x, (0, 3, 1, 2))


# ---------------------------------------------------------------------------
def _init_params(key):
    """Deterministic synthetic params matching Spatial_path.__init__ shapes."""
    chans = [(3, 64), (64, 128), (128, 256)]
    params = []
    for (cin, cout) in chans:
        key, kw_, kg, kb = jax.random.split(key, 4)
        fan_in = cin * 9
        w = jax.random.normal(kw_, (cout, cin, 3, 3), jnp.float32) / np.sqrt(fan_in)
        gamma = 1.0 + 0.1 * jax.random.normal(kg, (cout,), jnp.float32)
        beta = 0.1 * jax.random.normal(kb, (cout,), jnp.float32)
        params.append((w, gamma, beta))
    return params


if __name__ == "__main__":
    key = jax.random.PRNGKey(0)
    key, kx = jax.random.split(key)
    x = jax.random.normal(kx, (2, 3, 16, 16), jnp.float32)   # NCHW, in_channels=3
    params = _init_params(key)

    fwd = jax.jit(spatial_path)
    out = jax.block_until_ready(fwd(x, params))
    assert out.shape == (2, 256, 2, 2), out.shape

    # Check vs a reference using the same bf16-MXU / f32-accumulate convention
    # (tolerances account for the new bf16 activation storage).
    ref_bf16 = jax.block_until_ready(_ref_spatial_path(x, params, mxu_bf16=True))
    np.testing.assert_allclose(np.asarray(out), np.asarray(ref_bf16),
                               rtol=5e-2, atol=5e-2)

    # Loose sanity check vs the full-f32 PyTorch-semantics reference.
    ref_f32 = jax.block_until_ready(_ref_spatial_path(x, params, mxu_bf16=False))
    max_err = float(jnp.max(jnp.abs(out - ref_f32)))
    assert max_err < 0.35, f"max |err| vs f32 reference too large: {max_err}"

    print("KERNEL_OK")
</pallas_src>

<mosaic_0001>
module attributes {stable_mosaic.version = 11 : i64} {
  func.func @conv_stats_kernel(%arg0: i32, %arg1: i32, %arg2: memref<1x8x9x3xbf16, #tpu.memory_space<vmem>>, %arg3: memref<1x8x9x3xbf16, #tpu.memory_space<vmem>>, %arg4: memref<1x8x9x3xbf16, #tpu.memory_space<vmem>>, %arg5: memref<1x8x9x3xbf16, #tpu.memory_space<vmem>>, %arg6: memref<1x8x9x3xbf16, #tpu.memory_space<vmem>>, %arg7: memref<1x8x9x3xbf16, #tpu.memory_space<vmem>>, %arg8: memref<9x3x128xbf16, #tpu.memory_space<vmem>>, %arg9: memref<1x64x128xbf16, #tpu.memory_space<vmem>>, %arg10: memref<1x2x128xf32, #tpu.memory_space<vmem>>) attributes {dimension_semantics = [#tpu.dimension_semantics<parallel>, #tpu.dimension_semantics<parallel>], iteration_bounds = array<i64: 2, 1>, scalar_prefetch = 0 : i64, scratch_operands = 0 : i64, tpu.core_type = #tpu.core_type<tc>, window_params = [{transform_indices = @transform_0, window_bounds = array<i64: 1, 8, 9, 3>}, {transform_indices = @transform_1, window_bounds = array<i64: 1, 8, 9, 3>}, {transform_indices = @transform_2, window_bounds = array<i64: 1, 8, 9, 3>}, {transform_indices = @transform_3, window_bounds = array<i64: 1, 8, 9, 3>}, {transform_indices = @transform_4, window_bounds = array<i64: 1, 8, 9, 3>}, {transform_indices = @transform_5, window_bounds = array<i64: 1, 8, 9, 3>}, {pipeline_mode = #tpu.pipeline_mode<synchronous>, transform_indices = @transform_6, window_bounds = array<i64: 9, 3, 128>}, {transform_indices = @transform_7, window_bounds = array<i64: 1, 64, 128>}, {transform_indices = @transform_8, window_bounds = array<i64: 1, 2, 128>}]} {
    %c0 = arith.constant 0 : index
    %c0_0 = arith.constant 0 : index
    %c0_1 = arith.constant 0 : index
    %c0_2 = arith.constant 0 : index
    %0 = vector.load %arg2[%c0, %c0_0, %c0_1, %c0_2] : memref<1x8x9x3xbf16, #tpu.memory_space<vmem>>, vector<1x8x9x3xbf16>
    %1 = vector.shape_cast %0 : vector<1x8x9x3xbf16> to vector<8x9x3xbf16>
    %c0_3 = arith.constant 0 : index
    %c0_4 = arith.constant 0 : index
    %c0_5 = arith.constant 0 : index
    %c0_6 = arith.constant 0 : index
    %2 = vector.load %arg3[%c0_3, %c0_4, %c0_5, %c0_6] : memref<1x8x9x3xbf16, #tpu.memory_space<vmem>>, vector<1x8x9x3xbf16>
    %3 = vector.shape_cast %2 : vector<1x8x9x3xbf16> to vector<8x9x3xbf16>
    %c0_7 = arith.constant 0 : index
    %c0_8 = arith.constant 0 : index
    %c0_9 = arith.constant 0 : index
    %c0_10 = arith.constant 0 : index
    %4 = vector.load %arg4[%c0_7, %c0_8, %c0_9, %c0_10] : memref<1x8x9x3xbf16, #tpu.memory_space<vmem>>, vector<1x8x9x3xbf16>
    %5 = vector.shape_cast %4 : vector<1x8x9x3xbf16> to vector<8x9x3xbf16>
    %c0_11 = arith.constant 0 : index
    %c0_12 = arith.constant 0 : index
    %c0_13 = arith.constant 0 : index
    %c0_14 = arith.constant 0 : index
    %6 = vector.load %arg5[%c0_11, %c0_12, %c0_13, %c0_14] : memref<1x8x9x3xbf16, #tpu.memory_space<vmem>>, vector<1x8x9x3xbf16>
    %7 = vector.shape_cast %6 : vector<1x8x9x3xbf16> to vector<8x9x3xbf16>
    %c0_15 = arith.constant 0 : index
    %c0_16 = arith.constant 0 : index
    %c0_17 = arith.constant 0 : index
    %c0_18 = arith.constant 0 : index
    %8 = vector.load %arg6[%c0_15, %c0_16, %c0_17, %c0_18] : memref<1x8x9x3xbf16, #tpu.memory_space<vmem>>, vector<1x8x9x3xbf16>
    %9 = vector.shape_cast %8 : vector<1x8x9x3xbf16> to vector<8x9x3xbf16>
    %c0_19 = arith.constant 0 : index
    %c0_20 = arith.constant 0 : index
    %c0_21 = arith.constant 0 : index
    %c0_22 = arith.constant 0 : index
    %10 = vector.load %arg7[%c0_19, %c0_20, %c0_21, %c0_22] : memref<1x8x9x3xbf16, #tpu.memory_space<vmem>>, vector<1x8x9x3xbf16>
    %11 = vector.shape_cast %10 : vector<1x8x9x3xbf16> to vector<8x9x3xbf16>
    %cst = arith.constant 0.000000e+00 : f32
    %12 = vector.broadcast %cst : f32 to vector<64x128xf32>
    %13 = vector.extract_strided_slice %1 {offsets = [0, 0, 0], sizes = [8, 8, 3], strides = [1, 1, 1]} : vector<8x9x3xbf16> to vector<8x8x3xbf16>
    %14 = vector.shape_cast %13 : vector<8x8x3xbf16> to vector<64x3xbf16>
    %c0_23 = arith.constant 0 : index
    %c0_24 = arith.constant 0 : index
    %c0_25 = arith.constant 0 : index
    %15 = vector.load %arg8[%c0_23, %c0_24, %c0_25] : memref<9x3x128xbf16, #tpu.memory_space<vmem>>, vector<1x3x128xbf16>
    %16 = vector.shape_cast %15 : vector<1x3x128xbf16> to vector<3x128xbf16>
    %cst_26 = arith.constant dense<0.000000e+00> : vector<64x128xf32>
    %17 = tpu.matmul %14, %16, %cst_26 {dimension_numbers = #tpu.dot_dimension_numbers<[1], [0], [0], [1], [0, 0, 1, 1], [], []>} : vector<64x3xbf16>, vector<3x128xbf16>, vector<64x128xf32> -> vector<64x128xf32>
    %18 = arith.addf %12, %17 : vector<64x128xf32>
    %19 = vector.extract_strided_slice %3 {offsets = [0, 0, 0], sizes = [8, 8, 3], strides = [1, 1, 1]} : vector<8x9x3xbf16> to vector<8x8x3xbf16>
    %20 = vector.shape_cast %19 : vector<8x8x3xbf16> to vector<64x3xbf16>
    %c1 = arith.constant 1 : index
    %c0_27 = arith.constant 0 : index
    %c0_28 = arith.constant 0 : index
    %21 = vector.load %arg8[%c1, %c0_27, %c0_28] : memref<9x3x128xbf16, #tpu.memory_space<vmem>>, vector<1x3x128xbf16>
    %22 = vector.shape_cast %21 : vector<1x3x128xbf16> to vector<3x128xbf16>
    %cst_29 = arith.constant dense<0.000000e+00> : vector<64x128xf32>
    %23 = tpu.matmul %20, %22, %cst_29 {dimension_numbers = #tpu.dot_dimension_numbers<[1], [0], [0], [1], [0, 0, 1, 1], [], []>} : vector<64x3xbf16>, vector<3x128xbf16>, vector<64x128xf32> -> vector<64x128xf32>
    %24 = arith.addf %18, %23 : vector<64x128xf32>
    %25 = vector.extract_strided_slice %1 {offsets = [0, 1, 0], sizes = [8, 8, 3], strides = [1, 1, 1]} : vector<8x9x3xbf16> to vector<8x8x3xbf16>
    %26 = vector.shape_cast %25 : vector<8x8x3xbf16> to vector<64x3xbf16>
    %c2 = arith.constant 2 : index
    %c0_30 = arith.constant 0 : index
    %c0_31 = arith.constant 0 : index
    %27 = vector.load %arg8[%c2, %c0_30, %c0_31] : memref<9x3x128xbf16, #tpu.memory_space<vmem>>, vector<1x3x128xbf16>
    %28 = vector.shape_cast %27 : vector<1x3x128xbf16> to vector<3x128xbf16>
    %cst_32 = arith.constant dense<0.000000e+00> : vector<64x128xf32>
    %29 = tpu.matmul %26, %28, %cst_32 {dimension_numbers = #tpu.dot_dimension_numbers<[1], [0], [0], [1], [0, 0, 1, 1], [], []>} : vector<64x3xbf16>, vector<3x128xbf16>, vector<64x128xf32> -> vector<64x128xf32>
    %30 = arith.addf %24, %29 : vector<64x128xf32>
    %31 = vector.extract_strided_slice %5 {offsets = [0, 0, 0], sizes = [8, 8, 3], strides = [1, 1, 1]} : vector<8x9x3xbf16> to vector<8x8x3xbf16>
    %32 = vector.shape_cast %31 : vector<8x8x3xbf16> to vector<64x3xbf16>
    %c3 = arith.constant 3 : index
    %c0_33 = arith.constant 0 : index
    %c0_34 = arith.constant 0 : index
    %33 = vector.load %arg8[%c3, %c0_33, %c0_34] : memref<9x3x128xbf16, #tpu.memory_space<vmem>>, vector<1x3x128xbf16>
    %34 = vector.shape_cast %33 : vector<1x3x128xbf16> to vector<3x128xbf16>
    %cst_35 = arith.constant dense<0.000000e+00> : vector<64x128xf32>
    %35 = tpu.matmul %32, %34, %cst_35 {dimension_numbers = #tpu.dot_dimension_numbers<[1], [0], [0], [1], [0, 0, 1, 1], [], []>} : vector<64x3xbf16>, vector<3x128xbf16>, vector<64x128xf32> -> vector<64x128xf32>
    %36 = arith.addf %30, %35 : vector<64x128xf32>
    %37 = vector.extract_strided_slice %7 {offsets = [0, 0, 0], sizes = [8, 8, 3], strides = [1, 1, 1]} : vector<8x9x3xbf16> to vector<8x8x3xbf16>
    %38 = vector.shape_cast %37 : vector<8x8x3xbf16> to vector<64x3xbf16>
    %c4 = arith.constant 4 : index
    %c0_36 = arith.constant 0 : index
    %c0_37 = arith.constant 0 : index
    %39 = vector.load %arg8[%c4, %c0_36, %c0_37] : memref<9x3x128xbf16, #tpu.memory_space<vmem>>, vector<1x3x128xbf16>
    %40 = vector.shape_cast %39 : vector<1x3x128xbf16> to vector<3x128xbf16>
    %cst_38 = arith.constant dense<0.000000e+00> : vector<64x128xf32>
    %41 = tpu.matmul %38, %40, %cst_38 {dimension_numbers = #tpu.dot_dimension_numbers<[1], [0], [0], [1], [0, 0, 1, 1], [], []>} : vector<64x3xbf16>, vector<3x128xbf16>, vector<64x128xf32> -> vector<64x128xf32>
    %42 = arith.addf %36, %41 : vector<64x128xf32>
    %43 = vector.extract_strided_slice %5 {offsets = [0, 1, 0], sizes = [8, 8, 3], strides = [1, 1, 1]} : vector<8x9x3xbf16> to vector<8x8x3xbf16>
    %44 = vector.shape_cast %43 : vector<8x8x3xbf16> to vector<64x3xbf16>
    %c5 = arith.constant 5 : index
    %c0_39 = arith.constant 0 : index
    %c0_40 = arith.constant 0 : index
    %45 = vector.load %arg8[%c5, %c0_39, %c0_40] : memref<9x3x128xbf16, #tpu.memory_space<vmem>>, vector<1x3x128xbf16>
    %46 = vector.shape_cast %45 : vector<1x3x128xbf16> to vector<3x128xbf16>
    %cst_41 = arith.constant dense<0.000000e+00> : vector<64x128xf32>
    %47 = tpu.matmul %44, %46, %cst_41 {dimension_numbers = #tpu.dot_dimension_numbers<[1], [0], [0], [1], [0, 0, 1, 1], [], []>} : vector<64x3xbf16>, vector<3x128xbf16>, vector<64x128xf32> -> vector<64x128xf32>
    %48 = arith.addf %42, %47 : vector<64x128xf32>
    %49 = vector.extract_strided_slice %9 {offsets = [0, 0, 0], sizes = [8, 8, 3], strides = [1, 1, 1]} : vector<8x9x3xbf16> to vector<8x8x3xbf16>
    %50 = vector.shape_cast %49 : vector<8x8x3xbf16> to vector<64x3xbf16>
    %c6 = arith.constant 6 : index
    %c0_42 = arith.constant 0 : index
    %c0_43 = arith.constant 0 : index
    %51 = vector.load %arg8[%c6, %c0_42, %c0_43] : memref<9x3x128xbf16, #tpu.memory_space<vmem>>, vector<1x3x128xbf16>
    %52 = vector.shape_cast %51 : vector<1x3x128xbf16> to vector<3x128xbf16>
    %cst_44 = arith.constant dense<0.000000e+00> : vector<64x128xf32>
    %53 = tpu.matmul %50, %52, %cst_44 {dimension_numbers = #tpu.dot_dimension_numbers<[1], [0], [0], [1], [0, 0, 1, 1], [], []>} : vector<64x3xbf16>, vector<3x128xbf16>, vector<64x128xf32> -> vector<64x128xf32>
    %54 = arith.addf %48, %53 : vector<64x128xf32>
    %55 = vector.extract_strided_slice %11 {offsets = [0, 0, 0], sizes = [8, 8, 3], strides = [1, 1, 1]} : vector<8x9x3xbf16> to vector<8x8x3xbf16>
    %56 = vector.shape_cast %55 : vector<8x8x3xbf16> to vector<64x3xbf16>
    %c7 = arith.constant 7 : index
    %c0_45 = arith.constant 0 : index
    %c0_46 = arith.constant 0 : index
    %57 = vector.load %arg8[%c7, %c0_45, %c0_46] : memref<9x3x128xbf16, #tpu.memory_space<vmem>>, vector<1x3x128xbf16>
    %58 = vector.shape_cast %57 : vector<1x3x128xbf16> to vector<3x128xbf16>
    %cst_47 = arith.constant dense<0.000000e+00> : vector<64x128xf32>
    %59 = tpu.matmul %56, %58, %cst_47 {dimension_numbers = #tpu.dot_dimension_numbers<[1], [0], [0], [1], [0, 0, 1, 1], [], []>} : vector<64x3xbf16>, vector<3x128xbf16>, vector<64x128xf32> -> vector<64x128xf32>
    %60 = arith.addf %54, %59 : vector<64x128xf32>
    %61 = vector.extract_strided_slice %9 {offsets = [0, 1, 0], sizes = [8, 8, 3], strides = [1, 1, 1]} : vector<8x9x3xbf16> to vector<8x8x3xbf16>
    %62 = vector.shape_cast %61 : vector<8x8x3xbf16> to vector<64x3xbf16>
    %c8 = arith.constant 8 : index
    %c0_48 = arith.constant 0 : index
    %c0_49 = arith.constant 0 : index
    %63 = vector.load %arg8[%c8, %c0_48, %c0_49] : memref<9x3x128xbf16, #tpu.memory_space<vmem>>, vector<1x3x128xbf16>
    %64 = vector.shape_cast %63 : vector<1x3x128xbf16> to vector<3x128xbf16>
    %cst_50 = arith.constant dense<0.000000e+00> : vector<64x128xf32>
    %65 = tpu.matmul %62, %64, %cst_50 {dimension_numbers = #tpu.dot_dimension_numbers<[1], [0], [0], [1], [0, 0, 1, 1], [], []>} : vector<64x3xbf16>, vector<3x128xbf16>, vector<64x128xf32> -> vector<64x128xf32>
    %66 = arith.addf %60, %65 : vector<64x128xf32>
    %67 = arith.truncf %66 : vector<64x128xf32> to vector<64x128xbf16>
    %c0_51 = arith.constant 0 : index
    %c0_52 = arith.constant 0 : index
    %c0_53 = arith.constant 0 : index
    %68 = vector.load %arg9[%c0_51, %c0_52, %c0_53] : memref<1x64x128xbf16, #tpu.memory_space<vmem>>, vector<1x64x128xbf16>
    %69 = vector.shape_cast %68 : vector<1x64x128xbf16> to vector<64x128xbf16>
    %70 = vector.shape_cast %67 : vector<64x128xbf16> to vector<1x64x128xbf16>
    tpu.vector_store %arg9[%c0_51, %c0_52, %c0_53], %70 {strides = array<i32>} : memref<1x64x128xbf16, #tpu.memory_space<vmem>>, vector<1x64x128xbf16>,
    %cst_54 = arith.constant dense<0.000000e+00> : vector<128xf32>
    %71 = vector.multi_reduction <add>, %66, %cst_54 [0] : vector<64x128xf32> to vector<128xf32>
    %72 = vector.shape_cast %71 : vector<128xf32> to vector<1x128xf32>
    %c0_55 = arith.constant 0 : index
    %c0_56 = arith.constant 0 : index
    %c0_57 = arith.constant 0 : index
    %73 = vector.load %arg10[%c0_55, %c0_56, %c0_57] : memref<1x2x128xf32, #tpu.memory_space<vmem>>, vector<1x1x128xf32>
    %74 = vector.shape_cast %73 : vector<1x1x128xf32> to vector<1x128xf32>
    %75 = vector.shape_cast %72 : vector<1x128xf32> to vector<1x1x128xf32>
    tpu.vector_store %arg10[%c0_55, %c0_56, %c0_57], %75 {strides = array<i32>} : memref<1x2x128xf32, #tpu.memory_space<vmem>>, vector<1x1x128xf32>,
    %76 = arith.mulf %66, %66 : vector<64x128xf32>
    %cst_58 = arith.constant dense<0.000000e+00> : vector<128xf32>
    %77 = vector.multi_reduction <add>, %76, %cst_58 [0] : vector<64x128xf32> to vector<128xf32>
    %78 = vector.shape_cast %77 : vector<128xf32> to vector<1x128xf32>
    %c0_59 = arith.constant 0 : index
    %c1_60 = arith.constant 1 : index
    %c0_61 = arith.constant 0 : index
    %79 = vector.load %arg10[%c0_59, %c1_60, %c0_61] : memref<1x2x128xf32, #tpu.memory_space<vmem>>, vector<1x1x128xf32>
    %80 = vector.shape_cast %79 : vector<1x1x128xf32> to vector<1x128xf32>
    %81 = vector.shape_cast %78 : vector<1x128xf32> to vector<1x1x128xf32>
    tpu.vector_store %arg10[%c0_59, %c1_60, %c0_61], %81 {strides = array<i32>} : memref<1x2x128xf32, #tpu.memory_space<vmem>>, vector<1x1x128xf32>,
    return
  }
  func.func @transform_0(%arg0: i32, %arg1: i32) -> (i32, i32, i32, i32) {
    %c0_i32 = arith.constant 0 : i32
    %c0_i32_0 = arith.constant 0 : i32
    %c0_i32_1 = arith.constant 0 : i32
    return %arg0, %arg1, %c0_i32, %c0_i32_0 : i32, i32, i32, i32
  }
  func.func @transform_1(%arg0: i32, %arg1: i32) -> (i32, i32, i32, i32) {
    %c0_i32 = arith.constant 0 : i32
    %c0_i32_0 = arith.constant 0 : i32
    %c0_i32_1 = arith.constant 0 : i32
    return %arg0, %arg1, %c0_i32, %c0_i32_0 : i32, i32, i32, i32
  }
  func.func @transform_2(%arg0: i32, %arg1: i32) -> (i32, i32, i32, i32) {
    %c0_i32 = arith.constant 0 : i32
    %c0_i32_0 = arith.constant 0 : i32
    %c0_i32_1 = arith.constant 0 : i32
    return %arg0, %arg1, %c0_i32, %c0_i32_0 : i32, i32, i32, i32
  }
  func.func @transform_3(%arg0: i32, %arg1: i32) -> (i32, i32, i32, i32) {
    %c0_i32 = arith.constant 0 : i32
    %c0_i32_0 = arith.constant 0 : i32
    %c0_i32_1 = arith.constant 0 : i32
    return %arg0, %arg1, %c0_i32, %c0_i32_0 : i32, i32, i32, i32
  }
  func.func @transform_4(%arg0: i32, %arg1: i32) -> (i32, i32, i32, i32) {
    %c0_i32 = arith.constant 0 : i32
    %c0_i32_0 = arith.constant 0 : i32
    %c0_i32_1 = arith.constant 0 : i32
    return %arg0, %arg1, %c0_i32, %c0_i32_0 : i32, i32, i32, i32
  }
  func.func @transform_5(%arg0: i32, %arg1: i32) -> (i32, i32, i32, i32) {
    %c0_i32 = arith.constant 0 : i32
    %c0_i32_0 = arith.constant 0 : i32
    %c0_i32_1 = arith.constant 0 : i32
    return %arg0, %arg1, %c0_i32, %c0_i32_0 : i32, i32, i32, i32
  }
  func.func @transform_6(%arg0: i32, %arg1: i32) -> (i32, i32, i32) {
    %c0_i32 = arith.constant 0 : i32
    %c0_i32_0 = arith.constant 0 : i32
    %c0_i32_1 = arith.constant 0 : i32
    %c0_i32_2 = arith.constant 0 : i32
    return %c0_i32, %c0_i32_0, %c0_i32_1 : i32, i32, i32
  }
  func.func @transform_7(%arg0: i32, %arg1: i32) -> (i32, i32, i32) {
    %c1_i32 = arith.constant 1 : i32
    %0 = arith.muli %arg0, %c1_i32 : i32
    %1 = arith.addi %0, %arg1 : i32
    %c0_i32 = arith.constant 0 : i32
    %c0_i32_0 = arith.constant 0 : i32
    %c0_i32_1 = arith.constant 0 : i32
    return %1, %c0_i32, %c0_i32_0 : i32, i32, i32
  }
  func.func @transform_8(%arg0: i32, %arg1: i32) -> (i32, i32, i32) {
    %c1_i32 = arith.constant 1 : i32
    %0 = arith.muli %arg0, %c1_i32 : i32
    %1 = arith.addi %0, %arg1 : i32
    %c0_i32 = arith.constant 0 : i32
    %c0_i32_0 = arith.constant 0 : i32
    %c0_i32_1 = arith.constant 0 : i32
    return %1, %c0_i32, %c0_i32_0 : i32, i32, i32
  }
}

module attributes {stable_mosaic.version = 11 : i64} {
  func.func @bn_relu_kernel(%arg0: i32, %arg1: memref<2x128xf32, #tpu.memory_space<vmem>>, %arg2: memref<1x128xf32, #tpu.memory_space<vmem>>, %arg3: memref<1x128xf32, #tpu.memory_space<vmem>>, %arg4: memref<1x64x128xbf16, #tpu.memory_space<vmem>>, %arg5: memref<1x64x128xbf16, #tpu.memory_space<vmem>>) attributes {dimension_semantics = [#tpu.dimension_semantics<parallel>], iteration_bounds = array<i64: 2>, scalar_prefetch = 0 : i64, scratch_operands = 0 : i64, tpu.core_type = #tpu.core_type<tc>, window_params = [{pipeline_mode = #tpu.pipeline_mode<synchronous>, transform_indices = @transform_0, window_bounds = array<i64: 2, 128>}, {pipeline_mode = #tpu.pipeline_mode<synchronous>, transform_indices = @transform_1, window_bounds = array<i64: 1, 128>}, {pipeline_mode = #tpu.pipeline_mode<synchronous>, transform_indices = @transform_2, window_bounds = array<i64: 1, 128>}, {transform_indices = @transform_3, window_bounds = array<i64: 1, 64, 128>}, {transform_indices = @transform_4, window_bounds = array<i64: 1, 64, 128>}]} {
    %c0 = arith.constant 0 : index
    %c0_0 = arith.constant 0 : index
    %0 = vector.load %arg1[%c0, %c0_0] : memref<2x128xf32, #tpu.memory_space<vmem>>, vector<1x128xf32>
    %cst = arith.constant 7.812500e-03 : f32
    %1 = vector.broadcast %cst : f32 to vector<1x128xf32>
    %2 = arith.mulf %0, %1 : vector<1x128xf32>
    %c1 = arith.constant 1 : index
    %c0_1 = arith.constant 0 : index
    %3 = vector.load %arg1[%c1, %c0_1] : memref<2x128xf32, #tpu.memory_space<vmem>>, vector<1x128xf32>
    %cst_2 = arith.constant 7.812500e-03 : f32
    %4 = vector.broadcast %cst_2 : f32 to vector<1x128xf32>
    %5 = arith.mulf %3, %4 : vector<1x128xf32>
    %6 = arith.mulf %2, %2 : vector<1x128xf32>
    %7 = arith.subf %5, %6 : vector<1x128xf32>
    %cst_3 = arith.constant 0.000000e+00 : f32
    %8 = vector.broadcast %cst_3 : f32 to vector<1x128xf32>
    %9 = arith.maximumf %7, %8 : vector<1x128xf32>
    %c0_4 = arith.constant 0 : index
    %c0_5 = arith.constant 0 : index
    %10 = vector.load %arg2[%c0_4, %c0_5] : memref<1x128xf32, #tpu.memory_space<vmem>>, vector<1x128xf32>
    %cst_6 = arith.constant 9.99999974E-6 : f32
    %11 = vector.broadcast %cst_6 : f32 to vector<1x128xf32>
    %12 = arith.addf %9, %11 : vector<1x128xf32>
    %13 = math.rsqrt %12 : vector<1x128xf32>
    %14 = arith.mulf %10, %13 : vector<1x128xf32>
    %c0_7 = arith.constant 0 : index
    %c0_8 = arith.constant 0 : index
    %15 = vector.load %arg3[%c0_7, %c0_8] : memref<1x128xf32, #tpu.memory_space<vmem>>, vector<1x128xf32>
    %16 = arith.mulf %2, %14 : vector<1x128xf32>
    %17 = arith.subf %15, %16 : vector<1x128xf32>
    %c0_9 = arith.constant 0 : index
    %c0_10 = arith.constant 0 : index
    %c0_11 = arith.constant 0 : index
    %18 = vector.load %arg4[%c0_9, %c0_10, %c0_11] : memref<1x64x128xbf16, #tpu.memory_space<vmem>>, vector<1x64x128xbf16>
    %19 = vector.shape_cast %18 : vector<1x64x128xbf16> to vector<64x128xbf16>
    %20 = arith.extf %19 : vector<64x128xbf16> to vector<64x128xf32>
    %21 = vector.broadcast %14 : vector<1x128xf32> to vector<64x128xf32>
    %22 = arith.mulf %20, %21 : vector<64x128xf32>
    %23 = vector.broadcast %17 : vector<1x128xf32> to vector<64x128xf32>
    %24 = arith.addf %22, %23 : vector<64x128xf32>
    %cst_12 = arith.constant 0.000000e+00 : f32
    %25 = vector.broadcast %cst_12 : f32 to vector<64x128xf32>
    %26 = arith.maximumf %24, %25 : vector<64x128xf32>
    %27 = arith.truncf %26 : vector<64x128xf32> to vector<64x128xbf16>
    %c0_13 = arith.constant 0 : index
    %c0_14 = arith.constant 0 : index
    %c0_15 = arith.constant 0 : index
    %28 = vector.load %arg5[%c0_13, %c0_14, %c0_15] : memref<1x64x128xbf16, #tpu.memory_space<vmem>>, vector<1x64x128xbf16>
    %29 = vector.shape_cast %28 : vector<1x64x128xbf16> to vector<64x128xbf16>
    %30 = vector.shape_cast %27 : vector<64x128xbf16> to vector<1x64x128xbf16>
    tpu.vector_store %arg5[%c0_13, %c0_14, %c0_15], %30 {strides = array<i32>} : memref<1x64x128xbf16, #tpu.memory_space<vmem>>, vector<1x64x128xbf16>,
    return
  }
  func.func @transform_0(%arg0: i32) -> (i32, i32) {
    %c0_i32 = arith.constant 0 : i32
    %c0_i32_0 = arith.constant 0 : i32
    %c0_i32_1 = arith.constant 0 : i32
    return %c0_i32, %c0_i32_0 : i32, i32
  }
  func.func @transform_1(%arg0: i32) -> (i32, i32) {
    %c0_i32 = arith.constant 0 : i32
    %c0_i32_0 = arith.constant 0 : i32
    %c0_i32_1 = arith.constant 0 : i32
    return %c0_i32, %c0_i32_0 : i32, i32
  }
  func.func @transform_2(%arg0: i32) -> (i32, i32) {
    %c0_i32 = arith.constant 0 : i32
    %c0_i32_0 = arith.constant 0 : i32
    %c0_i32_1 = arith.constant 0 : i32
    return %c0_i32, %c0_i32_0 : i32, i32
  }
  func.func @transform_3(%arg0: i32) -> (i32, i32, i32) {
    %c0_i32 = arith.constant 0 : i32
    %c0_i32_0 = arith.constant 0 : i32
    %c0_i32_1 = arith.constant 0 : i32
    return %arg0, %c0_i32, %c0_i32_0 : i32, i32, i32
  }
  func.func @transform_4(%arg0: i32) -> (i32, i32, i32) {
    %c0_i32 = arith.constant 0 : i32
    %c0_i32_0 = arith.constant 0 : i32
    %c0_i32_1 = arith.constant 0 : i32
    return %arg0, %c0_i32, %c0_i32_0 : i32, i32, i32
  }
}

module attributes {stable_mosaic.version = 11 : i64} {
  func.func @conv_stats_kernel(%arg0: i32, %arg1: i32, %arg2: memref<1x4x5x64xbf16, #tpu.memory_space<vmem>>, %arg3: memref<1x4x5x64xbf16, #tpu.memory_space<vmem>>, %arg4: memref<1x4x5x64xbf16, #tpu.memory_space<vmem>>, %arg5: memref<1x4x5x64xbf16, #tpu.memory_space<vmem>>, %arg6: memref<1x4x5x64xbf16, #tpu.memory_space<vmem>>, %arg7: memref<1x4x5x64xbf16, #tpu.memory_space<vmem>>, %arg8: memref<9x64x128xbf16, #tpu.memory_space<vmem>>, %arg9: memref<1x16x128xbf16, #tpu.memory_space<vmem>>, %arg10: memref<1x2x128xf32, #tpu.memory_space<vmem>>) attributes {dimension_semantics = [#tpu.dimension_semantics<parallel>, #tpu.dimension_semantics<parallel>], iteration_bounds = array<i64: 2, 1>, scalar_prefetch = 0 : i64, scratch_operands = 0 : i64, tpu.core_type = #tpu.core_type<tc>, window_params = [{transform_indices = @transform_0, window_bounds = array<i64: 1, 4, 5, 64>}, {transform_indices = @transform_1, window_bounds = array<i64: 1, 4, 5, 64>}, {transform_indices = @transform_2, window_bounds = array<i64: 1, 4, 5, 64>}, {transform_indices = @transform_3, window_bounds = array<i64: 1, 4, 5, 64>}, {transform_indices = @transform_4, window_bounds = array<i64: 1, 4, 5, 64>}, {transform_indices = @transform_5, window_bounds = array<i64: 1, 4, 5, 64>}, {pipeline_mode = #tpu.pipeline_mode<synchronous>, transform_indices = @transform_6, window_bounds = array<i64: 9, 64, 128>}, {transform_indices = @transform_7, window_bounds = array<i64: 1, 16, 128>}, {transform_indices = @transform_8, window_bounds = array<i64: 1, 2, 128>}]} {
    %c0 = arith.constant 0 : index
    %c0_0 = arith.constant 0 : index
    %c0_1 = arith.constant 0 : index
    %c0_2 = arith.constant 0 : index
    %0 = vector.load %arg2[%c0, %c0_0, %c0_1, %c0_2] : memref<1x4x5x64xbf16, #tpu.memory_space<vmem>>, vector<1x4x5x64xbf16>
    %1 = vector.shape_cast %0 : vector<1x4x5x64xbf16> to vector<4x5x64xbf16>
    %c0_3 = arith.constant 0 : index
    %c0_4 = arith.constant 0 : index
    %c0_5 = arith.constant 0 : index
    %c0_6 = arith.constant 0 : index
    %2 = vector.load %arg3[%c0_3, %c0_4, %c0_5, %c0_6] : memref<1x4x5x64xbf16, #tpu.memory_space<vmem>>, vector<1x4x5x64xbf16>
    %3 = vector.shape_cast %2 : vector<1x4x5x64xbf16> to vector<4x5x64xbf16>
    %c0_7 = arith.constant 0 : index
    %c0_8 = arith.constant 0 : index
    %c0_9 = arith.constant 0 : index
    %c0_10 = arith.constant 0 : index
    %4 = vector.load %arg4[%c0_7, %c0_8, %c0_9, %c0_10] : memref<1x4x5x64xbf16, #tpu.memory_space<vmem>>, vector<1x4x5x64xbf16>
    %5 = vector.shape_cast %4 : vector<1x4x5x64xbf16> to vector<4x5x64xbf16>
    %c0_11 = arith.constant 0 : index
    %c0_12 = arith.constant 0 : index
    %c0_13 = arith.constant 0 : index
    %c0_14 = arith.constant 0 : index
    %6 = vector.load %arg5[%c0_11, %c0_12, %c0_13, %c0_14] : memref<1x4x5x64xbf16, #tpu.memory_space<vmem>>, vector<1x4x5x64xbf16>
    %7 = vector.shape_cast %6 : vector<1x4x5x64xbf16> to vector<4x5x64xbf16>
    %c0_15 = arith.constant 0 : index
    %c0_16 = arith.constant 0 : index
    %c0_17 = arith.constant 0 : index
    %c0_18 = arith.constant 0 : index
    %8 = vector.load %arg6[%c0_15, %c0_16, %c0_17, %c0_18] : memref<1x4x5x64xbf16, #tpu.memory_space<vmem>>, vector<1x4x5x64xbf16>
    %9 = vector.shape_cast %8 : vector<1x4x5x64xbf16> to vector<4x5x64xbf16>
    %c0_19 = arith.constant 0 : index
    %c0_20 = arith.constant 0 : index
    %c0_21 = arith.constant 0 : index
    %c0_22 = arith.constant 0 : index
    %10 = vector.load %arg7[%c0_19, %c0_20, %c0_21, %c0_22] : memref<1x4x5x64xbf16, #tpu.memory_space<vmem>>, vector<1x4x5x64xbf16>
    %11 = vector.shape_cast %10 : vector<1x4x5x64xbf16> to vector<4x5x64xbf16>
    %cst = arith.constant 0.000000e+00 : f32
    %12 = vector.broadcast %cst : f32 to vector<16x128xf32>
    %13 = vector.extract_strided_slice %1 {offsets = [0, 0, 0], sizes = [4, 4, 64], strides = [1, 1, 1]} : vector<4x5x64xbf16> to vector<4x4x64xbf16>
    %14 = vector.shape_cast %13 : vector<4x4x64xbf16> to vector<16x64xbf16>
    %c0_23 = arith.constant 0 : index
    %c0_24 = arith.constant 0 : index
    %c0_25 = arith.constant 0 : index
    %15 = vector.load %arg8[%c0_23, %c0_24, %c0_25] : memref<9x64x128xbf16, #tpu.memory_space<vmem>>, vector<1x64x128xbf16>
    %16 = vector.shape_cast %15 : vector<1x64x128xbf16> to vector<64x128xbf16>
    %cst_26 = arith.constant dense<0.000000e+00> : vector<16x128xf32>
    %17 = tpu.matmul %14, %16, %cst_26 {dimension_numbers = #tpu.dot_dimension_numbers<[1], [0], [0], [1], [0, 0, 1, 1], [], []>} : vector<16x64xbf16>, vector<64x128xbf16>, vector<16x128xf32> -> vector<16x128xf32>
    %18 = arith.addf %12, %17 : vector<16x128xf32>
    %19 = vector.extract_strided_slice %3 {offsets = [0, 0, 0], sizes = [4, 4, 64], strides = [1, 1, 1]} : vector<4x5x64xbf16> to vector<4x4x64xbf16>
    %20 = vector.shape_cast %19 : vector<4x4x64xbf16> to vector<16x64xbf16>
    %c1 = arith.constant 1 : index
    %c0_27 = arith.constant 0 : index
    %c0_28 = arith.constant 0 : index
    %21 = vector.load %arg8[%c1, %c0_27, %c0_28] : memref<9x64x128xbf16, #tpu.memory_space<vmem>>, vector<1x64x128xbf16>
    %22 = vector.shape_cast %21 : vector<1x64x128xbf16> to vector<64x128xbf16>
    %cst_29 = arith.constant dense<0.000000e+00> : vector<16x128xf32>
    %23 = tpu.matmul %20, %22, %cst_29 {dimension_numbers = #tpu.dot_dimension_numbers<[1], [0], [0], [1], [0, 0, 1, 1], [], []>} : vector<16x64xbf16>, vector<64x128xbf16>, vector<16x128xf32> -> vector<16x128xf32>
    %24 = arith.addf %18, %23 : vector<16x128xf32>
    %25 = vector.extract_strided_slice %1 {offsets = [0, 1, 0], sizes = [4, 4, 64], strides = [1, 1, 1]} : vector<4x5x64xbf16> to vector<4x4x64xbf16>
    %26 = vector.shape_cast %25 : vector<4x4x64xbf16> to vector<16x64xbf16>
    %c2 = arith.constant 2 : index
    %c0_30 = arith.constant 0 : index
    %c0_31 = arith.constant 0 : index
    %27 = vector.load %arg8[%c2, %c0_30, %c0_31] : memref<9x64x128xbf16, #tpu.memory_space<vmem>>, vector<1x64x128xbf16>
    %28 = vector.shape_cast %27 : vector<1x64x128xbf16> to vector<64x128xbf16>
    %cst_32 = arith.constant dense<0.000000e+00> : vector<16x128xf32>
    %29 = tpu.matmul %26, %28, %cst_32 {dimension_numbers = #tpu.dot_dimension_numbers<[1], [0], [0], [1], [0, 0, 1, 1], [], []>} : vector<16x64xbf16>, vector<64x128xbf16>, vector<16x128xf32> -> vector<16x128xf32>
    %30 = arith.addf %24, %29 : vector<16x128xf32>
    %31 = vector.extract_strided_slice %5 {offsets = [0, 0, 0], sizes = [4, 4, 64], strides = [1, 1, 1]} : vector<4x5x64xbf16> to vector<4x4x64xbf16>
    %32 = vector.shape_cast %31 : vector<4x4x64xbf16> to vector<16x64xbf16>
    %c3 = arith.constant 3 : index
    %c0_33 = arith.constant 0 : index
    %c0_34 = arith.constant 0 : index
    %33 = vector.load %arg8[%c3, %c0_33, %c0_34] : memref<9x64x128xbf16, #tpu.memory_space<vmem>>, vector<1x64x128xbf16>
    %34 = vector.shape_cast %33 : vector<1x64x128xbf16> to vector<64x128xbf16>
    %cst_35 = arith.constant dense<0.000000e+00> : vector<16x128xf32>
    %35 = tpu.matmul %32, %34, %cst_35 {dimension_numbers = #tpu.dot_dimension_numbers<[1], [0], [0], [1], [0, 0, 1, 1], [], []>} : vector<16x64xbf16>, vector<64x128xbf16>, vector<16x128xf32> -> vector<16x128xf32>
    %36 = arith.addf %30, %35 : vector<16x128xf32>
    %37 = vector.extract_strided_slice %7 {offsets = [0, 0, 0], sizes = [4, 4, 64], strides = [1, 1, 1]} : vector<4x5x64xbf16> to vector<4x4x64xbf16>
    %38 = vector.shape_cast %37 : vector<4x4x64xbf16> to vector<16x64xbf16>
    %c4 = arith.constant 4 : index
    %c0_36 = arith.constant 0 : index
    %c0_37 = arith.constant 0 : index
    %39 = vector.load %arg8[%c4, %c0_36, %c0_37] : memref<9x64x128xbf16, #tpu.memory_space<vmem>>, vector<1x64x128xbf16>
    %40 = vector.shape_cast %39 : vector<1x64x128xbf16> to vector<64x128xbf16>
    %cst_38 = arith.constant dense<0.000000e+00> : vector<16x128xf32>
    %41 = tpu.matmul %38, %40, %cst_38 {dimension_numbers = #tpu.dot_dimension_numbers<[1], [0], [0], [1], [0, 0, 1, 1], [], []>} : vector<16x64xbf16>, vector<64x128xbf16>, vector<16x128xf32> -> vector<16x128xf32>
    %42 = arith.addf %36, %41 : vector<16x128xf32>
    %43 = vector.extract_strided_slice %5 {offsets = [0, 1, 0], sizes = [4, 4, 64], strides = [1, 1, 1]} : vector<4x5x64xbf16> to vector<4x4x64xbf16>
    %44 = vector.shape_cast %43 : vector<4x4x64xbf16> to vector<16x64xbf16>
    %c5 = arith.constant 5 : index
    %c0_39 = arith.constant 0 : index
    %c0_40 = arith.constant 0 : index
    %45 = vector.load %arg8[%c5, %c0_39, %c0_40] : memref<9x64x128xbf16, #tpu.memory_space<vmem>>, vector<1x64x128xbf16>
    %46 = vector.shape_cast %45 : vector<1x64x128xbf16> to vector<64x128xbf16>
    %cst_41 = arith.constant dense<0.000000e+00> : vector<16x128xf32>
    %47 = tpu.matmul %44, %46, %cst_41 {dimension_numbers = #tpu.dot_dimension_numbers<[1], [0], [0], [1], [0, 0, 1, 1], [], []>} : vector<16x64xbf16>, vector<64x128xbf16>, vector<16x128xf32> -> vector<16x128xf32>
    %48 = arith.addf %42, %47 : vector<16x128xf32>
    %49 = vector.extract_strided_slice %9 {offsets = [0, 0, 0], sizes = [4, 4, 64], strides = [1, 1, 1]} : vector<4x5x64xbf16> to vector<4x4x64xbf16>
    %50 = vector.shape_cast %49 : vector<4x4x64xbf16> to vector<16x64xbf16>
    %c6 = arith.constant 6 : index
    %c0_42 = arith.constant 0 : index
    %c0_43 = arith.constant 0 : index
    %51 = vector.load %arg8[%c6, %c0_42, %c0_43] : memref<9x64x128xbf16, #tpu.memory_space<vmem>>, vector<1x64x128xbf16>
    %52 = vector.shape_cast %51 : vector<1x64x128xbf16> to vector<64x128xbf16>
    %cst_44 = arith.constant dense<0.000000e+00> : vector<16x128xf32>
    %53 = tpu.matmul %50, %52, %cst_44 {dimension_numbers = #tpu.dot_dimension_numbers<[1], [0], [0], [1], [0, 0, 1, 1], [], []>} : vector<16x64xbf16>, vector<64x128xbf16>, vector<16x128xf32> -> vector<16x128xf32>
    %54 = arith.addf %48, %53 : vector<16x128xf32>
    %55 = vector.extract_strided_slice %11 {offsets = [0, 0, 0], sizes = [4, 4, 64], strides = [1, 1, 1]} : vector<4x5x64xbf16> to vector<4x4x64xbf16>
    %56 = vector.shape_cast %55 : vector<4x4x64xbf16> to vector<16x64xbf16>
    %c7 = arith.constant 7 : index
    %c0_45 = arith.constant 0 : index
    %c0_46 = arith.constant 0 : index
    %57 = vector.load %arg8[%c7, %c0_45, %c0_46] : memref<9x64x128xbf16, #tpu.memory_space<vmem>>, vector<1x64x128xbf16>
    %58 = vector.shape_cast %57 : vector<1x64x128xbf16> to vector<64x128xbf16>
    %cst_47 = arith.constant dense<0.000000e+00> : vector<16x128xf32>
    %59 = tpu.matmul %56, %58, %cst_47 {dimension_numbers = #tpu.dot_dimension_numbers<[1], [0], [0], [1], [0, 0, 1, 1], [], []>} : vector<16x64xbf16>, vector<64x128xbf16>, vector<16x128xf32> -> vector<16x128xf32>
    %60 = arith.addf %54, %59 : vector<16x128xf32>
    %61 = vector.extract_strided_slice %9 {offsets = [0, 1, 0], sizes = [4, 4, 64], strides = [1, 1, 1]} : vector<4x5x64xbf16> to vector<4x4x64xbf16>
    %62 = vector.shape_cast %61 : vector<4x4x64xbf16> to vector<16x64xbf16>
    %c8 = arith.constant 8 : index
    %c0_48 = arith.constant 0 : index
    %c0_49 = arith.constant 0 : index
    %63 = vector.load %arg8[%c8, %c0_48, %c0_49] : memref<9x64x128xbf16, #tpu.memory_space<vmem>>, vector<1x64x128xbf16>
    %64 = vector.shape_cast %63 : vector<1x64x128xbf16> to vector<64x128xbf16>
    %cst_50 = arith.constant dense<0.000000e+00> : vector<16x128xf32>
    %65 = tpu.matmul %62, %64, %cst_50 {dimension_numbers = #tpu.dot_dimension_numbers<[1], [0], [0], [1], [0, 0, 1, 1], [], []>} : vector<16x64xbf16>, vector<64x128xbf16>, vector<16x128xf32> -> vector<16x128xf32>
    %66 = arith.addf %60, %65 : vector<16x128xf32>
    %67 = arith.truncf %66 : vector<16x128xf32> to vector<16x128xbf16>
    %c0_51 = arith.constant 0 : index
    %c0_52 = arith.constant 0 : index
    %c0_53 = arith.constant 0 : index
    %68 = vector.load %arg9[%c0_51, %c0_52, %c0_53] : memref<1x16x128xbf16, #tpu.memory_space<vmem>>, vector<1x16x128xbf16>
    %69 = vector.shape_cast %68 : vector<1x16x128xbf16> to vector<16x128xbf16>
    %70 = vector.shape_cast %67 : vector<16x128xbf16> to vector<1x16x128xbf16>
    tpu.vector_store %arg9[%c0_51, %c0_52, %c0_53], %70 {strides = array<i32>} : memref<1x16x128xbf16, #tpu.memory_space<vmem>>, vector<1x16x128xbf16>,
    %cst_54 = arith.constant dense<0.000000e+00> : vector<128xf32>
    %71 = vector.multi_reduction <add>, %66, %cst_54 [0] : vector<16x128xf32> to vector<128xf32>
    %72 = vector.shape_cast %71 : vector<128xf32> to vector<1x128xf32>
    %c0_55 = arith.constant 0 : index
    %c0_56 = arith.constant 0 : index
    %c0_57 = arith.constant 0 : index
    %73 = vector.load %arg10[%c0_55, %c0_56, %c0_57] : memref<1x2x128xf32, #tpu.memory_space<vmem>>, vector<1x1x128xf32>
    %74 = vector.shape_cast %73 : vector<1x1x128xf32> to vector<1x128xf32>
    %75 = vector.shape_cast %72 : vector<1x128xf32> to vector<1x1x128xf32>
    tpu.vector_store %arg10[%c0_55, %c0_56, %c0_57], %75 {strides = array<i32>} : memref<1x2x128xf32, #tpu.memory_space<vmem>>, vector<1x1x128xf32>,
    %76 = arith.mulf %66, %66 : vector<16x128xf32>
    %cst_58 = arith.constant dense<0.000000e+00> : vector<128xf32>
    %77 = vector.multi_reduction <add>, %76, %cst_58 [0] : vector<16x128xf32> to vector<128xf32>
    %78 = vector.shape_cast %77 : vector<128xf32> to vector<1x128xf32>
    %c0_59 = arith.constant 0 : index
    %c1_60 = arith.constant 1 : index
    %c0_61 = arith.constant 0 : index
    %79 = vector.load %arg10[%c0_59, %c1_60, %c0_61] : memref<1x2x128xf32, #tpu.memory_space<vmem>>, vector<1x1x128xf32>
    %80 = vector.shape_cast %79 : vector<1x1x128xf32> to vector<1x128xf32>
    %81 = vector.shape_cast %78 : vector<1x128xf32> to vector<1x1x128xf32>
    tpu.vector_store %arg10[%c0_59, %c1_60, %c0_61], %81 {strides = array<i32>} : memref<1x2x128xf32, #tpu.memory_space<vmem>>, vector<1x1x128xf32>,
    return
  }
  func.func @transform_0(%arg0: i32, %arg1: i32) -> (i32, i32, i32, i32) {
    %c0_i32 = arith.constant 0 : i32
    %c0_i32_0 = arith.constant 0 : i32
    %c0_i32_1 = arith.constant 0 : i32
    return %arg0, %arg1, %c0_i32, %c0_i32_0 : i32, i32, i32, i32
  }
  func.func @transform_1(%arg0: i32, %arg1: i32) -> (i32, i32, i32, i32) {
    %c0_i32 = arith.constant 0 : i32
    %c0_i32_0 = arith.constant 0 : i32
    %c0_i32_1 = arith.constant 0 : i32
    return %arg0, %arg1, %c0_i32, %c0_i32_0 : i32, i32, i32, i32
  }
  func.func @transform_2(%arg0: i32, %arg1: i32) -> (i32, i32, i32, i32) {
    %c0_i32 = arith.constant 0 : i32
    %c0_i32_0 = arith.constant 0 : i32
    %c0_i32_1 = arith.constant 0 : i32
    return %arg0, %arg1, %c0_i32, %c0_i32_0 : i32, i32, i32, i32
  }
  func.func @transform_3(%arg0: i32, %arg1: i32) -> (i32, i32, i32, i32) {
    %c0_i32 = arith.constant 0 : i32
    %c0_i32_0 = arith.constant 0 : i32
    %c0_i32_1 = arith.constant 0 : i32
    return %arg0, %arg1, %c0_i32, %c0_i32_0 : i32, i32, i32, i32
  }
  func.func @transform_4(%arg0: i32, %arg1: i32) -> (i32, i32, i32, i32) {
    %c0_i32 = arith.constant 0 : i32
    %c0_i32_0 = arith.constant 0 : i32
    %c0_i32_1 = arith.constant 0 : i32
    return %arg0, %arg1, %c0_i32, %c0_i32_0 : i32, i32, i32, i32
  }
  func.func @transform_5(%arg0: i32, %arg1: i32) -> (i32, i32, i32, i32) {
    %c0_i32 = arith.constant 0 : i32
    %c0_i32_0 = arith.constant 0 : i32
    %c0_i32_1 = arith.constant 0 : i32
    return %arg0, %arg1, %c0_i32, %c0_i32_0 : i32, i32, i32, i32
  }
  func.func @transform_6(%arg0: i32, %arg1: i32) -> (i32, i32, i32) {
    %c0_i32 = arith.constant 0 : i32
    %c0_i32_0 = arith.constant 0 : i32
    %c0_i32_1 = arith.constant 0 : i32
    %c0_i32_2 = arith.constant 0 : i32
    return %c0_i32, %c0_i32_0, %c0_i32_1 : i32, i32, i32
  }
  func.func @transform_7(%arg0: i32, %arg1: i32) -> (i32, i32, i32) {
    %c1_i32 = arith.constant 1 : i32
    %0 = arith.muli %arg0, %c1_i32 : i32
    %1 = arith.addi %0, %arg1 : i32
    %c0_i32 = arith.constant 0 : i32
    %c0_i32_0 = arith.constant 0 : i32
    %c0_i32_1 = arith.constant 0 : i32
    return %1, %c0_i32, %c0_i32_0 : i32, i32, i32
  }
  func.func @transform_8(%arg0: i32, %arg1: i32) -> (i32, i32, i32) {
    %c1_i32 = arith.constant 1 : i32
    %0 = arith.muli %arg0, %c1_i32 : i32
    %1 = arith.addi %0, %arg1 : i32
    %c0_i32 = arith.constant 0 : i32
    %c0_i32_0 = arith.constant 0 : i32
    %c0_i32_1 = arith.constant 0 : i32
    return %1, %c0_i32, %c0_i32_0 : i32, i32, i32
  }
}

module attributes {stable_mosaic.version = 11 : i64} {
  func.func @bn_relu_kernel(%arg0: i32, %arg1: memref<2x128xf32, #tpu.memory_space<vmem>>, %arg2: memref<1x128xf32, #tpu.memory_space<vmem>>, %arg3: memref<1x128xf32, #tpu.memory_space<vmem>>, %arg4: memref<1x16x128xbf16, #tpu.memory_space<vmem>>, %arg5: memref<1x16x128xbf16, #tpu.memory_space<vmem>>) attributes {dimension_semantics = [#tpu.dimension_semantics<parallel>], iteration_bounds = array<i64: 2>, scalar_prefetch = 0 : i64, scratch_operands = 0 : i64, tpu.core_type = #tpu.core_type<tc>, window_params = [{pipeline_mode = #tpu.pipeline_mode<synchronous>, transform_indices = @transform_0, window_bounds = array<i64: 2, 128>}, {pipeline_mode = #tpu.pipeline_mode<synchronous>, transform_indices = @transform_1, window_bounds = array<i64: 1, 128>}, {pipeline_mode = #tpu.pipeline_mode<synchronous>, transform_indices = @transform_2, window_bounds = array<i64: 1, 128>}, {transform_indices = @transform_3, window_bounds = array<i64: 1, 16, 128>}, {transform_indices = @transform_4, window_bounds = array<i64: 1, 16, 128>}]} {
    %c0 = arith.constant 0 : index
    %c0_0 = arith.constant 0 : index
    %0 = vector.load %arg1[%c0, %c0_0] : memref<2x128xf32, #tpu.memory_space<vmem>>, vector<1x128xf32>
    %cst = arith.constant 3.125000e-02 : f32
    %1 = vector.broadcast %cst : f32 to vector<1x128xf32>
    %2 = arith.mulf %0, %1 : vector<1x128xf32>
    %c1 = arith.constant 1 : index
    %c0_1 = arith.constant 0 : index
    %3 = vector.load %arg1[%c1, %c0_1] : memref<2x128xf32, #tpu.memory_space<vmem>>, vector<1x128xf32>
    %cst_2 = arith.constant 3.125000e-02 : f32
    %4 = vector.broadcast %cst_2 : f32 to vector<1x128xf32>
    %5 = arith.mulf %3, %4 : vector<1x128xf32>
    %6 = arith.mulf %2, %2 : vector<1x128xf32>
    %7 = arith.subf %5, %6 : vector<1x128xf32>
    %cst_3 = arith.constant 0.000000e+00 : f32
    %8 = vector.broadcast %cst_3 : f32 to vector<1x128xf32>
    %9 = arith.maximumf %7, %8 : vector<1x128xf32>
    %c0_4 = arith.constant 0 : index
    %c0_5 = arith.constant 0 : index
    %10 = vector.load %arg2[%c0_4, %c0_5] : memref<1x128xf32, #tpu.memory_space<vmem>>, vector<1x128xf32>
    %cst_6 = arith.constant 9.99999974E-6 : f32
    %11 = vector.broadcast %cst_6 : f32 to vector<1x128xf32>
    %12 = arith.addf %9, %11 : vector<1x128xf32>
    %13 = math.rsqrt %12 : vector<1x128xf32>
    %14 = arith.mulf %10, %13 : vector<1x128xf32>
    %c0_7 = arith.constant 0 : index
    %c0_8 = arith.constant 0 : index
    %15 = vector.load %arg3[%c0_7, %c0_8] : memref<1x128xf32, #tpu.memory_space<vmem>>, vector<1x128xf32>
    %16 = arith.mulf %2, %14 : vector<1x128xf32>
    %17 = arith.subf %15, %16 : vector<1x128xf32>
    %c0_9 = arith.constant 0 : index
    %c0_10 = arith.constant 0 : index
    %c0_11 = arith.constant 0 : index
    %18 = vector.load %arg4[%c0_9, %c0_10, %c0_11] : memref<1x16x128xbf16, #tpu.memory_space<vmem>>, vector<1x16x128xbf16>
    %19 = vector.shape_cast %18 : vector<1x16x128xbf16> to vector<16x128xbf16>
    %20 = arith.extf %19 : vector<16x128xbf16> to vector<16x128xf32>
    %21 = vector.broadcast %14 : vector<1x128xf32> to vector<16x128xf32>
    %22 = arith.mulf %20, %21 : vector<16x128xf32>
    %23 = vector.broadcast %17 : vector<1x128xf32> to vector<16x128xf32>
    %24 = arith.addf %22, %23 : vector<16x128xf32>
    %cst_12 = arith.constant 0.000000e+00 : f32
    %25 = vector.broadcast %cst_12 : f32 to vector<16x128xf32>
    %26 = arith.maximumf %24, %25 : vector<16x128xf32>
    %27 = arith.truncf %26 : vector<16x128xf32> to vector<16x128xbf16>
    %c0_13 = arith.constant 0 : index
    %c0_14 = arith.constant 0 : index
    %c0_15 = arith.constant 0 : index
    %28 = vector.load %arg5[%c0_13, %c0_14, %c0_15] : memref<1x16x128xbf16, #tpu.memory_space<vmem>>, vector<1x16x128xbf16>
    %29 = vector.shape_cast %28 : vector<1x16x128xbf16> to vector<16x128xbf16>
    %30 = vector.shape_cast %27 : vector<16x128xbf16> to vector<1x16x128xbf16>
    tpu.vector_store %arg5[%c0_13, %c0_14, %c0_15], %30 {strides = array<i32>} : memref<1x16x128xbf16, #tpu.memory_space<vmem>>, vector<1x16x128xbf16>,
    return
  }
  func.func @transform_0(%arg0: i32) -> (i32, i32) {
    %c0_i32 = arith.constant 0 : i32
    %c0_i32_0 = arith.constant 0 : i32
    %c0_i32_1 = arith.constant 0 : i32
    return %c0_i32, %c0_i32_0 : i32, i32
  }
  func.func @transform_1(%arg0: i32) -> (i32, i32) {
    %c0_i32 = arith.constant 0 : i32
    %c0_i32_0 = arith.constant 0 : i32
    %c0_i32_1 = arith.constant 0 : i32
    return %c0_i32, %c0_i32_0 : i32, i32
  }
  func.func @transform_2(%arg0: i32) -> (i32, i32) {
    %c0_i32 = arith.constant 0 : i32
    %c0_i32_0 = arith.constant 0 : i32
    %c0_i32_1 = arith.constant 0 : i32
    return %c0_i32, %c0_i32_0 : i32, i32
  }
  func.func @transform_3(%arg0: i32) -> (i32, i32, i32) {
    %c0_i32 = arith.constant 0 : i32
    %c0_i32_0 = arith.constant 0 : i32
    %c0_i32_1 = arith.constant 0 : i32
    return %arg0, %c0_i32, %c0_i32_0 : i32, i32, i32
  }
  func.func @transform_4(%arg0: i32) -> (i32, i32, i32) {
    %c0_i32 = arith.constant 0 : i32
    %c0_i32_0 = arith.constant 0 : i32
    %c0_i32_1 = arith.constant 0 : i32
    return %arg0, %c0_i32, %c0_i32_0 : i32, i32, i32
  }
}

module attributes {stable_mosaic.version = 11 : i64} {
  func.func @conv_stats_kernel(%arg0: i32, %arg1: i32, %arg2: memref<1x2x3x128xbf16, #tpu.memory_space<vmem>>, %arg3: memref<1x2x3x128xbf16, #tpu.memory_space<vmem>>, %arg4: memref<1x2x3x128xbf16, #tpu.memory_space<vmem>>, %arg5: memref<1x2x3x128xbf16, #tpu.memory_space<vmem>>, %arg6: memref<1x2x3x128xbf16, #tpu.memory_space<vmem>>, %arg7: memref<1x2x3x128xbf16, #tpu.memory_space<vmem>>, %arg8: memref<9x128x256xbf16, #tpu.memory_space<vmem>>, %arg9: memref<1x4x256xbf16, #tpu.memory_space<vmem>>, %arg10: memref<1x2x256xf32, #tpu.memory_space<vmem>>) attributes {dimension_semantics = [#tpu.dimension_semantics<parallel>, #tpu.dimension_semantics<parallel>], iteration_bounds = array<i64: 2, 1>, scalar_prefetch = 0 : i64, scratch_operands = 0 : i64, tpu.core_type = #tpu.core_type<tc>, window_params = [{transform_indices = @transform_0, window_bounds = array<i64: 1, 2, 3, 128>}, {transform_indices = @transform_1, window_bounds = array<i64: 1, 2, 3, 128>}, {transform_indices = @transform_2, window_bounds = array<i64: 1, 2, 3, 128>}, {transform_indices = @transform_3, window_bounds = array<i64: 1, 2, 3, 128>}, {transform_indices = @transform_4, window_bounds = array<i64: 1, 2, 3, 128>}, {transform_indices = @transform_5, window_bounds = array<i64: 1, 2, 3, 128>}, {pipeline_mode = #tpu.pipeline_mode<synchronous>, transform_indices = @transform_6, window_bounds = array<i64: 9, 128, 256>}, {transform_indices = @transform_7, window_bounds = array<i64: 1, 4, 256>}, {transform_indices = @transform_8, window_bounds = array<i64: 1, 2, 256>}]} {
    %c0 = arith.constant 0 : index
    %c0_0 = arith.constant 0 : index
    %c0_1 = arith.constant 0 : index
    %c0_2 = arith.constant 0 : index
    %0 = vector.load %arg2[%c0, %c0_0, %c0_1, %c0_2] : memref<1x2x3x128xbf16, #tpu.memory_space<vmem>>, vector<1x2x3x128xbf16>
    %1 = vector.shape_cast %0 : vector<1x2x3x128xbf16> to vector<2x3x128xbf16>
    %c0_3 = arith.constant 0 : index
    %c0_4 = arith.constant 0 : index
    %c0_5 = arith.constant 0 : index
    %c0_6 = arith.constant 0 : index
    %2 = vector.load %arg3[%c0_3, %c0_4, %c0_5, %c0_6] : memref<1x2x3x128xbf16, #tpu.memory_space<vmem>>, vector<1x2x3x128xbf16>
    %3 = vector.shape_cast %2 : vector<1x2x3x128xbf16> to vector<2x3x128xbf16>
    %c0_7 = arith.constant 0 : index
    %c0_8 = arith.constant 0 : index
    %c0_9 = arith.constant 0 : index
    %c0_10 = arith.constant 0 : index
    %4 = vector.load %arg4[%c0_7, %c0_8, %c0_9, %c0_10] : memref<1x2x3x128xbf16, #tpu.memory_space<vmem>>, vector<1x2x3x128xbf16>
    %5 = vector.shape_cast %4 : vector<1x2x3x128xbf16> to vector<2x3x128xbf16>
    %c0_11 = arith.constant 0 : index
    %c0_12 = arith.constant 0 : index
    %c0_13 = arith.constant 0 : index
    %c0_14 = arith.constant 0 : index
    %6 = vector.load %arg5[%c0_11, %c0_12, %c0_13, %c0_14] : memref<1x2x3x128xbf16, #tpu.memory_space<vmem>>, vector<1x2x3x128xbf16>
    %7 = vector.shape_cast %6 : vector<1x2x3x128xbf16> to vector<2x3x128xbf16>
    %c0_15 = arith.constant 0 : index
    %c0_16 = arith.constant 0 : index
    %c0_17 = arith.constant 0 : index
    %c0_18 = arith.constant 0 : index
    %8 = vector.load %arg6[%c0_15, %c0_16, %c0_17, %c0_18] : memref<1x2x3x128xbf16, #tpu.memory_space<vmem>>, vector<1x2x3x128xbf16>
    %9 = vector.shape_cast %8 : vector<1x2x3x128xbf16> to vector<2x3x128xbf16>
    %c0_19 = arith.constant 0 : index
    %c0_20 = arith.constant 0 : index
    %c0_21 = arith.constant 0 : index
    %c0_22 = arith.constant 0 : index
    %10 = vector.load %arg7[%c0_19, %c0_20, %c0_21, %c0_22] : memref<1x2x3x128xbf16, #tpu.memory_space<vmem>>, vector<1x2x3x128xbf16>
    %11 = vector.shape_cast %10 : vector<1x2x3x128xbf16> to vector<2x3x128xbf16>
    %cst = arith.constant 0.000000e+00 : f32
    %12 = vector.broadcast %cst : f32 to vector<4x256xf32>
    %13 = vector.extract_strided_slice %1 {offsets = [0, 0, 0], sizes = [2, 2, 128], strides = [1, 1, 1]} : vector<2x3x128xbf16> to vector<2x2x128xbf16>
    %14 = vector.shape_cast %13 : vector<2x2x128xbf16> to vector<4x128xbf16>
    %c0_23 = arith.constant 0 : index
    %c0_24 = arith.constant 0 : index
    %c0_25 = arith.constant 0 : index
    %15 = vector.load %arg8[%c0_23, %c0_24, %c0_25] : memref<9x128x256xbf16, #tpu.memory_space<vmem>>, vector<1x128x256xbf16>
    %16 = vector.shape_cast %15 : vector<1x128x256xbf16> to vector<128x256xbf16>
    %cst_26 = arith.constant dense<0.000000e+00> : vector<4x256xf32>
    %17 = tpu.matmul %14, %16, %cst_26 {dimension_numbers = #tpu.dot_dimension_numbers<[1], [0], [0], [1], [0, 0, 1, 1], [], []>} : vector<4x128xbf16>, vector<128x256xbf16>, vector<4x256xf32> -> vector<4x256xf32>
    %18 = arith.addf %12, %17 : vector<4x256xf32>
    %19 = vector.extract_strided_slice %3 {offsets = [0, 0, 0], sizes = [2, 2, 128], strides = [1, 1, 1]} : vector<2x3x128xbf16> to vector<2x2x128xbf16>
    %20 = vector.shape_cast %19 : vector<2x2x128xbf16> to vector<4x128xbf16>
    %c1 = arith.constant 1 : index
    %c0_27 = arith.constant 0 : index
    %c0_28 = arith.constant 0 : index
    %21 = vector.load %arg8[%c1, %c0_27, %c0_28] : memref<9x128x256xbf16, #tpu.memory_space<vmem>>, vector<1x128x256xbf16>
    %22 = vector.shape_cast %21 : vector<1x128x256xbf16> to vector<128x256xbf16>
    %cst_29 = arith.constant dense<0.000000e+00> : vector<4x256xf32>
    %23 = tpu.matmul %20, %22, %cst_29 {dimension_numbers = #tpu.dot_dimension_numbers<[1], [0], [0], [1], [0, 0, 1, 1], [], []>} : vector<4x128xbf16>, vector<128x256xbf16>, vector<4x256xf32> -> vector<4x256xf32>
    %24 = arith.addf %18, %23 : vector<4x256xf32>
    %25 = vector.extract_strided_slice %1 {offsets = [0, 1, 0], sizes = [2, 2, 128], strides = [1, 1, 1]} : vector<2x3x128xbf16> to vector<2x2x128xbf16>
    %26 = vector.shape_cast %25 : vector<2x2x128xbf16> to vector<4x128xbf16>
    %c2 = arith.constant 2 : index
    %c0_30 = arith.constant 0 : index
    %c0_31 = arith.constant 0 : index
    %27 = vector.load %arg8[%c2, %c0_30, %c0_31] : memref<9x128x256xbf16, #tpu.memory_space<vmem>>, vector<1x128x256xbf16>
    %28 = vector.shape_cast %27 : vector<1x128x256xbf16> to vector<128x256xbf16>
    %cst_32 = arith.constant dense<0.000000e+00> : vector<4x256xf32>
    %29 = tpu.matmul %26, %28, %cst_32 {dimension_numbers = #tpu.dot_dimension_numbers<[1], [0], [0], [1], [0, 0, 1, 1], [], []>} : vector<4x128xbf16>, vector<128x256xbf16>, vector<4x256xf32> -> vector<4x256xf32>
    %30 = arith.addf %24, %29 : vector<4x256xf32>
    %31 = vector.extract_strided_slice %5 {offsets = [0, 0, 0], sizes = [2, 2, 128], strides = [1, 1, 1]} : vector<2x3x128xbf16> to vector<2x2x128xbf16>
    %32 = vector.shape_cast %31 : vector<2x2x128xbf16> to vector<4x128xbf16>
    %c3 = arith.constant 3 : index
    %c0_33 = arith.constant 0 : index
    %c0_34 = arith.constant 0 : index
    %33 = vector.load %arg8[%c3, %c0_33, %c0_34] : memref<9x128x256xbf16, #tpu.memory_space<vmem>>, vector<1x128x256xbf16>
    %34 = vector.shape_cast %33 : vector<1x128x256xbf16> to vector<128x256xbf16>
    %cst_35 = arith.constant dense<0.000000e+00> : vector<4x256xf32>
    %35 = tpu.matmul %32, %34, %cst_35 {dimension_numbers = #tpu.dot_dimension_numbers<[1], [0], [0], [1], [0, 0, 1, 1], [], []>} : vector<4x128xbf16>, vector<128x256xbf16>, vector<4x256xf32> -> vector<4x256xf32>
    %36 = arith.addf %30, %35 : vector<4x256xf32>
    %37 = vector.extract_strided_slice %7 {offsets = [0, 0, 0], sizes = [2, 2, 128], strides = [1, 1, 1]} : vector<2x3x128xbf16> to vector<2x2x128xbf16>
    %38 = vector.shape_cast %37 : vector<2x2x128xbf16> to vector<4x128xbf16>
    %c4 = arith.constant 4 : index
    %c0_36 = arith.constant 0 : index
    %c0_37 = arith.constant 0 : index
    %39 = vector.load %arg8[%c4, %c0_36, %c0_37] : memref<9x128x256xbf16, #tpu.memory_space<vmem>>, vector<1x128x256xbf16>
    %40 = vector.shape_cast %39 : vector<1x128x256xbf16> to vector<128x256xbf16>
    %cst_38 = arith.constant dense<0.000000e+00> : vector<4x256xf32>
    %41 = tpu.matmul %38, %40, %cst_38 {dimension_numbers = #tpu.dot_dimension_numbers<[1], [0], [0], [1], [0, 0, 1, 1], [], []>} : vector<4x128xbf16>, vector<128x256xbf16>, vector<4x256xf32> -> vector<4x256xf32>
    %42 = arith.addf %36, %41 : vector<4x256xf32>
    %43 = vector.extract_strided_slice %5 {offsets = [0, 1, 0], sizes = [2, 2, 128], strides = [1, 1, 1]} : vector<2x3x128xbf16> to vector<2x2x128xbf16>
    %44 = vector.shape_cast %43 : vector<2x2x128xbf16> to vector<4x128xbf16>
    %c5 = arith.constant 5 : index
    %c0_39 = arith.constant 0 : index
    %c0_40 = arith.constant 0 : index
    %45 = vector.load %arg8[%c5, %c0_39, %c0_40] : memref<9x128x256xbf16, #tpu.memory_space<vmem>>, vector<1x128x256xbf16>
    %46 = vector.shape_cast %45 : vector<1x128x256xbf16> to vector<128x256xbf16>
    %cst_41 = arith.constant dense<0.000000e+00> : vector<4x256xf32>
    %47 = tpu.matmul %44, %46, %cst_41 {dimension_numbers = #tpu.dot_dimension_numbers<[1], [0], [0], [1], [0, 0, 1, 1], [], []>} : vector<4x128xbf16>, vector<128x256xbf16>, vector<4x256xf32> -> vector<4x256xf32>
    %48 = arith.addf %42, %47 : vector<4x256xf32>
    %49 = vector.extract_strided_slice %9 {offsets = [0, 0, 0], sizes = [2, 2, 128], strides = [1, 1, 1]} : vector<2x3x128xbf16> to vector<2x2x128xbf16>
    %50 = vector.shape_cast %49 : vector<2x2x128xbf16> to vector<4x128xbf16>
    %c6 = arith.constant 6 : index
    %c0_42 = arith.constant 0 : index
    %c0_43 = arith.constant 0 : index
    %51 = vector.load %arg8[%c6, %c0_42, %c0_43] : memref<9x128x256xbf16, #tpu.memory_space<vmem>>, vector<1x128x256xbf16>
    %52 = vector.shape_cast %51 : vector<1x128x256xbf16> to vector<128x256xbf16>
    %cst_44 = arith.constant dense<0.000000e+00> : vector<4x256xf32>
    %53 = tpu.matmul %50, %52, %cst_44 {dimension_numbers = #tpu.dot_dimension_numbers<[1], [0], [0], [1], [0, 0, 1, 1], [], []>} : vector<4x128xbf16>, vector<128x256xbf16>, vector<4x256xf32> -> vector<4x256xf32>
    %54 = arith.addf %48, %53 : vector<4x256xf32>
    %55 = vector.extract_strided_slice %11 {offsets = [0, 0, 0], sizes = [2, 2, 128], strides = [1, 1, 1]} : vector<2x3x128xbf16> to vector<2x2x128xbf16>
    %56 = vector.shape_cast %55 : vector<2x2x128xbf16> to vector<4x128xbf16>
    %c7 = arith.constant 7 : index
    %c0_45 = arith.constant 0 : index
    %c0_46 = arith.constant 0 : index
    %57 = vector.load %arg8[%c7, %c0_45, %c0_46] : memref<9x128x256xbf16, #tpu.memory_space<vmem>>, vector<1x128x256xbf16>
    %58 = vector.shape_cast %57 : vector<1x128x256xbf16> to vector<128x256xbf16>
    %cst_47 = arith.constant dense<0.000000e+00> : vector<4x256xf32>
    %59 = tpu.matmul %56, %58, %cst_47 {dimension_numbers = #tpu.dot_dimension_numbers<[1], [0], [0], [1], [0, 0, 1, 1], [], []>} : vector<4x128xbf16>, vector<128x256xbf16>, vector<4x256xf32> -> vector<4x256xf32>
    %60 = arith.addf %54, %59 : vector<4x256xf32>
    %61 = vector.extract_strided_slice %9 {offsets = [0, 1, 0], sizes = [2, 2, 128], strides = [1, 1, 1]} : vector<2x3x128xbf16> to vector<2x2x128xbf16>
    %62 = vector.shape_cast %61 : vector<2x2x128xbf16> to vector<4x128xbf16>
    %c8 = arith.constant 8 : index
    %c0_48 = arith.constant 0 : index
    %c0_49 = arith.constant 0 : index
    %63 = vector.load %arg8[%c8, %c0_48, %c0_49] : memref<9x128x256xbf16, #tpu.memory_space<vmem>>, vector<1x128x256xbf16>
    %64 = vector.shape_cast %63 : vector<1x128x256xbf16> to vector<128x256xbf16>
    %cst_50 = arith.constant dense<0.000000e+00> : vector<4x256xf32>
    %65 = tpu.matmul %62, %64, %cst_50 {dimension_numbers = #tpu.dot_dimension_numbers<[1], [0], [0], [1], [0, 0, 1, 1], [], []>} : vector<4x128xbf16>, vector<128x256xbf16>, vector<4x256xf32> -> vector<4x256xf32>
    %66 = arith.addf %60, %65 : vector<4x256xf32>
    %67 = arith.truncf %66 : vector<4x256xf32> to vector<4x256xbf16>
    %c0_51 = arith.constant 0 : index
    %c0_52 = arith.constant 0 : index
    %c0_53 = arith.constant 0 : index
    %68 = vector.load %arg9[%c0_51, %c0_52, %c0_53] : memref<1x4x256xbf16, #tpu.memory_space<vmem>>, vector<1x4x256xbf16>
    %69 = vector.shape_cast %68 : vector<1x4x256xbf16> to vector<4x256xbf16>
    %70 = vector.shape_cast %67 : vector<4x256xbf16> to vector<1x4x256xbf16>
    tpu.vector_store %arg9[%c0_51, %c0_52, %c0_53], %70 {strides = array<i32>} : memref<1x4x256xbf16, #tpu.memory_space<vmem>>, vector<1x4x256xbf16>,
    %cst_54 = arith.constant dense<0.000000e+00> : vector<256xf32>
    %71 = vector.multi_reduction <add>, %66, %cst_54 [0] : vector<4x256xf32> to vector<256xf32>
    %72 = vector.shape_cast %71 : vector<256xf32> to vector<1x256xf32>
    %c0_55 = arith.constant 0 : index
    %c0_56 = arith.constant 0 : index
    %c0_57 = arith.constant 0 : index
    %73 = vector.load %arg10[%c0_55, %c0_56, %c0_57] : memref<1x2x256xf32, #tpu.memory_space<vmem>>, vector<1x1x256xf32>
    %74 = vector.shape_cast %73 : vector<1x1x256xf32> to vector<1x256xf32>
    %75 = vector.shape_cast %72 : vector<1x256xf32> to vector<1x1x256xf32>
    tpu.vector_store %arg10[%c0_55, %c0_56, %c0_57], %75 {strides = array<i32>} : memref<1x2x256xf32, #tpu.memory_space<vmem>>, vector<1x1x256xf32>,
    %76 = arith.mulf %66, %66 : vector<4x256xf32>
    %cst_58 = arith.constant dense<0.000000e+00> : vector<256xf32>
    %77 = vector.multi_reduction <add>, %76, %cst_58 [0] : vector<4x256xf32> to vector<256xf32>
    %78 = vector.shape_cast %77 : vector<256xf32> to vector<1x256xf32>
    %c0_59 = arith.constant 0 : index
    %c1_60 = arith.constant 1 : index
    %c0_61 = arith.constant 0 : index
    %79 = vector.load %arg10[%c0_59, %c1_60, %c0_61] : memref<1x2x256xf32, #tpu.memory_space<vmem>>, vector<1x1x256xf32>
    %80 = vector.shape_cast %79 : vector<1x1x256xf32> to vector<1x256xf32>
    %81 = vector.shape_cast %78 : vector<1x256xf32> to vector<1x1x256xf32>
    tpu.vector_store %arg10[%c0_59, %c1_60, %c0_61], %81 {strides = array<i32>} : memref<1x2x256xf32, #tpu.memory_space<vmem>>, vector<1x1x256xf32>,
    return
  }
  func.func @transform_0(%arg0: i32, %arg1: i32) -> (i32, i32, i32, i32) {
    %c0_i32 = arith.constant 0 : i32
    %c0_i32_0 = arith.constant 0 : i32
    %c0_i32_1 = arith.constant 0 : i32
    return %arg0, %arg1, %c0_i32, %c0_i32_0 : i32, i32, i32, i32
  }
  func.func @transform_1(%arg0: i32, %arg1: i32) -> (i32, i32, i32, i32) {
    %c0_i32 = arith.constant 0 : i32
    %c0_i32_0 = arith.constant 0 : i32
    %c0_i32_1 = arith.constant 0 : i32
    return %arg0, %arg1, %c0_i32, %c0_i32_0 : i32, i32, i32, i32
  }
  func.func @transform_2(%arg0: i32, %arg1: i32) -> (i32, i32, i32, i32) {
    %c0_i32 = arith.constant 0 : i32
    %c0_i32_0 = arith.constant 0 : i32
    %c0_i32_1 = arith.constant 0 : i32
    return %arg0, %arg1, %c0_i32, %c0_i32_0 : i32, i32, i32, i32
  }
  func.func @transform_3(%arg0: i32, %arg1: i32) -> (i32, i32, i32, i32) {
    %c0_i32 = arith.constant 0 : i32
    %c0_i32_0 = arith.constant 0 : i32
    %c0_i32_1 = arith.constant 0 : i32
    return %arg0, %arg1, %c0_i32, %c0_i32_0 : i32, i32, i32, i32
  }
  func.func @transform_4(%arg0: i32, %arg1: i32) -> (i32, i32, i32, i32) {
    %c0_i32 = arith.constant 0 : i32
    %c0_i32_0 = arith.constant 0 : i32
    %c0_i32_1 = arith.constant 0 : i32
    return %arg0, %arg1, %c0_i32, %c0_i32_0 : i32, i32, i32, i32
  }
  func.func @transform_5(%arg0: i32, %arg1: i32) -> (i32, i32, i32, i32) {
    %c0_i32 = arith.constant 0 : i32
    %c0_i32_0 = arith.constant 0 : i32
    %c0_i32_1 = arith.constant 0 : i32
    return %arg0, %arg1, %c0_i32, %c0_i32_0 : i32, i32, i32, i32
  }
  func.func @transform_6(%arg0: i32, %arg1: i32) -> (i32, i32, i32) {
    %c0_i32 = arith.constant 0 : i32
    %c0_i32_0 = arith.constant 0 : i32
    %c0_i32_1 = arith.constant 0 : i32
    %c0_i32_2 = arith.constant 0 : i32
    return %c0_i32, %c0_i32_0, %c0_i32_1 : i32, i32, i32
  }
  func.func @transform_7(%arg0: i32, %arg1: i32) -> (i32, i32, i32) {
    %c1_i32 = arith.constant 1 : i32
    %0 = arith.muli %arg0, %c1_i32 : i32
    %1 = arith.addi %0, %arg1 : i32
    %c0_i32 = arith.constant 0 : i32
    %c0_i32_0 = arith.constant 0 : i32
    %c0_i32_1 = arith.constant 0 : i32
    return %1, %c0_i32, %c0_i32_0 : i32, i32, i32
  }
  func.func @transform_8(%arg0: i32, %arg1: i32) -> (i32, i32, i32) {
    %c1_i32 = arith.constant 1 : i32
    %0 = arith.muli %arg0, %c1_i32 : i32
    %1 = arith.addi %0, %arg1 : i32
    %c0_i32 = arith.constant 0 : i32
    %c0_i32_0 = arith.constant 0 : i32
    %c0_i32_1 = arith.constant 0 : i32
    return %1, %c0_i32, %c0_i32_0 : i32, i32, i32
  }
}

module attributes {stable_mosaic.version = 11 : i64} {
  func.func @bn_relu_kernel(%arg0: i32, %arg1: memref<2x256xf32, #tpu.memory_space<vmem>>, %arg2: memref<1x256xf32, #tpu.memory_space<vmem>>, %arg3: memref<1x256xf32, #tpu.memory_space<vmem>>, %arg4: memref<1x4x256xbf16, #tpu.memory_space<vmem>>, %arg5: memref<1x4x256xbf16, #tpu.memory_space<vmem>>) attributes {dimension_semantics = [#tpu.dimension_semantics<parallel>], iteration_bounds = array<i64: 2>, scalar_prefetch = 0 : i64, scratch_operands = 0 : i64, tpu.core_type = #tpu.core_type<tc>, window_params = [{pipeline_mode = #tpu.pipeline_mode<synchronous>, transform_indices = @transform_0, window_bounds = array<i64: 2, 256>}, {pipeline_mode = #tpu.pipeline_mode<synchronous>, transform_indices = @transform_1, window_bounds = array<i64: 1, 256>}, {pipeline_mode = #tpu.pipeline_mode<synchronous>, transform_indices = @transform_2, window_bounds = array<i64: 1, 256>}, {transform_indices = @transform_3, window_bounds = array<i64: 1, 4, 256>}, {transform_indices = @transform_4, window_bounds = array<i64: 1, 4, 256>}]} {
    %c0 = arith.constant 0 : index
    %c0_0 = arith.constant 0 : index
    %0 = vector.load %arg1[%c0, %c0_0] : memref<2x256xf32, #tpu.memory_space<vmem>>, vector<1x256xf32>
    %cst = arith.constant 1.250000e-01 : f32
    %1 = vector.broadcast %cst : f32 to vector<1x256xf32>
    %2 = arith.mulf %0, %1 : vector<1x256xf32>
    %c1 = arith.constant 1 : index
    %c0_1 = arith.constant 0 : index
    %3 = vector.load %arg1[%c1, %c0_1] : memref<2x256xf32, #tpu.memory_space<vmem>>, vector<1x256xf32>
    %cst_2 = arith.constant 1.250000e-01 : f32
    %4 = vector.broadcast %cst_2 : f32 to vector<1x256xf32>
    %5 = arith.mulf %3, %4 : vector<1x256xf32>
    %6 = arith.mulf %2, %2 : vector<1x256xf32>
    %7 = arith.subf %5, %6 : vector<1x256xf32>
    %cst_3 = arith.constant 0.000000e+00 : f32
    %8 = vector.broadcast %cst_3 : f32 to vector<1x256xf32>
    %9 = arith.maximumf %7, %8 : vector<1x256xf32>
    %c0_4 = arith.constant 0 : index
    %c0_5 = arith.constant 0 : index
    %10 = vector.load %arg2[%c0_4, %c0_5] : memref<1x256xf32, #tpu.memory_space<vmem>>, vector<1x256xf32>
    %cst_6 = arith.constant 9.99999974E-6 : f32
    %11 = vector.broadcast %cst_6 : f32 to vector<1x256xf32>
    %12 = arith.addf %9, %11 : vector<1x256xf32>
    %13 = math.rsqrt %12 : vector<1x256xf32>
    %14 = arith.mulf %10, %13 : vector<1x256xf32>
    %c0_7 = arith.constant 0 : index
    %c0_8 = arith.constant 0 : index
    %15 = vector.load %arg3[%c0_7, %c0_8] : memref<1x256xf32, #tpu.memory_space<vmem>>, vector<1x256xf32>
    %16 = arith.mulf %2, %14 : vector<1x256xf32>
    %17 = arith.subf %15, %16 : vector<1x256xf32>
    %c0_9 = arith.constant 0 : index
    %c0_10 = arith.constant 0 : index
    %c0_11 = arith.constant 0 : index
    %18 = vector.load %arg4[%c0_9, %c0_10, %c0_11] : memref<1x4x256xbf16, #tpu.memory_space<vmem>>, vector<1x4x256xbf16>
    %19 = vector.shape_cast %18 : vector<1x4x256xbf16> to vector<4x256xbf16>
    %20 = arith.extf %19 : vector<4x256xbf16> to vector<4x256xf32>
    %21 = vector.broadcast %14 : vector<1x256xf32> to vector<4x256xf32>
    %22 = arith.mulf %20, %21 : vector<4x256xf32>
    %23 = vector.broadcast %17 : vector<1x256xf32> to vector<4x256xf32>
    %24 = arith.addf %22, %23 : vector<4x256xf32>
    %cst_12 = arith.constant 0.000000e+00 : f32
    %25 = vector.broadcast %cst_12 : f32 to vector<4x256xf32>
    %26 = arith.maximumf %24, %25 : vector<4x256xf32>
    %27 = arith.truncf %26 : vector<4x256xf32> to vector<4x256xbf16>
    %c0_13 = arith.constant 0 : index
    %c0_14 = arith.constant 0 : index
    %c0_15 = arith.constant 0 : index
    %28 = vector.load %arg5[%c0_13, %c0_14, %c0_15] : memref<1x4x256xbf16, #tpu.memory_space<vmem>>, vector<1x4x256xbf16>
    %29 = vector.shape_cast %28 : vector<1x4x256xbf16> to vector<4x256xbf16>
    %30 = vector.shape_cast %27 : vector<4x256xbf16> to vector<1x4x256xbf16>
    tpu.vector_store %arg5[%c0_13, %c0_14, %c0_15], %30 {strides = array<i32>} : memref<1x4x256xbf16, #tpu.memory_space<vmem>>, vector<1x4x256xbf16>,
    return
  }
  func.func @transform_0(%arg0: i32) -> (i32, i32) {
    %c0_i32 = arith.constant 0 : i32
    %c0_i32_0 = arith.constant 0 : i32
    %c0_i32_1 = arith.constant 0 : i32
    return %c0_i32, %c0_i32_0 : i32, i32
  }
  func.func @transform_1(%arg0: i32) -> (i32, i32) {
    %c0_i32 = arith.constant 0 : i32
    %c0_i32_0 = arith.constant 0 : i32
    %c0_i32_1 = arith.constant 0 : i32
    return %c0_i32, %c0_i32_0 : i32, i32
  }
  func.func @transform_2(%arg0: i32) -> (i32, i32) {
    %c0_i32 = arith.constant 0 : i32
    %c0_i32_0 = arith.constant 0 : i32
    %c0_i32_1 = arith.constant 0 : i32
    return %c0_i32, %c0_i32_0 : i32, i32
  }
  func.func @transform_3(%arg0: i32) -> (i32, i32, i32) {
    %c0_i32 = arith.constant 0 : i32
    %c0_i32_0 = arith.constant 0 : i32
    %c0_i32_1 = arith.constant 0 : i32
    return %arg0, %c0_i32, %c0_i32_0 : i32, i32, i32
  }
  func.func @transform_4(%arg0: i32) -> (i32, i32, i32) {
    %c0_i32 = arith.constant 0 : i32
    %c0_i32_0 = arith.constant 0 : i32
    %c0_i32_1 = arith.constant 0 : i32
    return %arg0, %c0_i32, %c0_i32_0 : i32, i32, i32
  }
}

</mosaic_0001>

<llo_original>
// kernel: spatial_path.7
$region0: #{spatial_path.7}
  #allocation0 [shape = 'u32[]', space=smem, size = 0x4, offset = 0x4, fixed_abs, tag = 'smem constant byte address 0x4 - core index']
  #allocation1 [shape = 'u32[144,128]{1,0:T(1,128)}', space=vmem, size = 0x12000, scoped, tag = 'internal scratch']
  %s0 = inlined_call_operand.vmem [shape: f32[2,128], index: 0, kind: input, shape index: {}]
  %s1 = inlined_call_operand.vmem [shape: f32[1,128], index: 1, kind: input, shape index: {}]
  %s2 = inlined_call_operand.vmem [shape: f32[1,128], index: 2, kind: input, shape index: {}]
  %s3 = inlined_call_operand.vmem [shape: bf16[2,64,128], index: 3, kind: input, shape index: {}]
  %s4 = inlined_call_operand.vmem [shape: bf16[2,64,128], index: 4, kind: output, shape index: {}]
  %s5 = sld [smem:[#allocation0]]
  $region49: #{spatial_path.7} parent=0
    _
  %s7 = ssub.s32 1, %s5
  %s8 = scalar_select 0, %s7, %s5
  loop: start=0, step=1, limit=4
  $region2: #{spatial_path.7} parent=0 // loop_pre_header
    _
  $region3: #{spatial_path.7} parent=0 // loop_header
    %s10 = sphi 0, %s14
    %p11 = scmp.ge.s32.totalorder %s10, 4
    %s18 = sphi 0, %s18
    %s20 = sphi 0, %s18
    %s21 = sphi 0, %s20
    %s35 = sphi 0, %s21
    %s39 = sphi 0, %s39
    %s41 = sphi 0, %s39
    %s42 = sphi 0, %s41
    %s56 = sphi 0, %s42
    %s60 = sphi 0, %s60
    %s62 = sphi 0, %s60
    %s63 = sphi 0, %s62
    %s77 = sphi 0, %s63
    %s83 = sphi 0, %s85
    %s86 = sphi 0, %s83
    %s87 = sphi 0, %s86
    %s103 = sphi 0, %s87
    %s109 = sphi 0, %s111
    %s112 = sphi 0, %s109
    %s113 = sphi 0, %s112
    %s129 = sphi 0, %s113
  $region4: #{spatial_path.7} parent=0 // loop_header_branch
    %13 = sbr.rel (%p11) target = $region8
  $region5: #{spatial_path.7} parent=0 // loop_body
    %s15 = ssub.s32 %s10, 1
    %s16 = ssub.s32 %s10, 2
    %s17 = sadd.s32 %s10, 1
    %s19 = sadd.s32 %s18, 1
    %p22 = scmp.eq.s32.totalorder %s10, 1
    %p23 = scmp.ne.s32.totalorder %s18, %s20
    %p24 = scmp.eq.s32.totalorder %s10, 0
    %p25 = por %p23, %p24
    %p26 = scmp.ne.s32.totalorder %s18, %s20
    %p27 = scmp.eq.s32.totalorder %s15, 1
    %p28 = por %p26, %p27
    %p29 = scmp.ne.s32.totalorder %s20, %s21
    %p30 = scmp.eq.s32.totalorder %s15, 0
    %p31 = por %p29, %p30
    %p32 = scmp.ne.s32.totalorder %s20, %s21
    %p33 = scmp.eq.s32.totalorder %s16, 1
    %p34 = por %p32, %p33
    %p36 = scmp.ne.s32.totalorder %s21, %s35
    %p37 = scmp.eq.s32.totalorder %s16, 0
    %p38 = por %p36, %p37
    %s40 = sadd.s32 %s39, 1
    %p43 = scmp.eq.s32.totalorder %s10, 1
    %p44 = scmp.ne.s32.totalorder %s39, %s41
    %p45 = scmp.eq.s32.totalorder %s10, 0
    %p46 = por %p44, %p45
    %p47 = scmp.ne.s32.totalorder %s39, %s41
    %p48 = scmp.eq.s32.totalorder %s15, 1
    %p49 = por %p47, %p48
    %p50 = scmp.ne.s32.totalorder %s41, %s42
    %p51 = scmp.eq.s32.totalorder %s15, 0
    %p52 = por %p50, %p51
    %p53 = scmp.ne.s32.totalorder %s41, %s42
    %p54 = scmp.eq.s32.totalorder %s16, 1
    %p55 = por %p53, %p54
    %p57 = scmp.ne.s32.totalorder %s42, %s56
    %p58 = scmp.eq.s32.totalorder %s16, 0
    %p59 = por %p57, %p58
    %s61 = sadd.s32 %s60, 1
    %p64 = scmp.eq.s32.totalorder %s10, 1
    %p65 = scmp.ne.s32.totalorder %s60, %s62
    %p66 = scmp.eq.s32.totalorder %s10, 0
    %p67 = por %p65, %p66
    %p68 = scmp.ne.s32.totalorder %s60, %s62
    %p69 = scmp.eq.s32.totalorder %s15, 1
    %p70 = por %p68, %p69
    %p71 = scmp.ne.s32.totalorder %s62, %s63
    %p72 = scmp.eq.s32.totalorder %s15, 0
    %p73 = por %p71, %p72
    %p74 = scmp.ne.s32.totalorder %s62, %s63
    %p75 = scmp.eq.s32.totalorder %s16, 1
    %p76 = por %p74, %p75
    %p78 = scmp.ne.s32.totalorder %s63, %s77
    %p79 = scmp.eq.s32.totalorder %s16, 0
    %p80 = por %p78, %p79
    %s81 = ssub.s32 %s10, %s17
    %p82 = scmp.eq.s32.totalorder %s81, 0
    %s84 = sadd.s32 %s83, 1
    %s85 = scalar_select %p82, %s83, %s84
    %p88 = pneg %p82
    %p89 = scmp.eq.s32.totalorder %s10, 1
    %p90 = por %p88, %p89
    %p91 = scmp.ne.s32.totalorder %s83, %s86
    %p92 = scmp.eq.s32.totalorder %s10, 0
    %p93 = por %p91, %p92
    %p94 = scmp.ne.s32.totalorder %s83, %s86
    %p95 = scmp.eq.s32.totalorder %s15, 1
    %p96 = por %p94, %p95
    %p97 = scmp.ne.s32.totalorder %s86, %s87
    %p98 = scmp.eq.s32.totalorder %s15, 0
    %p99 = por %p97, %p98
    %p100 = scmp.ne.s32.totalorder %s86, %s87
    %p101 = scmp.eq.s32.totalorder %s16, 1
    %p102 = por %p100, %p101
    %p104 = scmp.ne.s32.totalorder %s87, %s103
    %p105 = scmp.eq.s32.totalorder %s16, 0
    %p106 = por %p104, %p105
    %s107 = ssub.s32 %s10, %s17
    %p108 = scmp.eq.s32.totalorder %s107, 0
    %s110 = sadd.s32 %s109, 1
    %s111 = scalar_select %p108, %s109, %s110
    %p114 = pneg %p108
    %p115 = scmp.eq.s32.totalorder %s10, 1
    %p116 = por %p114, %p115
    %p117 = scmp.ne.s32.totalorder %s109, %s112
    %p118 = scmp.eq.s32.totalorder %s10, 0
    %p119 = por %p117, %p118
    %p120 = scmp.ne.s32.totalorder %s109, %s112
    %p121 = scmp.eq.s32.totalorder %s15, 1
    %p122 = por %p120, %p121
    %p123 = scmp.ne.s32.totalorder %s112, %s113
    %p124 = scmp.eq.s32.totalorder %s15, 0
    %p125 = por %p123, %p124
    %p126 = scmp.ne.s32.totalorder %s112, %s113
    %p127 = scmp.eq.s32.totalorder %s16, 1
    %p128 = por %p126, %p127
    %p130 = scmp.ne.s32.totalorder %s113, %s129
    %p131 = scmp.eq.s32.totalorder %s16, 0
    %p132 = por %p130, %p131
    %p133 = scmp.le.s32.totalorder 1, %s10
    %p134 = scmp.lt.s32.totalorder %s10, 3
    %p135 = pnand %p133, %p134
    %p136 = pneg %p135
    // Predicated region
    $region9: #{spatial_path.7} parent=5 // pred_check
      _
    $region10: #{spatial_path.7} parent=5 // pred_check_branch
      %138 = sbr.rel (%p135) target = $region12
    $region11: #{spatial_path.7} parent=5 // pred_region
      %s139 = ssub.s32 %s10, 1
      // Predicated region
      $region13: #{spatial_path.7} parent=11 // pred_check
        %p140 = pneg %p31
      $region14: #{spatial_path.7} parent=11 // pred_check_branch
        %142 = sbr.rel (%p140) target = $region16
      $region15: #{spatial_path.7} parent=11 // pred_region
        _
      $region16: #{spatial_path.7} parent=11 // pred_fallthru
        _
      // Predicated region
      $region17: #{spatial_path.7} parent=11 // pred_check
        %p143 = pneg %p52
      $region18: #{spatial_path.7} parent=11 // pred_check_branch
        %145 = sbr.rel (%p143) target = $region20
      $region19: #{spatial_path.7} parent=11 // pred_region
        _
      $region20: #{spatial_path.7} parent=11 // pred_fallthru
        _
      // Predicated region
      $region21: #{spatial_path.7} parent=11 // pred_check
        %p146 = pneg %p73
      $region22: #{spatial_path.7} parent=11 // pred_check_branch
        %148 = sbr.rel (%p146) target = $region24
      $region23: #{spatial_path.7} parent=11 // pred_region
        _
      $region24: #{spatial_path.7} parent=11 // pred_fallthru
        _
    $region12: #{spatial_path.7} parent=5 // pred_fallthru
      _
    %p149 = scmp.lt.s32.totalorder %s10, 2
    // Predicated region
    $region25: #{spatial_path.7} parent=5 // pred_check
      %p150 = pneg %p149
    $region26: #{spatial_path.7} parent=5 // pred_check_branch
      %152 = sbr.rel (%p150) target = $region28
    $region27: #{spatial_path.7} parent=5 // pred_region
      // Predicated region
      $region29: #{spatial_path.7} parent=27 // pred_check
        %p153 = pneg %p93
      $region30: #{spatial_path.7} parent=27 // pred_check_branch
        %155 = sbr.rel (%p153) target = $region32
      $region31: #{spatial_path.7} parent=27 // pred_region
        %p156 = scmp.lt.s32.totalorder %s10, 1
        %s157 = scalar_select %p156, %s10, 1
        %s158 = smul.addr %s157, 8
        %s159 = smul.addr %s158, 4
        %s160 = scalar_lea.vmem %s3, %s159
      $region32: #{spatial_path.7} parent=27 // pred_fallthru
        _
    $region28: #{spatial_path.7} parent=5 // pred_fallthru
      _
    %p161 = scmp.le.s32.totalorder 1, %s10
    %p162 = scmp.lt.s32.totalorder %s10, 3
    %p163 = pnand %p161, %p162
    %p164 = pneg %p163
    // Predicated region
    $region33: #{spatial_path.7} parent=5 // pred_check
      _
    $region34: #{spatial_path.7} parent=5 // pred_check_branch
      %166 = sbr.rel (%p163) target = $region36
    $region35: #{spatial_path.7} parent=5 // pred_region
      %s167 = ssub.s32 %s10, 1
      %p168 = pneg %p31
      %p169 = pneg %p28
      %p170 = pneg %p52
      %p171 = pneg %p49
      %p172 = pneg %p73
      %p173 = pneg %p70
      %p174 = scmp.lt.s32.totalorder %s15, 1
      %s175 = scalar_select %p174, %s15, 1
      %s176 = smul.addr %s175, 8
      %s177 = smul.addr %s176, 4
      %s178 = scalar_lea.vmem %s3, %s177
      %p179 = pneg %p99
      %p180 = pneg %p96
      %p181 = pneg %p125
      %p182 = pneg %p122
      %p183 = scmp.lt.s32.totalorder %s15, 1
      %s184 = scalar_select %p183, %s15, 1
      %s185 = smul.addr %s184, 8
      %s186 = smul.addr %s185, 4
      %s187 = scalar_lea.vmem %s4, %s186
      %p188 = scmp.lt.s32.totalorder %s15, 1
      %s189 = scalar_select %p188, %s15, 1
      %s190 = smul.addr %s189, 8
      %s191 = smul.addr %s190, 4
      %s192 = scalar_lea.vmem %s3, %s191
      %p193 = scmp.lt.s32.totalorder %s15, 1
      %s194 = scalar_select %p193, %s15, 1
      %s195 = smul.addr %s194, 8
      %s196 = smul.addr %s195, 4
      %s197 = scalar_lea.vmem %s4, %s196
      %v198 = vld [vmem:[%s0] sm:$0x1]
      %v199 = vmul.f32 %v198, 0.0078125
      %v200 = vld [vmem:[%s0 + $0x1] sm:$0x1]
      %v201 = vmul.f32 %v200, 0.0078125
      %v202 = vmul.f32 %v199, %v199
      %v203 = vsub.f32 %v201, %v202
      %v204 = vmax.f32 %v203, 0.0
      %v205 = vld [vmem:[%s1] sm:$0x1]
      %v206 = vadd.f32 %v204, 1e-05
      %v207 = vrsqrt.pop %v206
      %v208 = vmul.f32 %v205, %v207
      %v209 = vld [vmem:[%s2] sm:$0x1]
      %v210 = vmul.f32 %v199, %v208
      %v211 = vsub.f32 %v209, %v210
      %v212 = vld [vmem:[%s192] sm:$0xf]
      %v213 = vld [vmem:[%s192 + $0x4] sm:$0xf]
      %v214 = vld [vmem:[%s192 + $0x8] sm:$0xf]
      %v215 = vld [vmem:[%s192 + $0xc] sm:$0xf]
      %v216 = vld [vmem:[%s192 + $0x10] sm:$0xf]
      %v217 = vld [vmem:[%s192 + $0x14] sm:$0xf]
      %v218 = vld [vmem:[%s192 + $0x18] sm:$0xf]
      %v219 = vld [vmem:[%s192 + $0x1c] sm:$0xf]
      %v220 = vunpack.c.l.bf16 %v212
      %v221 = vunpack.c.l.bf16 %v213
      %v222 = vunpack.c.l.bf16 %v214
      %v223 = vunpack.c.l.bf16 %v215
      %v224 = vunpack.c.l.bf16 %v216
      %v225 = vunpack.c.l.bf16 %v217
      %v226 = vunpack.c.l.bf16 %v218
      %v227 = vunpack.c.l.bf16 %v219
      %v229 = vlaneseq
      %v230 = vshrl.u32 %v229, 7
      %v231 = vsub.s32 0, %v230
      %v232 = vrot.slane %v208, %v231
      %v234 = vmul.f32 %v220, %v232
      %v235 = vmul.f32 %v221, %v232
      %v236 = vmul.f32 %v222, %v232
      %v237 = vmul.f32 %v223, %v232
      %v238 = vmul.f32 %v224, %v232
      %v239 = vmul.f32 %v225, %v232
      %v240 = vmul.f32 %v226, %v232
      %v241 = vmul.f32 %v227, %v232
      %v243 = vlaneseq
      %v244 = vshrl.u32 %v243, 7
      %v245 = vsub.s32 0, %v244
      %v246 = vrot.slane %v211, %v245
      %v248 = vadd.f32 %v234, %v246
      %v249 = vadd.f32 %v235, %v246
      %v250 = vadd.f32 %v236, %v246
      %v251 = vadd.f32 %v237, %v246
      %v252 = vadd.f32 %v238, %v246
      %v253 = vadd.f32 %v239, %v246
      %v254 = vadd.f32 %v240, %v246
      %v255 = vadd.f32 %v241, %v246
      %v256 = vmax.f32 %v248, 0.0
      %v257 = vmax.f32 %v249, 0.0
      %v258 = vmax.f32 %v250, 0.0
      %v259 = vmax.f32 %v251, 0.0
      %v260 = vmax.f32 %v252, 0.0
      %v261 = vmax.f32 %v253, 0.0
      %v262 = vmax.f32 %v254, 0.0
      %v263 = vmax.f32 %v255, 0.0
      %v264 = vpack.c.bf16 %v257, %v256
      %v265 = vpack.c.bf16 %v259, %v258
      %v266 = vpack.c.bf16 %v261, %v260
      %v267 = vpack.c.bf16 %v263, %v262
      %v272 = vunpack.c.l.b16 %v264
      %v273 = vunpack.c.h.b16 %v264
      %v274 = vunpack.c.l.b16 %v265
      %v275 = vunpack.c.h.b16 %v265
      %v276 = vunpack.c.l.b16 %v266
      %v277 = vunpack.c.h.b16 %v266
      %v278 = vunpack.c.l.b16 %v267
      %v279 = vunpack.c.h.b16 %v267
      %v280 = vpack.c.b16 %v272, %v272
      %v281 = vpack.c.b16 %v273, %v273
      %v282 = vpack.c.b16 %v274, %v274
      %v283 = vpack.c.b16 %v275, %v275
      %v284 = vpack.c.b16 %v276, %v276
      %v285 = vpack.c.b16 %v277, %v277
      %v286 = vpack.c.b16 %v278, %v278
      %v287 = vpack.c.b16 %v279, %v279
      %296 = vst [vmem:[%s197] sm:$0xf] %v280
      %297 = vst [vmem:[%s197 + $0x4] sm:$0xf] %v281
      %298 = vst [vmem:[%s197 + $0x8] sm:$0xf] %v282
      %299 = vst [vmem:[%s197 + $0xc] sm:$0xf] %v283
      %300 = vst [vmem:[%s197 + $0x10] sm:$0xf] %v284
      %301 = vst [vmem:[%s197 + $0x14] sm:$0xf] %v285
      %302 = vst [vmem:[%s197 + $0x18] sm:$0xf] %v286
      %303 = vst [vmem:[%s197 + $0x1c] sm:$0xf] %v287
      %p304 = scmp.lt.s32.totalorder %s15, 1
      %s305 = scalar_select %p304, %s15, 1
      %s306 = smul.addr %s305, 8
      %s307 = smul.addr %s306, 4
      %s308 = scalar_lea.vmem %s4, %s307
      // Predicated region
      $region37: #{spatial_path.7} parent=35 // pred_check
        %p309 = pneg %p122
      $region38: #{spatial_path.7} parent=35 // pred_check_branch
        %311 = sbr.rel (%p309) target = $region40
      $region39: #{spatial_path.7} parent=35 // pred_region
        _
      $region40: #{spatial_path.7} parent=35 // pred_fallthru
        _
    $region36: #{spatial_path.7} parent=5 // pred_fallthru
      _
    %p312 = scmp.le.s32.totalorder 2, %s10
    // Predicated region
    $region41: #{spatial_path.7} parent=5 // pred_check
      %p313 = pneg %p312
    $region42: #{spatial_path.7} parent=5 // pred_check_branch
      %315 = sbr.rel (%p313) target = $region44
    $region43: #{spatial_path.7} parent=5 // pred_region
      %s316 = ssub.s32 %s10, 2
      // Predicated region
      $region45: #{spatial_path.7} parent=43 // pred_check
        %p317 = pneg %p128
      $region46: #{spatial_path.7} parent=43 // pred_check_branch
        %319 = sbr.rel (%p317) target = $region48
      $region47: #{spatial_path.7} parent=43 // pred_region
        %p320 = scmp.lt.s32.totalorder %s16, 1
        %s321 = scalar_select %p320, %s16, 1
        %s322 = smul.addr %s321, 8
        %s323 = smul.addr %s322, 4
        %s324 = scalar_lea.vmem %s4, %s323
      $region48: #{spatial_path.7} parent=43 // pred_fallthru
        _
    $region44: #{spatial_path.7} parent=5 // pred_fallthru
      _
  $region6: #{spatial_path.7} parent=0 // loop_footer
    %s14 = sadd.s32 1, %s10
  $region7: #{spatial_path.7} parent=0 // loop_footer_branch
    %9 = sbr.rel target = $region3
  $region8: #{spatial_path.7} parent=0 // loop_exit
    _

// kernel: spatial_path.9
$region0: #{spatial_path.9}
  #allocation0 [shape = 'u32[]', space=smem, size = 0x4, offset = 0x4, fixed_abs, tag = 'smem constant byte address 0x4 - core index']
  #allocation1 [shape = 'u32[144,128]{1,0:T(1,128)}', space=vmem, size = 0x12000, scoped, tag = 'internal scratch']
  %s0 = inlined_call_operand.vmem [shape: f32[2,128], index: 0, kind: input, shape index: {}]
  %s1 = inlined_call_operand.vmem [shape: f32[1,128], index: 1, kind: input, shape index: {}]
  %s2 = inlined_call_operand.vmem [shape: f32[1,128], index: 2, kind: input, shape index: {}]
  %s3 = inlined_call_operand.vmem [shape: bf16[2,16,128], index: 3, kind: input, shape index: {}]
  %s4 = inlined_call_operand.vmem [shape: bf16[2,16,128], index: 4, kind: output, shape index: {}]
  %s5 = sld [smem:[#allocation0]]
  $region49: #{spatial_path.9} parent=0
    _
  %s7 = ssub.s32 1, %s5
  %s8 = scalar_select 0, %s7, %s5
  loop: start=0, step=1, limit=4
  $region2: #{spatial_path.9} parent=0 // loop_pre_header
    _
  $region3: #{spatial_path.9} parent=0 // loop_header
    %s10 = sphi 0, %s14
    %p11 = scmp.ge.s32.totalorder %s10, 4
    %s18 = sphi 0, %s18
    %s20 = sphi 0, %s18
    %s21 = sphi 0, %s20
    %s35 = sphi 0, %s21
    %s39 = sphi 0, %s39
    %s41 = sphi 0, %s39
    %s42 = sphi 0, %s41
    %s56 = sphi 0, %s42
    %s60 = sphi 0, %s60
    %s62 = sphi 0, %s60
    %s63 = sphi 0, %s62
    %s77 = sphi 0, %s63
    %s83 = sphi 0, %s85
    %s86 = sphi 0, %s83
    %s87 = sphi 0, %s86
    %s103 = sphi 0, %s87
    %s109 = sphi 0, %s111
    %s112 = sphi 0, %s109
    %s113 = sphi 0, %s112
    %s129 = sphi 0, %s113
  $region4: #{spatial_path.9} parent=0 // loop_header_branch
    %13 = sbr.rel (%p11) target = $region8
  $region5: #{spatial_path.9} parent=0 // loop_body
    %s15 = ssub.s32 %s10, 1
    %s16 = ssub.s32 %s10, 2
    %s17 = sadd.s32 %s10, 1
    %s19 = sadd.s32 %s18, 1
    %p22 = scmp.eq.s32.totalorder %s10, 1
    %p23 = scmp.ne.s32.totalorder %s18, %s20
    %p24 = scmp.eq.s32.totalorder %s10, 0
    %p25 = por %p23, %p24
    %p26 = scmp.ne.s32.totalorder %s18, %s20
    %p27 = scmp.eq.s32.totalorder %s15, 1
    %p28 = por %p26, %p27
    %p29 = scmp.ne.s32.totalorder %s20, %s21
    %p30 = scmp.eq.s32.totalorder %s15, 0
    %p31 = por %p29, %p30
    %p32 = scmp.ne.s32.totalorder %s20, %s21
    %p33 = scmp.eq.s32.totalorder %s16, 1
    %p34 = por %p32, %p33
    %p36 = scmp.ne.s32.totalorder %s21, %s35
    %p37 = scmp.eq.s32.totalorder %s16, 0
    %p38 = por %p36, %p37
    %s40 = sadd.s32 %s39, 1
    %p43 = scmp.eq.s32.totalorder %s10, 1
    %p44 = scmp.ne.s32.totalorder %s39, %s41
    %p45 = scmp.eq.s32.totalorder %s10, 0
    %p46 = por %p44, %p45
    %p47 = scmp.ne.s32.totalorder %s39, %s41
    %p48 = scmp.eq.s32.totalorder %s15, 1
    %p49 = por %p47, %p48
    %p50 = scmp.ne.s32.totalorder %s41, %s42
    %p51 = scmp.eq.s32.totalorder %s15, 0
    %p52 = por %p50, %p51
    %p53 = scmp.ne.s32.totalorder %s41, %s42
    %p54 = scmp.eq.s32.totalorder %s16, 1
    %p55 = por %p53, %p54
    %p57 = scmp.ne.s32.totalorder %s42, %s56
    %p58 = scmp.eq.s32.totalorder %s16, 0
    %p59 = por %p57, %p58
    %s61 = sadd.s32 %s60, 1
    %p64 = scmp.eq.s32.totalorder %s10, 1
    %p65 = scmp.ne.s32.totalorder %s60, %s62
    %p66 = scmp.eq.s32.totalorder %s10, 0
    %p67 = por %p65, %p66
    %p68 = scmp.ne.s32.totalorder %s60, %s62
    %p69 = scmp.eq.s32.totalorder %s15, 1
    %p70 = por %p68, %p69
    %p71 = scmp.ne.s32.totalorder %s62, %s63
    %p72 = scmp.eq.s32.totalorder %s15, 0
    %p73 = por %p71, %p72
    %p74 = scmp.ne.s32.totalorder %s62, %s63
    %p75 = scmp.eq.s32.totalorder %s16, 1
    %p76 = por %p74, %p75
    %p78 = scmp.ne.s32.totalorder %s63, %s77
    %p79 = scmp.eq.s32.totalorder %s16, 0
    %p80 = por %p78, %p79
    %s81 = ssub.s32 %s10, %s17
    %p82 = scmp.eq.s32.totalorder %s81, 0
    %s84 = sadd.s32 %s83, 1
    %s85 = scalar_select %p82, %s83, %s84
    %p88 = pneg %p82
    %p89 = scmp.eq.s32.totalorder %s10, 1
    %p90 = por %p88, %p89
    %p91 = scmp.ne.s32.totalorder %s83, %s86
    %p92 = scmp.eq.s32.totalorder %s10, 0
    %p93 = por %p91, %p92
    %p94 = scmp.ne.s32.totalorder %s83, %s86
    %p95 = scmp.eq.s32.totalorder %s15, 1
    %p96 = por %p94, %p95
    %p97 = scmp.ne.s32.totalorder %s86, %s87
    %p98 = scmp.eq.s32.totalorder %s15, 0
    %p99 = por %p97, %p98
    %p100 = scmp.ne.s32.totalorder %s86, %s87
    %p101 = scmp.eq.s32.totalorder %s16, 1
    %p102 = por %p100, %p101
    %p104 = scmp.ne.s32.totalorder %s87, %s103
    %p105 = scmp.eq.s32.totalorder %s16, 0
    %p106 = por %p104, %p105
    %s107 = ssub.s32 %s10, %s17
    %p108 = scmp.eq.s32.totalorder %s107, 0
    %s110 = sadd.s32 %s109, 1
    %s111 = scalar_select %p108, %s109, %s110
    %p114 = pneg %p108
    %p115 = scmp.eq.s32.totalorder %s10, 1
    %p116 = por %p114, %p115
    %p117 = scmp.ne.s32.totalorder %s109, %s112
    %p118 = scmp.eq.s32.totalorder %s10, 0
    %p119 = por %p117, %p118
    %p120 = scmp.ne.s32.totalorder %s109, %s112
    %p121 = scmp.eq.s32.totalorder %s15, 1
    %p122 = por %p120, %p121
    %p123 = scmp.ne.s32.totalorder %s112, %s113
    %p124 = scmp.eq.s32.totalorder %s15, 0
    %p125 = por %p123, %p124
    %p126 = scmp.ne.s32.totalorder %s112, %s113
    %p127 = scmp.eq.s32.totalorder %s16, 1
    %p128 = por %p126, %p127
    %p130 = scmp.ne.s32.totalorder %s113, %s129
    %p131 = scmp.eq.s32.totalorder %s16, 0
    %p132 = por %p130, %p131
    %p133 = scmp.le.s32.totalorder 1, %s10
    %p134 = scmp.lt.s32.totalorder %s10, 3
    %p135 = pnand %p133, %p134
    %p136 = pneg %p135
    // Predicated region
    $region9: #{spatial_path.9} parent=5 // pred_check
      _
    $region10: #{spatial_path.9} parent=5 // pred_check_branch
      %138 = sbr.rel (%p135) target = $region12
    $region11: #{spatial_path.9} parent=5 // pred_region
      %s139 = ssub.s32 %s10, 1
      // Predicated region
      $region13: #{spatial_path.9} parent=11 // pred_check
        %p140 = pneg %p31
      $region14: #{spatial_path.9} parent=11 // pred_check_branch
        %142 = sbr.rel (%p140) target = $region16
      $region15: #{spatial_path.9} parent=11 // pred_region
        _
      $region16: #{spatial_path.9} parent=11 // pred_fallthru
        _
      // Predicated region
      $region17: #{spatial_path.9} parent=11 // pred_check
        %p143 = pneg %p52
      $region18: #{spatial_path.9} parent=11 // pred_check_branch
        %145 = sbr.rel (%p143) target = $region20
      $region19: #{spatial_path.9} parent=11 // pred_region
        _
      $region20: #{spatial_path.9} parent=11 // pred_fallthru
        _
      // Predicated region
      $region21: #{spatial_path.9} parent=11 // pred_check
        %p146 = pneg %p73
      $region22: #{spatial_path.9} parent=11 // pred_check_branch
        %148 = sbr.rel (%p146) target = $region24
      $region23: #{spatial_path.9} parent=11 // pred_region
        _
      $region24: #{spatial_path.9} parent=11 // pred_fallthru
        _
    $region12: #{spatial_path.9} parent=5 // pred_fallthru
      _
    %p149 = scmp.lt.s32.totalorder %s10, 2
    // Predicated region
    $region25: #{spatial_path.9} parent=5 // pred_check
      %p150 = pneg %p149
    $region26: #{spatial_path.9} parent=5 // pred_check_branch
      %152 = sbr.rel (%p150) target = $region28
    $region27: #{spatial_path.9} parent=5 // pred_region
      // Predicated region
      $region29: #{spatial_path.9} parent=27 // pred_check
        %p153 = pneg %p93
      $region30: #{spatial_path.9} parent=27 // pred_check_branch
        %155 = sbr.rel (%p153) target = $region32
      $region31: #{spatial_path.9} parent=27 // pred_region
        %p156 = scmp.lt.s32.totalorder %s10, 1
        %s157 = scalar_select %p156, %s10, 1
        %s158 = smul.addr %s157, 2
        %s159 = smul.addr %s158, 4
        %s160 = scalar_lea.vmem %s3, %s159
      $region32: #{spatial_path.9} parent=27 // pred_fallthru
        _
    $region28: #{spatial_path.9} parent=5 // pred_fallthru
      _
    %p161 = scmp.le.s32.totalorder 1, %s10
    %p162 = scmp.lt.s32.totalorder %s10, 3
    %p163 = pnand %p161, %p162
    %p164 = pneg %p163
    // Predicated region
    $region33: #{spatial_path.9} parent=5 // pred_check
      _
    $region34: #{spatial_path.9} parent=5 // pred_check_branch
      %166 = sbr.rel (%p163) target = $region36
    $region35: #{spatial_path.9} parent=5 // pred_region
      %s167 = ssub.s32 %s10, 1
      %p168 = pneg %p31
      %p169 = pneg %p28
      %p170 = pneg %p52
      %p171 = pneg %p49
      %p172 = pneg %p73
      %p173 = pneg %p70
      %p174 = scmp.lt.s32.totalorder %s15, 1
      %s175 = scalar_select %p174, %s15, 1
      %s176 = smul.addr %s175, 2
      %s177 = smul.addr %s176, 4
      %s178 = scalar_lea.vmem %s3, %s177
      %p179 = pneg %p99
      %p180 = pneg %p96
      %p181 = pneg %p125
      %p182 = pneg %p122
      %p183 = scmp.lt.s32.totalorder %s15, 1
      %s184 = scalar_select %p183, %s15, 1
      %s185 = smul.addr %s184, 2
      %s186 = smul.addr %s185, 4
      %s187 = scalar_lea.vmem %s4, %s186
      %p188 = scmp.lt.s32.totalorder %s15, 1
      %s189 = scalar_select %p188, %s15, 1
      %s190 = smul.addr %s189, 2
      %s191 = smul.addr %s190, 4
      %s192 = scalar_lea.vmem %s3, %s191
      %p193 = scmp.lt.s32.totalorder %s15, 1
      %s194 = scalar_select %p193, %s15, 1
      %s195 = smul.addr %s194, 2
      %s196 = smul.addr %s195, 4
      %s197 = scalar_lea.vmem %s4, %s196
      %v198 = vld [vmem:[%s0] sm:$0x1]
      %v199 = vmul.f32 %v198, 0.03125
      %v200 = vld [vmem:[%s0 + $0x1] sm:$0x1]
      %v201 = vmul.f32 %v200, 0.03125
      %v202 = vmul.f32 %v199, %v199
      %v203 = vsub.f32 %v201, %v202
      %v204 = vmax.f32 %v203, 0.0
      %v205 = vld [vmem:[%s1] sm:$0x1]
      %v206 = vadd.f32 %v204, 1e-05
      %v207 = vrsqrt.pop %v206
      %v208 = vmul.f32 %v205, %v207
      %v209 = vld [vmem:[%s2] sm:$0x1]
      %v210 = vmul.f32 %v199, %v208
      %v211 = vsub.f32 %v209, %v210
      %v212 = vld [vmem:[%s192] sm:$0xf]
      %v213 = vld [vmem:[%s192 + $0x4] sm:$0xf]
      %v214 = vunpack.c.l.bf16 %v212
      %v215 = vunpack.c.l.bf16 %v213
      %v217 = vlaneseq
      %v218 = vshrl.u32 %v217, 7
      %v219 = vsub.s32 0, %v218
      %v220 = vrot.slane %v208, %v219
      %v222 = vmul.f32 %v214, %v220
      %v223 = vmul.f32 %v215, %v220
      %v225 = vlaneseq
      %v226 = vshrl.u32 %v225, 7
      %v227 = vsub.s32 0, %v226
      %v228 = vrot.slane %v211, %v227
      %v230 = vadd.f32 %v222, %v228
      %v231 = vadd.f32 %v223, %v228
      %v232 = vmax.f32 %v230, 0.0
      %v233 = vmax.f32 %v231, 0.0
      %v234 = vpack.c.bf16 %v233, %v232
      %v236 = vunpack.c.l.b16 %v234
      %v237 = vunpack.c.h.b16 %v234
      %v238 = vpack.c.b16 %v236, %v236
      %v239 = vpack.c.b16 %v237, %v237
      %242 = vst [vmem:[%s197] sm:$0xf] %v238
      %243 = vst [vmem:[%s197 + $0x4] sm:$0xf] %v239
      %p244 = scmp.lt.s32.totalorder %s15, 1
      %s245 = scalar_select %p244, %s15, 1
      %s246 = smul.addr %s245, 2
      %s247 = smul.addr %s246, 4
      %s248 = scalar_lea.vmem %s4, %s247
      // Predicated region
      $region37: #{spatial_path.9} parent=35 // pred_check
        %p249 = pneg %p122
      $region38: #{spatial_path.9} parent=35 // pred_check_branch
        %251 = sbr.rel (%p249) target = $region40
      $region39: #{spatial_path.9} parent=35 // pred_region
        _
      $region40: #{spatial_path.9} parent=35 // pred_fallthru
        _
    $region36: #{spatial_path.9} parent=5 // pred_fallthru
      _
    %p252 = scmp.le.s32.totalorder 2, %s10
    // Predicated region
    $region41: #{spatial_path.9} parent=5 // pred_check
      %p253 = pneg %p252
    $region42: #{spatial_path.9} parent=5 // pred_check_branch
      %255 = sbr.rel (%p253) target = $region44
    $region43: #{spatial_path.9} parent=5 // pred_region
      %s256 = ssub.s32 %s10, 2
      // Predicated region
      $region45: #{spatial_path.9} parent=43 // pred_check
        %p257 = pneg %p128
      $region46: #{spatial_path.9} parent=43 // pred_check_branch
        %259 = sbr.rel (%p257) target = $region48
      $region47: #{spatial_path.9} parent=43 // pred_region
        %p260 = scmp.lt.s32.totalorder %s16, 1
        %s261 = scalar_select %p260, %s16, 1
        %s262 = smul.addr %s261, 2
        %s263 = smul.addr %s262, 4
        %s264 = scalar_lea.vmem %s4, %s263
      $region48: #{spatial_path.9} parent=43 // pred_fallthru
        _
    $region44: #{spatial_path.9} parent=5 // pred_fallthru
      _
  $region6: #{spatial_path.9} parent=0 // loop_footer
    %s14 = sadd.s32 1, %s10
  $region7: #{spatial_path.9} parent=0 // loop_footer_branch
    %9 = sbr.rel target = $region3
  $region8: #{spatial_path.9} parent=0 // loop_exit
    _

// kernel: spatial_path.6
$region0: #{spatial_path.6}
  #allocation0 [shape = 'u32[]', space=smem, size = 0x4, offset = 0x4, fixed_abs, tag = 'smem constant byte address 0x4 - core index']
  #allocation1 [shape = 'u32[144,128]{1,0:T(1,128)}', space=vmem, size = 0x12000, scoped, tag = 'internal scratch']
  %s0 = inlined_call_operand.vmem [shape: bf16[2,8,9,3], index: 0, kind: input, shape index: {}]
  %s1 = inlined_call_operand.vmem [shape: bf16[2,8,9,3], index: 1, kind: input, shape index: {}]
  %s2 = inlined_call_operand.vmem [shape: bf16[2,8,9,3], index: 2, kind: input, shape index: {}]
  %s3 = inlined_call_operand.vmem [shape: bf16[2,8,9,3], index: 3, kind: input, shape index: {}]
  %s4 = inlined_call_operand.vmem [shape: bf16[2,8,9,3], index: 4, kind: input, shape index: {}]
  %s5 = inlined_call_operand.vmem [shape: bf16[2,8,9,3], index: 5, kind: input, shape index: {}]
  %s6 = inlined_call_operand.vmem [shape: bf16[9,3,128], index: 6, kind: input, shape index: {}]
  %s7 = inlined_call_operand.vmem [shape: bf16[2,64,128], index: 7, kind: output, shape index: {0}]
  %s8 = inlined_call_operand.vmem [shape: f32[2,2,128], index: 8, kind: output, shape index: {1}]
  %9 = xla_tuple %s7, %s8
  %s10 = sld [smem:[#allocation0]]
  $region69: #{spatial_path.6} parent=0
    _
  %s12 = ssub.s32 1, %s10
  %s13 = scalar_select 0, %s12, %s10
  loop: start=0, step=1, limit=4
  $region2: #{spatial_path.6} parent=0 // loop_pre_header
    _
  $region3: #{spatial_path.6} parent=0 // loop_header
    %s15 = sphi 0, %s19
    %p16 = scmp.ge.s32.totalorder %s15, 4
    %s22 = sphi 0, %s34
    %s23 = sphi 0, %s30
    %s24 = sphi 0, %s22
    %s25 = sphi 0, %s23
    %s26 = sphi 0, %s24
    %s27 = sphi 0, %s25
    %s39 = sphi 0, %s41
    %s42 = sphi 0, %s39
    %s43 = sphi 0, %s42
    %s59 = sphi 0, %s43
    %s67 = sphi 0, %s69
    %s70 = sphi 0, %s67
    %s71 = sphi 0, %s70
    %s87 = sphi 0, %s71
    %s95 = sphi 0, %s97
    %s98 = sphi 0, %s95
    %s99 = sphi 0, %s98
    %s115 = sphi 0, %s99
    %s123 = sphi 0, %s125
    %s126 = sphi 0, %s123
    %s127 = sphi 0, %s126
    %s143 = sphi 0, %s127
    %s151 = sphi 0, %s153
    %s154 = sphi 0, %s151
    %s155 = sphi 0, %s154
    %s171 = sphi 0, %s155
    %s179 = sphi 0, %s181
    %s182 = sphi 0, %s179
    %s183 = sphi 0, %s182
    %s199 = sphi 0, %s183
    %s203 = sphi 0, %s203
    %s205 = sphi 0, %s203
    %s206 = sphi 0, %s205
    %s220 = sphi 0, %s206
    %s228 = sphi 0, %s230
    %s231 = sphi 0, %s228
    %s232 = sphi 0, %s231
    %s248 = sphi 0, %s232
    %s256 = sphi 0, %s258
    %s259 = sphi 0, %s256
    %s260 = sphi 0, %s259
    %s276 = sphi 0, %s260
  $region4: #{spatial_path.6} parent=0 // loop_header_branch
    %18 = sbr.rel (%p16) target = $region8
  $region5: #{spatial_path.6} parent=0 // loop_body
    %s20 = ssub.s32 %s15, 1
    %s21 = ssub.s32 %s15, 2
    %s28 = sadd.s32 1, %s23
    %p29 = scmp.ge.s32.totalorder %s28, 1
    %s30 = scalar_select %p29, 0, %s28
    %s31 = sadd.s32 1, %s22
    %s32 = scalar_select %p29, %s31, %s22
    %p33 = scmp.ge.s32.totalorder %s32, 2
    %s34 = scalar_select %p33, 0, %s32
    %s35 = ssub.s32 %s22, %s34
    %s36 = ssub.s32 %s23, %s30
    %s37 = sor.u32 %s35, %s36
    %p38 = scmp.eq.s32.totalorder %s37, 0
    %s40 = sadd.s32 %s39, 1
    %s41 = scalar_select %p38, %s39, %s40
    %p44 = pneg %p38
    %p45 = scmp.eq.s32.totalorder %s15, 1
    %p46 = por %p44, %p45
    %p47 = scmp.ne.s32.totalorder %s39, %s42
    %p48 = scmp.eq.s32.totalorder %s15, 0
    %p49 = por %p47, %p48
    %p50 = scmp.ne.s32.totalorder %s39, %s42
    %p51 = scmp.eq.s32.totalorder %s20, 1
    %p52 = por %p50, %p51
    %p53 = scmp.ne.s32.totalorder %s42, %s43
    %p54 = scmp.eq.s32.totalorder %s20, 0
    %p55 = por %p53, %p54
    %p56 = scmp.ne.s32.totalorder %s42, %s43
    %p57 = scmp.eq.s32.totalorder %s21, 1
    %p58 = por %p56, %p57
    %p60 = scmp.ne.s32.totalorder %s43, %s59
    %p61 = scmp.eq.s32.totalorder %s21, 0
    %p62 = por %p60, %p61
    %s63 = ssub.s32 %s22, %s34
    %s64 = ssub.s32 %s23, %s30
    %s65 = sor.u32 %s63, %s64
    %p66 = scmp.eq.s32.totalorder %s65, 0
    %s68 = sadd.s32 %s67, 1
    %s69 = scalar_select %p66, %s67, %s68
    %p72 = pneg %p66
    %p73 = scmp.eq.s32.totalorder %s15, 1
    %p74 = por %p72, %p73
    %p75 = scmp.ne.s32.totalorder %s67, %s70
    %p76 = scmp.eq.s32.totalorder %s15, 0
    %p77 = por %p75, %p76
    %p78 = scmp.ne.s32.totalorder %s67, %s70
    %p79 = scmp.eq.s32.totalorder %s20, 1
    %p80 = por %p78, %p79
    %p81 = scmp.ne.s32.totalorder %s70, %s71
    %p82 = scmp.eq.s32.totalorder %s20, 0
    %p83 = por %p81, %p82
    %p84 = scmp.ne.s32.totalorder %s70, %s71
    %p85 = scmp.eq.s32.totalorder %s21, 1
    %p86 = por %p84, %p85
    %p88 = scmp.ne.s32.totalorder %s71, %s87
    %p89 = scmp.eq.s32.totalorder %s21, 0
    %p90 = por %p88, %p89
    %s91 = ssub.s32 %s22, %s34
    %s92 = ssub.s32 %s23, %s30
    %s93 = sor.u32 %s91, %s92
    %p94 = scmp.eq.s32.totalorder %s93, 0
    %s96 = sadd.s32 %s95, 1
    %s97 = scalar_select %p94, %s95, %s96
    %p100 = pneg %p94
    %p101 = scmp.eq.s32.totalorder %s15, 1
    %p102 = por %p100, %p101
    %p103 = scmp.ne.s32.totalorder %s95, %s98
    %p104 = scmp.eq.s32.totalorder %s15, 0
    %p105 = por %p103, %p104
    %p106 = scmp.ne.s32.totalorder %s95, %s98
    %p107 = scmp.eq.s32.totalorder %s20, 1
    %p108 = por %p106, %p107
    %p109 = scmp.ne.s32.totalorder %s98, %s99
    %p110 = scmp.eq.s32.totalorder %s20, 0
    %p111 = por %p109, %p110
    %p112 = scmp.ne.s32.totalorder %s98, %s99
    %p113 = scmp.eq.s32.totalorder %s21, 1
    %p114 = por %p112, %p113
    %p116 = scmp.ne.s32.totalorder %s99, %s115
    %p117 = scmp.eq.s32.totalorder %s21, 0
    %p118 = por %p116, %p117
    %s119 = ssub.s32 %s22, %s34
    %s120 = ssub.s32 %s23, %s30
    %s121 = sor.u32 %s119, %s120
    %p122 = scmp.eq.s32.totalorder %s121, 0
    %s124 = sadd.s32 %s123, 1
    %s125 = scalar_select %p122, %s123, %s124
    %p128 = pneg %p122
    %p129 = scmp.eq.s32.totalorder %s15, 1
    %p130 = por %p128, %p129
    %p131 = scmp.ne.s32.totalorder %s123, %s126
    %p132 = scmp.eq.s32.totalorder %s15, 0
    %p133 = por %p131, %p132
    %p134 = scmp.ne.s32.totalorder %s123, %s126
    %p135 = scmp.eq.s32.totalorder %s20, 1
    %p136 = por %p134, %p135
    %p137 = scmp.ne.s32.totalorder %s126, %s127
    %p138 = scmp.eq.s32.totalorder %s20, 0
    %p139 = por %p137, %p138
    %p140 = scmp.ne.s32.totalorder %s126, %s127
    %p141 = scmp.eq.s32.totalorder %s21, 1
    %p142 = por %p140, %p141
    %p144 = scmp.ne.s32.totalorder %s127, %s143
    %p145 = scmp.eq.s32.totalorder %s21, 0
    %p146 = por %p144, %p145
    %s147 = ssub.s32 %s22, %s34
    %s148 = ssub.s32 %s23, %s30
    %s149 = sor.u32 %s147, %s148
    %p150 = scmp.eq.s32.totalorder %s149, 0
    %s152 = sadd.s32 %s151, 1
    %s153 = scalar_select %p150, %s151, %s152
    %p156 = pneg %p150
    %p157 = scmp.eq.s32.totalorder %s15, 1
    %p158 = por %p156, %p157
    %p159 = scmp.ne.s32.totalorder %s151, %s154
    %p160 = scmp.eq.s32.totalorder %s15, 0
    %p161 = por %p159, %p160
    %p162 = scmp.ne.s32.totalorder %s151, %s154
    %p163 = scmp.eq.s32.totalorder %s20, 1
    %p164 = por %p162, %p163
    %p165 = scmp.ne.s32.totalorder %s154, %s155
    %p166 = scmp.eq.s32.totalorder %s20, 0
    %p167 = por %p165, %p166
    %p168 = scmp.ne.s32.totalorder %s154, %s155
    %p169 = scmp.eq.s32.totalorder %s21, 1
    %p170 = por %p168, %p169
    %p172 = scmp.ne.s32.totalorder %s155, %s171
    %p173 = scmp.eq.s32.totalorder %s21, 0
    %p174 = por %p172, %p173
    %s175 = ssub.s32 %s22, %s34
    %s176 = ssub.s32 %s23, %s30
    %s177 = sor.u32 %s175, %s176
    %p178 = scmp.eq.s32.totalorder %s177, 0
    %s180 = sadd.s32 %s179, 1
    %s181 = scalar_select %p178, %s179, %s180
    %p184 = pneg %p178
    %p185 = scmp.eq.s32.totalorder %s15, 1
    %p186 = por %p184, %p185
    %p187 = scmp.ne.s32.totalorder %s179, %s182
    %p188 = scmp.eq.s32.totalorder %s15, 0
    %p189 = por %p187, %p188
    %p190 = scmp.ne.s32.totalorder %s179, %s182
    %p191 = scmp.eq.s32.totalorder %s20, 1
    %p192 = por %p190, %p191
    %p193 = scmp.ne.s32.totalorder %s182, %s183
    %p194 = scmp.eq.s32.totalorder %s20, 0
    %p195 = por %p193, %p194
    %p196 = scmp.ne.s32.totalorder %s182, %s183
    %p197 = scmp.eq.s32.totalorder %s21, 1
    %p198 = por %p196, %p197
    %p200 = scmp.ne.s32.totalorder %s183, %s199
    %p201 = scmp.eq.s32.totalorder %s21, 0
    %p202 = por %p200, %p201
    %s204 = sadd.s32 %s203, 1
    %p207 = scmp.eq.s32.totalorder %s15, 1
    %p208 = scmp.ne.s32.totalorder %s203, %s205
    %p209 = scmp.eq.s32.totalorder %s15, 0
    %p210 = por %p208, %p209
    %p211 = scmp.ne.s32.totalorder %s203, %s205
    %p212 = scmp.eq.s32.totalorder %s20, 1
    %p213 = por %p211, %p212
    %p214 = scmp.ne.s32.totalorder %s205, %s206
    %p215 = scmp.eq.s32.totalorder %s20, 0
    %p216 = por %p214, %p215
    %p217 = scmp.ne.s32.totalorder %s205, %s206
    %p218 = scmp.eq.s32.totalorder %s21, 1
    %p219 = por %p217, %p218
    %p221 = scmp.ne.s32.totalorder %s206, %s220
    %p222 = scmp.eq.s32.totalorder %s21, 0
    %p223 = por %p221, %p222
    %s224 = sadd.s32 %s22, %s23
    %s225 = sadd.s32 %s34, %s30
    %s226 = ssub.s32 %s224, %s225
    %p227 = scmp.eq.s32.totalorder %s226, 0
    %s229 = sadd.s32 %s228, 1
    %s230 = scalar_select %p227, %s228, %s229
    %p233 = pneg %p227
    %p234 = scmp.eq.s32.totalorder %s15, 1
    %p235 = por %p233, %p234
    %p236 = scmp.ne.s32.totalorder %s228, %s231
    %p237 = scmp.eq.s32.totalorder %s15, 0
    %p238 = por %p236, %p237
    %p239 = scmp.ne.s32.totalorder %s228, %s231
    %p240 = scmp.eq.s32.totalorder %s20, 1
    %p241 = por %p239, %p240
    %p242 = scmp.ne.s32.totalorder %s231, %s232
    %p243 = scmp.eq.s32.totalorder %s20, 0
    %p244 = por %p242, %p243
    %p245 = scmp.ne.s32.totalorder %s231, %s232
    %p246 = scmp.eq.s32.totalorder %s21, 1
    %p247 = por %p245, %p246
    %p249 = scmp.ne.s32.totalorder %s232, %s248
    %p250 = scmp.eq.s32.totalorder %s21, 0
    %p251 = por %p249, %p250
    %s252 = sadd.s32 %s22, %s23
    %s253 = sadd.s32 %s34, %s30
    %s254 = ssub.s32 %s252, %s253
    %p255 = scmp.eq.s32.totalorder %s254, 0
    %s257 = sadd.s32 %s256, 1
    %s258 = scalar_select %p255, %s256, %s257
    %p261 = pneg %p255
    %p262 = scmp.eq.s32.totalorder %s15, 1
    %p263 = por %p261, %p262
    %p264 = scmp.ne.s32.totalorder %s256, %s259
    %p265 = scmp.eq.s32.totalorder %s15, 0
    %p266 = por %p264, %p265
    %p267 = scmp.ne.s32.totalorder %s256, %s259
    %p268 = scmp.eq.s32.totalorder %s20, 1
    %p269 = por %p267, %p268
    %p270 = scmp.ne.s32.totalorder %s259, %s260
    %p271 = scmp.eq.s32.totalorder %s20, 0
    %p272 = por %p270, %p271
    %p273 = scmp.ne.s32.totalorder %s259, %s260
    %p274 = scmp.eq.s32.totalorder %s21, 1
    %p275 = por %p273, %p274
    %p277 = scmp.ne.s32.totalorder %s260, %s276
    %p278 = scmp.eq.s32.totalorder %s21, 0
    %p279 = por %p277, %p278
    %p280 = scmp.le.s32.totalorder 1, %s15
    %p281 = scmp.lt.s32.totalorder %s15, 3
    %p282 = pnand %p280, %p281
    %p283 = pneg %p282
    // Predicated region
    $region9: #{spatial_path.6} parent=5 // pred_check
      _
    $region10: #{spatial_path.6} parent=5 // pred_check_branch
      %285 = sbr.rel (%p282) target = $region12
    $region11: #{spatial_path.6} parent=5 // pred_region
      %s286 = ssub.s32 %s15, 1
      // Predicated region
      $region13: #{spatial_path.6} parent=11 // pred_check
        %p287 = pneg %p216
      $region14: #{spatial_path.6} parent=11 // pred_check_branch
        %289 = sbr.rel (%p287) target = $region16
      $region15: #{spatial_path.6} parent=11 // pred_region
        _
      $region16: #{spatial_path.6} parent=11 // pred_fallthru
        _
    $region12: #{spatial_path.6} parent=5 // pred_fallthru
      _
    %p290 = scmp.lt.s32.totalorder %s15, 2
    // Predicated region
    $region17: #{spatial_path.6} parent=5 // pred_check
      %p291 = pneg %p290
    $region18: #{spatial_path.6} parent=5 // pred_check_branch
      %293 = sbr.rel (%p291) target = $region20
    $region19: #{spatial_path.6} parent=5 // pred_region
      // Predicated region
      $region21: #{spatial_path.6} parent=19 // pred_check
        %p294 = pneg %p49
      $region22: #{spatial_path.6} parent=19 // pred_check_branch
        %296 = sbr.rel (%p294) target = $region24
      $region23: #{spatial_path.6} parent=19 // pred_region
        %s297 = smul.u32 8, %s23
        %p298 = scmp.lt.s32.totalorder %s22, 1
        %s299 = scalar_select %p298, %s22, 1
        %p300 = scmp.lt.s32.totalorder %s297, 7
        %s301 = scalar_select %p300, %s297, 7
        %s302 = smul.addr %s301, 2
        %s303 = smul.addr %s299, 16
        %s304 = sadd.s32 %s302, %s303
        %s305 = smul.addr %s304, 4
        %s306 = scalar_lea.vmem %s0, %s305
        %s307 = smul.u32 8, %s23
      $region24: #{spatial_path.6} parent=19 // pred_fallthru
        _
      // Predicated region
      $region25: #{spatial_path.6} parent=19 // pred_check
        %p308 = pneg %p77
      $region26: #{spatial_path.6} parent=19 // pred_check_branch
        %310 = sbr.rel (%p308) target = $region28
      $region27: #{spatial_path.6} parent=19 // pred_region
        %s311 = smul.u32 8, %s23
        %p312 = scmp.lt.s32.totalorder %s22, 1
        %s313 = scalar_select %p312, %s22, 1
        %p314 = scmp.lt.s32.totalorder %s311, 7
        %s315 = scalar_select %p314, %s311, 7
        %s316 = smul.addr %s315, 2
        %s317 = smul.addr %s313, 16
        %s318 = sadd.s32 %s316, %s317
        %s319 = smul.addr %s318, 4
        %s320 = scalar_lea.vmem %s1, %s319
        %s321 = smul.u32 8, %s23
      $region28: #{spatial_path.6} parent=19 // pred_fallthru
        _
      // Predicated region
      $region29: #{spatial_path.6} parent=19 // pred_check
        %p322 = pneg %p105
      $region30: #{spatial_path.6} parent=19 // pred_check_branch
        %324 = sbr.rel (%p322) target = $region32
      $region31: #{spatial_path.6} parent=19 // pred_region
        %s325 = smul.u32 8, %s23
        %p326 = scmp.lt.s32.totalorder %s22, 1
        %s327 = scalar_select %p326, %s22, 1
        %p328 = scmp.lt.s32.totalorder %s325, 7
        %s329 = scalar_select %p328, %s325, 7
        %s330 = smul.addr %s329, 2
        %s331 = smul.addr %s327, 16
        %s332 = sadd.s32 %s330, %s331
        %s333 = smul.addr %s332, 4
        %s334 = scalar_lea.vmem %s2, %s333
        %s335 = smul.u32 8, %s23
      $region32: #{spatial_path.6} parent=19 // pred_fallthru
        _
      // Predicated region
      $region33: #{spatial_path.6} parent=19 // pred_check
        %p336 = pneg %p133
      $region34: #{spatial_path.6} parent=19 // pred_check_branch
        %338 = sbr.rel (%p336) target = $region36
      $region35: #{spatial_path.6} parent=19 // pred_region
        %s339 = smul.u32 8, %s23
        %p340 = scmp.lt.s32.totalorder %s22, 1
        %s341 = scalar_select %p340, %s22, 1
        %p342 = scmp.lt.s32.totalorder %s339, 7
        %s343 = scalar_select %p342, %s339, 7
        %s344 = smul.addr %s343, 2
        %s345 = smul.addr %s341, 16
        %s346 = sadd.s32 %s344, %s345
        %s347 = smul.addr %s346, 4
        %s348 = scalar_lea.vmem %s3, %s347
        %s349 = smul.u32 8, %s23
      $region36: #{spatial_path.6} parent=19 // pred_fallthru
        _
      // Predicated region
      $region37: #{spatial_path.6} parent=19 // pred_check
        %p350 = pneg %p161
      $region38: #{spatial_path.6} parent=19 // pred_check_branch
        %352 = sbr.rel (%p350) target = $region40
      $region39: #{spatial_path.6} parent=19 // pred_region
        %s353 = smul.u32 8, %s23
        %p354 = scmp.lt.s32.totalorder %s22, 1
        %s355 = scalar_select %p354, %s22, 1
        %p356 = scmp.lt.s32.totalorder %s353, 7
        %s357 = scalar_select %p356, %s353, 7
        %s358 = smul.addr %s357, 2
        %s359 = smul.addr %s355, 16
        %s360 = sadd.s32 %s358, %s359
        %s361 = smul.addr %s360, 4
        %s362 = scalar_lea.vmem %s4, %s361
        %s363 = smul.u32 8, %s23
      $region40: #{spatial_path.6} parent=19 // pred_fallthru
        _
      // Predicated region
      $region41: #{spatial_path.6} parent=19 // pred_check
        %p364 = pneg %p189
      $region42: #{spatial_path.6} parent=19 // pred_check_branch
        %366 = sbr.rel (%p364) target = $region44
      $region43: #{spatial_path.6} parent=19 // pred_region
        %s367 = smul.u32 8, %s23
        %p368 = scmp.lt.s32.totalorder %s22, 1
        %s369 = scalar_select %p368, %s22, 1
        %p370 = scmp.lt.s32.totalorder %s367, 7
        %s371 = scalar_select %p370, %s367, 7
        %s372 = smul.addr %s371, 2
        %s373 = smul.addr %s369, 16
        %s374 = sadd.s32 %s372, %s373
        %s375 = smul.addr %s374, 4
        %s376 = scalar_lea.vmem %s5, %s375
        %s377 = smul.u32 8, %s23
      $region44: #{spatial_path.6} parent=19 // pred_fallthru
        _
    $region20: #{spatial_path.6} parent=5 // pred_fallthru
      _
    %p378 = scmp.le.s32.totalorder 1, %s15
    %p379 = scmp.lt.s32.totalorder %s15, 3
    %p380 = pnand %p378, %p379
    %p381 = pneg %p380
    // Predicated region
    $region45: #{spatial_path.6} parent=5 // pred_check
      _
    $region46: #{spatial_path.6} parent=5 // pred_check_branch
      %383 = sbr.rel (%p380) target = $region48
    $region47: #{spatial_path.6} parent=5 // pred_region
      %s384 = ssub.s32 %s15, 1
      %s385 = smul.u32 8, %s25
      %p386 = scmp.lt.s32.totalorder %s24, 1
      %s387 = scalar_select %p386, %s24, 1
      %p388 = scmp.lt.s32.totalorder %s385, 7
      %s389 = scalar_select %p388, %s385, 7
      %s390 = smul.addr %s389, 2
      %s391 = smul.addr %s387, 16
      %s392 = sadd.s32 %s390, %s391
      %s393 = smul.addr %s392, 4
      %s394 = scalar_lea.vmem %s0, %s393
      %p395 = pneg %p55
      %p396 = pneg %p52
      %s397 = smul.u32 8, %s25
      %p398 = scmp.lt.s32.totalorder %s24, 1
      %s399 = scalar_select %p398, %s24, 1
      %p400 = scmp.lt.s32.totalorder %s397, 7
      %s401 = scalar_select %p400, %s397, 7
      %s402 = smul.addr %s401, 2
      %s403 = smul.addr %s399, 16
      %s404 = sadd.s32 %s402, %s403
      %s405 = smul.addr %s404, 4
      %s406 = scalar_lea.vmem %s1, %s405
      %p407 = pneg %p83
      %p408 = pneg %p80
      %s409 = smul.u32 8, %s25
      %p410 = scmp.lt.s32.totalorder %s24, 1
      %s411 = scalar_select %p410, %s24, 1
      %p412 = scmp.lt.s32.totalorder %s409, 7
      %s413 = scalar_select %p412, %s409, 7
      %s414 = smul.addr %s413, 2
      %s415 = smul.addr %s411, 16
      %s416 = sadd.s32 %s414, %s415
      %s417 = smul.addr %s416, 4
      %s418 = scalar_lea.vmem %s2, %s417
      %p419 = pneg %p111
      %p420 = pneg %p108
      %s421 = smul.u32 8, %s25
      %p422 = scmp.lt.s32.totalorder %s24, 1
      %s423 = scalar_select %p422, %s24, 1
      %p424 = scmp.lt.s32.totalorder %s421, 7
      %s425 = scalar_select %p424, %s421, 7
      %s426 = smul.addr %s425, 2
      %s427 = smul.addr %s423, 16
      %s428 = sadd.s32 %s426, %s427
      %s429 = smul.addr %s428, 4
      %s430 = scalar_lea.vmem %s3, %s429
      %p431 = pneg %p139
      %p432 = pneg %p136
      %s433 = smul.u32 8, %s25
      %p434 = scmp.lt.s32.totalorder %s24, 1
      %s435 = scalar_select %p434, %s24, 1
      %p436 = scmp.lt.s32.totalorder %s433, 7
      %s437 = scalar_select %p436, %s433, 7
      %s438 = smul.addr %s437, 2
      %s439 = smul.addr %s435, 16
      %s440 = sadd.s32 %s438, %s439
      %s441 = smul.addr %s440, 4
      %s442 = scalar_lea.vmem %s4, %s441
      %p443 = pneg %p167
      %p444 = pneg %p164
      %s445 = smul.u32 8, %s25
      %p446 = scmp.lt.s32.totalorder %s24, 1
      %s447 = scalar_select %p446, %s24, 1
      %p448 = scmp.lt.s32.totalorder %s445, 7
      %s449 = scalar_select %p448, %s445, 7
      %s450 = smul.addr %s449, 2
      %s451 = smul.addr %s447, 16
      %s452 = sadd.s32 %s450, %s451
      %s453 = smul.addr %s452, 4
      %s454 = scalar_lea.vmem %s5, %s453
      %p455 = pneg %p195
      %p456 = pneg %p192
      %p457 = pneg %p216
      %p458 = pneg %p213
      %p459 = pneg %p244
      %p460 = pneg %p241
      %s461 = sadd.s32 %s24, %s25
      %p462 = scmp.lt.s32.totalorder %s461, 1
      %s463 = scalar_select %p462, %s461, 1
      %s464 = smul.addr %s463, 8
      %s465 = smul.addr %s464, 4
      %s466 = scalar_lea.vmem %s7, %s465
      %p467 = pneg %p272
      %p468 = pneg %p269
      %s469 = sadd.s32 %s24, %s25
      %p470 = scmp.lt.s32.totalorder %s469, 1
      %s471 = scalar_select %p470, %s469, 1
      %s472 = smul.addr %s471, 2
      %s473 = scalar_lea.vmem %s8, %s472
      %s474 = smul.u32 8, %s25
      %p475 = scmp.lt.s32.totalorder %s24, 1
      %s476 = scalar_select %p475, %s24, 1
      %p477 = scmp.lt.s32.totalorder %s474, 7
      %s478 = scalar_select %p477, %s474, 7
      %s479 = smul.addr %s478, 2
      %s480 = smul.addr %s476, 16
      %s481 = sadd.s32 %s479, %s480
      %s482 = smul.addr %s481, 4
      %s483 = scalar_lea.vmem %s0, %s482
      %s484 = smul.u32 8, %s25
      %s485 = smul.u32 8, %s25
      %p486 = scmp.lt.s32.totalorder %s24, 1
      %s487 = scalar_select %p486, %s24, 1
      %p488 = scmp.lt.s32.totalorder %s485, 7
      %s489 = scalar_select %p488, %s485, 7
      %s490 = smul.addr %s489, 2
      %s491 = smul.addr %s487, 16
      %s492 = sadd.s32 %s490, %s491
      %s493 = smul.addr %s492, 4
      %s494 = scalar_lea.vmem %s1, %s493
      %s495 = smul.u32 8, %s25
      %s496 = smul.u32 8, %s25
      %p497 = scmp.lt.s32.totalorder %s24, 1
      %s498 = scalar_select %p497, %s24, 1
      %p499 = scmp.lt.s32.totalorder %s496, 7
      %s500 = scalar_select %p499, %s496, 7
      %s501 = smul.addr %s500, 2
      %s502 = smul.addr %s498, 16
      %s503 = sadd.s32 %s501, %s502
      %s504 = smul.addr %s503, 4
      %s505 = scalar_lea.vmem %s2, %s504
      %s506 = smul.u32 8, %s25
      %s507 = smul.u32 8, %s25
      %p508 = scmp.lt.s32.totalorder %s24, 1
      %s509 = scalar_select %p508, %s24, 1
      %p510 = scmp.lt.s32.totalorder %s507, 7
      %s511 = scalar_select %p510, %s507, 7
      %s512 = smul.addr %s511, 2
      %s513 = smul.addr %s509, 16
      %s514 = sadd.s32 %s512, %s513
      %s515 = smul.addr %s514, 4
      %s516 = scalar_lea.vmem %s3, %s515
      %s517 = smul.u32 8, %s25
      %s518 = smul.u32 8, %s25
      %p519 = scmp.lt.s32.totalorder %s24, 1
      %s520 = scalar_select %p519, %s24, 1
      %p521 = scmp.lt.s32.totalorder %s518, 7
      %s522 = scalar_select %p521, %s518, 7
      %s523 = smul.addr %s522, 2
      %s524 = smul.addr %s520, 16
      %s525 = sadd.s32 %s523, %s524
      %s526 = smul.addr %s525, 4
      %s527 = scalar_lea.vmem %s4, %s526
      %s528 = smul.u32 8, %s25
      %s529 = smul.u32 8, %s25
      %p530 = scmp.lt.s32.totalorder %s24, 1
      %s531 = scalar_select %p530, %s24, 1
      %p532 = scmp.lt.s32.totalorder %s529, 7
      %s533 = scalar_select %p532, %s529, 7
      %s534 = smul.addr %s533, 2
      %s535 = smul.addr %s531, 16
      %s536 = sadd.s32 %s534, %s535
      %s537 = smul.addr %s536, 4
      %s538 = scalar_lea.vmem %s5, %s537
      %s539 = smul.u32 8, %s25
      %s540 = sadd.s32 %s24, %s25
      %p541 = scmp.lt.s32.totalorder %s540, 1
      %s542 = scalar_select %p541, %s540, 1
      %s543 = smul.addr %s542, 8
      %s544 = smul.addr %s543, 4
      %s545 = scalar_lea.vmem %s7, %s544
      %s546 = sadd.s32 %s24, %s25
      %s547 = sadd.s32 %s24, %s25
      %p548 = scmp.lt.s32.totalorder %s547, 1
      %s549 = scalar_select %p548, %s547, 1
      %s550 = smul.addr %s549, 2
      %s551 = scalar_lea.vmem %s8, %s550
      %s552 = sadd.s32 %s24, %s25
      %v554 = vld [vmem:[%s483] sm:$0xf]
      %v555 = vld [vmem:[%s483 + $0x4] sm:$0x1]
      %v556 = vld [vmem:[%s483 + $0x8] sm:$0xf]
      %v557 = vld [vmem:[%s483 + $0xc] sm:$0x1]
      %v558 = vld [vmem:[%s483 + $0x10] sm:$0xf]
      %v559 = vld [vmem:[%s483 + $0x14] sm:$0x1]
      %v560 = vld [vmem:[%s483 + $0x18] sm:$0xf]
      %v561 = vld [vmem:[%s483 + $0x1c] sm:$0x1]
      %v562 = vld [vmem:[%s483 + $0x20] sm:$0xf]
      %v563 = vld [vmem:[%s483 + $0x24] sm:$0x1]
      %v564 = vld [vmem:[%s483 + $0x28] sm:$0xf]
      %v565 = vld [vmem:[%s483 + $0x2c] sm:$0x1]
      %v566 = vld [vmem:[%s483 + $0x30] sm:$0xf]
      %v567 = vld [vmem:[%s483 + $0x34] sm:$0x1]
      %v568 = vld [vmem:[%s483 + $0x38] sm:$0xf]
      %v569 = vld [vmem:[%s483 + $0x3c] sm:$0x1]
      %v570 = vld [vmem:[%s494] sm:$0xf]
      %v571 = vld [vmem:[%s494 + $0x8] sm:$0xf]
      %v572 = vld [vmem:[%s494 + $0x10] sm:$0xf]
      %v573 = vld [vmem:[%s494 + $0x18] sm:$0xf]
      %v574 = vld [vmem:[%s494 + $0x20] sm:$0xf]
      %v575 = vld [vmem:[%s494 + $0x28] sm:$0xf]
      %v576 = vld [vmem:[%s494 + $0x30] sm:$0xf]
      %v577 = vld [vmem:[%s494 + $0x38] sm:$0xf]
      %v578 = vld [vmem:[%s505] sm:$0xf]
      %v579 = vld [vmem:[%s505 + $0x4] sm:$0x1]
      %v580 = vld [vmem:[%s505 + $0x8] sm:$0xf]
      %v581 = vld [vmem:[%s505 + $0xc] sm:$0x1]
      %v582 = vld [vmem:[%s505 + $0x10] sm:$0xf]
      %v583 = vld [vmem:[%s505 + $0x14] sm:$0x1]
      %v584 = vld [vmem:[%s505 + $0x18] sm:$0xf]
      %v585 = vld [vmem:[%s505 + $0x1c] sm:$0x1]
      %v586 = vld [vmem:[%s505 + $0x20] sm:$0xf]
      %v587 = vld [vmem:[%s505 + $0x24] sm:$0x1]
      %v588 = vld [vmem:[%s505 + $0x28] sm:$0xf]
      %v589 = vld [vmem:[%s505 + $0x2c] sm:$0x1]
      %v590 = vld [vmem:[%s505 + $0x30] sm:$0xf]
      %v591 = vld [vmem:[%s505 + $0x34] sm:$0x1]
      %v592 = vld [vmem:[%s505 + $0x38] sm:$0xf]
      %v593 = vld [vmem:[%s505 + $0x3c] sm:$0x1]
      %v594 = vld [vmem:[%s516] sm:$0xf]
      %v595 = vld [vmem:[%s516 + $0x8] sm:$0xf]
      %v596 = vld [vmem:[%s516 + $0x10] sm:$0xf]
      %v597 = vld [vmem:[%s516 + $0x18] sm:$0xf]
      %v598 = vld [vmem:[%s516 + $0x20] sm:$0xf]
      %v599 = vld [vmem:[%s516 + $0x28] sm:$0xf]
      %v600 = vld [vmem:[%s516 + $0x30] sm:$0xf]
      %v601 = vld [vmem:[%s516 + $0x38] sm:$0xf]
      %v602 = vld [vmem:[%s527] sm:$0xf]
      %v603 = vld [vmem:[%s527 + $0x4] sm:$0x1]
      %v604 = vld [vmem:[%s527 + $0x8] sm:$0xf]
      %v605 = vld [vmem:[%s527 + $0xc] sm:$0x1]
      %v606 = vld [vmem:[%s527 + $0x10] sm:$0xf]
      %v607 = vld [vmem:[%s527 + $0x14] sm:$0x1]
      %v608 = vld [vmem:[%s527 + $0x18] sm:$0xf]
      %v609 = vld [vmem:[%s527 + $0x1c] sm:$0x1]
      %v610 = vld [vmem:[%s527 + $0x20] sm:$0xf]
      %v611 = vld [vmem:[%s527 + $0x24] sm:$0x1]
      %v612 = vld [vmem:[%s527 + $0x28] sm:$0xf]
      %v613 = vld [vmem:[%s527 + $0x2c] sm:$0x1]
      %v614 = vld [vmem:[%s527 + $0x30] sm:$0xf]
      %v615 = vld [vmem:[%s527 + $0x34] sm:$0x1]
      %v616 = vld [vmem:[%s527 + $0x38] sm:$0xf]
      %v617 = vld [vmem:[%s527 + $0x3c] sm:$0x1]
      %v618 = vld [vmem:[%s538] sm:$0xf]
      %v619 = vld [vmem:[%s538 + $0x8] sm:$0xf]
      %v620 = vld [vmem:[%s538 + $0x10] sm:$0xf]
      %v621 = vld [vmem:[%s538 + $0x18] sm:$0xf]
      %v622 = vld [vmem:[%s538 + $0x20] sm:$0xf]
      %v623 = vld [vmem:[%s538 + $0x28] sm:$0xf]
      %v624 = vld [vmem:[%s538 + $0x30] sm:$0xf]
      %v625 = vld [vmem:[%s538 + $0x38] sm:$0xf]
      %v626 = vld [vmem:[%s6] sm:$0x3]
      %s627 = scalar_lea.vmem %s6, 2
      %v628 = vld [vmem:[%s627] sm:$0x3]
      %v637 = vunpack.c.l.b16 %v570
      %v638 = vunpack.c.l.b16 %v571
      %v639 = vunpack.c.l.b16 %v572
      %v640 = vunpack.c.l.b16 %v573
      %v641 = vunpack.c.l.b16 %v574
      %v642 = vunpack.c.l.b16 %v575
      %v643 = vunpack.c.l.b16 %v576
      %v644 = vunpack.c.l.b16 %v577
      %v645 = vpack.c.b16 %v638, %v637
      %v646 = vpack.c.b16 %v640, %v639
      %v647 = vpack.c.b16 %v642, %v641
      %v648 = vpack.c.b16 %v644, %v643
      %vm649 = vcmask 23552
      %v651 = vsel %vm649, %v645, 0
      %v654 = vsel %vm649, %v646, 0
      %v657 = vsel %vm649, %v647, 0
      %v660 = vsel %vm649, %v648, 0
      %vm662 = vcmask 1040384
      %vm663 = vcmask 1041408
      %v664 = vsel %vm662, 4294967295, 65535
      %v665 = vsel %vm663, %v664, 0
      %v667 = vand.u32 %v628, %v665
      %669 = vmatprep.subr.bf16.mxu0 0
      %670 = vmatpush1.bf16.msra.mxu0 %v667
      %671 = vmatprep.subr.bf16.mxu0 0
      %672 = vmatpush1.bf16.msra.mxu0 0
      %673 = vmatprep.subr.bf16.mxu0 0
      %674 = vmatpush1.bf16.msra.mxu0 0
      %675 = vmatprep.subr.bf16.mxu0 0
      %676 = vmatpush1.bf16.msra.mxu0 0
      %677 = vmatprep.subr.bf16.mxu0 0
      %678 = vmatpush1.bf16.msra.mxu0 0
      %679 = vmatprep.subr.bf16.mxu0 0
      %680 = vmatpush1.bf16.msra.mxu0 0
      %681 = vmatprep.subr.bf16.mxu0 0
      %682 = vmatpush1.bf16.msra.mxu0 0
      %683 = vmatprep.subr.bf16.mxu0 0
      %684 = vmatpush1.bf16.msra.mxu0 0
      %685 = vmatprep.subr.bf16.mxu0 0
      %686 = vmatpush1.bf16.msra.mxu0 0
      %687 = vmatprep.subr.bf16.mxu0 0
      %688 = vmatpush1.bf16.msra.mxu0 0
      %689 = vmatprep.subr.bf16.mxu0 0
      %690 = vmatpush1.bf16.msra.mxu0 0
      %691 = vmatprep.subr.bf16.mxu0 0
      %692 = vmatpush1.bf16.msra.mxu0 0
      %693 = vmatprep.subr.bf16.mxu0 0
      %694 = vmatpush1.bf16.msra.mxu0 0
      %695 = vmatprep.subr.bf16.mxu0 0
      %696 = vmatpush1.bf16.msra.mxu0 0
      %697 = vmatprep.subr.bf16.mxu0 0
      %698 = vmatpush1.bf16.msra.mxu0 0
      %699 = vmatprep.subr.bf16.mxu0 0
      %700 = vmatpush1.bf16.msra.mxu0 0
      %701 = vmatprep.mubr.bf16.mxu0 0
      %702 = vmatmul.mubr.bf16.gmra.mrb[0].mxu0 %v651
      %v703 = vpop.f32.mrb[0].mxu0
      %v704 = vadd.f32 0.0, %v703
      %v705 = vpop.f32.mrb[0].mxu0
      %v706 = vpop.f32.mrb[0].mxu0
      %v707 = vadd.f32 0.0, %v706
      %v708 = vpop.f32.mrb[0].mxu0
      %709 = vmatprep.mubr.bf16.mxu0 0
      %710 = vmatmul.mubr.bf16.gmra.mrb[0].mxu0 %v654
      %v711 = vpop.f32.mrb[0].mxu0
      %v712 = vadd.f32 0.0, %v711
      %v713 = vpop.f32.mrb[0].mxu0
      %v714 = vpop.f32.mrb[0].mxu0
      %v715 = vadd.f32 0.0, %v714
      %v716 = vpop.f32.mrb[0].mxu0
      %717 = vmatprep.mubr.bf16.mxu0 0
      %718 = vmatmul.mubr.bf16.gmra.mrb[0].mxu0 %v657
      %v719 = vpop.f32.mrb[0].mxu0
      %v720 = vadd.f32 0.0, %v719
      %v721 = vpop.f32.mrb[0].mxu0
      %v722 = vpop.f32.mrb[0].mxu0
      %v723 = vadd.f32 0.0, %v722
      %v724 = vpop.f32.mrb[0].mxu0
      %725 = vmatprep.mubr.bf16.mxu0 0
      %726 = vmatmul.mubr.bf16.gmra.mrb[0].mxu0 %v660
      %v727 = vpop.f32.mrb[0].mxu0
      %v728 = vadd.f32 0.0, %v727
      %v729 = vpop.f32.mrb[0].mxu0
      %v730 = vpop.f32.mrb[0].mxu0
      %v731 = vadd.f32 0.0, %v730
      %v732 = vpop.f32.mrb[0].mxu0
      %733 = vdwg.mxu0
      %v742 = vunpack.c.l.b16 %v554
      %v743 = vunpack.c.l.b16 %v556
      %v744 = vunpack.c.l.b16 %v558
      %v745 = vunpack.c.l.b16 %v560
      %v746 = vunpack.c.l.b16 %v562
      %v747 = vunpack.c.l.b16 %v564
      %v748 = vunpack.c.l.b16 %v566
      %v749 = vunpack.c.l.b16 %v568
      %v750 = vpack.c.b16 %v743, %v742
      %v751 = vpack.c.b16 %v745, %v744
      %v752 = vpack.c.b16 %v747, %v746
      %v753 = vpack.c.b16 %v749, %v748
      %v755 = vsel %vm649, %v750, 0
      %v758 = vsel %vm649, %v751, 0
      %v761 = vsel %vm649, %v752, 0
      %v764 = vsel %vm649, %v753, 0
      %v767 = vand.u32 %v626, %v665
      %769 = vmatprep.subr.bf16.mxu0 0
      %770 = vmatpush1.bf16.msra.mxu0 %v767
      %771 = vmatprep.subr.bf16.mxu0 0
      %772 = vmatpush1.bf16.msra.mxu0 0
      %773 = vmatprep.subr.bf16.mxu0 0
      %774 = vmatpush1.bf16.msra.mxu0 0
      %775 = vmatprep.subr.bf16.mxu0 0
      %776 = vmatpush1.bf16.msra.mxu0 0
      %777 = vmatprep.subr.bf16.mxu0 0
      %778 = vmatpush1.bf16.msra.mxu0 0
      %779 = vmatprep.subr.bf16.mxu0 0
      %780 = vmatpush1.bf16.msra.mxu0 0
      %781 = vmatprep.subr.bf16.mxu0 0
      %782 = vmatpush1.bf16.msra.mxu0 0
      %783 = vmatprep.subr.bf16.mxu0 0
      %784 = vmatpush1.bf16.msra.mxu0 0
      %785 = vmatprep.subr.bf16.mxu0 0
      %786 = vmatpush1.bf16.msra.mxu0 0
      %787 = vmatprep.subr.bf16.mxu0 0
      %788 = vmatpush1.bf16.msra.mxu0 0
      %789 = vmatprep.subr.bf16.mxu0 0
      %790 = vmatpush1.bf16.msra.mxu0 0
      %791 = vmatprep.subr.bf16.mxu0 0
      %792 = vmatpush1.bf16.msra.mxu0 0
      %793 = vmatprep.subr.bf16.mxu0 0
      %794 = vmatpush1.bf16.msra.mxu0 0
      %795 = vmatprep.subr.bf16.mxu0 0
      %796 = vmatpush1.bf16.msra.mxu0 0
      %797 = vmatprep.subr.bf16.mxu0 0
      %798 = vmatpush1.bf16.msra.mxu0 0
      %799 = vmatprep.subr.bf16.mxu0 0
      %800 = vmatpush1.bf16.msra.mxu0 0
      %801 = vmatprep.mubr.bf16.mxu0 0
      %802 = vmatmul.mubr.bf16.gmra.mrb[0].mxu0 %v755
      %v803 = vpop.f32.mrb[0].mxu0
      %v804 = vadd.f32 %v704, %v803
      %v805 = vpop.f32.mrb[0].mxu0
      %v806 = vpop.f32.mrb[0].mxu0
      %v807 = vadd.f32 %v707, %v806
      %v808 = vpop.f32.mrb[0].mxu0
      %809 = vmatprep.mubr.bf16.mxu0 0
      %810 = vmatmul.mubr.bf16.gmra.mrb[0].mxu0 %v758
      %v811 = vpop.f32.mrb[0].mxu0
      %v812 = vadd.f32 %v712, %v811
      %v813 = vpop.f32.mrb[0].mxu0
      %v814 = vpop.f32.mrb[0].mxu0
      %v815 = vadd.f32 %v715, %v814
      %v816 = vpop.f32.mrb[0].mxu0
      %817 = vmatprep.mubr.bf16.mxu0 0
      %818 = vmatmul.mubr.bf16.gmra.mrb[0].mxu0 %v761
      %v819 = vpop.f32.mrb[0].mxu0
      %v820 = vadd.f32 %v720, %v819
      %v821 = vpop.f32.mrb[0].mxu0
      %v822 = vpop.f32.mrb[0].mxu0
      %v823 = vadd.f32 %v723, %v822
      %v824 = vpop.f32.mrb[0].mxu0
      %825 = vmatprep.mubr.bf16.mxu0 0
      %826 = vmatmul.mubr.bf16.gmra.mrb[0].mxu0 %v764
      %v827 = vpop.f32.mrb[0].mxu0
      %v828 = vadd.f32 %v728, %v827
      %v829 = vpop.f32.mrb[0].mxu0
      %v830 = vpop.f32.mrb[0].mxu0
      %v831 = vadd.f32 %v731, %v830
      %v832 = vpop.f32.mrb[0].mxu0
      %833 = vdwg.mxu0
      %vm834 = vsmask.f32 3328
      %vm835 = vsmask.f32 7440
      %vm836 = vmor %vm834, %vm835
      %v838 = vshrl.u32 %v554, 16
      %v840 = vrot.slane %v838, 4
      %v841 = vshll.u32 %v554, 16
      %v843 = vrot.slane %v841, 5
      %v844 = vor.u32 %v840, %v843
      %v845 = vrot.slane %v844, 4
      %v847 = vshll.u32 %v555, 16
      %v849 = vrot.slane %v847, 5
      %v850 = vsel %vm836, %v845, %v849
      %v852 = vshrl.u32 %v556, 16
      %v854 = vrot.slane %v852, 4
      %v855 = vshll.u32 %v556, 16
      %v857 = vrot.slane %v855, 5
      %v858 = vor.u32 %v854, %v857
      %v859 = vrot.slane %v858, 4
      %v861 = vshll.u32 %v557, 16
      %v863 = vrot.slane %v861, 5
      %v864 = vsel %vm836, %v859, %v863
      %v866 = vshrl.u32 %v558, 16
      %v868 = vrot.slane %v866, 4
      %v869 = vshll.u32 %v558, 16
      %v871 = vrot.slane %v869, 5
      %v872 = vor.u32 %v868, %v871
      %v873 = vrot.slane %v872, 4
      %v875 = vshll.u32 %v559, 16
      %v877 = vrot.slane %v875, 5
      %v878 = vsel %vm836, %v873, %v877
      %v880 = vshrl.u32 %v560, 16
      %v882 = vrot.slane %v880, 4
      %v883 = vshll.u32 %v560, 16
      %v885 = vrot.slane %v883, 5
      %v886 = vor.u32 %v882, %v885
      %v887 = vrot.slane %v886, 4
      %v889 = vshll.u32 %v561, 16
      %v891 = vrot.slane %v889, 5
      %v892 = vsel %vm836, %v887, %v891
      %v894 = vshrl.u32 %v562, 16
      %v896 = vrot.slane %v894, 4
      %v897 = vshll.u32 %v562, 16
      %v899 = vrot.slane %v897, 5
      %v900 = vor.u32 %v896, %v899
      %v901 = vrot.slane %v900, 4
      %v903 = vshll.u32 %v563, 16
      %v905 = vrot.slane %v903, 5
      %v906 = vsel %vm836, %v901, %v905
      %v908 = vshrl.u32 %v564, 16
      %v910 = vrot.slane %v908, 4
      %v911 = vshll.u32 %v564, 16
      %v913 = vrot.slane %v911, 5
      %v914 = vor.u32 %v910, %v913
      %v915 = vrot.slane %v914, 4
      %v917 = vshll.u32 %v565, 16
      %v919 = vrot.slane %v917, 5
      %v920 = vsel %vm836, %v915, %v919
      %v922 = vshrl.u32 %v566, 16
      %v924 = vrot.slane %v922, 4
      %v925 = vshll.u32 %v566, 16
      %v927 = vrot.slane %v925, 5
      %v928 = vor.u32 %v924, %v927
      %v929 = vrot.slane %v928, 4
      %v931 = vshll.u32 %v567, 16
      %v933 = vrot.slane %v931, 5
      %v934 = vsel %vm836, %v929, %v933
      %v936 = vshrl.u32 %v568, 16
      %v938 = vrot.slane %v936, 4
      %v939 = vshll.u32 %v568, 16
      %v941 = vrot.slane %v939, 5
      %v942 = vor.u32 %v938, %v941
      %v943 = vrot.slane %v942, 4
      %v945 = vshll.u32 %v569, 16
      %v947 = vrot.slane %v945, 5
      %v948 = vsel %vm836, %v943, %v947
      %s949 = scalar_lea.vmem %s6, 4
      %v950 = vld [vmem:[%s949] sm:$0x3]
      %v951 = vunpack.c.l.b16 %v850
      %v952 = vunpack.c.l.b16 %v864
      %v953 = vunpack.c.l.b16 %v878
      %v954 = vunpack.c.l.b16 %v892
      %v955 = vunpack.c.l.b16 %v906
      %v956 = vunpack.c.l.b16 %v920
      %v957 = vunpack.c.l.b16 %v934
      %v958 = vunpack.c.l.b16 %v948
      %v959 = vpack.c.b16 %v952, %v951
      %v960 = vpack.c.b16 %v954, %v953
      %v961 = vpack.c.b16 %v956, %v955
      %v962 = vpack.c.b16 %v958, %v957
      %v964 = vsel %vm649, %v959, 0
      %v967 = vsel %vm649, %v960, 0
      %v970 = vsel %vm649, %v961, 0
      %v973 = vsel %vm649, %v962, 0
      %v976 = vand.u32 %v950, %v665
      %978 = vmatprep.subr.bf16.mxu0 0
      %979 = vmatpush1.bf16.msra.mxu0 %v976
      %980 = vmatprep.subr.bf16.mxu0 0
      %981 = vmatpush1.bf16.msra.mxu0 0
      %982 = vmatprep.subr.bf16.mxu0 0
      %983 = vmatpush1.bf16.msra.mxu0 0
      %984 = vmatprep.subr.bf16.mxu0 0
      %985 = vmatpush1.bf16.msra.mxu0 0
      %986 = vmatprep.subr.bf16.mxu0 0
      %987 = vmatpush1.bf16.msra.mxu0 0
      %988 = vmatprep.subr.bf16.mxu0 0
      %989 = vmatpush1.bf16.msra.mxu0 0
      %990 = vmatprep.subr.bf16.mxu0 0
      %991 = vmatpush1.bf16.msra.mxu0 0
      %992 = vmatprep.subr.bf16.mxu0 0
      %993 = vmatpush1.bf16.msra.mxu0 0
      %994 = vmatprep.subr.bf16.mxu0 0
      %995 = vmatpush1.bf16.msra.mxu0 0
      %996 = vmatprep.subr.bf16.mxu0 0
      %997 = vmatpush1.bf16.msra.mxu0 0
      %998 = vmatprep.subr.bf16.mxu0 0
      %999 = vmatpush1.bf16.msra.mxu0 0
      %1000 = vmatprep.subr.bf16.mxu0 0
      %1001 = vmatpush1.bf16.msra.mxu0 0
      %1002 = vmatprep.subr.bf16.mxu0 0
      %1003 = vmatpush1.bf16.msra.mxu0 0
      %1004 = vmatprep.subr.bf16.mxu0 0
      %1005 = vmatpush1.bf16.msra.mxu0 0
      %1006 = vmatprep.subr.bf16.mxu0 0
      %1007 = vmatpush1.bf16.msra.mxu0 0
      %1008 = vmatprep.subr.bf16.mxu0 0
      %1009 = vmatpush1.bf16.msra.mxu0 0
      %1010 = vmatprep.mubr.bf16.mxu0 0
      %1011 = vmatmul.mubr.bf16.gmra.mrb[0].mxu0 %v964
      %v1012 = vpop.f32.mrb[0].mxu0
      %v1013 = vadd.f32 0.0, %v1012
      %v1014 = vpop.f32.mrb[0].mxu0
      %v1015 = vpop.f32.mrb[0].mxu0
      %v1016 = vadd.f32 0.0, %v1015
      %v1017 = vpop.f32.mrb[0].mxu0
      %1018 = vmatprep.mubr.bf16.mxu0 0
      %1019 = vmatmul.mubr.bf16.gmra.mrb[0].mxu0 %v967
      %v1020 = vpop.f32.mrb[0].mxu0
      %v1021 = vadd.f32 0.0, %v1020
      %v1022 = vpop.f32.mrb[0].mxu0
      %v1023 = vpop.f32.mrb[0].mxu0
      %v1024 = vadd.f32 0.0, %v1023
      %v1025 = vpop.f32.mrb[0].mxu0
      %1026 = vmatprep.mubr.bf16.mxu0 0
      %1027 = vmatmul.mubr.bf16.gmra.mrb[0].mxu0 %v970
      %v1028 = vpop.f32.mrb[0].mxu0
      %v1029 = vadd.f32 0.0, %v1028
      %v1030 = vpop.f32.mrb[0].mxu0
      %v1031 = vpop.f32.mrb[0].mxu0
      %v1032 = vadd.f32 0.0, %v1031
      %v1033 = vpop.f32.mrb[0].mxu0
      %1034 = vmatprep.mubr.bf16.mxu0 0
      %1035 = vmatmul.mubr.bf16.gmra.mrb[0].mxu0 %v973
      %v1036 = vpop.f32.mrb[0].mxu0
      %v1037 = vadd.f32 0.0, %v1036
      %v1038 = vpop.f32.mrb[0].mxu0
      %v1039 = vpop.f32.mrb[0].mxu0
      %v1040 = vadd.f32 0.0, %v1039
      %v1041 = vpop.f32.mrb[0].mxu0
      %1042 = vdwg.mxu0
      %v1043 = vadd.f32 %v804, %v1013
      %v1044 = vadd.f32 %v807, %v1016
      %v1045 = vadd.f32 %v812, %v1021
      %v1046 = vadd.f32 %v815, %v1024
      %v1047 = vadd.f32 %v820, %v1029
      %v1048 = vadd.f32 %v823, %v1032
      %v1049 = vadd.f32 %v828, %v1037
      %v1050 = vadd.f32 %v831, %v1040
      %s1051 = scalar_lea.vmem %s6, 6
      %v1052 = vld [vmem:[%s1051] sm:$0x3]
      %v1061 = vunpack.c.l.b16 %v578
      %v1062 = vunpack.c.l.b16 %v580
      %v1063 = vunpack.c.l.b16 %v582
      %v1064 = vunpack.c.l.b16 %v584
      %v1065 = vunpack.c.l.b16 %v586
      %v1066 = vunpack.c.l.b16 %v588
      %v1067 = vunpack.c.l.b16 %v590
      %v1068 = vunpack.c.l.b16 %v592
      %v1069 = vpack.c.b16 %v1062, %v1061
      %v1070 = vpack.c.b16 %v1064, %v1063
      %v1071 = vpack.c.b16 %v1066, %v1065
      %v1072 = vpack.c.b16 %v1068, %v1067
      %v1074 = vsel %vm649, %v1069, 0
      %v1077 = vsel %vm649, %v1070, 0
      %v1080 = vsel %vm649, %v1071, 0
      %v1083 = vsel %vm649, %v1072, 0
      %v1086 = vand.u32 %v1052, %v665
      %1088 = vmatprep.subr.bf16.mxu0 0
      %1089 = vmatpush1.bf16.msra.mxu0 %v1086
      %1090 = vmatprep.subr.bf16.mxu0 0
      %1091 = vmatpush1.bf16.msra.mxu0 0
      %1092 = vmatprep.subr.bf16.mxu0 0
      %1093 = vmatpush1.bf16.msra.mxu0 0
      %1094 = vmatprep.subr.bf16.mxu0 0
      %1095 = vmatpush1.bf16.msra.mxu0 0
      %1096 = vmatprep.subr.bf16.mxu0 0
      %1097 = vmatpush1.bf16.msra.mxu0 0
      %1098 = vmatprep.subr.bf16.mxu0 0
      %1099 = vmatpush1.bf16.msra.mxu0 0
      %1100 = vmatprep.subr.bf16.mxu0 0
      %1101 = vmatpush1.bf16.msra.mxu0 0
      %1102 = vmatprep.subr.bf16.mxu0 0
      %1103 = vmatpush1.bf16.msra.mxu0 0
      %1104 = vmatprep.subr.bf16.mxu0 0
      %1105 = vmatpush1.bf16.msra.mxu0 0
      %1106 = vmatprep.subr.bf16.mxu0 0
      %1107 = vmatpush1.bf16.msra.mxu0 0
      %1108 = vmatprep.subr.bf16.mxu0 0
      %1109 = vmatpush1.bf16.msra.mxu0 0
      %1110 = vmatprep.subr.bf16.mxu0 0
      %1111 = vmatpush1.bf16.msra.mxu0 0
      %1112 = vmatprep.subr.bf16.mxu0 0
      %1113 = vmatpush1.bf16.msra.mxu0 0
      %1114 = vmatprep.subr.bf16.mxu0 0
      %1115 = vmatpush1.bf16.msra.mxu0 0
      %1116 = vmatprep.subr.bf16.mxu0 0
      %1117 = vmatpush1.bf16.msra.mxu0 0
      %1118 = vmatprep.subr.bf16.mxu0 0
      %1119 = vmatpush1.bf16.msra.mxu0 0
      %1120 = vmatprep.mubr.bf16.mxu0 0
      %1121 = vmatmul.mubr.bf16.gmra.mrb[0].mxu0 %v1074
      %v1122 = vpop.f32.mrb[0].mxu0
      %v1123 = vadd.f32 0.0, %v1122
      %v1124 = vpop.f32.mrb[0].mxu0
      %v1125 = vpop.f32.mrb[0].mxu0
      %v1126 = vadd.f32 0.0, %v1125
      %v1127 = vpop.f32.mrb[0].mxu0
      %1128 = vmatprep.mubr.bf16.mxu0 0
      %1129 = vmatmul.mubr.bf16.gmra.mrb[0].mxu0 %v1077
      %v1130 = vpop.f32.mrb[0].mxu0
      %v1131 = vadd.f32 0.0, %v1130
      %v1132 = vpop.f32.mrb[0].mxu0
      %v1133 = vpop.f32.mrb[0].mxu0
      %v1134 = vadd.f32 0.0, %v1133
      %v1135 = vpop.f32.mrb[0].mxu0
      %1136 = vmatprep.mubr.bf16.mxu0 0
      %1137 = vmatmul.mubr.bf16.gmra.mrb[0].mxu0 %v1080
      %v1138 = vpop.f32.mrb[0].mxu0
      %v1139 = vadd.f32 0.0, %v1138
      %v1140 = vpop.f32.mrb[0].mxu0
      %v1141 = vpop.f32.mrb[0].mxu0
      %v1142 = vadd.f32 0.0, %v1141
      %v1143 = vpop.f32.mrb[0].mxu0
      %1144 = vmatprep.mubr.bf16.mxu0 0
      %1145 = vmatmul.mubr.bf16.gmra.mrb[0].mxu0 %v1083
      %v1146 = vpop.f32.mrb[0].mxu0
      %v1147 = vadd.f32 0.0, %v1146
      %v1148 = vpop.f32.mrb[0].mxu0
      %v1149 = vpop.f32.mrb[0].mxu0
      %v1150 = vadd.f32 0.0, %v1149
      %v1151 = vpop.f32.mrb[0].mxu0
      %1152 = vdwg.mxu0
      %v1153 = vadd.f32 %v1043, %v1123
      %v1154 = vadd.f32 %v1044, %v1126
      %v1155 = vadd.f32 %v1045, %v1131
      %v1156 = vadd.f32 %v1046, %v1134
      %v1157 = vadd.f32 %v1047, %v1139
      %v1158 = vadd.f32 %v1048, %v1142
      %v1159 = vadd.f32 %v1049, %v1147
      %v1160 = vadd.f32 %v1050, %v1150
      %s1161 = scalar_lea.vmem %s6, 8
      %v1162 = vld [vmem:[%s1161] sm:$0x3]
      %v1171 = vunpack.c.l.b16 %v594
      %v1172 = vunpack.c.l.b16 %v595
      %v1173 = vunpack.c.l.b16 %v596
      %v1174 = vunpack.c.l.b16 %v597
      %v1175 = vunpack.c.l.b16 %v598
      %v1176 = vunpack.c.l.b16 %v599
      %v1177 = vunpack.c.l.b16 %v600
      %v1178 = vunpack.c.l.b16 %v601
      %v1179 = vpack.c.b16 %v1172, %v1171
      %v1180 = vpack.c.b16 %v1174, %v1173
      %v1181 = vpack.c.b16 %v1176, %v1175
      %v1182 = vpack.c.b16 %v1178, %v1177
      %v1184 = vsel %vm649, %v1179, 0
      %v1187 = vsel %vm649, %v1180, 0
      %v1190 = vsel %vm649, %v1181, 0
      %v1193 = vsel %vm649, %v1182, 0
      %v1196 = vand.u32 %v1162, %v665
      %1198 = vmatprep.subr.bf16.mxu0 0
      %1199 = vmatpush1.bf16.msra.mxu0 %v1196
      %1200 = vmatprep.subr.bf16.mxu0 0
      %1201 = vmatpush1.bf16.msra.mxu0 0
      %1202 = vmatprep.subr.bf16.mxu0 0
      %1203 = vmatpush1.bf16.msra.mxu0 0
      %1204 = vmatprep.subr.bf16.mxu0 0
      %1205 = vmatpush1.bf16.msra.mxu0 0
      %1206 = vmatprep.subr.bf16.mxu0 0
      %1207 = vmatpush1.bf16.msra.mxu0 0
      %1208 = vmatprep.subr.bf16.mxu0 0
      %1209 = vmatpush1.bf16.msra.mxu0 0
      %1210 = vmatprep.subr.bf16.mxu0 0
      %1211 = vmatpush1.bf16.msra.mxu0 0
      %1212 = vmatprep.subr.bf16.mxu0 0
      %1213 = vmatpush1.bf16.msra.mxu0 0
      %1214 = vmatprep.subr.bf16.mxu0 0
      %1215 = vmatpush1.bf16.msra.mxu0 0
      %1216 = vmatprep.subr.bf16.mxu0 0
      %1217 = vmatpush1.bf16.msra.mxu0 0
      %1218 = vmatprep.subr.bf16.mxu0 0
      %1219 = vmatpush1.bf16.msra.mxu0 0
      %1220 = vmatprep.subr.bf16.mxu0 0
      %1221 = vmatpush1.bf16.msra.mxu0 0
      %1222 = vmatprep.subr.bf16.mxu0 0
      %1223 = vmatpush1.bf16.msra.mxu0 0
      %1224 = vmatprep.subr.bf16.mxu0 0
      %1225 = vmatpush1.bf16.msra.mxu0 0
      %1226 = vmatprep.subr.bf16.mxu0 0
      %1227 = vmatpush1.bf16.msra.mxu0 0
      %1228 = vmatprep.subr.bf16.mxu0 0
      %1229 = vmatpush1.bf16.msra.mxu0 0
      %1230 = vmatprep.mubr.bf16.mxu0 0
      %1231 = vmatmul.mubr.bf16.gmra.mrb[0].mxu0 %v1184
      %v1232 = vpop.f32.mrb[0].mxu0
      %v1233 = vadd.f32 0.0, %v1232
      %v1234 = vpop.f32.mrb[0].mxu0
      %v1235 = vpop.f32.mrb[0].mxu0
      %v1236 = vadd.f32 0.0, %v1235
      %v1237 = vpop.f32.mrb[0].mxu0
      %1238 = vmatprep.mubr.bf16.mxu0 0
      %1239 = vmatmul.mubr.bf16.gmra.mrb[0].mxu0 %v1187
      %v1240 = vpop.f32.mrb[0].mxu0
      %v1241 = vadd.f32 0.0, %v1240
      %v1242 = vpop.f32.mrb[0].mxu0
      %v1243 = vpop.f32.mrb[0].mxu0
      %v1244 = vadd.f32 0.0, %v1243
      %v1245 = vpop.f32.mrb[0].mxu0
      %1246 = vmatprep.mubr.bf16.mxu0 0
      %1247 = vmatmul.mubr.bf16.gmra.mrb[0].mxu0 %v1190
      %v1248 = vpop.f32.mrb[0].mxu0
      %v1249 = vadd.f32 0.0, %v1248
      %v1250 = vpop.f32.mrb[0].mxu0
      %v1251 = vpop.f32.mrb[0].mxu0
      %v1252 = vadd.f32 0.0, %v1251
      %v1253 = vpop.f32.mrb[0].mxu0
      %1254 = vmatprep.mubr.bf16.mxu0 0
      %1255 = vmatmul.mubr.bf16.gmra.mrb[0].mxu0 %v1193
      %v1256 = vpop.f32.mrb[0].mxu0
      %v1257 = vadd.f32 0.0, %v1256
      %v1258 = vpop.f32.mrb[0].mxu0
      %v1259 = vpop.f32.mrb[0].mxu0
      %v1260 = vadd.f32 0.0, %v1259
      %v1261 = vpop.f32.mrb[0].mxu0
      %1262 = vdwg.mxu0
      %v1263 = vadd.f32 %v1153, %v1233
      %v1264 = vadd.f32 %v1154, %v1236
      %v1265 = vadd.f32 %v1155, %v1241
      %v1266 = vadd.f32 %v1156, %v1244
      %v1267 = vadd.f32 %v1157, %v1249
      %v1268 = vadd.f32 %v1158, %v1252
      %v1269 = vadd.f32 %v1159, %v1257
      %v1270 = vadd.f32 %v1160, %v1260
      %v1272 = vshrl.u32 %v578, 16
      %v1274 = vrot.slane %v1272, 4
      %v1275 = vshll.u32 %v578, 16
      %v1277 = vrot.slane %v1275, 5
      %v1278 = vor.u32 %v1274, %v1277
      %v1279 = vrot.slane %v1278, 4
      %v1281 = vshll.u32 %v579, 16
      %v1283 = vrot.slane %v1281, 5
      %v1284 = vsel %vm836, %v1279, %v1283
      %v1286 = vshrl.u32 %v580, 16
      %v1288 = vrot.slane %v1286, 4
      %v1289 = vshll.u32 %v580, 16
      %v1291 = vrot.slane %v1289, 5
      %v1292 = vor.u32 %v1288, %v1291
      %v1293 = vrot.slane %v1292, 4
      %v1295 = vshll.u32 %v581, 16
      %v1297 = vrot.slane %v1295, 5
      %v1298 = vsel %vm836, %v1293, %v1297
      %v1300 = vshrl.u32 %v582, 16
      %v1302 = vrot.slane %v1300, 4
      %v1303 = vshll.u32 %v582, 16
      %v1305 = vrot.slane %v1303, 5
      %v1306 = vor.u32 %v1302, %v1305
      %v1307 = vrot.slane %v1306, 4
      %v1309 = vshll.u32 %v583, 16
      %v1311 = vrot.slane %v1309, 5
      %v1312 = vsel %vm836, %v1307, %v1311
      %v1314 = vshrl.u32 %v584, 16
      %v1316 = vrot.slane %v1314, 4
      %v1317 = vshll.u32 %v584, 16
      %v1319 = vrot.slane %v1317, 5
      %v1320 = vor.u32 %v1316, %v1319
      %v1321 = vrot.slane %v1320, 4
      %v1323 = vshll.u32 %v585, 16
      %v1325 = vrot.slane %v1323, 5
      %v1326 = vsel %vm836, %v1321, %v1325
      %v1328 = vshrl.u32 %v586, 16
      %v1330 = vrot.slane %v1328, 4
      %v1331 = vshll.u32 %v586, 16
      %v1333 = vrot.slane %v1331, 5
      %v1334 = vor.u32 %v1330, %v1333
      %v1335 = vrot.slane %v1334, 4
      %v1337 = vshll.u32 %v587, 16
      %v1339 = vrot.slane %v1337, 5
      %v1340 = vsel %vm836, %v1335, %v1339
      %v1342 = vshrl.u32 %v588, 16
      %v1344 = vrot.slane %v1342, 4
      %v1345 = vshll.u32 %v588, 16
      %v1347 = vrot.slane %v1345, 5
      %v1348 = vor.u32 %v1344, %v1347
      %v1349 = vrot.slane %v1348, 4
      %v1351 = vshll.u32 %v589, 16
      %v1353 = vrot.slane %v1351, 5
      %v1354 = vsel %vm836, %v1349, %v1353
      %v1356 = vshrl.u32 %v590, 16
      %v1358 = vrot.slane %v1356, 4
      %v1359 = vshll.u32 %v590, 16
      %v1361 = vrot.slane %v1359, 5
      %v1362 = vor.u32 %v1358, %v1361
      %v1363 = vrot.slane %v1362, 4
      %v1365 = vshll.u32 %v591, 16
      %v1367 = vrot.slane %v1365, 5
      %v1368 = vsel %vm836, %v1363, %v1367
      %v1370 = vshrl.u32 %v592, 16
      %v1372 = vrot.slane %v1370, 4
      %v1373 = vshll.u32 %v592, 16
      %v1375 = vrot.slane %v1373, 5
      %v1376 = vor.u32 %v1372, %v1375
      %v1377 = vrot.slane %v1376, 4
      %v1379 = vshll.u32 %v593, 16
      %v1381 = vrot.slane %v1379, 5
      %v1382 = vsel %vm836, %v1377, %v1381
      %s1383 = scalar_lea.vmem %s6, 10
      %v1384 = vld [vmem:[%s1383] sm:$0x3]
      %v1385 = vunpack.c.l.b16 %v1284
      %v1386 = vunpack.c.l.b16 %v1298
      %v1387 = vunpack.c.l.b16 %v1312
      %v1388 = vunpack.c.l.b16 %v1326
      %v1389 = vunpack.c.l.b16 %v1340
      %v1390 = vunpack.c.l.b16 %v1354
      %v1391 = vunpack.c.l.b16 %v1368
      %v1392 = vunpack.c.l.b16 %v1382
      %v1393 = vpack.c.b16 %v1386, %v1385
      %v1394 = vpack.c.b16 %v1388, %v1387
      %v1395 = vpack.c.b16 %v1390, %v1389
      %v1396 = vpack.c.b16 %v1392, %v1391
      %v1398 = vsel %vm649, %v1393, 0
      %v1401 = vsel %vm649, %v1394, 0
      %v1404 = vsel %vm649, %v1395, 0
      %v1407 = vsel %vm649, %v1396, 0
      %v1410 = vand.u32 %v1384, %v665
      %1412 = vmatprep.subr.bf16.mxu0 0
      %1413 = vmatpush1.bf16.msra.mxu0 %v1410
      %1414 = vmatprep.subr.bf16.mxu0 0
      %1415 = vmatpush1.bf16.msra.mxu0 0
      %1416 = vmatprep.subr.bf16.mxu0 0
      %1417 = vmatpush1.bf16.msra.mxu0 0
      %1418 = vmatprep.subr.bf16.mxu0 0
      %1419 = vmatpush1.bf16.msra.mxu0 0
      %1420 = vmatprep.subr.bf16.mxu0 0
      %1421 = vmatpush1.bf16.msra.mxu0 0
      %1422 = vmatprep.subr.bf16.mxu0 0
      %1423 = vmatpush1.bf16.msra.mxu0 0
      %1424 = vmatprep.subr.bf16.mxu0 0
      %1425 = vmatpush1.bf16.msra.mxu0 0
      %1426 = vmatprep.subr.bf16.mxu0 0
      %1427 = vmatpush1.bf16.msra.mxu0 0
      %1428 = vmatprep.subr.bf16.mxu0 0
      %1429 = vmatpush1.bf16.msra.mxu0 0
      %1430 = vmatprep.subr.bf16.mxu0 0
      %1431 = vmatpush1.bf16.msra.mxu0 0
      %1432 = vmatprep.subr.bf16.mxu0 0
      %1433 = vmatpush1.bf16.msra.mxu0 0
      %1434 = vmatprep.subr.bf16.mxu0 0
      %1435 = vmatpush1.bf16.msra.mxu0 0
      %1436 = vmatprep.subr.bf16.mxu0 0
      %1437 = vmatpush1.bf16.msra.mxu0 0
      %1438 = vmatprep.subr.bf16.mxu0 0
      %1439 = vmatpush1.bf16.msra.mxu0 0
      %1440 = vmatprep.subr.bf16.mxu0 0
      %1441 = vmatpush1.bf16.msra.mxu0 0
      %1442 = vmatprep.subr.bf16.mxu0 0
      %1443 = vmatpush1.bf16.msra.mxu0 0
      %1444 = vmatprep.mubr.bf16.mxu0 0
      %1445 = vmatmul.mubr.bf16.gmra.mrb[0].mxu0 %v1398
      %v1446 = vpop.f32.mrb[0].mxu0
      %v1447 = vadd.f32 0.0, %v1446
      %v1448 = vpop.f32.mrb[0].mxu0
      %v1449 = vpop.f32.mrb[0].mxu0
      %v1450 = vadd.f32 0.0, %v1449
      %v1451 = vpop.f32.mrb[0].mxu0
      %1452 = vmatprep.mubr.bf16.mxu0 0
      %1453 = vmatmul.mubr.bf16.gmra.mrb[0].mxu0 %v1401
      %v1454 = vpop.f32.mrb[0].mxu0
      %v1455 = vadd.f32 0.0, %v1454
      %v1456 = vpop.f32.mrb[0].mxu0
      %v1457 = vpop.f32.mrb[0].mxu0
      %v1458 = vadd.f32 0.0, %v1457
      %v1459 = vpop.f32.mrb[0].mxu0
      %1460 = vmatprep.mubr.bf16.mxu0 0
      %1461 = vmatmul.mubr.bf16.gmra.mrb[0].mxu0 %v1404
      %v1462 = vpop.f32.mrb[0].mxu0
      %v1463 = vadd.f32 0.0, %v1462
      %v1464 = vpop.f32.mrb[0].mxu0
      %v1465 = vpop.f32.mrb[0].mxu0
      %v1466 = vadd.f32 0.0, %v1465
      %v1467 = vpop.f32.mrb[0].mxu0
      %1468 = vmatprep.mubr.bf16.mxu0 0
      %1469 = vmatmul.mubr.bf16.gmra.mrb[0].mxu0 %v1407
      %v1470 = vpop.f32.mrb[0].mxu0
      %v1471 = vadd.f32 0.0, %v1470
      %v1472 = vpop.f32.mrb[0].mxu0
      %v1473 = vpop.f32.mrb[0].mxu0
      %v1474 = vadd.f32 0.0, %v1473
      %v1475 = vpop.f32.mrb[0].mxu0
      %1476 = vdwg.mxu0
      %v1477 = vadd.f32 %v1263, %v1447
      %v1478 = vadd.f32 %v1264, %v1450
      %v1479 = vadd.f32 %v1265, %v1455
      %v1480 = vadd.f32 %v1266, %v1458
      %v1481 = vadd.f32 %v1267, %v1463
      %v1482 = vadd.f32 %v1268, %v1466
      %v1483 = vadd.f32 %v1269, %v1471
      %v1484 = vadd.f32 %v1270, %v1474
      %s1485 = scalar_lea.vmem %s6, 12
      %v1486 = vld [vmem:[%s1485] sm:$0x3]
      %v1495 = vunpack.c.l.b16 %v602
      %v1496 = vunpack.c.l.b16 %v604
      %v1497 = vunpack.c.l.b16 %v606
      %v1498 = vunpack.c.l.b16 %v608
      %v1499 = vunpack.c.l.b16 %v610
      %v1500 = vunpack.c.l.b16 %v612
      %v1501 = vunpack.c.l.b16 %v614
      %v1502 = vunpack.c.l.b16 %v616
      %v1503 = vpack.c.b16 %v1496, %v1495
      %v1504 = vpack.c.b16 %v1498, %v1497
      %v1505 = vpack.c.b16 %v1500, %v1499
      %v1506 = vpack.c.b16 %v1502, %v1501
      %v1508 = vsel %vm649, %v1503, 0
      %v1511 = vsel %vm649, %v1504, 0
      %v1514 = vsel %vm649, %v1505, 0
      %v1517 = vsel %vm649, %v1506, 0
      %v1520 = vand.u32 %v1486, %v665
      %1522 = vmatprep.subr.bf16.mxu0 0
      %1523 = vmatpush1.bf16.msra.mxu0 %v1520
      %1524 = vmatprep.subr.bf16.mxu0 0
      %1525 = vmatpush1.bf16.msra.mxu0 0
      %1526 = vmatprep.subr.bf16.mxu0 0
      %1527 = vmatpush1.bf16.msra.mxu0 0
      %1528 = vmatprep.subr.bf16.mxu0 0
      %1529 = vmatpush1.bf16.msra.mxu0 0
      %1530 = vmatprep.subr.bf16.mxu0 0
      %1531 = vmatpush1.bf16.msra.mxu0 0
      %1532 = vmatprep.subr.bf16.mxu0 0
      %1533 = vmatpush1.bf16.msra.mxu0 0
      %1534 = vmatprep.subr.bf16.mxu0 0
      %1535 = vmatpush1.bf16.msra.mxu0 0
      %1536 = vmatprep.subr.bf16.mxu0 0
      %1537 = vmatpush1.bf16.msra.mxu0 0
      %1538 = vmatprep.subr.bf16.mxu0 0
      %1539 = vmatpush1.bf16.msra.mxu0 0
      %1540 = vmatprep.subr.bf16.mxu0 0
      %1541 = vmatpush1.bf16.msra.mxu0 0
      %1542 = vmatprep.subr.bf16.mxu0 0
      %1543 = vmatpush1.bf16.msra.mxu0 0
      %1544 = vmatprep.subr.bf16.mxu0 0
      %1545 = vmatpush1.bf16.msra.mxu0 0
      %1546 = vmatprep.subr.bf16.mxu0 0
      %1547 = vmatpush1.bf16.msra.mxu0 0
      %1548 = vmatprep.subr.bf16.mxu0 0
      %1549 = vmatpush1.bf16.msra.mxu0 0
      %1550 = vmatprep.subr.bf16.mxu0 0
      %1551 = vmatpush1.bf16.msra.mxu0 0
      %1552 = vmatprep.subr.bf16.mxu0 0
      %1553 = vmatpush1.bf16.msra.mxu0 0
      %1554 = vmatprep.mubr.bf16.mxu0 0
      %1555 = vmatmul.mubr.bf16.gmra.mrb[0].mxu0 %v1508
      %v1556 = vpop.f32.mrb[0].mxu0
      %v1557 = vadd.f32 0.0, %v1556
      %v1558 = vpop.f32.mrb[0].mxu0
      %v1559 = vpop.f32.mrb[0].mxu0
      %v1560 = vadd.f32 0.0, %v1559
      %v1561 = vpop.f32.mrb[0].mxu0
      %1562 = vmatprep.mubr.bf16.mxu0 0
      %1563 = vmatmul.mubr.bf16.gmra.mrb[0].mxu0 %v1511
      %v1564 = vpop.f32.mrb[0].mxu0
      %v1565 = vadd.f32 0.0, %v1564
      %v1566 = vpop.f32.mrb[0].mxu0
      %v1567 = vpop.f32.mrb[0].mxu0
      %v1568 = vadd.f32 0.0, %v1567
      %v1569 = vpop.f32.mrb[0].mxu0
      %1570 = vmatprep.mubr.bf16.mxu0 0
      %1571 = vmatmul.mubr.bf16.gmra.mrb[0].mxu0 %v1514
      %v1572 = vpop.f32.mrb[0].mxu0
      %v1573 = vadd.f32 0.0, %v1572
      %v1574 = vpop.f32.mrb[0].mxu0
      %v1575 = vpop.f32.mrb[0].mxu0
      %v1576 = vadd.f32 0.0, %v1575
      %v1577 = vpop.f32.mrb[0].mxu0
      %1578 = vmatprep.mubr.bf16.mxu0 0
      %1579 = vmatmul.mubr.bf16.gmra.mrb[0].mxu0 %v1517
      %v1580 = vpop.f32.mrb[0].mxu0
      %v1581 = vadd.f32 0.0, %v1580
      %v1582 = vpop.f32.mrb[0].mxu0
      %v1583 = vpop.f32.mrb[0].mxu0
      %v1584 = vadd.f32 0.0, %v1583
      %v1585 = vpop.f32.mrb[0].mxu0
      %1586 = vdwg.mxu0
      %v1587 = vadd.f32 %v1477, %v1557
      %v1588 = vadd.f32 %v1478, %v1560
      %v1589 = vadd.f32 %v1479, %v1565
      %v1590 = vadd.f32 %v1480, %v1568
      %v1591 = vadd.f32 %v1481, %v1573
      %v1592 = vadd.f32 %v1482, %v1576
      %v1593 = vadd.f32 %v1483, %v1581
      %v1594 = vadd.f32 %v1484, %v1584
      %s1595 = scalar_lea.vmem %s6, 14
      %v1596 = vld [vmem:[%s1595] sm:$0x3]
      %v1605 = vunpack.c.l.b16 %v618
      %v1606 = vunpack.c.l.b16 %v619
      %v1607 = vunpack.c.l.b16 %v620
      %v1608 = vunpack.c.l.b16 %v621
      %v1609 = vunpack.c.l.b16 %v622
      %v1610 = vunpack.c.l.b16 %v623
      %v1611 = vunpack.c.l.b16 %v624
      %v1612 = vunpack.c.l.b16 %v625
      %v1613 = vpack.c.b16 %v1606, %v1605
      %v1614 = vpack.c.b16 %v1608, %v1607
      %v1615 = vpack.c.b16 %v1610, %v1609
      %v1616 = vpack.c.b16 %v1612, %v1611
      %v1618 = vsel %vm649, %v1613, 0
      %v1621 = vsel %vm649, %v1614, 0
      %v1624 = vsel %vm649, %v1615, 0
      %v1627 = vsel %vm649, %v1616, 0
      %v1630 = vand.u32 %v1596, %v665
      %1632 = vmatprep.subr.bf16.mxu0 0
      %1633 = vmatpush1.bf16.msra.mxu0 %v1630
      %1634 = vmatprep.subr.bf16.mxu0 0
      %1635 = vmatpush1.bf16.msra.mxu0 0
      %1636 = vmatprep.subr.bf16.mxu0 0
      %1637 = vmatpush1.bf16.msra.mxu0 0
      %1638 = vmatprep.subr.bf16.mxu0 0
      %1639 = vmatpush1.bf16.msra.mxu0 0
      %1640 = vmatprep.subr.bf16.mxu0 0
      %1641 = vmatpush1.bf16.msra.mxu0 0
      %1642 = vmatprep.subr.bf16.mxu0 0
      %1643 = vmatpush1.bf16.msra.mxu0 0
      %1644 = vmatprep.subr.bf16.mxu0 0
      %1645 = vmatpush1.bf16.msra.mxu0 0
      %1646 = vmatprep.subr.bf16.mxu0 0
      %1647 = vmatpush1.bf16.msra.mxu0 0
      %1648 = vmatprep.subr.bf16.mxu0 0
      %1649 = vmatpush1.bf16.msra.mxu0 0
      %1650 = vmatprep.subr.bf16.mxu0 0
      %1651 = vmatpush1.bf16.msra.mxu0 0
      %1652 = vmatprep.subr.bf16.mxu0 0
      %1653 = vmatpush1.bf16.msra.mxu0 0
      %1654 = vmatprep.subr.bf16.mxu0 0
      %1655 = vmatpush1.bf16.msra.mxu0 0
      %1656 = vmatprep.subr.bf16.mxu0 0
      %1657 = vmatpush1.bf16.msra.mxu0 0
      %1658 = vmatprep.subr.bf16.mxu0 0
      %1659 = vmatpush1.bf16.msra.mxu0 0
      %1660 = vmatprep.subr.bf16.mxu0 0
      %1661 = vmatpush1.bf16.msra.mxu0 0
      %1662 = vmatprep.subr.bf16.mxu0 0
      %1663 = vmatpush1.bf16.msra.mxu0 0
      %1664 = vmatprep.mubr.bf16.mxu0 0
      %1665 = vmatmul.mubr.bf16.gmra.mrb[0].mxu0 %v1618
      %v1666 = vpop.f32.mrb[0].mxu0
      %v1667 = vadd.f32 0.0, %v1666
      %v1668 = vpop.f32.mrb[0].mxu0
      %v1669 = vpop.f32.mrb[0].mxu0
      %v1670 = vadd.f32 0.0, %v1669
      %v1671 = vpop.f32.mrb[0].mxu0
      %1672 = vmatprep.mubr.bf16.mxu0 0
      %1673 = vmatmul.mubr.bf16.gmra.mrb[0].mxu0 %v1621
      %v1674 = vpop.f32.mrb[0].mxu0
      %v1675 = vadd.f32 0.0, %v1674
      %v1676 = vpop.f32.mrb[0].mxu0
      %v1677 = vpop.f32.mrb[0].mxu0
      %v1678 = vadd.f32 0.0, %v1677
      %v1679 = vpop.f32.mrb[0].mxu0
      %1680 = vmatprep.mubr.bf16.mxu0 0
      %1681 = vmatmul.mubr.bf16.gmra.mrb[0].mxu0 %v1624
      %v1682 = vpop.f32.mrb[0].mxu0
      %v1683 = vadd.f32 0.0, %v1682
      %v1684 = vpop.f32.mrb[0].mxu0
      %v1685 = vpop.f32.mrb[0].mxu0
      %v1686 = vadd.f32 0.0, %v1685
      %v1687 = vpop.f32.mrb[0].mxu0
      %1688 = vmatprep.mubr.bf16.mxu0 0
      %1689 = vmatmul.mubr.bf16.gmra.mrb[0].mxu0 %v1627
      %v1690 = vpop.f32.mrb[0].mxu0
      %v1691 = vadd.f32 0.0, %v1690
      %v1692 = vpop.f32.mrb[0].mxu0
      %v1693 = vpop.f32.mrb[0].mxu0
      %v1694 = vadd.f32 0.0, %v1693
      %v1695 = vpop.f32.mrb[0].mxu0
      %1696 = vdwg.mxu0
      %v1697 = vadd.f32 %v1587, %v1667
      %v1698 = vadd.f32 %v1588, %v1670
      %v1699 = vadd.f32 %v1589, %v1675
      %v1700 = vadd.f32 %v1590, %v1678
      %v1701 = vadd.f32 %v1591, %v1683
      %v1702 = vadd.f32 %v1592, %v1686
      %v1703 = vadd.f32 %v1593, %v1691
      %v1704 = vadd.f32 %v1594, %v1694
      %v1706 = vshrl.u32 %v602, 16
      %v1708 = vrot.slane %v1706, 4
      %v1709 = vshll.u32 %v602, 16
      %v1711 = vrot.slane %v1709, 5
      %v1712 = vor.u32 %v1708, %v1711
      %v1713 = vrot.slane %v1712, 4
      %v1715 = vshll.u32 %v603, 16
      %v1717 = vrot.slane %v1715, 5
      %v1718 = vsel %vm836, %v1713, %v1717
      %v1720 = vshrl.u32 %v604, 16
      %v1722 = vrot.slane %v1720, 4
      %v1723 = vshll.u32 %v604, 16
      %v1725 = vrot.slane %v1723, 5
      %v1726 = vor.u32 %v1722, %v1725
      %v1727 = vrot.slane %v1726, 4
      %v1729 = vshll.u32 %v605, 16
      %v1731 = vrot.slane %v1729, 5
      %v1732 = vsel %vm836, %v1727, %v1731
      %v1734 = vshrl.u32 %v606, 16
      %v1736 = vrot.slane %v1734, 4
      %v1737 = vshll.u32 %v606, 16
      %v1739 = vrot.slane %v1737, 5
      %v1740 = vor.u32 %v1736, %v1739
      %v1741 = vrot.slane %v1740, 4
      %v1743 = vshll.u32 %v607, 16
      %v1745 = vrot.slane %v1743, 5
      %v1746 = vsel %vm836, %v1741, %v1745
      %v1748 = vshrl.u32 %v608, 16
      %v1750 = vrot.slane %v1748, 4
      %v1751 = vshll.u32 %v608, 16
      %v1753 = vrot.slane %v1751, 5
      %v1754 = vor.u32 %v1750, %v1753
      %v1755 = vrot.slane %v1754, 4
      %v1757 = vshll.u32 %v609, 16
      %v1759 = vrot.slane %v1757, 5
      %v1760 = vsel %vm836, %v1755, %v1759
      %v1762 = vshrl.u32 %v610, 16
      %v1764 = vrot.slane %v1762, 4
      %v1765 = vshll.u32 %v610, 16
      %v1767 = vrot.slane %v1765, 5
      %v1768 = vor.u32 %v1764, %v1767
      %v1769 = vrot.slane %v1768, 4
      %v1771 = vshll.u32 %v611, 16
      %v1773 = vrot.slane %v1771, 5
      %v1774 = vsel %vm836, %v1769, %v1773
      %v1776 = vshrl.u32 %v612, 16
      %v1778 = vrot.slane %v1776, 4
      %v1779 = vshll.u32 %v612, 16
      %v1781 = vrot.slane %v1779, 5
      %v1782 = vor.u32 %v1778, %v1781
      %v1783 = vrot.slane %v1782, 4
      %v1785 = vshll.u32 %v613, 16
      %v1787 = vrot.slane %v1785, 5
      %v1788 = vsel %vm836, %v1783, %v1787
      %v1790 = vshrl.u32 %v614, 16
      %v1792 = vrot.slane %v1790, 4
      %v1793 = vshll.u32 %v614, 16
      %v1795 = vrot.slane %v1793, 5
      %v1796 = vor.u32 %v1792, %v1795
      %v1797 = vrot.slane %v1796, 4
      %v1799 = vshll.u32 %v615, 16
      %v1801 = vrot.slane %v1799, 5
      %v1802 = vsel %vm836, %v1797, %v1801
      %v1804 = vshrl.u32 %v616, 16
      %v1806 = vrot.slane %v1804, 4
      %v1807 = vshll.u32 %v616, 16
      %v1809 = vrot.slane %v1807, 5
      %v1810 = vor.u32 %v1806, %v1809
      %v1811 = vrot.slane %v1810, 4
      %v1813 = vshll.u32 %v617, 16
      %v1815 = vrot.slane %v1813, 5
      %v1816 = vsel %vm836, %v1811, %v1815
      %s1817 = scalar_lea.vmem %s6, 16
      %v1818 = vld [vmem:[%s1817] sm:$0x3]
      %v1819 = vunpack.c.l.b16 %v1718
      %v1820 = vunpack.c.l.b16 %v1732
      %v1821 = vunpack.c.l.b16 %v1746
      %v1822 = vunpack.c.l.b16 %v1760
      %v1823 = vunpack.c.l.b16 %v1774
      %v1824 = vunpack.c.l.b16 %v1788
      %v1825 = vunpack.c.l.b16 %v1802
      %v1826 = vunpack.c.l.b16 %v1816
      %v1827 = vpack.c.b16 %v1820, %v1819
      %v1828 = vpack.c.b16 %v1822, %v1821
      %v1829 = vpack.c.b16 %v1824, %v1823
      %v1830 = vpack.c.b16 %v1826, %v1825
      %v1832 = vsel %vm649, %v1827, 0
      %v1835 = vsel %vm649, %v1828, 0
      %v1838 = vsel %vm649, %v1829, 0
      %v1841 = vsel %vm649, %v1830, 0
      %v1844 = vand.u32 %v1818, %v665
      %1846 = vmatprep.subr.bf16.mxu0 0
      %1847 = vmatpush1.bf16.msra.mxu0 %v1844
      %1848 = vmatprep.subr.bf16.mxu0 0
      %1849 = vmatpush1.bf16.msra.mxu0 0
      %1850 = vmatprep.subr.bf16.mxu0 0
      %1851 = vmatpush1.bf16.msra.mxu0 0
      %1852 = vmatprep.subr.bf16.mxu0 0
      %1853 = vmatpush1.bf16.msra.mxu0 0
      %1854 = vmatprep.subr.bf16.mxu0 0
      %1855 = vmatpush1.bf16.msra.mxu0 0
      %1856 = vmatprep.subr.bf16.mxu0 0
      %1857 = vmatpush1.bf16.msra.mxu0 0
      %1858 = vmatprep.subr.bf16.mxu0 0
      %1859 = vmatpush1.bf16.msra.mxu0 0
      %1860 = vmatprep.subr.bf16.mxu0 0
      %1861 = vmatpush1.bf16.msra.mxu0 0
      %1862 = vmatprep.subr.bf16.mxu0 0
      %1863 = vmatpush1.bf16.msra.mxu0 0
      %1864 = vmatprep.subr.bf16.mxu0 0
      %1865 = vmatpush1.bf16.msra.mxu0 0
      %1866 = vmatprep.subr.bf16.mxu0 0
      %1867 = vmatpush1.bf16.msra.mxu0 0
      %1868 = vmatprep.subr.bf16.mxu0 0
      %1869 = vmatpush1.bf16.msra.mxu0 0
      %1870 = vmatprep.subr.bf16.mxu0 0
      %1871 = vmatpush1.bf16.msra.mxu0 0
      %1872 = vmatprep.subr.bf16.mxu0 0
      %1873 = vmatpush1.bf16.msra.mxu0 0
      %1874 = vmatprep.subr.bf16.mxu0 0
      %1875 = vmatpush1.bf16.msra.mxu0 0
      %1876 = vmatprep.subr.bf16.mxu0 0
      %1877 = vmatpush1.bf16.msra.mxu0 0
      %1878 = vmatprep.mubr.bf16.mxu0 0
      %1879 = vmatmul.mubr.bf16.gmra.mrb[0].mxu0 %v1832
      %v1880 = vpop.f32.mrb[0].mxu0
      %v1881 = vadd.f32 0.0, %v1880
      %v1882 = vpop.f32.mrb[0].mxu0
      %v1883 = vpop.f32.mrb[0].mxu0
      %v1884 = vadd.f32 0.0, %v1883
      %v1885 = vpop.f32.mrb[0].mxu0
      %1886 = vmatprep.mubr.bf16.mxu0 0
      %1887 = vmatmul.mubr.bf16.gmra.mrb[0].mxu0 %v1835
      %v1888 = vpop.f32.mrb[0].mxu0
      %v1889 = vadd.f32 0.0, %v1888
      %v1890 = vpop.f32.mrb[0].mxu0
      %v1891 = vpop.f32.mrb[0].mxu0
      %v1892 = vadd.f32 0.0, %v1891
      %v1893 = vpop.f32.mrb[0].mxu0
      %1894 = vmatprep.mubr.bf16.mxu0 0
      %1895 = vmatmul.mubr.bf16.gmra.mrb[0].mxu0 %v1838
      %v1896 = vpop.f32.mrb[0].mxu0
      %v1897 = vadd.f32 0.0, %v1896
      %v1898 = vpop.f32.mrb[0].mxu0
      %v1899 = vpop.f32.mrb[0].mxu0
      %v1900 = vadd.f32 0.0, %v1899
      %v1901 = vpop.f32.mrb[0].mxu0
      %1902 = vmatprep.mubr.bf16.mxu0 0
      %1903 = vmatmul.mubr.bf16.gmra.mrb[0].mxu0 %v1841
      %v1904 = vpop.f32.mrb[0].mxu0
      %v1905 = vadd.f32 0.0, %v1904
      %v1906 = vpop.f32.mrb[0].mxu0
      %v1907 = vpop.f32.mrb[0].mxu0
      %v1908 = vadd.f32 0.0, %v1907
      %v1909 = vpop.f32.mrb[0].mxu0
      %1910 = vdwg.mxu0
      %v1911 = vadd.f32 %v1697, %v1881
      %v1912 = vadd.f32 %v1698, %v1884
      %v1913 = vadd.f32 %v1699, %v1889
      %v1914 = vadd.f32 %v1700, %v1892
      %v1915 = vadd.f32 %v1701, %v1897
      %v1916 = vadd.f32 %v1702, %v1900
      %v1917 = vadd.f32 %v1703, %v1905
      %v1918 = vadd.f32 %v1704, %v1908
      %v1919 = vpack.c.bf16 %v1912, %v1911
      %v1920 = vpack.c.bf16 %v1914, %v1913
      %v1921 = vpack.c.bf16 %v1916, %v1915
      %v1922 = vpack.c.bf16 %v1918, %v1917
      %v1927 = vunpack.c.l.b16 %v1919
      %v1928 = vunpack.c.h.b16 %v1919
      %v1929 = vunpack.c.l.b16 %v1920
      %v1930 = vunpack.c.h.b16 %v1920
      %v1931 = vunpack.c.l.b16 %v1921
      %v1932 = vunpack.c.h.b16 %v1921
      %v1933 = vunpack.c.l.b16 %v1922
      %v1934 = vunpack.c.h.b16 %v1922
      %v1935 = vpack.c.b16 %v1927, %v1927
      %v1936 = vpack.c.b16 %v1928, %v1928
      %v1937 = vpack.c.b16 %v1929, %v1929
      %v1938 = vpack.c.b16 %v1930, %v1930
      %v1939 = vpack.c.b16 %v1931, %v1931
      %v1940 = vpack.c.b16 %v1932, %v1932
      %v1941 = vpack.c.b16 %v1933, %v1933
      %v1942 = vpack.c.b16 %v1934, %v1934
      %1951 = vst [vmem:[%s545] sm:$0xf] %v1935
      %1952 = vst [vmem:[%s545 + $0x4] sm:$0xf] %v1936
      %1953 = vst [vmem:[%s545 + $0x8] sm:$0xf] %v1937
      %1954 = vst [vmem:[%s545 + $0xc] sm:$0xf] %v1938
      %1955 = vst [vmem:[%s545 + $0x10] sm:$0xf] %v1939
      %1956 = vst [vmem:[%s545 + $0x14] sm:$0xf] %v1940
      %1957 = vst [vmem:[%s545 + $0x18] sm:$0xf] %v1941
      %1958 = vst [vmem:[%s545 + $0x1c] sm:$0xf] %v1942
      %v1959 = vadd.f32 %v1911, %v1912
      %v1960 = vadd.f32 %v1959, %v1913
      %v1961 = vadd.f32 %v1960, %v1914
      %v1962 = vadd.f32 %v1961, %v1915
      %v1963 = vadd.f32 %v1962, %v1916
      %v1964 = vadd.f32 %v1963, %v1917
      %v1965 = vadd.f32 %v1964, %v1918
      %v1966 = vrot.slane %v1965, 4
      %v1967 = vadd.f32 %v1965, %v1966
      %v1968 = vrot.slane %v1967, 2
      %v1969 = vadd.f32 %v1967, %v1968
      %v1970 = vrot.slane %v1969, 1
      %v1971 = vadd.f32 %v1969, %v1970
      %1972 = vst [vmem:[%s551] sm:$0x1] %v1971
      %v1973 = vmul.f32 %v1911, %v1911
      %v1974 = vmul.f32 %v1912, %v1912
      %v1975 = vmul.f32 %v1913, %v1913
      %v1976 = vmul.f32 %v1914, %v1914
      %v1977 = vmul.f32 %v1915, %v1915
      %v1978 = vmul.f32 %v1916, %v1916
      %v1979 = vmul.f32 %v1917, %v1917
      %v1980 = vmul.f32 %v1918, %v1918
      %v1981 = vadd.f32 %v1973, %v1974
      %v1982 = vadd.f32 %v1981, %v1975
      %v1983 = vadd.f32 %v1982, %v1976
      %v1984 = vadd.f32 %v1983, %v1977
      %v1985 = vadd.f32 %v1984, %v1978
      %v1986 = vadd.f32 %v1985, %v1979
      %v1987 = vadd.f32 %v1986, %v1980
      %v1988 = vrot.slane %v1987, 4
      %v1989 = vadd.f32 %v1987, %v1988
      %v1990 = vrot.slane %v1989, 2
      %v1991 = vadd.f32 %v1989, %v1990
      %v1992 = vrot.slane %v1991, 1
      %v1993 = vadd.f32 %v1991, %v1992
      %1994 = vst [vmem:[%s551 + $0x1] sm:$0x1] %v1993
      %s1995 = sadd.s32 %s24, %s25
      %p1996 = scmp.lt.s32.totalorder %s1995, 1
      %s1997 = scalar_select %p1996, %s1995, 1
      %s1998 = smul.addr %s1997, 8
      %s1999 = smul.addr %s1998, 4
      %s2000 = scalar_lea.vmem %s7, %s1999
      %s2001 = sadd.s32 %s24, %s25
      %p2002 = scmp.lt.s32.totalorder %s2001, 1
      %s2003 = scalar_select %p2002, %s2001, 1
      %s2004 = smul.addr %s2003, 2
      %s2005 = scalar_lea.vmem %s8, %s2004
      // Predicated region
      $region49: #{spatial_path.6} parent=47 // pred_check
        %p2006 = pneg %p241
      $region50: #{spatial_path.6} parent=47 // pred_check_branch
        %2008 = sbr.rel (%p2006) target = $region52
      $region51: #{spatial_path.6} parent=47 // pred_region
        %s2009 = sadd.s32 %s24, %s25
      $region52: #{spatial_path.6} parent=47 // pred_fallthru
        _
      // Predicated region
      $region53: #{spatial_path.6} parent=47 // pred_check
        %p2010 = pneg %p269
      $region54: #{spatial_path.6} parent=47 // pred_check_branch
        %2012 = sbr.rel (%p2010) target = $region56
      $region55: #{spatial_path.6} parent=47 // pred_region
        %s2013 = sadd.s32 %s24, %s25
      $region56: #{spatial_path.6} parent=47 // pred_fallthru
        _
    $region48: #{spatial_path.6} parent=5 // pred_fallthru
      _
    %p2014 = scmp.le.s32.totalorder 2, %s15
    // Predicated region
    $region57: #{spatial_path.6} parent=5 // pred_check
      %p2015 = pneg %p2014
    $region58: #{spatial_path.6} parent=5 // pred_check_branch
      %2017 = sbr.rel (%p2015) target = $region60
    $region59: #{spatial_path.6} parent=5 // pred_region
      %s2018 = ssub.s32 %s15, 2
      // Predicated region
      $region61: #{spatial_path.6} parent=59 // pred_check
        %p2019 = pneg %p247
      $region62: #{spatial_path.6} parent=59 // pred_check_branch
        %2021 = sbr.rel (%p2019) target = $region64
      $region63: #{spatial_path.6} parent=59 // pred_region
        %s2022 = sadd.s32 %s26, %s27
        %p2023 = scmp.lt.s32.totalorder %s2022, 1
        %s2024 = scalar_select %p2023, %s2022, 1
        %s2025 = smul.addr %s2024, 8
        %s2026 = smul.addr %s2025, 4
        %s2027 = scalar_lea.vmem %s7, %s2026
      $region64: #{spatial_path.6} parent=59 // pred_fallthru
        _
      // Predicated region
      $region65: #{spatial_path.6} parent=59 // pred_check
        %p2028 = pneg %p275
      $region66: #{spatial_path.6} parent=59 // pred_check_branch
        %2030 = sbr.rel (%p2028) target = $region68
      $region67: #{spatial_path.6} parent=59 // pred_region
        %s2031 = sadd.s32 %s26, %s27
        %p2032 = scmp.lt.s32.totalorder %s2031, 1
        %s2033 = scalar_select %p2032, %s2031, 1
        %s2034 = smul.addr %s2033, 2
        %s2035 = scalar_lea.vmem %s8, %s2034
      $region68: #{spatial_path.6} parent=59 // pred_fallthru
        _
    $region60: #{spatial_path.6} parent=5 // pred_fallthru
      _
  $region6: #{spatial_path.6} parent=0 // loop_footer
    %s19 = sadd.s32 1, %s15
  $region7: #{spatial_path.6} parent=0 // loop_footer_branch
    %14 = sbr.rel target = $region3
  $region8: #{spatial_path.6} parent=0 // loop_exit
    _

// kernel: spatial_path.8
$region0: #{spatial_path.8}
  #allocation0 [shape = 'u32[]', space=smem, size = 0x4, offset = 0x4, fixed_abs, tag = 'smem constant byte address 0x4 - core index']
  #allocation1 [shape = 'u32[144,128]{1,0:T(1,128)}', space=vmem, size = 0x12000, scoped, tag = 'internal scratch']
  %s0 = inlined_call_operand.vmem [shape: bf16[2,4,5,64], index: 0, kind: input, shape index: {}]
  %s1 = inlined_call_operand.vmem [shape: bf16[2,4,5,64], index: 1, kind: input, shape index: {}]
  %s2 = inlined_call_operand.vmem [shape: bf16[2,4,5,64], index: 2, kind: input, shape index: {}]
  %s3 = inlined_call_operand.vmem [shape: bf16[2,4,5,64], index: 3, kind: input, shape index: {}]
  %s4 = inlined_call_operand.vmem [shape: bf16[2,4,5,64], index: 4, kind: input, shape index: {}]
  %s5 = inlined_call_operand.vmem [shape: bf16[2,4,5,64], index: 5, kind: input, shape index: {}]
  %s6 = inlined_call_operand.vmem [shape: bf16[9,64,128], index: 6, kind: input, shape index: {}]
  %s7 = inlined_call_operand.vmem [shape: bf16[2,16,128], index: 7, kind: output, shape index: {0}]
  %s8 = inlined_call_operand.vmem [shape: f32[2,2,128], index: 8, kind: output, shape index: {1}]
  %9 = xla_tuple %s7, %s8
  %s10 = sld [smem:[#allocation0]]
  $region69: #{spatial_path.8} parent=0
    _
  %s12 = ssub.s32 1, %s10
  %s13 = scalar_select 0, %s12, %s10
  loop: start=0, step=1, limit=4
  $region2: #{spatial_path.8} parent=0 // loop_pre_header
    _
  $region3: #{spatial_path.8} parent=0 // loop_header
    %s15 = sphi 0, %s19
    %p16 = scmp.ge.s32.totalorder %s15, 4
    %s22 = sphi 0, %s34
    %s23 = sphi 0, %s30
    %s24 = sphi 0, %s22
    %s25 = sphi 0, %s23
    %s26 = sphi 0, %s24
    %s27 = sphi 0, %s25
    %s39 = sphi 0, %s41
    %s42 = sphi 0, %s39
    %s43 = sphi 0, %s42
    %s59 = sphi 0, %s43
    %s67 = sphi 0, %s69
    %s70 = sphi 0, %s67
    %s71 = sphi 0, %s70
    %s87 = sphi 0, %s71
    %s95 = sphi 0, %s97
    %s98 = sphi 0, %s95
    %s99 = sphi 0, %s98
    %s115 = sphi 0, %s99
    %s123 = sphi 0, %s125
    %s126 = sphi 0, %s123
    %s127 = sphi 0, %s126
    %s143 = sphi 0, %s127
    %s151 = sphi 0, %s153
    %s154 = sphi 0, %s151
    %s155 = sphi 0, %s154
    %s171 = sphi 0, %s155
    %s179 = sphi 0, %s181
    %s182 = sphi 0, %s179
    %s183 = sphi 0, %s182
    %s199 = sphi 0, %s183
    %s203 = sphi 0, %s203
    %s205 = sphi 0, %s203
    %s206 = sphi 0, %s205
    %s220 = sphi 0, %s206
    %s228 = sphi 0, %s230
    %s231 = sphi 0, %s228
    %s232 = sphi 0, %s231
    %s248 = sphi 0, %s232
    %s256 = sphi 0, %s258
    %s259 = sphi 0, %s256
    %s260 = sphi 0, %s259
    %s276 = sphi 0, %s260
  $region4: #{spatial_path.8} parent=0 // loop_header_branch
    %18 = sbr.rel (%p16) target = $region8
  $region5: #{spatial_path.8} parent=0 // loop_body
    %s20 = ssub.s32 %s15, 1
    %s21 = ssub.s32 %s15, 2
    %s28 = sadd.s32 1, %s23
    %p29 = scmp.ge.s32.totalorder %s28, 1
    %s30 = scalar_select %p29, 0, %s28
    %s31 = sadd.s32 1, %s22
    %s32 = scalar_select %p29, %s31, %s22
    %p33 = scmp.ge.s32.totalorder %s32, 2
    %s34 = scalar_select %p33, 0, %s32
    %s35 = ssub.s32 %s22, %s34
    %s36 = ssub.s32 %s23, %s30
    %s37 = sor.u32 %s35, %s36
    %p38 = scmp.eq.s32.totalorder %s37, 0
    %s40 = sadd.s32 %s39, 1
    %s41 = scalar_select %p38, %s39, %s40
    %p44 = pneg %p38
    %p45 = scmp.eq.s32.totalorder %s15, 1
    %p46 = por %p44, %p45
    %p47 = scmp.ne.s32.totalorder %s39, %s42
    %p48 = scmp.eq.s32.totalorder %s15, 0
    %p49 = por %p47, %p48
    %p50 = scmp.ne.s32.totalorder %s39, %s42
    %p51 = scmp.eq.s32.totalorder %s20, 1
    %p52 = por %p50, %p51
    %p53 = scmp.ne.s32.totalorder %s42, %s43
    %p54 = scmp.eq.s32.totalorder %s20, 0
    %p55 = por %p53, %p54
    %p56 = scmp.ne.s32.totalorder %s42, %s43
    %p57 = scmp.eq.s32.totalorder %s21, 1
    %p58 = por %p56, %p57
    %p60 = scmp.ne.s32.totalorder %s43, %s59
    %p61 = scmp.eq.s32.totalorder %s21, 0
    %p62 = por %p60, %p61
    %s63 = ssub.s32 %s22, %s34
    %s64 = ssub.s32 %s23, %s30
    %s65 = sor.u32 %s63, %s64
    %p66 = scmp.eq.s32.totalorder %s65, 0
    %s68 = sadd.s32 %s67, 1
    %s69 = scalar_select %p66, %s67, %s68
    %p72 = pneg %p66
    %p73 = scmp.eq.s32.totalorder %s15, 1
    %p74 = por %p72, %p73
    %p75 = scmp.ne.s32.totalorder %s67, %s70
    %p76 = scmp.eq.s32.totalorder %s15, 0
    %p77 = por %p75, %p76
    %p78 = scmp.ne.s32.totalorder %s67, %s70
    %p79 = scmp.eq.s32.totalorder %s20, 1
    %p80 = por %p78, %p79
    %p81 = scmp.ne.s32.totalorder %s70, %s71
    %p82 = scmp.eq.s32.totalorder %s20, 0
    %p83 = por %p81, %p82
    %p84 = scmp.ne.s32.totalorder %s70, %s71
    %p85 = scmp.eq.s32.totalorder %s21, 1
    %p86 = por %p84, %p85
    %p88 = scmp.ne.s32.totalorder %s71, %s87
    %p89 = scmp.eq.s32.totalorder %s21, 0
    %p90 = por %p88, %p89
    %s91 = ssub.s32 %s22, %s34
    %s92 = ssub.s32 %s23, %s30
    %s93 = sor.u32 %s91, %s92
    %p94 = scmp.eq.s32.totalorder %s93, 0
    %s96 = sadd.s32 %s95, 1
    %s97 = scalar_select %p94, %s95, %s96
    %p100 = pneg %p94
    %p101 = scmp.eq.s32.totalorder %s15, 1
    %p102 = por %p100, %p101
    %p103 = scmp.ne.s32.totalorder %s95, %s98
    %p104 = scmp.eq.s32.totalorder %s15, 0
    %p105 = por %p103, %p104
    %p106 = scmp.ne.s32.totalorder %s95, %s98
    %p107 = scmp.eq.s32.totalorder %s20, 1
    %p108 = por %p106, %p107
    %p109 = scmp.ne.s32.totalorder %s98, %s99
    %p110 = scmp.eq.s32.totalorder %s20, 0
    %p111 = por %p109, %p110
    %p112 = scmp.ne.s32.totalorder %s98, %s99
    %p113 = scmp.eq.s32.totalorder %s21, 1
    %p114 = por %p112, %p113
    %p116 = scmp.ne.s32.totalorder %s99, %s115
    %p117 = scmp.eq.s32.totalorder %s21, 0
    %p118 = por %p116, %p117
    %s119 = ssub.s32 %s22, %s34
    %s120 = ssub.s32 %s23, %s30
    %s121 = sor.u32 %s119, %s120
    %p122 = scmp.eq.s32.totalorder %s121, 0
    %s124 = sadd.s32 %s123, 1
    %s125 = scalar_select %p122, %s123, %s124
    %p128 = pneg %p122
    %p129 = scmp.eq.s32.totalorder %s15, 1
    %p130 = por %p128, %p129
    %p131 = scmp.ne.s32.totalorder %s123, %s126
    %p132 = scmp.eq.s32.totalorder %s15, 0
    %p133 = por %p131, %p132
    %p134 = scmp.ne.s32.totalorder %s123, %s126
    %p135 = scmp.eq.s32.totalorder %s20, 1
    %p136 = por %p134, %p135
    %p137 = scmp.ne.s32.totalorder %s126, %s127
    %p138 = scmp.eq.s32.totalorder %s20, 0
    %p139 = por %p137, %p138
    %p140 = scmp.ne.s32.totalorder %s126, %s127
    %p141 = scmp.eq.s32.totalorder %s21, 1
    %p142 = por %p140, %p141
    %p144 = scmp.ne.s32.totalorder %s127, %s143
    %p145 = scmp.eq.s32.totalorder %s21, 0
    %p146 = por %p144, %p145
    %s147 = ssub.s32 %s22, %s34
    %s148 = ssub.s32 %s23, %s30
    %s149 = sor.u32 %s147, %s148
    %p150 = scmp.eq.s32.totalorder %s149, 0
    %s152 = sadd.s32 %s151, 1
    %s153 = scalar_select %p150, %s151, %s152
    %p156 = pneg %p150
    %p157 = scmp.eq.s32.totalorder %s15, 1
    %p158 = por %p156, %p157
    %p159 = scmp.ne.s32.totalorder %s151, %s154
    %p160 = scmp.eq.s32.totalorder %s15, 0
    %p161 = por %p159, %p160
    %p162 = scmp.ne.s32.totalorder %s151, %s154
    %p163 = scmp.eq.s32.totalorder %s20, 1
    %p164 = por %p162, %p163
    %p165 = scmp.ne.s32.totalorder %s154, %s155
    %p166 = scmp.eq.s32.totalorder %s20, 0
    %p167 = por %p165, %p166
    %p168 = scmp.ne.s32.totalorder %s154, %s155
    %p169 = scmp.eq.s32.totalorder %s21, 1
    %p170 = por %p168, %p169
    %p172 = scmp.ne.s32.totalorder %s155, %s171
    %p173 = scmp.eq.s32.totalorder %s21, 0
    %p174 = por %p172, %p173
    %s175 = ssub.s32 %s22, %s34
    %s176 = ssub.s32 %s23, %s30
    %s177 = sor.u32 %s175, %s176
    %p178 = scmp.eq.s32.totalorder %s177, 0
    %s180 = sadd.s32 %s179, 1
    %s181 = scalar_select %p178, %s179, %s180
    %p184 = pneg %p178
    %p185 = scmp.eq.s32.totalorder %s15, 1
    %p186 = por %p184, %p185
    %p187 = scmp.ne.s32.totalorder %s179, %s182
    %p188 = scmp.eq.s32.totalorder %s15, 0
    %p189 = por %p187, %p188
    %p190 = scmp.ne.s32.totalorder %s179, %s182
    %p191 = scmp.eq.s32.totalorder %s20, 1
    %p192 = por %p190, %p191
    %p193 = scmp.ne.s32.totalorder %s182, %s183
    %p194 = scmp.eq.s32.totalorder %s20, 0
    %p195 = por %p193, %p194
    %p196 = scmp.ne.s32.totalorder %s182, %s183
    %p197 = scmp.eq.s32.totalorder %s21, 1
    %p198 = por %p196, %p197
    %p200 = scmp.ne.s32.totalorder %s183, %s199
    %p201 = scmp.eq.s32.totalorder %s21, 0
    %p202 = por %p200, %p201
    %s204 = sadd.s32 %s203, 1
    %p207 = scmp.eq.s32.totalorder %s15, 1
    %p208 = scmp.ne.s32.totalorder %s203, %s205
    %p209 = scmp.eq.s32.totalorder %s15, 0
    %p210 = por %p208, %p209
    %p211 = scmp.ne.s32.totalorder %s203, %s205
    %p212 = scmp.eq.s32.totalorder %s20, 1
    %p213 = por %p211, %p212
    %p214 = scmp.ne.s32.totalorder %s205, %s206
    %p215 = scmp.eq.s32.totalorder %s20, 0
    %p216 = por %p214, %p215
    %p217 = scmp.ne.s32.totalorder %s205, %s206
    %p218 = scmp.eq.s32.totalorder %s21, 1
    %p219 = por %p217, %p218
    %p221 = scmp.ne.s32.totalorder %s206, %s220
    %p222 = scmp.eq.s32.totalorder %s21, 0
    %p223 = por %p221, %p222
    %s224 = sadd.s32 %s22, %s23
    %s225 = sadd.s32 %s34, %s30
    %s226 = ssub.s32 %s224, %s225
    %p227 = scmp.eq.s32.totalorder %s226, 0
    %s229 = sadd.s32 %s228, 1
    %s230 = scalar_select %p227, %s228, %s229
    %p233 = pneg %p227
    %p234 = scmp.eq.s32.totalorder %s15, 1
    %p235 = por %p233, %p234
    %p236 = scmp.ne.s32.totalorder %s228, %s231
    %p237 = scmp.eq.s32.totalorder %s15, 0
    %p238 = por %p236, %p237
    %p239 = scmp.ne.s32.totalorder %s228, %s231
    %p240 = scmp.eq.s32.totalorder %s20, 1
    %p241 = por %p239, %p240
    %p242 = scmp.ne.s32.totalorder %s231, %s232
    %p243 = scmp.eq.s32.totalorder %s20, 0
    %p244 = por %p242, %p243
    %p245 = scmp.ne.s32.totalorder %s231, %s232
    %p246 = scmp.eq.s32.totalorder %s21, 1
    %p247 = por %p245, %p246
    %p249 = scmp.ne.s32.totalorder %s232, %s248
    %p250 = scmp.eq.s32.totalorder %s21, 0
    %p251 = por %p249, %p250
    %s252 = sadd.s32 %s22, %s23
    %s253 = sadd.s32 %s34, %s30
    %s254 = ssub.s32 %s252, %s253
    %p255 = scmp.eq.s32.totalorder %s254, 0
    %s257 = sadd.s32 %s256, 1
    %s258 = scalar_select %p255, %s256, %s257
    %p261 = pneg %p255
    %p262 = scmp.eq.s32.totalorder %s15, 1
    %p263 = por %p261, %p262
    %p264 = scmp.ne.s32.totalorder %s256, %s259
    %p265 = scmp.eq.s32.totalorder %s15, 0
    %p266 = por %p264, %p265
    %p267 = scmp.ne.s32.totalorder %s256, %s259
    %p268 = scmp.eq.s32.totalorder %s20, 1
    %p269 = por %p267, %p268
    %p270 = scmp.ne.s32.totalorder %s259, %s260
    %p271 = scmp.eq.s32.totalorder %s20, 0
    %p272 = por %p270, %p271
    %p273 = scmp.ne.s32.totalorder %s259, %s260
    %p274 = scmp.eq.s32.totalorder %s21, 1
    %p275 = por %p273, %p274
    %p277 = scmp.ne.s32.totalorder %s260, %s276
    %p278 = scmp.eq.s32.totalorder %s21, 0
    %p279 = por %p277, %p278
    %p280 = scmp.le.s32.totalorder 1, %s15
    %p281 = scmp.lt.s32.totalorder %s15, 3
    %p282 = pnand %p280, %p281
    %p283 = pneg %p282
    // Predicated region
    $region9: #{spatial_path.8} parent=5 // pred_check
      _
    $region10: #{spatial_path.8} parent=5 // pred_check_branch
      %285 = sbr.rel (%p282) target = $region12
    $region11: #{spatial_path.8} parent=5 // pred_region
      %s286 = ssub.s32 %s15, 1
      // Predicated region
      $region13: #{spatial_path.8} parent=11 // pred_check
        %p287 = pneg %p216
      $region14: #{spatial_path.8} parent=11 // pred_check_branch
        %289 = sbr.rel (%p287) target = $region16
      $region15: #{spatial_path.8} parent=11 // pred_region
        _
      $region16: #{spatial_path.8} parent=11 // pred_fallthru
        _
    $region12: #{spatial_path.8} parent=5 // pred_fallthru
      _
    %p290 = scmp.lt.s32.totalorder %s15, 2
    // Predicated region
    $region17: #{spatial_path.8} parent=5 // pred_check
      %p291 = pneg %p290
    $region18: #{spatial_path.8} parent=5 // pred_check_branch
      %293 = sbr.rel (%p291) target = $region20
    $region19: #{spatial_path.8} parent=5 // pred_region
      // Predicated region
      $region21: #{spatial_path.8} parent=19 // pred_check
        %p294 = pneg %p49
      $region22: #{spatial_path.8} parent=19 // pred_check_branch
        %296 = sbr.rel (%p294) target = $region24
      $region23: #{spatial_path.8} parent=19 // pred_region
        %s297 = smul.u32 4, %s23
        %p298 = scmp.lt.s32.totalorder %s22, 1
        %s299 = scalar_select %p298, %s22, 1
        %p300 = scmp.lt.s32.totalorder %s297, 3
        %s301 = scalar_select %p300, %s297, 3
        %s302 = smul.addr %s299, 4
        %s303 = sadd.s32 %s301, %s302
        %s304 = smul.addr %s303, 4
        %s305 = scalar_lea.vmem %s0, %s304
        %s306 = smul.u32 4, %s23
      $region24: #{spatial_path.8} parent=19 // pred_fallthru
        _
      // Predicated region
      $region25: #{spatial_path.8} parent=19 // pred_check
        %p307 = pneg %p77
      $region26: #{spatial_path.8} parent=19 // pred_check_branch
        %309 = sbr.rel (%p307) target = $region28
      $region27: #{spatial_path.8} parent=19 // pred_region
        %s310 = smul.u32 4, %s23
        %p311 = scmp.lt.s32.totalorder %s22, 1
        %s312 = scalar_select %p311, %s22, 1
        %p313 = scmp.lt.s32.totalorder %s310, 3
        %s314 = scalar_select %p313, %s310, 3
        %s315 = smul.addr %s312, 4
        %s316 = sadd.s32 %s314, %s315
        %s317 = smul.addr %s316, 4
        %s318 = scalar_lea.vmem %s1, %s317
        %s319 = smul.u32 4, %s23
      $region28: #{spatial_path.8} parent=19 // pred_fallthru
        _
      // Predicated region
      $region29: #{spatial_path.8} parent=19 // pred_check
        %p320 = pneg %p105
      $region30: #{spatial_path.8} parent=19 // pred_check_branch
        %322 = sbr.rel (%p320) target = $region32
      $region31: #{spatial_path.8} parent=19 // pred_region
        %s323 = smul.u32 4, %s23
        %p324 = scmp.lt.s32.totalorder %s22, 1
        %s325 = scalar_select %p324, %s22, 1
        %p326 = scmp.lt.s32.totalorder %s323, 3
        %s327 = scalar_select %p326, %s323, 3
        %s328 = smul.addr %s325, 4
        %s329 = sadd.s32 %s327, %s328
        %s330 = smul.addr %s329, 4
        %s331 = scalar_lea.vmem %s2, %s330
        %s332 = smul.u32 4, %s23
      $region32: #{spatial_path.8} parent=19 // pred_fallthru
        _
      // Predicated region
      $region33: #{spatial_path.8} parent=19 // pred_check
        %p333 = pneg %p133
      $region34: #{spatial_path.8} parent=19 // pred_check_branch
        %335 = sbr.rel (%p333) target = $region36
      $region35: #{spatial_path.8} parent=19 // pred_region
        %s336 = smul.u32 4, %s23
        %p337 = scmp.lt.s32.totalorder %s22, 1
        %s338 = scalar_select %p337, %s22, 1
        %p339 = scmp.lt.s32.totalorder %s336, 3
        %s340 = scalar_select %p339, %s336, 3
        %s341 = smul.addr %s338, 4
        %s342 = sadd.s32 %s340, %s341
        %s343 = smul.addr %s342, 4
        %s344 = scalar_lea.vmem %s3, %s343
        %s345 = smul.u32 4, %s23
      $region36: #{spatial_path.8} parent=19 // pred_fallthru
        _
      // Predicated region
      $region37: #{spatial_path.8} parent=19 // pred_check
        %p346 = pneg %p161
      $region38: #{spatial_path.8} parent=19 // pred_check_branch
        %348 = sbr.rel (%p346) target = $region40
      $region39: #{spatial_path.8} parent=19 // pred_region
        %s349 = smul.u32 4, %s23
        %p350 = scmp.lt.s32.totalorder %s22, 1
        %s351 = scalar_select %p350, %s22, 1
        %p352 = scmp.lt.s32.totalorder %s349, 3
        %s353 = scalar_select %p352, %s349, 3
        %s354 = smul.addr %s351, 4
        %s355 = sadd.s32 %s353, %s354
        %s356 = smul.addr %s355, 4
        %s357 = scalar_lea.vmem %s4, %s356
        %s358 = smul.u32 4, %s23
      $region40: #{spatial_path.8} parent=19 // pred_fallthru
        _
      // Predicated region
      $region41: #{spatial_path.8} parent=19 // pred_check
        %p359 = pneg %p189
      $region42: #{spatial_path.8} parent=19 // pred_check_branch
        %361 = sbr.rel (%p359) target = $region44
      $region43: #{spatial_path.8} parent=19 // pred_region
        %s362 = smul.u32 4, %s23
        %p363 = scmp.lt.s32.totalorder %s22, 1
        %s364 = scalar_select %p363, %s22, 1
        %p365 = scmp.lt.s32.totalorder %s362, 3
        %s366 = scalar_select %p365, %s362, 3
        %s367 = smul.addr %s364, 4
        %s368 = sadd.s32 %s366, %s367
        %s369 = smul.addr %s368, 4
        %s370 = scalar_lea.vmem %s5, %s369
        %s371 = smul.u32 4, %s23
      $region44: #{spatial_path.8} parent=19 // pred_fallthru
        _
    $region20: #{spatial_path.8} parent=5 // pred_fallthru
      _
    %p372 = scmp.le.s32.totalorder 1, %s15
    %p373 = scmp.lt.s32.totalorder %s15, 3
    %p374 = pnand %p372, %p373
    %p375 = pneg %p374
    // Predicated region
    $region45: #{spatial_path.8} parent=5 // pred_check
      _
    $region46: #{spatial_path.8} parent=5 // pred_check_branch
      %377 = sbr.rel (%p374) target = $region48
    $region47: #{spatial_path.8} parent=5 // pred_region
      %s378 = ssub.s32 %s15, 1
      %s379 = smul.u32 4, %s25
      %p380 = scmp.lt.s32.totalorder %s24, 1
      %s381 = scalar_select %p380, %s24, 1
      %p382 = scmp.lt.s32.totalorder %s379, 3
      %s383 = scalar_select %p382, %s379, 3
      %s384 = smul.addr %s381, 4
      %s385 = sadd.s32 %s383, %s384
      %s386 = smul.addr %s385, 4
      %s387 = scalar_lea.vmem %s0, %s386
      %p388 = pneg %p55
      %p389 = pneg %p52
      %s390 = smul.u32 4, %s25
      %p391 = scmp.lt.s32.totalorder %s24, 1
      %s392 = scalar_select %p391, %s24, 1
      %p393 = scmp.lt.s32.totalorder %s390, 3
      %s394 = scalar_select %p393, %s390, 3
      %s395 = smul.addr %s392, 4
      %s396 = sadd.s32 %s394, %s395
      %s397 = smul.addr %s396, 4
      %s398 = scalar_lea.vmem %s1, %s397
      %p399 = pneg %p83
      %p400 = pneg %p80
      %s401 = smul.u32 4, %s25
      %p402 = scmp.lt.s32.totalorder %s24, 1
      %s403 = scalar_select %p402, %s24, 1
      %p404 = scmp.lt.s32.totalorder %s401, 3
      %s405 = scalar_select %p404, %s401, 3
      %s406 = smul.addr %s403, 4
      %s407 = sadd.s32 %s405, %s406
      %s408 = smul.addr %s407, 4
      %s409 = scalar_lea.vmem %s2, %s408
      %p410 = pneg %p111
      %p411 = pneg %p108
      %s412 = smul.u32 4, %s25
      %p413 = scmp.lt.s32.totalorder %s24, 1
      %s414 = scalar_select %p413, %s24, 1
      %p415 = scmp.lt.s32.totalorder %s412, 3
      %s416 = scalar_select %p415, %s412, 3
      %s417 = smul.addr %s414, 4
      %s418 = sadd.s32 %s416, %s417
      %s419 = smul.addr %s418, 4
      %s420 = scalar_lea.vmem %s3, %s419
      %p421 = pneg %p139
      %p422 = pneg %p136
      %s423 = smul.u32 4, %s25
      %p424 = scmp.lt.s32.totalorder %s24, 1
      %s425 = scalar_select %p424, %s24, 1
      %p426 = scmp.lt.s32.totalorder %s423, 3
      %s427 = scalar_select %p426, %s423, 3
      %s428 = smul.addr %s425, 4
      %s429 = sadd.s32 %s427, %s428
      %s430 = smul.addr %s429, 4
      %s431 = scalar_lea.vmem %s4, %s430
      %p432 = pneg %p167
      %p433 = pneg %p164
      %s434 = smul.u32 4, %s25
      %p435 = scmp.lt.s32.totalorder %s24, 1
      %s436 = scalar_select %p435, %s24, 1
      %p437 = scmp.lt.s32.totalorder %s434, 3
      %s438 = scalar_select %p437, %s434, 3
      %s439 = smul.addr %s436, 4
      %s440 = sadd.s32 %s438, %s439
      %s441 = smul.addr %s440, 4
      %s442 = scalar_lea.vmem %s5, %s441
      %p443 = pneg %p195
      %p444 = pneg %p192
      %p445 = pneg %p216
      %p446 = pneg %p213
      %p447 = pneg %p244
      %p448 = pneg %p241
      %s449 = sadd.s32 %s24, %s25
      %p450 = scmp.lt.s32.totalorder %s449, 1
      %s451 = scalar_select %p450, %s449, 1
      %s452 = smul.addr %s451, 2
      %s453 = smul.addr %s452, 4
      %s454 = scalar_lea.vmem %s7, %s453
      %p455 = pneg %p272
      %p456 = pneg %p269
      %s457 = sadd.s32 %s24, %s25
      %p458 = scmp.lt.s32.totalorder %s457, 1
      %s459 = scalar_select %p458, %s457, 1
      %s460 = smul.addr %s459, 2
      %s461 = scalar_lea.vmem %s8, %s460
      %s462 = smul.u32 4, %s25
      %p463 = scmp.lt.s32.totalorder %s24, 1
      %s464 = scalar_select %p463, %s24, 1
      %p465 = scmp.lt.s32.totalorder %s462, 3
      %s466 = scalar_select %p465, %s462, 3
      %s467 = smul.addr %s464, 4
      %s468 = sadd.s32 %s466, %s467
      %s469 = smul.addr %s468, 4
      %s470 = scalar_lea.vmem %s0, %s469
      %s471 = smul.u32 4, %s25
      %s472 = smul.u32 4, %s25
      %p473 = scmp.lt.s32.totalorder %s24, 1
      %s474 = scalar_select %p473, %s24, 1
      %p475 = scmp.lt.s32.totalorder %s472, 3
      %s476 = scalar_select %p475, %s472, 3
      %s477 = smul.addr %s474, 4
      %s478 = sadd.s32 %s476, %s477
      %s479 = smul.addr %s478, 4
      %s480 = scalar_lea.vmem %s1, %s479
      %s481 = smul.u32 4, %s25
      %s482 = smul.u32 4, %s25
      %p483 = scmp.lt.s32.totalorder %s24, 1
      %s484 = scalar_select %p483, %s24, 1
      %p485 = scmp.lt.s32.totalorder %s482, 3
      %s486 = scalar_select %p485, %s482, 3
      %s487 = smul.addr %s484, 4
      %s488 = sadd.s32 %s486, %s487
      %s489 = smul.addr %s488, 4
      %s490 = scalar_lea.vmem %s2, %s489
      %s491 = smul.u32 4, %s25
      %s492 = smul.u32 4, %s25
      %p493 = scmp.lt.s32.totalorder %s24, 1
      %s494 = scalar_select %p493, %s24, 1
      %p495 = scmp.lt.s32.totalorder %s492, 3
      %s496 = scalar_select %p495, %s492, 3
      %s497 = smul.addr %s494, 4
      %s498 = sadd.s32 %s496, %s497
      %s499 = smul.addr %s498, 4
      %s500 = scalar_lea.vmem %s3, %s499
      %s501 = smul.u32 4, %s25
      %s502 = smul.u32 4, %s25
      %p503 = scmp.lt.s32.totalorder %s24, 1
      %s504 = scalar_select %p503, %s24, 1
      %p505 = scmp.lt.s32.totalorder %s502, 3
      %s506 = scalar_select %p505, %s502, 3
      %s507 = smul.addr %s504, 4
      %s508 = sadd.s32 %s506, %s507
      %s509 = smul.addr %s508, 4
      %s510 = scalar_lea.vmem %s4, %s509
      %s511 = smul.u32 4, %s25
      %s512 = smul.u32 4, %s25
      %p513 = scmp.lt.s32.totalorder %s24, 1
      %s514 = scalar_select %p513, %s24, 1
      %p515 = scmp.lt.s32.totalorder %s512, 3
      %s516 = scalar_select %p515, %s512, 3
      %s517 = smul.addr %s514, 4
      %s518 = sadd.s32 %s516, %s517
      %s519 = smul.addr %s518, 4
      %s520 = scalar_lea.vmem %s5, %s519
      %s521 = smul.u32 4, %s25
      %s522 = sadd.s32 %s24, %s25
      %p523 = scmp.lt.s32.totalorder %s522, 1
      %s524 = scalar_select %p523, %s522, 1
      %s525 = smul.addr %s524, 2
      %s526 = smul.addr %s525, 4
      %s527 = scalar_lea.vmem %s7, %s526
      %s528 = sadd.s32 %s24, %s25
      %s529 = sadd.s32 %s24, %s25
      %p530 = scmp.lt.s32.totalorder %s529, 1
      %s531 = scalar_select %p530, %s529, 1
      %s532 = smul.addr %s531, 2
      %s533 = scalar_lea.vmem %s8, %s532
      %s534 = sadd.s32 %s24, %s25
      %v536 = vld [vmem:[%s470] sm:$0x7]
      %v537 = vld [vmem:[%s470 + $0x4] sm:$0x7]
      %v538 = vld [vmem:[%s470 + $0x8] sm:$0x7]
      %v539 = vld [vmem:[%s470 + $0xc] sm:$0x7]
      %v540 = vld [vmem:[%s480] sm:$0x7]
      %v541 = vld [vmem:[%s480 + $0x4] sm:$0x7]
      %v542 = vld [vmem:[%s480 + $0x8] sm:$0x7]
      %v543 = vld [vmem:[%s480 + $0xc] sm:$0x7]
      %v544 = vld [vmem:[%s490] sm:$0x7]
      %v545 = vld [vmem:[%s490 + $0x4] sm:$0x7]
      %v546 = vld [vmem:[%s490 + $0x8] sm:$0x7]
      %v547 = vld [vmem:[%s490 + $0xc] sm:$0x7]
      %v548 = vld [vmem:[%s500] sm:$0x7]
      %v549 = vld [vmem:[%s500 + $0x4] sm:$0x7]
      %v550 = vld [vmem:[%s500 + $0x8] sm:$0x7]
      %v551 = vld [vmem:[%s500 + $0xc] sm:$0x7]
      %v552 = vld [vmem:[%s510] sm:$0x7]
      %v553 = vld [vmem:[%s510 + $0x4] sm:$0x7]
      %v554 = vld [vmem:[%s510 + $0x8] sm:$0x7]
      %v555 = vld [vmem:[%s510 + $0xc] sm:$0x7]
      %v556 = vld [vmem:[%s520] sm:$0x7]
      %v557 = vld [vmem:[%s520 + $0x4] sm:$0x7]
      %v558 = vld [vmem:[%s520 + $0x8] sm:$0x7]
      %v559 = vld [vmem:[%s520 + $0xc] sm:$0x7]
      %v560 = vld [vmem:[%s6] sm:$0xf]
      %v561 = vld [vmem:[%s6 + $0x4] sm:$0xf]
      %v562 = vld [vmem:[%s6 + $0x8] sm:$0xf]
      %v563 = vld [vmem:[%s6 + $0xc] sm:$0xf]
      %v564 = vld [vmem:[%s6 + $0x10] sm:$0xf]
      %v565 = vld [vmem:[%s6 + $0x14] sm:$0xf]
      %v566 = vld [vmem:[%s6 + $0x18] sm:$0xf]
      %v567 = vld [vmem:[%s6 + $0x1c] sm:$0xf]
      %s568 = scalar_lea.vmem %s6, 32
      %v569 = vld [vmem:[%s568] sm:$0xf]
      %v570 = vld [vmem:[%s568 + $0x4] sm:$0xf]
      %v571 = vld [vmem:[%s568 + $0x8] sm:$0xf]
      %v572 = vld [vmem:[%s568 + $0xc] sm:$0xf]
      %v573 = vld [vmem:[%s568 + $0x10] sm:$0xf]
      %v574 = vld [vmem:[%s568 + $0x14] sm:$0xf]
      %v575 = vld [vmem:[%s568 + $0x18] sm:$0xf]
      %v576 = vld [vmem:[%s568 + $0x1c] sm:$0xf]
      %v581 = vcombine.low %v540, %v541
      %v582 = vcombine.low %v542, %v543
      %v584 = vunpack.c.l.s4 1983009808
      %v585 = vunpack.c.0.s8 %v584
      %v586 = vlaneseq
      %v587 = vshrl.u32 %v586, 7
      %v588 = vsub.s32 %v585, %v587
      %v589 = vrot.slane %v581, %v588
      %v591 = vunpack.c.l.s4 1983009808
      %v592 = vunpack.c.0.s8 %v591
      %v593 = vlaneseq
      %v594 = vshrl.u32 %v593, 7
      %v595 = vsub.s32 %v592, %v594
      %v596 = vrot.slane %v582, %v595
      %v597 = vcombine.low %v589, %v596
      %v606 = vunpack.c.l.b16 %v569
      %v607 = vunpack.c.l.b16 %v570
      %v608 = vunpack.c.l.b16 %v571
      %v609 = vunpack.c.l.b16 %v572
      %v610 = vunpack.c.l.b16 %v573
      %v611 = vunpack.c.l.b16 %v574
      %v612 = vunpack.c.l.b16 %v575
      %v613 = vunpack.c.l.b16 %v576
      %v614 = vpack.c.b16 %v607, %v606
      %v615 = vpack.c.b16 %v609, %v608
      %v616 = vpack.c.b16 %v611, %v610
      %v617 = vpack.c.b16 %v613, %v612
      %vm622 = vcmask 523264
      %v624 = vsel %vm622, %v597, 0
      %626 = vmatprep.subr.bf16.mxu0 0
      %627 = vmatpush1.bf16.msra.mxu0 %v614
      %628 = vmatprep.subr.bf16.mxu0 0
      %629 = vmatpush1.bf16.msra.mxu0 %v615
      %630 = vmatprep.subr.bf16.mxu0 0
      %631 = vmatpush1.bf16.msra.mxu0 %v616
      %632 = vmatprep.subr.bf16.mxu0 0
      %633 = vmatpush1.bf16.msra.mxu0 %v617
      %634 = vmatprep.subr.bf16.mxu0 0
      %635 = vmatpush1.bf16.msra.mxu0 0
      %636 = vmatprep.subr.bf16.mxu0 0
      %637 = vmatpush1.bf16.msra.mxu0 0
      %638 = vmatprep.subr.bf16.mxu0 0
      %639 = vmatpush1.bf16.msra.mxu0 0
      %640 = vmatprep.subr.bf16.mxu0 0
      %641 = vmatpush1.bf16.msra.mxu0 0
      %642 = vmatprep.subr.bf16.mxu0 0
      %643 = vmatpush1.bf16.msra.mxu0 0
      %644 = vmatprep.subr.bf16.mxu0 0
      %645 = vmatpush1.bf16.msra.mxu0 0
      %646 = vmatprep.subr.bf16.mxu0 0
      %647 = vmatpush1.bf16.msra.mxu0 0
      %648 = vmatprep.subr.bf16.mxu0 0
      %649 = vmatpush1.bf16.msra.mxu0 0
      %650 = vmatprep.subr.bf16.mxu0 0
      %651 = vmatpush1.bf16.msra.mxu0 0
      %652 = vmatprep.subr.bf16.mxu0 0
      %653 = vmatpush1.bf16.msra.mxu0 0
      %654 = vmatprep.subr.bf16.mxu0 0
      %655 = vmatpush1.bf16.msra.mxu0 0
      %656 = vmatprep.subr.bf16.mxu0 0
      %657 = vmatpush1.bf16.msra.mxu0 0
      %658 = vmatprep.mubr.bf16.mxu0 0
      %659 = vmatmul.mubr.bf16.gmra.mrb[0].mxu0 %v624
      %v660 = vpop.f32.mrb[0].mxu0
      %v661 = vadd.f32 0.0, %v660
      %v662 = vpop.f32.mrb[0].mxu0
      %v663 = vpop.f32.mrb[0].mxu0
      %v664 = vadd.f32 0.0, %v663
      %v665 = vpop.f32.mrb[0].mxu0
      %666 = vdwg.mxu0
      %v671 = vcombine.low %v536, %v537
      %v672 = vcombine.low %v538, %v539
      %v674 = vunpack.c.l.s4 1983009808
      %v675 = vunpack.c.0.s8 %v674
      %v676 = vlaneseq
      %v677 = vshrl.u32 %v676, 7
      %v678 = vsub.s32 %v675, %v677
      %v679 = vrot.slane %v671, %v678
      %v681 = vunpack.c.l.s4 1983009808
      %v682 = vunpack.c.0.s8 %v681
      %v683 = vlaneseq
      %v684 = vshrl.u32 %v683, 7
      %v685 = vsub.s32 %v682, %v684
      %v686 = vrot.slane %v672, %v685
      %v687 = vcombine.low %v679, %v686
      %v696 = vunpack.c.l.b16 %v560
      %v697 = vunpack.c.l.b16 %v561
      %v698 = vunpack.c.l.b16 %v562
      %v699 = vunpack.c.l.b16 %v563
      %v700 = vunpack.c.l.b16 %v564
      %v701 = vunpack.c.l.b16 %v565
      %v702 = vunpack.c.l.b16 %v566
      %v703 = vunpack.c.l.b16 %v567
      %v704 = vpack.c.b16 %v697, %v696
      %v705 = vpack.c.b16 %v699, %v698
      %v706 = vpack.c.b16 %v701, %v700
      %v707 = vpack.c.b16 %v703, %v702
      %v713 = vsel %vm622, %v687, 0
      %715 = vmatprep.subr.bf16.mxu0 0
      %716 = vmatpush1.bf16.msra.mxu0 %v704
      %717 = vmatprep.subr.bf16.mxu0 0
      %718 = vmatpush1.bf16.msra.mxu0 %v705
      %719 = vmatprep.subr.bf16.mxu0 0
      %720 = vmatpush1.bf16.msra.mxu0 %v706
      %721 = vmatprep.subr.bf16.mxu0 0
      %722 = vmatpush1.bf16.msra.mxu0 %v707
      %723 = vmatprep.subr.bf16.mxu0 0
      %724 = vmatpush1.bf16.msra.mxu0 0
      %725 = vmatprep.subr.bf16.mxu0 0
      %726 = vmatpush1.bf16.msra.mxu0 0
      %727 = vmatprep.subr.bf16.mxu0 0
      %728 = vmatpush1.bf16.msra.mxu0 0
      %729 = vmatprep.subr.bf16.mxu0 0
      %730 = vmatpush1.bf16.msra.mxu0 0
      %731 = vmatprep.subr.bf16.mxu0 0
      %732 = vmatpush1.bf16.msra.mxu0 0
      %733 = vmatprep.subr.bf16.mxu0 0
      %734 = vmatpush1.bf16.msra.mxu0 0
      %735 = vmatprep.subr.bf16.mxu0 0
      %736 = vmatpush1.bf16.msra.mxu0 0
      %737 = vmatprep.subr.bf16.mxu0 0
      %738 = vmatpush1.bf16.msra.mxu0 0
      %739 = vmatprep.subr.bf16.mxu0 0
      %740 = vmatpush1.bf16.msra.mxu0 0
      %741 = vmatprep.subr.bf16.mxu0 0
      %742 = vmatpush1.bf16.msra.mxu0 0
      %743 = vmatprep.subr.bf16.mxu0 0
      %744 = vmatpush1.bf16.msra.mxu0 0
      %745 = vmatprep.subr.bf16.mxu0 0
      %746 = vmatpush1.bf16.msra.mxu0 0
      %747 = vmatprep.mubr.bf16.mxu0 0
      %748 = vmatmul.mubr.bf16.gmra.mrb[0].mxu0 %v713
      %v749 = vpop.f32.mrb[0].mxu0
      %v750 = vadd.f32 %v661, %v749
      %v751 = vpop.f32.mrb[0].mxu0
      %v752 = vpop.f32.mrb[0].mxu0
      %v753 = vadd.f32 %v664, %v752
      %v754 = vpop.f32.mrb[0].mxu0
      %755 = vdwg.mxu0
      %v757 = vunpack.c.l.s4 1983009808
      %v758 = vunpack.c.0.s8 %v757
      %v759 = vlaneseq
      %v760 = vshrl.u32 %v759, 7
      %v761 = vsub.s32 %v758, %v760
      %v762 = vrot.slane %v536, %v761
      %v763 = vcombine.high %v762, %v762
      %v765 = vunpack.c.l.s4 1983009808
      %v766 = vunpack.c.0.s8 %v765
      %v767 = vlaneseq
      %v768 = vshrl.u32 %v767, 7
      %v769 = vsub.s32 %v766, %v768
      %v770 = vrot.slane %v537, %v769
      %v771 = vcombine.high %v770, %v770
      %v773 = vunpack.c.l.s4 1983009808
      %v774 = vunpack.c.0.s8 %v773
      %v775 = vlaneseq
      %v776 = vshrl.u32 %v775, 7
      %v777 = vsub.s32 %v774, %v776
      %v778 = vrot.slane %v538, %v777
      %v779 = vcombine.high %v778, %v778
      %v781 = vunpack.c.l.s4 1983009808
      %v782 = vunpack.c.0.s8 %v781
      %v783 = vlaneseq
      %v784 = vshrl.u32 %v783, 7
      %v785 = vsub.s32 %v782, %v784
      %v786 = vrot.slane %v539, %v785
      %v787 = vcombine.high %v786, %v786
      %vm788 = vsmask.f32 1280
      %vm789 = vsmask.f32 3336
      %vm790 = vmor %vm788, %vm789
      %vm791 = vsmask.f32 5392
      %vm792 = vmor %vm790, %vm791
      %vm793 = vsmask.f32 7448
      %vm794 = vmor %vm792, %vm793
      %v796 = vshrl.u32 %v762, 16
      %v798 = vrot.slane %v796, 6
      %v799 = vshll.u32 %v762, 16
      %v801 = vrot.slane %v799, 7
      %v802 = vor.u32 %v798, %v801
      %v803 = vrot.slane %v802, 2
      %v805 = vshll.u32 %v763, 16
      %v807 = vrot.slane %v805, 7
      %v808 = vsel %vm794, %v803, %v807
      %v810 = vshrl.u32 %v770, 16
      %v812 = vrot.slane %v810, 6
      %v813 = vshll.u32 %v770, 16
      %v815 = vrot.slane %v813, 7
      %v816 = vor.u32 %v812, %v815
      %v817 = vrot.slane %v816, 2
      %v819 = vshll.u32 %v771, 16
      %v821 = vrot.slane %v819, 7
      %v822 = vsel %vm794, %v817, %v821
      %v824 = vshrl.u32 %v778, 16
      %v826 = vrot.slane %v824, 6
      %v827 = vshll.u32 %v778, 16
      %v829 = vrot.slane %v827, 7
      %v830 = vor.u32 %v826, %v829
      %v831 = vrot.slane %v830, 2
      %v833 = vshll.u32 %v779, 16
      %v835 = vrot.slane %v833, 7
      %v836 = vsel %vm794, %v831, %v835
      %v838 = vshrl.u32 %v786, 16
      %v840 = vrot.slane %v838, 6
      %v841 = vshll.u32 %v786, 16
      %v843 = vrot.slane %v841, 7
      %v844 = vor.u32 %v840, %v843
      %v845 = vrot.slane %v844, 2
      %v847 = vshll.u32 %v787, 16
      %v849 = vrot.slane %v847, 7
      %v850 = vsel %vm794, %v845, %v849
      %s851 = scalar_lea.vmem %s6, 64
      %v852 = vld [vmem:[%s851] sm:$0xf]
      %v853 = vld [vmem:[%s851 + $0x4] sm:$0xf]
      %v854 = vld [vmem:[%s851 + $0x8] sm:$0xf]
      %v855 = vld [vmem:[%s851 + $0xc] sm:$0xf]
      %v856 = vld [vmem:[%s851 + $0x10] sm:$0xf]
      %v857 = vld [vmem:[%s851 + $0x14] sm:$0xf]
      %v858 = vld [vmem:[%s851 + $0x18] sm:$0xf]
      %v859 = vld [vmem:[%s851 + $0x1c] sm:$0xf]
      %v860 = vcombine.low %v808, %v822
      %v861 = vcombine.low %v836, %v850
      %v863 = vunpack.c.l.s4 1983009808
      %v864 = vunpack.c.0.s8 %v863
      %v865 = vlaneseq
      %v866 = vshrl.u32 %v865, 7
      %v867 = vsub.s32 %v864, %v866
      %v868 = vrot.slane %v860, %v867
      %v870 = vunpack.c.l.s4 1983009808
      %v871 = vunpack.c.0.s8 %v870
      %v872 = vlaneseq
      %v873 = vshrl.u32 %v872, 7
      %v874 = vsub.s32 %v871, %v873
      %v875 = vrot.slane %v861, %v874
      %v876 = vcombine.low %v868, %v875
      %v885 = vunpack.c.l.b16 %v852
      %v886 = vunpack.c.l.b16 %v853
      %v887 = vunpack.c.l.b16 %v854
      %v888 = vunpack.c.l.b16 %v855
      %v889 = vunpack.c.l.b16 %v856
      %v890 = vunpack.c.l.b16 %v857
      %v891 = vunpack.c.l.b16 %v858
      %v892 = vunpack.c.l.b16 %v859
      %v893 = vpack.c.b16 %v886, %v885
      %v894 = vpack.c.b16 %v888, %v887
      %v895 = vpack.c.b16 %v890, %v889
      %v896 = vpack.c.b16 %v892, %v891
      %v902 = vsel %vm622, %v876, 0
      %904 = vmatprep.subr.bf16.mxu0 0
      %905 = vmatpush1.bf16.msra.mxu0 %v893
      %906 = vmatprep.subr.bf16.mxu0 0
      %907 = vmatpush1.bf16.msra.mxu0 %v894
      %908 = vmatprep.subr.bf16.mxu0 0
      %909 = vmatpush1.bf16.msra.mxu0 %v895
      %910 = vmatprep.subr.bf16.mxu0 0
      %911 = vmatpush1.bf16.msra.mxu0 %v896
      %912 = vmatprep.subr.bf16.mxu0 0
      %913 = vmatpush1.bf16.msra.mxu0 0
      %914 = vmatprep.subr.bf16.mxu0 0
      %915 = vmatpush1.bf16.msra.mxu0 0
      %916 = vmatprep.subr.bf16.mxu0 0
      %917 = vmatpush1.bf16.msra.mxu0 0
      %918 = vmatprep.subr.bf16.mxu0 0
      %919 = vmatpush1.bf16.msra.mxu0 0
      %920 = vmatprep.subr.bf16.mxu0 0
      %921 = vmatpush1.bf16.msra.mxu0 0
      %922 = vmatprep.subr.bf16.mxu0 0
      %923 = vmatpush1.bf16.msra.mxu0 0
      %924 = vmatprep.subr.bf16.mxu0 0
      %925 = vmatpush1.bf16.msra.mxu0 0
      %926 = vmatprep.subr.bf16.mxu0 0
      %927 = vmatpush1.bf16.msra.mxu0 0
      %928 = vmatprep.subr.bf16.mxu0 0
      %929 = vmatpush1.bf16.msra.mxu0 0
      %930 = vmatprep.subr.bf16.mxu0 0
      %931 = vmatpush1.bf16.msra.mxu0 0
      %932 = vmatprep.subr.bf16.mxu0 0
      %933 = vmatpush1.bf16.msra.mxu0 0
      %934 = vmatprep.subr.bf16.mxu0 0
      %935 = vmatpush1.bf16.msra.mxu0 0
      %936 = vmatprep.mubr.bf16.mxu0 0
      %937 = vmatmul.mubr.bf16.gmra.mrb[0].mxu0 %v902
      %v938 = vpop.f32.mrb[0].mxu0
      %v939 = vadd.f32 0.0, %v938
      %v940 = vpop.f32.mrb[0].mxu0
      %v941 = vpop.f32.mrb[0].mxu0
      %v942 = vadd.f32 0.0, %v941
      %v943 = vpop.f32.mrb[0].mxu0
      %944 = vdwg.mxu0
      %v945 = vadd.f32 %v750, %v939
      %v946 = vadd.f32 %v753, %v942
      %s947 = scalar_lea.vmem %s6, 96
      %v948 = vld [vmem:[%s947] sm:$0xf]
      %v949 = vld [vmem:[%s947 + $0x4] sm:$0xf]
      %v950 = vld [vmem:[%s947 + $0x8] sm:$0xf]
      %v951 = vld [vmem:[%s947 + $0xc] sm:$0xf]
      %v952 = vld [vmem:[%s947 + $0x10] sm:$0xf]
      %v953 = vld [vmem:[%s947 + $0x14] sm:$0xf]
      %v954 = vld [vmem:[%s947 + $0x18] sm:$0xf]
      %v955 = vld [vmem:[%s947 + $0x1c] sm:$0xf]
      %v960 = vcombine.low %v544, %v545
      %v961 = vcombine.low %v546, %v547
      %v963 = vunpack.c.l.s4 1983009808
      %v964 = vunpack.c.0.s8 %v963
      %v965 = vlaneseq
      %v966 = vshrl.u32 %v965, 7
      %v967 = vsub.s32 %v964, %v966
      %v968 = vrot.slane %v960, %v967
      %v970 = vunpack.c.l.s4 1983009808
      %v971 = vunpack.c.0.s8 %v970
      %v972 = vlaneseq
      %v973 = vshrl.u32 %v972, 7
      %v974 = vsub.s32 %v971, %v973
      %v975 = vrot.slane %v961, %v974
      %v976 = vcombine.low %v968, %v975
      %v985 = vunpack.c.l.b16 %v948
      %v986 = vunpack.c.l.b16 %v949
      %v987 = vunpack.c.l.b16 %v950
      %v988 = vunpack.c.l.b16 %v951
      %v989 = vunpack.c.l.b16 %v952
      %v990 = vunpack.c.l.b16 %v953
      %v991 = vunpack.c.l.b16 %v954
      %v992 = vunpack.c.l.b16 %v955
      %v993 = vpack.c.b16 %v986, %v985
      %v994 = vpack.c.b16 %v988, %v987
      %v995 = vpack.c.b16 %v990, %v989
      %v996 = vpack.c.b16 %v992, %v991
      %v1002 = vsel %vm622, %v976, 0
      %1004 = vmatprep.subr.bf16.mxu0 0
      %1005 = vmatpush1.bf16.msra.mxu0 %v993
      %1006 = vmatprep.subr.bf16.mxu0 0
      %1007 = vmatpush1.bf16.msra.mxu0 %v994
      %1008 = vmatprep.subr.bf16.mxu0 0
      %1009 = vmatpush1.bf16.msra.mxu0 %v995
      %1010 = vmatprep.subr.bf16.mxu0 0
      %1011 = vmatpush1.bf16.msra.mxu0 %v996
      %1012 = vmatprep.subr.bf16.mxu0 0
      %1013 = vmatpush1.bf16.msra.mxu0 0
      %1014 = vmatprep.subr.bf16.mxu0 0
      %1015 = vmatpush1.bf16.msra.mxu0 0
      %1016 = vmatprep.subr.bf16.mxu0 0
      %1017 = vmatpush1.bf16.msra.mxu0 0
      %1018 = vmatprep.subr.bf16.mxu0 0
      %1019 = vmatpush1.bf16.msra.mxu0 0
      %1020 = vmatprep.subr.bf16.mxu0 0
      %1021 = vmatpush1.bf16.msra.mxu0 0
      %1022 = vmatprep.subr.bf16.mxu0 0
      %1023 = vmatpush1.bf16.msra.mxu0 0
      %1024 = vmatprep.subr.bf16.mxu0 0
      %1025 = vmatpush1.bf16.msra.mxu0 0
      %1026 = vmatprep.subr.bf16.mxu0 0
      %1027 = vmatpush1.bf16.msra.mxu0 0
      %1028 = vmatprep.subr.bf16.mxu0 0
      %1029 = vmatpush1.bf16.msra.mxu0 0
      %1030 = vmatprep.subr.bf16.mxu0 0
      %1031 = vmatpush1.bf16.msra.mxu0 0
      %1032 = vmatprep.subr.bf16.mxu0 0
      %1033 = vmatpush1.bf16.msra.mxu0 0
      %1034 = vmatprep.subr.bf16.mxu0 0
      %1035 = vmatpush1.bf16.msra.mxu0 0
      %1036 = vmatprep.mubr.bf16.mxu0 0
      %1037 = vmatmul.mubr.bf16.gmra.mrb[0].mxu0 %v1002
      %v1038 = vpop.f32.mrb[0].mxu0
      %v1039 = vadd.f32 0.0, %v1038
      %v1040 = vpop.f32.mrb[0].mxu0
      %v1041 = vpop.f32.mrb[0].mxu0
      %v1042 = vadd.f32 0.0, %v1041
      %v1043 = vpop.f32.mrb[0].mxu0
      %1044 = vdwg.mxu0
      %v1045 = vadd.f32 %v945, %v1039
      %v1046 = vadd.f32 %v946, %v1042
      %s1047 = scalar_lea.vmem %s6, 128
      %v1048 = vld [vmem:[%s1047] sm:$0xf]
      %v1049 = vld [vmem:[%s1047 + $0x4] sm:$0xf]
      %v1050 = vld [vmem:[%s1047 + $0x8] sm:$0xf]
      %v1051 = vld [vmem:[%s1047 + $0xc] sm:$0xf]
      %v1052 = vld [vmem:[%s1047 + $0x10] sm:$0xf]
      %v1053 = vld [vmem:[%s1047 + $0x14] sm:$0xf]
      %v1054 = vld [vmem:[%s1047 + $0x18] sm:$0xf]
      %v1055 = vld [vmem:[%s1047 + $0x1c] sm:$0xf]
      %v1060 = vcombine.low %v548, %v549
      %v1061 = vcombine.low %v550, %v551
      %v1063 = vunpack.c.l.s4 1983009808
      %v1064 = vunpack.c.0.s8 %v1063
      %v1065 = vlaneseq
      %v1066 = vshrl.u32 %v1065, 7
      %v1067 = vsub.s32 %v1064, %v1066
      %v1068 = vrot.slane %v1060, %v1067
      %v1070 = vunpack.c.l.s4 1983009808
      %v1071 = vunpack.c.0.s8 %v1070
      %v1072 = vlaneseq
      %v1073 = vshrl.u32 %v1072, 7
      %v1074 = vsub.s32 %v1071, %v1073
      %v1075 = vrot.slane %v1061, %v1074
      %v1076 = vcombine.low %v1068, %v1075
      %v1085 = vunpack.c.l.b16 %v1048
      %v1086 = vunpack.c.l.b16 %v1049
      %v1087 = vunpack.c.l.b16 %v1050
      %v1088 = vunpack.c.l.b16 %v1051
      %v1089 = vunpack.c.l.b16 %v1052
      %v1090 = vunpack.c.l.b16 %v1053
      %v1091 = vunpack.c.l.b16 %v1054
      %v1092 = vunpack.c.l.b16 %v1055
      %v1093 = vpack.c.b16 %v1086, %v1085
      %v1094 = vpack.c.b16 %v1088, %v1087
      %v1095 = vpack.c.b16 %v1090, %v1089
      %v1096 = vpack.c.b16 %v1092, %v1091
      %v1102 = vsel %vm622, %v1076, 0
      %1104 = vmatprep.subr.bf16.mxu0 0
      %1105 = vmatpush1.bf16.msra.mxu0 %v1093
      %1106 = vmatprep.subr.bf16.mxu0 0
      %1107 = vmatpush1.bf16.msra.mxu0 %v1094
      %1108 = vmatprep.subr.bf16.mxu0 0
      %1109 = vmatpush1.bf16.msra.mxu0 %v1095
      %1110 = vmatprep.subr.bf16.mxu0 0
      %1111 = vmatpush1.bf16.msra.mxu0 %v1096
      %1112 = vmatprep.subr.bf16.mxu0 0
      %1113 = vmatpush1.bf16.msra.mxu0 0
      %1114 = vmatprep.subr.bf16.mxu0 0
      %1115 = vmatpush1.bf16.msra.mxu0 0
      %1116 = vmatprep.subr.bf16.mxu0 0
      %1117 = vmatpush1.bf16.msra.mxu0 0
      %1118 = vmatprep.subr.bf16.mxu0 0
      %1119 = vmatpush1.bf16.msra.mxu0 0
      %1120 = vmatprep.subr.bf16.mxu0 0
      %1121 = vmatpush1.bf16.msra.mxu0 0
      %1122 = vmatprep.subr.bf16.mxu0 0
      %1123 = vmatpush1.bf16.msra.mxu0 0
      %1124 = vmatprep.subr.bf16.mxu0 0
      %1125 = vmatpush1.bf16.msra.mxu0 0
      %1126 = vmatprep.subr.bf16.mxu0 0
      %1127 = vmatpush1.bf16.msra.mxu0 0
      %1128 = vmatprep.subr.bf16.mxu0 0
      %1129 = vmatpush1.bf16.msra.mxu0 0
      %1130 = vmatprep.subr.bf16.mxu0 0
      %1131 = vmatpush1.bf16.msra.mxu0 0
      %1132 = vmatprep.subr.bf16.mxu0 0
      %1133 = vmatpush1.bf16.msra.mxu0 0
      %1134 = vmatprep.subr.bf16.mxu0 0
      %1135 = vmatpush1.bf16.msra.mxu0 0
      %1136 = vmatprep.mubr.bf16.mxu0 0
      %1137 = vmatmul.mubr.bf16.gmra.mrb[0].mxu0 %v1102
      %v1138 = vpop.f32.mrb[0].mxu0
      %v1139 = vadd.f32 0.0, %v1138
      %v1140 = vpop.f32.mrb[0].mxu0
      %v1141 = vpop.f32.mrb[0].mxu0
      %v1142 = vadd.f32 0.0, %v1141
      %v1143 = vpop.f32.mrb[0].mxu0
      %1144 = vdwg.mxu0
      %v1145 = vadd.f32 %v1045, %v1139
      %v1146 = vadd.f32 %v1046, %v1142
      %v1148 = vunpack.c.l.s4 1983009808
      %v1149 = vunpack.c.0.s8 %v1148
      %v1150 = vlaneseq
      %v1151 = vshrl.u32 %v1150, 7
      %v1152 = vsub.s32 %v1149, %v1151
      %v1153 = vrot.slane %v544, %v1152
      %v1154 = vcombine.high %v1153, %v1153
      %v1156 = vunpack.c.l.s4 1983009808
      %v1157 = vunpack.c.0.s8 %v1156
      %v1158 = vlaneseq
      %v1159 = vshrl.u32 %v1158, 7
      %v1160 = vsub.s32 %v1157, %v1159
      %v1161 = vrot.slane %v545, %v1160
      %v1162 = vcombine.high %v1161, %v1161
      %v1164 = vunpack.c.l.s4 1983009808
      %v1165 = vunpack.c.0.s8 %v1164
      %v1166 = vlaneseq
      %v1167 = vshrl.u32 %v1166, 7
      %v1168 = vsub.s32 %v1165, %v1167
      %v1169 = vrot.slane %v546, %v1168
      %v1170 = vcombine.high %v1169, %v1169
      %v1172 = vunpack.c.l.s4 1983009808
      %v1173 = vunpack.c.0.s8 %v1172
      %v1174 = vlaneseq
      %v1175 = vshrl.u32 %v1174, 7
      %v1176 = vsub.s32 %v1173, %v1175
      %v1177 = vrot.slane %v547, %v1176
      %v1178 = vcombine.high %v1177, %v1177
      %v1180 = vshrl.u32 %v1153, 16
      %v1182 = vrot.slane %v1180, 6
      %v1183 = vshll.u32 %v1153, 16
      %v1185 = vrot.slane %v1183, 7
      %v1186 = vor.u32 %v1182, %v1185
      %v1187 = vrot.slane %v1186, 2
      %v1189 = vshll.u32 %v1154, 16
      %v1191 = vrot.slane %v1189, 7
      %v1192 = vsel %vm794, %v1187, %v1191
      %v1194 = vshrl.u32 %v1161, 16
      %v1196 = vrot.slane %v1194, 6
      %v1197 = vshll.u32 %v1161, 16
      %v1199 = vrot.slane %v1197, 7
      %v1200 = vor.u32 %v1196, %v1199
      %v1201 = vrot.slane %v1200, 2
      %v1203 = vshll.u32 %v1162, 16
      %v1205 = vrot.slane %v1203, 7
      %v1206 = vsel %vm794, %v1201, %v1205
      %v1208 = vshrl.u32 %v1169, 16
      %v1210 = vrot.slane %v1208, 6
      %v1211 = vshll.u32 %v1169, 16
      %v1213 = vrot.slane %v1211, 7
      %v1214 = vor.u32 %v1210, %v1213
      %v1215 = vrot.slane %v1214, 2
      %v1217 = vshll.u32 %v1170, 16
      %v1219 = vrot.slane %v1217, 7
      %v1220 = vsel %vm794, %v1215, %v1219
      %v1222 = vshrl.u32 %v1177, 16
      %v1224 = vrot.slane %v1222, 6
      %v1225 = vshll.u32 %v1177, 16
      %v1227 = vrot.slane %v1225, 7
      %v1228 = vor.u32 %v1224, %v1227
      %v1229 = vrot.slane %v1228, 2
      %v1231 = vshll.u32 %v1178, 16
      %v1233 = vrot.slane %v1231, 7
      %v1234 = vsel %vm794, %v1229, %v1233
      %s1235 = scalar_lea.vmem %s6, 160
      %v1236 = vld [vmem:[%s1235] sm:$0xf]
      %v1237 = vld [vmem:[%s1235 + $0x4] sm:$0xf]
      %v1238 = vld [vmem:[%s1235 + $0x8] sm:$0xf]
      %v1239 = vld [vmem:[%s1235 + $0xc] sm:$0xf]
      %v1240 = vld [vmem:[%s1235 + $0x10] sm:$0xf]
      %v1241 = vld [vmem:[%s1235 + $0x14] sm:$0xf]
      %v1242 = vld [vmem:[%s1235 + $0x18] sm:$0xf]
      %v1243 = vld [vmem:[%s1235 + $0x1c] sm:$0xf]
      %v1244 = vcombine.low %v1192, %v1206
      %v1245 = vcombine.low %v1220, %v1234
      %v1247 = vunpack.c.l.s4 1983009808
      %v1248 = vunpack.c.0.s8 %v1247
      %v1249 = vlaneseq
      %v1250 = vshrl.u32 %v1249, 7
      %v1251 = vsub.s32 %v1248, %v1250
      %v1252 = vrot.slane %v1244, %v1251
      %v1254 = vunpack.c.l.s4 1983009808
      %v1255 = vunpack.c.0.s8 %v1254
      %v1256 = vlaneseq
      %v1257 = vshrl.u32 %v1256, 7
      %v1258 = vsub.s32 %v1255, %v1257
      %v1259 = vrot.slane %v1245, %v1258
      %v1260 = vcombine.low %v1252, %v1259
      %v1269 = vunpack.c.l.b16 %v1236
      %v1270 = vunpack.c.l.b16 %v1237
      %v1271 = vunpack.c.l.b16 %v1238
      %v1272 = vunpack.c.l.b16 %v1239
      %v1273 = vunpack.c.l.b16 %v1240
      %v1274 = vunpack.c.l.b16 %v1241
      %v1275 = vunpack.c.l.b16 %v1242
      %v1276 = vunpack.c.l.b16 %v1243
      %v1277 = vpack.c.b16 %v1270, %v1269
      %v1278 = vpack.c.b16 %v1272, %v1271
      %v1279 = vpack.c.b16 %v1274, %v1273
      %v1280 = vpack.c.b16 %v1276, %v1275
      %v1286 = vsel %vm622, %v1260, 0
      %1288 = vmatprep.subr.bf16.mxu0 0
      %1289 = vmatpush1.bf16.msra.mxu0 %v1277
      %1290 = vmatprep.subr.bf16.mxu0 0
      %1291 = vmatpush1.bf16.msra.mxu0 %v1278
      %1292 = vmatprep.subr.bf16.mxu0 0
      %1293 = vmatpush1.bf16.msra.mxu0 %v1279
      %1294 = vmatprep.subr.bf16.mxu0 0
      %1295 = vmatpush1.bf16.msra.mxu0 %v1280
      %1296 = vmatprep.subr.bf16.mxu0 0
      %1297 = vmatpush1.bf16.msra.mxu0 0
      %1298 = vmatprep.subr.bf16.mxu0 0
      %1299 = vmatpush1.bf16.msra.mxu0 0
      %1300 = vmatprep.subr.bf16.mxu0 0
      %1301 = vmatpush1.bf16.msra.mxu0 0
      %1302 = vmatprep.subr.bf16.mxu0 0
      %1303 = vmatpush1.bf16.msra.mxu0 0
      %1304 = vmatprep.subr.bf16.mxu0 0
      %1305 = vmatpush1.bf16.msra.mxu0 0
      %1306 = vmatprep.subr.bf16.mxu0 0
      %1307 = vmatpush1.bf16.msra.mxu0 0
      %1308 = vmatprep.subr.bf16.mxu0 0
      %1309 = vmatpush1.bf16.msra.mxu0 0
      %1310 = vmatprep.subr.bf16.mxu0 0
      %1311 = vmatpush1.bf16.msra.mxu0 0
      %1312 = vmatprep.subr.bf16.mxu0 0
      %1313 = vmatpush1.bf16.msra.mxu0 0
      %1314 = vmatprep.subr.bf16.mxu0 0
      %1315 = vmatpush1.bf16.msra.mxu0 0
      %1316 = vmatprep.subr.bf16.mxu0 0
      %1317 = vmatpush1.bf16.msra.mxu0 0
      %1318 = vmatprep.subr.bf16.mxu0 0
      %1319 = vmatpush1.bf16.msra.mxu0 0
      %1320 = vmatprep.mubr.bf16.mxu0 0
      %1321 = vmatmul.mubr.bf16.gmra.mrb[0].mxu0 %v1286
      %v1322 = vpop.f32.mrb[0].mxu0
      %v1323 = vadd.f32 0.0, %v1322
      %v1324 = vpop.f32.mrb[0].mxu0
      %v1325 = vpop.f32.mrb[0].mxu0
      %v1326 = vadd.f32 0.0, %v1325
      %v1327 = vpop.f32.mrb[0].mxu0
      %1328 = vdwg.mxu0
      %v1329 = vadd.f32 %v1145, %v1323
      %v1330 = vadd.f32 %v1146, %v1326
      %s1331 = scalar_lea.vmem %s6, 192
      %v1332 = vld [vmem:[%s1331] sm:$0xf]
      %v1333 = vld [vmem:[%s1331 + $0x4] sm:$0xf]
      %v1334 = vld [vmem:[%s1331 + $0x8] sm:$0xf]
      %v1335 = vld [vmem:[%s1331 + $0xc] sm:$0xf]
      %v1336 = vld [vmem:[%s1331 + $0x10] sm:$0xf]
      %v1337 = vld [vmem:[%s1331 + $0x14] sm:$0xf]
      %v1338 = vld [vmem:[%s1331 + $0x18] sm:$0xf]
      %v1339 = vld [vmem:[%s1331 + $0x1c] sm:$0xf]
      %v1344 = vcombine.low %v552, %v553
      %v1345 = vcombine.low %v554, %v555
      %v1347 = vunpack.c.l.s4 1983009808
      %v1348 = vunpack.c.0.s8 %v1347
      %v1349 = vlaneseq
      %v1350 = vshrl.u32 %v1349, 7
      %v1351 = vsub.s32 %v1348, %v1350
      %v1352 = vrot.slane %v1344, %v1351
      %v1354 = vunpack.c.l.s4 1983009808
      %v1355 = vunpack.c.0.s8 %v1354
      %v1356 = vlaneseq
      %v1357 = vshrl.u32 %v1356, 7
      %v1358 = vsub.s32 %v1355, %v1357
      %v1359 = vrot.slane %v1345, %v1358
      %v1360 = vcombine.low %v1352, %v1359
      %v1369 = vunpack.c.l.b16 %v1332
      %v1370 = vunpack.c.l.b16 %v1333
      %v1371 = vunpack.c.l.b16 %v1334
      %v1372 = vunpack.c.l.b16 %v1335
      %v1373 = vunpack.c.l.b16 %v1336
      %v1374 = vunpack.c.l.b16 %v1337
      %v1375 = vunpack.c.l.b16 %v1338
      %v1376 = vunpack.c.l.b16 %v1339
      %v1377 = vpack.c.b16 %v1370, %v1369
      %v1378 = vpack.c.b16 %v1372, %v1371
      %v1379 = vpack.c.b16 %v1374, %v1373
      %v1380 = vpack.c.b16 %v1376, %v1375
      %v1386 = vsel %vm622, %v1360, 0
      %1388 = vmatprep.subr.bf16.mxu0 0
      %1389 = vmatpush1.bf16.msra.mxu0 %v1377
      %1390 = vmatprep.subr.bf16.mxu0 0
      %1391 = vmatpush1.bf16.msra.mxu0 %v1378
      %1392 = vmatprep.subr.bf16.mxu0 0
      %1393 = vmatpush1.bf16.msra.mxu0 %v1379
      %1394 = vmatprep.subr.bf16.mxu0 0
      %1395 = vmatpush1.bf16.msra.mxu0 %v1380
      %1396 = vmatprep.subr.bf16.mxu0 0
      %1397 = vmatpush1.bf16.msra.mxu0 0
      %1398 = vmatprep.subr.bf16.mxu0 0
      %1399 = vmatpush1.bf16.msra.mxu0 0
      %1400 = vmatprep.subr.bf16.mxu0 0
      %1401 = vmatpush1.bf16.msra.mxu0 0
      %1402 = vmatprep.subr.bf16.mxu0 0
      %1403 = vmatpush1.bf16.msra.mxu0 0
      %1404 = vmatprep.subr.bf16.mxu0 0
      %1405 = vmatpush1.bf16.msra.mxu0 0
      %1406 = vmatprep.subr.bf16.mxu0 0
      %1407 = vmatpush1.bf16.msra.mxu0 0
      %1408 = vmatprep.subr.bf16.mxu0 0
      %1409 = vmatpush1.bf16.msra.mxu0 0
      %1410 = vmatprep.subr.bf16.mxu0 0
      %1411 = vmatpush1.bf16.msra.mxu0 0
      %1412 = vmatprep.subr.bf16.mxu0 0
      %1413 = vmatpush1.bf16.msra.mxu0 0
      %1414 = vmatprep.subr.bf16.mxu0 0
      %1415 = vmatpush1.bf16.msra.mxu0 0
      %1416 = vmatprep.subr.bf16.mxu0 0
      %1417 = vmatpush1.bf16.msra.mxu0 0
      %1418 = vmatprep.subr.bf16.mxu0 0
      %1419 = vmatpush1.bf16.msra.mxu0 0
      %1420 = vmatprep.mubr.bf16.mxu0 0
      %1421 = vmatmul.mubr.bf16.gmra.mrb[0].mxu0 %v1386
      %v1422 = vpop.f32.mrb[0].mxu0
      %v1423 = vadd.f32 0.0, %v1422
      %v1424 = vpop.f32.mrb[0].mxu0
      %v1425 = vpop.f32.mrb[0].mxu0
      %v1426 = vadd.f32 0.0, %v1425
      %v1427 = vpop.f32.mrb[0].mxu0
      %1428 = vdwg.mxu0
      %v1429 = vadd.f32 %v1329, %v1423
      %v1430 = vadd.f32 %v1330, %v1426
      %s1431 = scalar_lea.vmem %s6, 224
      %v1432 = vld [vmem:[%s1431] sm:$0xf]
      %v1433 = vld [vmem:[%s1431 + $0x4] sm:$0xf]
      %v1434 = vld [vmem:[%s1431 + $0x8] sm:$0xf]
      %v1435 = vld [vmem:[%s1431 + $0xc] sm:$0xf]
      %v1436 = vld [vmem:[%s1431 + $0x10] sm:$0xf]
      %v1437 = vld [vmem:[%s1431 + $0x14] sm:$0xf]
      %v1438 = vld [vmem:[%s1431 + $0x18] sm:$0xf]
      %v1439 = vld [vmem:[%s1431 + $0x1c] sm:$0xf]
      %v1444 = vcombine.low %v556, %v557
      %v1445 = vcombine.low %v558, %v559
      %v1447 = vunpack.c.l.s4 1983009808
      %v1448 = vunpack.c.0.s8 %v1447
      %v1449 = vlaneseq
      %v1450 = vshrl.u32 %v1449, 7
      %v1451 = vsub.s32 %v1448, %v1450
      %v1452 = vrot.slane %v1444, %v1451
      %v1454 = vunpack.c.l.s4 1983009808
      %v1455 = vunpack.c.0.s8 %v1454
      %v1456 = vlaneseq
      %v1457 = vshrl.u32 %v1456, 7
      %v1458 = vsub.s32 %v1455, %v1457
      %v1459 = vrot.slane %v1445, %v1458
      %v1460 = vcombine.low %v1452, %v1459
      %v1469 = vunpack.c.l.b16 %v1432
      %v1470 = vunpack.c.l.b16 %v1433
      %v1471 = vunpack.c.l.b16 %v1434
      %v1472 = vunpack.c.l.b16 %v1435
      %v1473 = vunpack.c.l.b16 %v1436
      %v1474 = vunpack.c.l.b16 %v1437
      %v1475 = vunpack.c.l.b16 %v1438
      %v1476 = vunpack.c.l.b16 %v1439
      %v1477 = vpack.c.b16 %v1470, %v1469
      %v1478 = vpack.c.b16 %v1472, %v1471
      %v1479 = vpack.c.b16 %v1474, %v1473
      %v1480 = vpack.c.b16 %v1476, %v1475
      %v1486 = vsel %vm622, %v1460, 0
      %1488 = vmatprep.subr.bf16.mxu0 0
      %1489 = vmatpush1.bf16.msra.mxu0 %v1477
      %1490 = vmatprep.subr.bf16.mxu0 0
      %1491 = vmatpush1.bf16.msra.mxu0 %v1478
      %1492 = vmatprep.subr.bf16.mxu0 0
      %1493 = vmatpush1.bf16.msra.mxu0 %v1479
      %1494 = vmatprep.subr.bf16.mxu0 0
      %1495 = vmatpush1.bf16.msra.mxu0 %v1480
      %1496 = vmatprep.subr.bf16.mxu0 0
      %1497 = vmatpush1.bf16.msra.mxu0 0
      %1498 = vmatprep.subr.bf16.mxu0 0
      %1499 = vmatpush1.bf16.msra.mxu0 0
      %1500 = vmatprep.subr.bf16.mxu0 0
      %1501 = vmatpush1.bf16.msra.mxu0 0
      %1502 = vmatprep.subr.bf16.mxu0 0
      %1503 = vmatpush1.bf16.msra.mxu0 0
      %1504 = vmatprep.subr.bf16.mxu0 0
      %1505 = vmatpush1.bf16.msra.mxu0 0
      %1506 = vmatprep.subr.bf16.mxu0 0
      %1507 = vmatpush1.bf16.msra.mxu0 0
      %1508 = vmatprep.subr.bf16.mxu0 0
      %1509 = vmatpush1.bf16.msra.mxu0 0
      %1510 = vmatprep.subr.bf16.mxu0 0
      %1511 = vmatpush1.bf16.msra.mxu0 0
      %1512 = vmatprep.subr.bf16.mxu0 0
      %1513 = vmatpush1.bf16.msra.mxu0 0
      %1514 = vmatprep.subr.bf16.mxu0 0
      %1515 = vmatpush1.bf16.msra.mxu0 0
      %1516 = vmatprep.subr.bf16.mxu0 0
      %1517 = vmatpush1.bf16.msra.mxu0 0
      %1518 = vmatprep.subr.bf16.mxu0 0
      %1519 = vmatpush1.bf16.msra.mxu0 0
      %1520 = vmatprep.mubr.bf16.mxu0 0
      %1521 = vmatmul.mubr.bf16.gmra.mrb[0].mxu0 %v1486
      %v1522 = vpop.f32.mrb[0].mxu0
      %v1523 = vadd.f32 0.0, %v1522
      %v1524 = vpop.f32.mrb[0].mxu0
      %v1525 = vpop.f32.mrb[0].mxu0
      %v1526 = vadd.f32 0.0, %v1525
      %v1527 = vpop.f32.mrb[0].mxu0
      %1528 = vdwg.mxu0
      %v1529 = vadd.f32 %v1429, %v1523
      %v1530 = vadd.f32 %v1430, %v1526
      %v1532 = vunpack.c.l.s4 1983009808
      %v1533 = vunpack.c.0.s8 %v1532
      %v1534 = vlaneseq
      %v1535 = vshrl.u32 %v1534, 7
      %v1536 = vsub.s32 %v1533, %v1535
      %v1537 = vrot.slane %v552, %v1536
      %v1538 = vcombine.high %v1537, %v1537
      %v1540 = vunpack.c.l.s4 1983009808
      %v1541 = vunpack.c.0.s8 %v1540
      %v1542 = vlaneseq
      %v1543 = vshrl.u32 %v1542, 7
      %v1544 = vsub.s32 %v1541, %v1543
      %v1545 = vrot.slane %v553, %v1544
      %v1546 = vcombine.high %v1545, %v1545
      %v1548 = vunpack.c.l.s4 1983009808
      %v1549 = vunpack.c.0.s8 %v1548
      %v1550 = vlaneseq
      %v1551 = vshrl.u32 %v1550, 7
      %v1552 = vsub.s32 %v1549, %v1551
      %v1553 = vrot.slane %v554, %v1552
      %v1554 = vcombine.high %v1553, %v1553
      %v1556 = vunpack.c.l.s4 1983009808
      %v1557 = vunpack.c.0.s8 %v1556
      %v1558 = vlaneseq
      %v1559 = vshrl.u32 %v1558, 7
      %v1560 = vsub.s32 %v1557, %v1559
      %v1561 = vrot.slane %v555, %v1560
      %v1562 = vcombine.high %v1561, %v1561
      %v1564 = vshrl.u32 %v1537, 16
      %v1566 = vrot.slane %v1564, 6
      %v1567 = vshll.u32 %v1537, 16
      %v1569 = vrot.slane %v1567, 7
      %v1570 = vor.u32 %v1566, %v1569
      %v1571 = vrot.slane %v1570, 2
      %v1573 = vshll.u32 %v1538, 16
      %v1575 = vrot.slane %v1573, 7
      %v1576 = vsel %vm794, %v1571, %v1575
      %v1578 = vshrl.u32 %v1545, 16
      %v1580 = vrot.slane %v1578, 6
      %v1581 = vshll.u32 %v1545, 16
      %v1583 = vrot.slane %v1581, 7
      %v1584 = vor.u32 %v1580, %v1583
      %v1585 = vrot.slane %v1584, 2
      %v1587 = vshll.u32 %v1546, 16
      %v1589 = vrot.slane %v1587, 7
      %v1590 = vsel %vm794, %v1585, %v1589
      %v1592 = vshrl.u32 %v1553, 16
      %v1594 = vrot.slane %v1592, 6
      %v1595 = vshll.u32 %v1553, 16
      %v1597 = vrot.slane %v1595, 7
      %v1598 = vor.u32 %v1594, %v1597
      %v1599 = vrot.slane %v1598, 2
      %v1601 = vshll.u32 %v1554, 16
      %v1603 = vrot.slane %v1601, 7
      %v1604 = vsel %vm794, %v1599, %v1603
      %v1606 = vshrl.u32 %v1561, 16
      %v1608 = vrot.slane %v1606, 6
      %v1609 = vshll.u32 %v1561, 16
      %v1611 = vrot.slane %v1609, 7
      %v1612 = vor.u32 %v1608, %v1611
      %v1613 = vrot.slane %v1612, 2
      %v1615 = vshll.u32 %v1562, 16
      %v1617 = vrot.slane %v1615, 7
      %v1618 = vsel %vm794, %v1613, %v1617
      %s1619 = scalar_lea.vmem %s6, 256
      %v1620 = vld [vmem:[%s1619] sm:$0xf]
      %v1621 = vld [vmem:[%s1619 + $0x4] sm:$0xf]
      %v1622 = vld [vmem:[%s1619 + $0x8] sm:$0xf]
      %v1623 = vld [vmem:[%s1619 + $0xc] sm:$0xf]
      %v1624 = vld [vmem:[%s1619 + $0x10] sm:$0xf]
      %v1625 = vld [vmem:[%s1619 + $0x14] sm:$0xf]
      %v1626 = vld [vmem:[%s1619 + $0x18] sm:$0xf]
      %v1627 = vld [vmem:[%s1619 + $0x1c] sm:$0xf]
      %v1628 = vcombine.low %v1576, %v1590
      %v1629 = vcombine.low %v1604, %v1618
      %v1631 = vunpack.c.l.s4 1983009808
      %v1632 = vunpack.c.0.s8 %v1631
      %v1633 = vlaneseq
      %v1634 = vshrl.u32 %v1633, 7
      %v1635 = vsub.s32 %v1632, %v1634
      %v1636 = vrot.slane %v1628, %v1635
      %v1638 = vunpack.c.l.s4 1983009808
      %v1639 = vunpack.c.0.s8 %v1638
      %v1640 = vlaneseq
      %v1641 = vshrl.u32 %v1640, 7
      %v1642 = vsub.s32 %v1639, %v1641
      %v1643 = vrot.slane %v1629, %v1642
      %v1644 = vcombine.low %v1636, %v1643
      %v1653 = vunpack.c.l.b16 %v1620
      %v1654 = vunpack.c.l.b16 %v1621
      %v1655 = vunpack.c.l.b16 %v1622
      %v1656 = vunpack.c.l.b16 %v1623
      %v1657 = vunpack.c.l.b16 %v1624
      %v1658 = vunpack.c.l.b16 %v1625
      %v1659 = vunpack.c.l.b16 %v1626
      %v1660 = vunpack.c.l.b16 %v1627
      %v1661 = vpack.c.b16 %v1654, %v1653
      %v1662 = vpack.c.b16 %v1656, %v1655
      %v1663 = vpack.c.b16 %v1658, %v1657
      %v1664 = vpack.c.b16 %v1660, %v1659
      %v1670 = vsel %vm622, %v1644, 0
      %1672 = vmatprep.subr.bf16.mxu0 0
      %1673 = vmatpush1.bf16.msra.mxu0 %v1661
      %1674 = vmatprep.subr.bf16.mxu0 0
      %1675 = vmatpush1.bf16.msra.mxu0 %v1662
      %1676 = vmatprep.subr.bf16.mxu0 0
      %1677 = vmatpush1.bf16.msra.mxu0 %v1663
      %1678 = vmatprep.subr.bf16.mxu0 0
      %1679 = vmatpush1.bf16.msra.mxu0 %v1664
      %1680 = vmatprep.subr.bf16.mxu0 0
      %1681 = vmatpush1.bf16.msra.mxu0 0
      %1682 = vmatprep.subr.bf16.mxu0 0
      %1683 = vmatpush1.bf16.msra.mxu0 0
      %1684 = vmatprep.subr.bf16.mxu0 0
      %1685 = vmatpush1.bf16.msra.mxu0 0
      %1686 = vmatprep.subr.bf16.mxu0 0
      %1687 = vmatpush1.bf16.msra.mxu0 0
      %1688 = vmatprep.subr.bf16.mxu0 0
      %1689 = vmatpush1.bf16.msra.mxu0 0
      %1690 = vmatprep.subr.bf16.mxu0 0
      %1691 = vmatpush1.bf16.msra.mxu0 0
      %1692 = vmatprep.subr.bf16.mxu0 0
      %1693 = vmatpush1.bf16.msra.mxu0 0
      %1694 = vmatprep.subr.bf16.mxu0 0
      %1695 = vmatpush1.bf16.msra.mxu0 0
      %1696 = vmatprep.subr.bf16.mxu0 0
      %1697 = vmatpush1.bf16.msra.mxu0 0
      %1698 = vmatprep.subr.bf16.mxu0 0
      %1699 = vmatpush1.bf16.msra.mxu0 0
      %1700 = vmatprep.subr.bf16.mxu0 0
      %1701 = vmatpush1.bf16.msra.mxu0 0
      %1702 = vmatprep.subr.bf16.mxu0 0
      %1703 = vmatpush1.bf16.msra.mxu0 0
      %1704 = vmatprep.mubr.bf16.mxu0 0
      %1705 = vmatmul.mubr.bf16.gmra.mrb[0].mxu0 %v1670
      %v1706 = vpop.f32.mrb[0].mxu0
      %v1707 = vadd.f32 0.0, %v1706
      %v1708 = vpop.f32.mrb[0].mxu0
      %v1709 = vpop.f32.mrb[0].mxu0
      %v1710 = vadd.f32 0.0, %v1709
      %v1711 = vpop.f32.mrb[0].mxu0
      %1712 = vdwg.mxu0
      %v1713 = vadd.f32 %v1529, %v1707
      %v1714 = vadd.f32 %v1530, %v1710
      %v1715 = vpack.c.bf16 %v1714, %v1713
      %v1717 = vunpack.c.l.b16 %v1715
      %v1718 = vunpack.c.h.b16 %v1715
      %v1719 = vpack.c.b16 %v1717, %v1717
      %v1720 = vpack.c.b16 %v1718, %v1718
      %1723 = vst [vmem:[%s527] sm:$0xf] %v1719
      %1724 = vst [vmem:[%s527 + $0x4] sm:$0xf] %v1720
      %v1725 = vadd.f32 %v1713, %v1714
      %v1726 = vrot.slane %v1725, 4
      %v1727 = vadd.f32 %v1725, %v1726
      %v1728 = vrot.slane %v1727, 2
      %v1729 = vadd.f32 %v1727, %v1728
      %v1730 = vrot.slane %v1729, 1
      %v1731 = vadd.f32 %v1729, %v1730
      %1732 = vst [vmem:[%s533] sm:$0x1] %v1731
      %v1733 = vmul.f32 %v1713, %v1713
      %v1734 = vmul.f32 %v1714, %v1714
      %v1735 = vadd.f32 %v1733, %v1734
      %v1736 = vrot.slane %v1735, 4
      %v1737 = vadd.f32 %v1735, %v1736
      %v1738 = vrot.slane %v1737, 2
      %v1739 = vadd.f32 %v1737, %v1738
      %v1740 = vrot.slane %v1739, 1
      %v1741 = vadd.f32 %v1739, %v1740
      %1742 = vst [vmem:[%s533 + $0x1] sm:$0x1] %v1741
      %s1743 = sadd.s32 %s24, %s25
      %p1744 = scmp.lt.s32.totalorder %s1743, 1
      %s1745 = scalar_select %p1744, %s1743, 1
      %s1746 = smul.addr %s1745, 2
      %s1747 = smul.addr %s1746, 4
      %s1748 = scalar_lea.vmem %s7, %s1747
      %s1749 = sadd.s32 %s24, %s25
      %p1750 = scmp.lt.s32.totalorder %s1749, 1
      %s1751 = scalar_select %p1750, %s1749, 1
      %s1752 = smul.addr %s1751, 2
      %s1753 = scalar_lea.vmem %s8, %s1752
      // Predicated region
      $region49: #{spatial_path.8} parent=47 // pred_check
        %p1754 = pneg %p241
      $region50: #{spatial_path.8} parent=47 // pred_check_branch
        %1756 = sbr.rel (%p1754) target = $region52
      $region51: #{spatial_path.8} parent=47 // pred_region
        %s1757 = sadd.s32 %s24, %s25
      $region52: #{spatial_path.8} parent=47 // pred_fallthru
        _
      // Predicated region
      $region53: #{spatial_path.8} parent=47 // pred_check
        %p1758 = pneg %p269
      $region54: #{spatial_path.8} parent=47 // pred_check_branch
        %1760 = sbr.rel (%p1758) target = $region56
      $region55: #{spatial_path.8} parent=47 // pred_region
        %s1761 = sadd.s32 %s24, %s25
      $region56: #{spatial_path.8} parent=47 // pred_fallthru
        _
    $region48: #{spatial_path.8} parent=5 // pred_fallthru
      _
    %p1762 = scmp.le.s32.totalorder 2, %s15
    // Predicated region
    $region57: #{spatial_path.8} parent=5 // pred_check
      %p1763 = pneg %p1762
    $region58: #{spatial_path.8} parent=5 // pred_check_branch
      %1765 = sbr.rel (%p1763) target = $region60
    $region59: #{spatial_path.8} parent=5 // pred_region
      %s1766 = ssub.s32 %s15, 2
      // Predicated region
      $region61: #{spatial_path.8} parent=59 // pred_check
        %p1767 = pneg %p247
      $region62: #{spatial_path.8} parent=59 // pred_check_branch
        %1769 = sbr.rel (%p1767) target = $region64
      $region63: #{spatial_path.8} parent=59 // pred_region
        %s1770 = sadd.s32 %s26, %s27
        %p1771 = scmp.lt.s32.totalorder %s1770, 1
        %s1772 = scalar_select %p1771, %s1770, 1
        %s1773 = smul.addr %s1772, 2
        %s1774 = smul.addr %s1773, 4
        %s1775 = scalar_lea.vmem %s7, %s1774
      $region64: #{spatial_path.8} parent=59 // pred_fallthru
        _
      // Predicated region
      $region65: #{spatial_path.8} parent=59 // pred_check
        %p1776 = pneg %p275
      $region66: #{spatial_path.8} parent=59 // pred_check_branch
        %1778 = sbr.rel (%p1776) target = $region68
      $region67: #{spatial_path.8} parent=59 // pred_region
        %s1779 = sadd.s32 %s26, %s27
        %p1780 = scmp.lt.s32.totalorder %s1779, 1
        %s1781 = scalar_select %p1780, %s1779, 1
        %s1782 = smul.addr %s1781, 2
        %s1783 = scalar_lea.vmem %s8, %s1782
      $region68: #{spatial_path.8} parent=59 // pred_fallthru
        _
    $region60: #{spatial_path.8} parent=5 // pred_fallthru
      _
  $region6: #{spatial_path.8} parent=0 // loop_footer
    %s19 = sadd.s32 1, %s15
  $region7: #{spatial_path.8} parent=0 // loop_footer_branch
    %14 = sbr.rel target = $region3
  $region8: #{spatial_path.8} parent=0 // loop_exit
    _

// kernel: spatial_path.11
$region0: #{spatial_path.11}
  #allocation0 [shape = 'u32[]', space=smem, size = 0x4, offset = 0x4, fixed_abs, tag = 'smem constant byte address 0x4 - core index']
  #allocation1 [shape = 'u32[144,128]{1,0:T(1,128)}', space=vmem, size = 0x12000, scoped, tag = 'internal scratch']
  %s0 = inlined_call_operand.vmem [shape: f32[2,256], index: 0, kind: input, shape index: {}]
  %s1 = inlined_call_operand.vmem [shape: f32[1,256], index: 1, kind: input, shape index: {}]
  %s2 = inlined_call_operand.vmem [shape: f32[1,256], index: 2, kind: input, shape index: {}]
  %s3 = inlined_call_operand.vmem [shape: bf16[2,4,256], index: 3, kind: input, shape index: {}]
  %s4 = inlined_call_operand.vmem [shape: bf16[2,4,256], index: 4, kind: output, shape index: {}]
  %s5 = sld [smem:[#allocation0]]
  $region49: #{spatial_path.11} parent=0
    _
  %s7 = ssub.s32 1, %s5
  %s8 = scalar_select 0, %s7, %s5
  loop: start=0, step=1, limit=4
  $region2: #{spatial_path.11} parent=0 // loop_pre_header
    _
  $region3: #{spatial_path.11} parent=0 // loop_header
    %s10 = sphi 0, %s14
    %p11 = scmp.ge.s32.totalorder %s10, 4
    %s18 = sphi 0, %s18
    %s20 = sphi 0, %s18
    %s21 = sphi 0, %s20
    %s35 = sphi 0, %s21
    %s39 = sphi 0, %s39
    %s41 = sphi 0, %s39
    %s42 = sphi 0, %s41
    %s56 = sphi 0, %s42
    %s60 = sphi 0, %s60
    %s62 = sphi 0, %s60
    %s63 = sphi 0, %s62
    %s77 = sphi 0, %s63
    %s83 = sphi 0, %s85
    %s86 = sphi 0, %s83
    %s87 = sphi 0, %s86
    %s103 = sphi 0, %s87
    %s109 = sphi 0, %s111
    %s112 = sphi 0, %s109
    %s113 = sphi 0, %s112
    %s129 = sphi 0, %s113
  $region4: #{spatial_path.11} parent=0 // loop_header_branch
    %13 = sbr.rel (%p11) target = $region8
  $region5: #{spatial_path.11} parent=0 // loop_body
    %s15 = ssub.s32 %s10, 1
    %s16 = ssub.s32 %s10, 2
    %s17 = sadd.s32 %s10, 1
    %s19 = sadd.s32 %s18, 1
    %p22 = scmp.eq.s32.totalorder %s10, 1
    %p23 = scmp.ne.s32.totalorder %s18, %s20
    %p24 = scmp.eq.s32.totalorder %s10, 0
    %p25 = por %p23, %p24
    %p26 = scmp.ne.s32.totalorder %s18, %s20
    %p27 = scmp.eq.s32.totalorder %s15, 1
    %p28 = por %p26, %p27
    %p29 = scmp.ne.s32.totalorder %s20, %s21
    %p30 = scmp.eq.s32.totalorder %s15, 0
    %p31 = por %p29, %p30
    %p32 = scmp.ne.s32.totalorder %s20, %s21
    %p33 = scmp.eq.s32.totalorder %s16, 1
    %p34 = por %p32, %p33
    %p36 = scmp.ne.s32.totalorder %s21, %s35
    %p37 = scmp.eq.s32.totalorder %s16, 0
    %p38 = por %p36, %p37
    %s40 = sadd.s32 %s39, 1
    %p43 = scmp.eq.s32.totalorder %s10, 1
    %p44 = scmp.ne.s32.totalorder %s39, %s41
    %p45 = scmp.eq.s32.totalorder %s10, 0
    %p46 = por %p44, %p45
    %p47 = scmp.ne.s32.totalorder %s39, %s41
    %p48 = scmp.eq.s32.totalorder %s15, 1
    %p49 = por %p47, %p48
    %p50 = scmp.ne.s32.totalorder %s41, %s42
    %p51 = scmp.eq.s32.totalorder %s15, 0
    %p52 = por %p50, %p51
    %p53 = scmp.ne.s32.totalorder %s41, %s42
    %p54 = scmp.eq.s32.totalorder %s16, 1
    %p55 = por %p53, %p54
    %p57 = scmp.ne.s32.totalorder %s42, %s56
    %p58 = scmp.eq.s32.totalorder %s16, 0
    %p59 = por %p57, %p58
    %s61 = sadd.s32 %s60, 1
    %p64 = scmp.eq.s32.totalorder %s10, 1
    %p65 = scmp.ne.s32.totalorder %s60, %s62
    %p66 = scmp.eq.s32.totalorder %s10, 0
    %p67 = por %p65, %p66
    %p68 = scmp.ne.s32.totalorder %s60, %s62
    %p69 = scmp.eq.s32.totalorder %s15, 1
    %p70 = por %p68, %p69
    %p71 = scmp.ne.s32.totalorder %s62, %s63
    %p72 = scmp.eq.s32.totalorder %s15, 0
    %p73 = por %p71, %p72
    %p74 = scmp.ne.s32.totalorder %s62, %s63
    %p75 = scmp.eq.s32.totalorder %s16, 1
    %p76 = por %p74, %p75
    %p78 = scmp.ne.s32.totalorder %s63, %s77
    %p79 = scmp.eq.s32.totalorder %s16, 0
    %p80 = por %p78, %p79
    %s81 = ssub.s32 %s10, %s17
    %p82 = scmp.eq.s32.totalorder %s81, 0
    %s84 = sadd.s32 %s83, 1
    %s85 = scalar_select %p82, %s83, %s84
    %p88 = pneg %p82
    %p89 = scmp.eq.s32.totalorder %s10, 1
    %p90 = por %p88, %p89
    %p91 = scmp.ne.s32.totalorder %s83, %s86
    %p92 = scmp.eq.s32.totalorder %s10, 0
    %p93 = por %p91, %p92
    %p94 = scmp.ne.s32.totalorder %s83, %s86
    %p95 = scmp.eq.s32.totalorder %s15, 1
    %p96 = por %p94, %p95
    %p97 = scmp.ne.s32.totalorder %s86, %s87
    %p98 = scmp.eq.s32.totalorder %s15, 0
    %p99 = por %p97, %p98
    %p100 = scmp.ne.s32.totalorder %s86, %s87
    %p101 = scmp.eq.s32.totalorder %s16, 1
    %p102 = por %p100, %p101
    %p104 = scmp.ne.s32.totalorder %s87, %s103
    %p105 = scmp.eq.s32.totalorder %s16, 0
    %p106 = por %p104, %p105
    %s107 = ssub.s32 %s10, %s17
    %p108 = scmp.eq.s32.totalorder %s107, 0
    %s110 = sadd.s32 %s109, 1
    %s111 = scalar_select %p108, %s109, %s110
    %p114 = pneg %p108
    %p115 = scmp.eq.s32.totalorder %s10, 1
    %p116 = por %p114, %p115
    %p117 = scmp.ne.s32.totalorder %s109, %s112
    %p118 = scmp.eq.s32.totalorder %s10, 0
    %p119 = por %p117, %p118
    %p120 = scmp.ne.s32.totalorder %s109, %s112
    %p121 = scmp.eq.s32.totalorder %s15, 1
    %p122 = por %p120, %p121
    %p123 = scmp.ne.s32.totalorder %s112, %s113
    %p124 = scmp.eq.s32.totalorder %s15, 0
    %p125 = por %p123, %p124
    %p126 = scmp.ne.s32.totalorder %s112, %s113
    %p127 = scmp.eq.s32.totalorder %s16, 1
    %p128 = por %p126, %p127
    %p130 = scmp.ne.s32.totalorder %s113, %s129
    %p131 = scmp.eq.s32.totalorder %s16, 0
    %p132 = por %p130, %p131
    %p133 = scmp.le.s32.totalorder 1, %s10
    %p134 = scmp.lt.s32.totalorder %s10, 3
    %p135 = pnand %p133, %p134
    %p136 = pneg %p135
    // Predicated region
    $region9: #{spatial_path.11} parent=5 // pred_check
      _
    $region10: #{spatial_path.11} parent=5 // pred_check_branch
      %138 = sbr.rel (%p135) target = $region12
    $region11: #{spatial_path.11} parent=5 // pred_region
      %s139 = ssub.s32 %s10, 1
      // Predicated region
      $region13: #{spatial_path.11} parent=11 // pred_check
        %p140 = pneg %p31
      $region14: #{spatial_path.11} parent=11 // pred_check_branch
        %142 = sbr.rel (%p140) target = $region16
      $region15: #{spatial_path.11} parent=11 // pred_region
        _
      $region16: #{spatial_path.11} parent=11 // pred_fallthru
        _
      // Predicated region
      $region17: #{spatial_path.11} parent=11 // pred_check
        %p143 = pneg %p52
      $region18: #{spatial_path.11} parent=11 // pred_check_branch
        %145 = sbr.rel (%p143) target = $region20
      $region19: #{spatial_path.11} parent=11 // pred_region
        _
      $region20: #{spatial_path.11} parent=11 // pred_fallthru
        _
      // Predicated region
      $region21: #{spatial_path.11} parent=11 // pred_check
        %p146 = pneg %p73
      $region22: #{spatial_path.11} parent=11 // pred_check_branch
        %148 = sbr.rel (%p146) target = $region24
      $region23: #{spatial_path.11} parent=11 // pred_region
        _
      $region24: #{spatial_path.11} parent=11 // pred_fallthru
        _
    $region12: #{spatial_path.11} parent=5 // pred_fallthru
      _
    %p149 = scmp.lt.s32.totalorder %s10, 2
    // Predicated region
    $region25: #{spatial_path.11} parent=5 // pred_check
      %p150 = pneg %p149
    $region26: #{spatial_path.11} parent=5 // pred_check_branch
      %152 = sbr.rel (%p150) target = $region28
    $region27: #{spatial_path.11} parent=5 // pred_region
      // Predicated region
      $region29: #{spatial_path.11} parent=27 // pred_check
        %p153 = pneg %p93
      $region30: #{spatial_path.11} parent=27 // pred_check_branch
        %155 = sbr.rel (%p153) target = $region32
      $region31: #{spatial_path.11} parent=27 // pred_region
        %p156 = scmp.lt.s32.totalorder %s10, 1
        %s157 = scalar_select %p156, %s10, 1
        %s158 = smul.addr %s157, 2
        %s159 = smul.addr %s158, 2
        %s160 = scalar_lea.vmem %s3, %s159
      $region32: #{spatial_path.11} parent=27 // pred_fallthru
        _
    $region28: #{spatial_path.11} parent=5 // pred_fallthru
      _
    %p161 = scmp.le.s32.totalorder 1, %s10
    %p162 = scmp.lt.s32.totalorder %s10, 3
    %p163 = pnand %p161, %p162
    %p164 = pneg %p163
    // Predicated region
    $region33: #{spatial_path.11} parent=5 // pred_check
      _
    $region34: #{spatial_path.11} parent=5 // pred_check_branch
      %166 = sbr.rel (%p163) target = $region36
    $region35: #{spatial_path.11} parent=5 // pred_region
      %s167 = ssub.s32 %s10, 1
      %p168 = pneg %p31
      %p169 = pneg %p28
      %p170 = pneg %p52
      %p171 = pneg %p49
      %p172 = pneg %p73
      %p173 = pneg %p70
      %p174 = scmp.lt.s32.totalorder %s15, 1
      %s175 = scalar_select %p174, %s15, 1
      %s176 = smul.addr %s175, 2
      %s177 = smul.addr %s176, 2
      %s178 = scalar_lea.vmem %s3, %s177
      %p179 = pneg %p99
      %p180 = pneg %p96
      %p181 = pneg %p125
      %p182 = pneg %p122
      %p183 = scmp.lt.s32.totalorder %s15, 1
      %s184 = scalar_select %p183, %s15, 1
      %s185 = smul.addr %s184, 2
      %s186 = smul.addr %s185, 2
      %s187 = scalar_lea.vmem %s4, %s186
      %p188 = scmp.lt.s32.totalorder %s15, 1
      %s189 = scalar_select %p188, %s15, 1
      %s190 = smul.addr %s189, 2
      %s191 = smul.addr %s190, 2
      %s192 = scalar_lea.vmem %s3, %s191
      %p193 = scmp.lt.s32.totalorder %s15, 1
      %s194 = scalar_select %p193, %s15, 1
      %s195 = smul.addr %s194, 2
      %s196 = smul.addr %s195, 2
      %s197 = scalar_lea.vmem %s4, %s196
      %v198 = vld [vmem:[%s0] ss:$2 sm:$0x3]
      %v199 = vmul.f32 %v198, 0.125
      %s200 = scalar_lea.vmem %s0, 1
      %v201 = vld [vmem:[%s200] ss:$2 sm:$0x3]
      %v202 = vmul.f32 %v201, 0.125
      %v203 = vmul.f32 %v199, %v199
      %v204 = vsub.f32 %v202, %v203
      %v205 = vmax.f32 %v204, 0.0
      %v206 = vld [vmem:[%s1] sm:$0x3]
      %v207 = vadd.f32 %v205, 1e-05
      %v208 = vrsqrt.pop %v207
      %v209 = vmul.f32 %v206, %v208
      %v210 = vld [vmem:[%s2] sm:$0x3]
      %v211 = vmul.f32 %v199, %v209
      %v212 = vsub.f32 %v210, %v211
      %v213 = vld [vmem:[%s192] sm:$0xf]
      %v214 = vunpack.c.l.bf16 %v213
      %v216 = vlaneseq
      %v217 = vshrl.u32 %v216, 7
      %v218 = vsub.s32 0, %v217
      %v219 = vrot.slane %v209, %v218
      %v220 = vlaneseq
      %v221 = vshrl.u32 %v220, 7
      %v222 = vsub.s32 1, %v221
      %v223 = vrot.slane %v209, %v222
      %v224 = vcombine.low %v219, %v223
      %v226 = vmul.f32 %v214, %v224
      %v228 = vlaneseq
      %v229 = vshrl.u32 %v228, 7
      %v230 = vsub.s32 0, %v229
      %v231 = vrot.slane %v212, %v230
      %v232 = vlaneseq
      %v233 = vshrl.u32 %v232, 7
      %v234 = vsub.s32 1, %v233
      %v235 = vrot.slane %v212, %v234
      %v236 = vcombine.low %v231, %v235
      %v238 = vadd.f32 %v226, %v236
      %v239 = vmax.f32 %v238, 0.0
      %v241 = vcombine.high %v239, %v239
      %v243 = vpack.c.bf16 %v239, %v239
      %v244 = vpack.c.bf16 %v241, %v241
      %v247 = vcombine.low %v243, %v244
      %v249 = vunpack.c.l.s4 1983009808
      %v250 = vunpack.c.0.s8 %v249
      %v251 = vlaneseq
      %v252 = vshrl.u32 %v251, 7
      %v253 = vsub.s32 %v250, %v252
      %v254 = vrot.slane %v247, %v253
      %256 = vst [vmem:[%s197] sm:$0xf] %v254
      %p257 = scmp.lt.s32.totalorder %s15, 1
      %s258 = scalar_select %p257, %s15, 1
      %s259 = smul.addr %s258, 2
      %s260 = smul.addr %s259, 2
      %s261 = scalar_lea.vmem %s4, %s260
      // Predicated region
      $region37: #{spatial_path.11} parent=35 // pred_check
        %p262 = pneg %p122
      $region38: #{spatial_path.11} parent=35 // pred_check_branch
        %264 = sbr.rel (%p262) target = $region40
      $region39: #{spatial_path.11} parent=35 // pred_region
        _
      $region40: #{spatial_path.11} parent=35 // pred_fallthru
        _
    $region36: #{spatial_path.11} parent=5 // pred_fallthru
      _
    %p265 = scmp.le.s32.totalorder 2, %s10
    // Predicated region
    $region41: #{spatial_path.11} parent=5 // pred_check
      %p266 = pneg %p265
    $region42: #{spatial_path.11} parent=5 // pred_check_branch
      %268 = sbr.rel (%p266) target = $region44
    $region43: #{spatial_path.11} parent=5 // pred_region
      %s269 = ssub.s32 %s10, 2
      // Predicated region
      $region45: #{spatial_path.11} parent=43 // pred_check
        %p270 = pneg %p128
      $region46: #{spatial_path.11} parent=43 // pred_check_branch
        %272 = sbr.rel (%p270) target = $region48
      $region47: #{spatial_path.11} parent=43 // pred_region
        %p273 = scmp.lt.s32.totalorder %s16, 1
        %s274 = scalar_select %p273, %s16, 1
        %s275 = smul.addr %s274, 2
        %s276 = smul.addr %s275, 2
        %s277 = scalar_lea.vmem %s4, %s276
      $region48: #{spatial_path.11} parent=43 // pred_fallthru
        _
    $region44: #{spatial_path.11} parent=5 // pred_fallthru
      _
  $region6: #{spatial_path.11} parent=0 // loop_footer
    %s14 = sadd.s32 1, %s10
  $region7: #{spatial_path.11} parent=0 // loop_footer_branch
    %9 = sbr.rel target = $region3
  $region8: #{spatial_path.11} parent=0 // loop_exit
    _

// kernel: spatial_path.10
$region0: #{spatial_path.10}
  #allocation0 [shape = 'u32[]', space=smem, size = 0x4, offset = 0x4, fixed_abs, tag = 'smem constant byte address 0x4 - core index']
  #allocation1 [shape = 'u32[144,128]{1,0:T(1,128)}', space=vmem, size = 0x12000, scoped, tag = 'internal scratch']
  %s0 = inlined_call_operand.vmem [shape: bf16[2,2,3,128], index: 0, kind: input, shape index: {}]
  %s1 = inlined_call_operand.vmem [shape: bf16[2,2,3,128], index: 1, kind: input, shape index: {}]
  %s2 = inlined_call_operand.vmem [shape: bf16[2,2,3,128], index: 2, kind: input, shape index: {}]
  %s3 = inlined_call_operand.vmem [shape: bf16[2,2,3,128], index: 3, kind: input, shape index: {}]
  %s4 = inlined_call_operand.vmem [shape: bf16[2,2,3,128], index: 4, kind: input, shape index: {}]
  %s5 = inlined_call_operand.vmem [shape: bf16[2,2,3,128], index: 5, kind: input, shape index: {}]
  %s6 = inlined_call_operand.vmem [shape: bf16[9,128,256], index: 6, kind: input, shape index: {}]
  %s7 = inlined_call_operand.vmem [shape: bf16[2,4,256], index: 7, kind: output, shape index: {0}]
  %s8 = inlined_call_operand.vmem [shape: f32[2,2,256], index: 8, kind: output, shape index: {1}]
  %9 = xla_tuple %s7, %s8
  %s10 = sld [smem:[#allocation0]]
  $region69: #{spatial_path.10} parent=0
    _
  %s12 = ssub.s32 1, %s10
  %s13 = scalar_select 0, %s12, %s10
  loop: start=0, step=1, limit=4
  $region2: #{spatial_path.10} parent=0 // loop_pre_header
    _
  $region3: #{spatial_path.10} parent=0 // loop_header
    %s15 = sphi 0, %s19
    %p16 = scmp.ge.s32.totalorder %s15, 4
    %s22 = sphi 0, %s34
    %s23 = sphi 0, %s30
    %s24 = sphi 0, %s22
    %s25 = sphi 0, %s23
    %s26 = sphi 0, %s24
    %s27 = sphi 0, %s25
    %s39 = sphi 0, %s41
    %s42 = sphi 0, %s39
    %s43 = sphi 0, %s42
    %s59 = sphi 0, %s43
    %s67 = sphi 0, %s69
    %s70 = sphi 0, %s67
    %s71 = sphi 0, %s70
    %s87 = sphi 0, %s71
    %s95 = sphi 0, %s97
    %s98 = sphi 0, %s95
    %s99 = sphi 0, %s98
    %s115 = sphi 0, %s99
    %s123 = sphi 0, %s125
    %s126 = sphi 0, %s123
    %s127 = sphi 0, %s126
    %s143 = sphi 0, %s127
    %s151 = sphi 0, %s153
    %s154 = sphi 0, %s151
    %s155 = sphi 0, %s154
    %s171 = sphi 0, %s155
    %s179 = sphi 0, %s181
    %s182 = sphi 0, %s179
    %s183 = sphi 0, %s182
    %s199 = sphi 0, %s183
    %s203 = sphi 0, %s203
    %s205 = sphi 0, %s203
    %s206 = sphi 0, %s205
    %s220 = sphi 0, %s206
    %s228 = sphi 0, %s230
    %s231 = sphi 0, %s228
    %s232 = sphi 0, %s231
    %s248 = sphi 0, %s232
    %s256 = sphi 0, %s258
    %s259 = sphi 0, %s256
    %s260 = sphi 0, %s259
    %s276 = sphi 0, %s260
  $region4: #{spatial_path.10} parent=0 // loop_header_branch
    %18 = sbr.rel (%p16) target = $region8
  $region5: #{spatial_path.10} parent=0 // loop_body
    %s20 = ssub.s32 %s15, 1
    %s21 = ssub.s32 %s15, 2
    %s28 = sadd.s32 1, %s23
    %p29 = scmp.ge.s32.totalorder %s28, 1
    %s30 = scalar_select %p29, 0, %s28
    %s31 = sadd.s32 1, %s22
    %s32 = scalar_select %p29, %s31, %s22
    %p33 = scmp.ge.s32.totalorder %s32, 2
    %s34 = scalar_select %p33, 0, %s32
    %s35 = ssub.s32 %s22, %s34
    %s36 = ssub.s32 %s23, %s30
    %s37 = sor.u32 %s35, %s36
    %p38 = scmp.eq.s32.totalorder %s37, 0
    %s40 = sadd.s32 %s39, 1
    %s41 = scalar_select %p38, %s39, %s40
    %p44 = pneg %p38
    %p45 = scmp.eq.s32.totalorder %s15, 1
    %p46 = por %p44, %p45
    %p47 = scmp.ne.s32.totalorder %s39, %s42
    %p48 = scmp.eq.s32.totalorder %s15, 0
    %p49 = por %p47, %p48
    %p50 = scmp.ne.s32.totalorder %s39, %s42
    %p51 = scmp.eq.s32.totalorder %s20, 1
    %p52 = por %p50, %p51
    %p53 = scmp.ne.s32.totalorder %s42, %s43
    %p54 = scmp.eq.s32.totalorder %s20, 0
    %p55 = por %p53, %p54
    %p56 = scmp.ne.s32.totalorder %s42, %s43
    %p57 = scmp.eq.s32.totalorder %s21, 1
    %p58 = por %p56, %p57
    %p60 = scmp.ne.s32.totalorder %s43, %s59
    %p61 = scmp.eq.s32.totalorder %s21, 0
    %p62 = por %p60, %p61
    %s63 = ssub.s32 %s22, %s34
    %s64 = ssub.s32 %s23, %s30
    %s65 = sor.u32 %s63, %s64
    %p66 = scmp.eq.s32.totalorder %s65, 0
    %s68 = sadd.s32 %s67, 1
    %s69 = scalar_select %p66, %s67, %s68
    %p72 = pneg %p66
    %p73 = scmp.eq.s32.totalorder %s15, 1
    %p74 = por %p72, %p73
    %p75 = scmp.ne.s32.totalorder %s67, %s70
    %p76 = scmp.eq.s32.totalorder %s15, 0
    %p77 = por %p75, %p76
    %p78 = scmp.ne.s32.totalorder %s67, %s70
    %p79 = scmp.eq.s32.totalorder %s20, 1
    %p80 = por %p78, %p79
    %p81 = scmp.ne.s32.totalorder %s70, %s71
    %p82 = scmp.eq.s32.totalorder %s20, 0
    %p83 = por %p81, %p82
    %p84 = scmp.ne.s32.totalorder %s70, %s71
    %p85 = scmp.eq.s32.totalorder %s21, 1
    %p86 = por %p84, %p85
    %p88 = scmp.ne.s32.totalorder %s71, %s87
    %p89 = scmp.eq.s32.totalorder %s21, 0
    %p90 = por %p88, %p89
    %s91 = ssub.s32 %s22, %s34
    %s92 = ssub.s32 %s23, %s30
    %s93 = sor.u32 %s91, %s92
    %p94 = scmp.eq.s32.totalorder %s93, 0
    %s96 = sadd.s32 %s95, 1
    %s97 = scalar_select %p94, %s95, %s96
    %p100 = pneg %p94
    %p101 = scmp.eq.s32.totalorder %s15, 1
    %p102 = por %p100, %p101
    %p103 = scmp.ne.s32.totalorder %s95, %s98
    %p104 = scmp.eq.s32.totalorder %s15, 0
    %p105 = por %p103, %p104
    %p106 = scmp.ne.s32.totalorder %s95, %s98
    %p107 = scmp.eq.s32.totalorder %s20, 1
    %p108 = por %p106, %p107
    %p109 = scmp.ne.s32.totalorder %s98, %s99
    %p110 = scmp.eq.s32.totalorder %s20, 0
    %p111 = por %p109, %p110
    %p112 = scmp.ne.s32.totalorder %s98, %s99
    %p113 = scmp.eq.s32.totalorder %s21, 1
    %p114 = por %p112, %p113
    %p116 = scmp.ne.s32.totalorder %s99, %s115
    %p117 = scmp.eq.s32.totalorder %s21, 0
    %p118 = por %p116, %p117
    %s119 = ssub.s32 %s22, %s34
    %s120 = ssub.s32 %s23, %s30
    %s121 = sor.u32 %s119, %s120
    %p122 = scmp.eq.s32.totalorder %s121, 0
    %s124 = sadd.s32 %s123, 1
    %s125 = scalar_select %p122, %s123, %s124
    %p128 = pneg %p122
    %p129 = scmp.eq.s32.totalorder %s15, 1
    %p130 = por %p128, %p129
    %p131 = scmp.ne.s32.totalorder %s123, %s126
    %p132 = scmp.eq.s32.totalorder %s15, 0
    %p133 = por %p131, %p132
    %p134 = scmp.ne.s32.totalorder %s123, %s126
    %p135 = scmp.eq.s32.totalorder %s20, 1
    %p136 = por %p134, %p135
    %p137 = scmp.ne.s32.totalorder %s126, %s127
    %p138 = scmp.eq.s32.totalorder %s20, 0
    %p139 = por %p137, %p138
    %p140 = scmp.ne.s32.totalorder %s126, %s127
    %p141 = scmp.eq.s32.totalorder %s21, 1
    %p142 = por %p140, %p141
    %p144 = scmp.ne.s32.totalorder %s127, %s143
    %p145 = scmp.eq.s32.totalorder %s21, 0
    %p146 = por %p144, %p145
    %s147 = ssub.s32 %s22, %s34
    %s148 = ssub.s32 %s23, %s30
    %s149 = sor.u32 %s147, %s148
    %p150 = scmp.eq.s32.totalorder %s149, 0
    %s152 = sadd.s32 %s151, 1
    %s153 = scalar_select %p150, %s151, %s152
    %p156 = pneg %p150
    %p157 = scmp.eq.s32.totalorder %s15, 1
    %p158 = por %p156, %p157
    %p159 = scmp.ne.s32.totalorder %s151, %s154
    %p160 = scmp.eq.s32.totalorder %s15, 0
    %p161 = por %p159, %p160
    %p162 = scmp.ne.s32.totalorder %s151, %s154
    %p163 = scmp.eq.s32.totalorder %s20, 1
    %p164 = por %p162, %p163
    %p165 = scmp.ne.s32.totalorder %s154, %s155
    %p166 = scmp.eq.s32.totalorder %s20, 0
    %p167 = por %p165, %p166
    %p168 = scmp.ne.s32.totalorder %s154, %s155
    %p169 = scmp.eq.s32.totalorder %s21, 1
    %p170 = por %p168, %p169
    %p172 = scmp.ne.s32.totalorder %s155, %s171
    %p173 = scmp.eq.s32.totalorder %s21, 0
    %p174 = por %p172, %p173
    %s175 = ssub.s32 %s22, %s34
    %s176 = ssub.s32 %s23, %s30
    %s177 = sor.u32 %s175, %s176
    %p178 = scmp.eq.s32.totalorder %s177, 0
    %s180 = sadd.s32 %s179, 1
    %s181 = scalar_select %p178, %s179, %s180
    %p184 = pneg %p178
    %p185 = scmp.eq.s32.totalorder %s15, 1
    %p186 = por %p184, %p185
    %p187 = scmp.ne.s32.totalorder %s179, %s182
    %p188 = scmp.eq.s32.totalorder %s15, 0
    %p189 = por %p187, %p188
    %p190 = scmp.ne.s32.totalorder %s179, %s182
    %p191 = scmp.eq.s32.totalorder %s20, 1
    %p192 = por %p190, %p191
    %p193 = scmp.ne.s32.totalorder %s182, %s183
    %p194 = scmp.eq.s32.totalorder %s20, 0
    %p195 = por %p193, %p194
    %p196 = scmp.ne.s32.totalorder %s182, %s183
    %p197 = scmp.eq.s32.totalorder %s21, 1
    %p198 = por %p196, %p197
    %p200 = scmp.ne.s32.totalorder %s183, %s199
    %p201 = scmp.eq.s32.totalorder %s21, 0
    %p202 = por %p200, %p201
    %s204 = sadd.s32 %s203, 1
    %p207 = scmp.eq.s32.totalorder %s15, 1
    %p208 = scmp.ne.s32.totalorder %s203, %s205
    %p209 = scmp.eq.s32.totalorder %s15, 0
    %p210 = por %p208, %p209
    %p211 = scmp.ne.s32.totalorder %s203, %s205
    %p212 = scmp.eq.s32.totalorder %s20, 1
    %p213 = por %p211, %p212
    %p214 = scmp.ne.s32.totalorder %s205, %s206
    %p215 = scmp.eq.s32.totalorder %s20, 0
    %p216 = por %p214, %p215
    %p217 = scmp.ne.s32.totalorder %s205, %s206
    %p218 = scmp.eq.s32.totalorder %s21, 1
    %p219 = por %p217, %p218
    %p221 = scmp.ne.s32.totalorder %s206, %s220
    %p222 = scmp.eq.s32.totalorder %s21, 0
    %p223 = por %p221, %p222
    %s224 = sadd.s32 %s22, %s23
    %s225 = sadd.s32 %s34, %s30
    %s226 = ssub.s32 %s224, %s225
    %p227 = scmp.eq.s32.totalorder %s226, 0
    %s229 = sadd.s32 %s228, 1
    %s230 = scalar_select %p227, %s228, %s229
    %p233 = pneg %p227
    %p234 = scmp.eq.s32.totalorder %s15, 1
    %p235 = por %p233, %p234
    %p236 = scmp.ne.s32.totalorder %s228, %s231
    %p237 = scmp.eq.s32.totalorder %s15, 0
    %p238 = por %p236, %p237
    %p239 = scmp.ne.s32.totalorder %s228, %s231
    %p240 = scmp.eq.s32.totalorder %s20, 1
    %p241 = por %p239, %p240
    %p242 = scmp.ne.s32.totalorder %s231, %s232
    %p243 = scmp.eq.s32.totalorder %s20, 0
    %p244 = por %p242, %p243
    %p245 = scmp.ne.s32.totalorder %s231, %s232
    %p246 = scmp.eq.s32.totalorder %s21, 1
    %p247 = por %p245, %p246
    %p249 = scmp.ne.s32.totalorder %s232, %s248
    %p250 = scmp.eq.s32.totalorder %s21, 0
    %p251 = por %p249, %p250
    %s252 = sadd.s32 %s22, %s23
    %s253 = sadd.s32 %s34, %s30
    %s254 = ssub.s32 %s252, %s253
    %p255 = scmp.eq.s32.totalorder %s254, 0
    %s257 = sadd.s32 %s256, 1
    %s258 = scalar_select %p255, %s256, %s257
    %p261 = pneg %p255
    %p262 = scmp.eq.s32.totalorder %s15, 1
    %p263 = por %p261, %p262
    %p264 = scmp.ne.s32.totalorder %s256, %s259
    %p265 = scmp.eq.s32.totalorder %s15, 0
    %p266 = por %p264, %p265
    %p267 = scmp.ne.s32.totalorder %s256, %s259
    %p268 = scmp.eq.s32.totalorder %s20, 1
    %p269 = por %p267, %p268
    %p270 = scmp.ne.s32.totalorder %s259, %s260
    %p271 = scmp.eq.s32.totalorder %s20, 0
    %p272 = por %p270, %p271
    %p273 = scmp.ne.s32.totalorder %s259, %s260
    %p274 = scmp.eq.s32.totalorder %s21, 1
    %p275 = por %p273, %p274
    %p277 = scmp.ne.s32.totalorder %s260, %s276
    %p278 = scmp.eq.s32.totalorder %s21, 0
    %p279 = por %p277, %p278
    %p280 = scmp.le.s32.totalorder 1, %s15
    %p281 = scmp.lt.s32.totalorder %s15, 3
    %p282 = pnand %p280, %p281
    %p283 = pneg %p282
    // Predicated region
    $region9: #{spatial_path.10} parent=5 // pred_check
      _
    $region10: #{spatial_path.10} parent=5 // pred_check_branch
      %285 = sbr.rel (%p282) target = $region12
    $region11: #{spatial_path.10} parent=5 // pred_region
      %s286 = ssub.s32 %s15, 1
      // Predicated region
      $region13: #{spatial_path.10} parent=11 // pred_check
        %p287 = pneg %p216
      $region14: #{spatial_path.10} parent=11 // pred_check_branch
        %289 = sbr.rel (%p287) target = $region16
      $region15: #{spatial_path.10} parent=11 // pred_region
        _
      $region16: #{spatial_path.10} parent=11 // pred_fallthru
        _
    $region12: #{spatial_path.10} parent=5 // pred_fallthru
      _
    %p290 = scmp.lt.s32.totalorder %s15, 2
    // Predicated region
    $region17: #{spatial_path.10} parent=5 // pred_check
      %p291 = pneg %p290
    $region18: #{spatial_path.10} parent=5 // pred_check_branch
      %293 = sbr.rel (%p291) target = $region20
    $region19: #{spatial_path.10} parent=5 // pred_region
      // Predicated region
      $region21: #{spatial_path.10} parent=19 // pred_check
        %p294 = pneg %p49
      $region22: #{spatial_path.10} parent=19 // pred_check_branch
        %296 = sbr.rel (%p294) target = $region24
      $region23: #{spatial_path.10} parent=19 // pred_region
        %s297 = smul.u32 2, %s23
        %p298 = scmp.lt.s32.totalorder %s22, 1
        %s299 = scalar_select %p298, %s22, 1
        %p300 = scmp.lt.s32.totalorder %s297, 1
        %s301 = scalar_select %p300, %s297, 1
        %s302 = smul.addr %s299, 2
        %s303 = sadd.s32 %s301, %s302
        %s304 = smul.addr %s303, 2
        %s305 = scalar_lea.vmem %s0, %s304
        %s306 = smul.u32 2, %s23
      $region24: #{spatial_path.10} parent=19 // pred_fallthru
        _
      // Predicated region
      $region25: #{spatial_path.10} parent=19 // pred_check
        %p307 = pneg %p77
      $region26: #{spatial_path.10} parent=19 // pred_check_branch
        %309 = sbr.rel (%p307) target = $region28
      $region27: #{spatial_path.10} parent=19 // pred_region
        %s310 = smul.u32 2, %s23
        %p311 = scmp.lt.s32.totalorder %s22, 1
        %s312 = scalar_select %p311, %s22, 1
        %p313 = scmp.lt.s32.totalorder %s310, 1
        %s314 = scalar_select %p313, %s310, 1
        %s315 = smul.addr %s312, 2
        %s316 = sadd.s32 %s314, %s315
        %s317 = smul.addr %s316, 2
        %s318 = scalar_lea.vmem %s1, %s317
        %s319 = smul.u32 2, %s23
      $region28: #{spatial_path.10} parent=19 // pred_fallthru
        _
      // Predicated region
      $region29: #{spatial_path.10} parent=19 // pred_check
        %p320 = pneg %p105
      $region30: #{spatial_path.10} parent=19 // pred_check_branch
        %322 = sbr.rel (%p320) target = $region32
      $region31: #{spatial_path.10} parent=19 // pred_region
        %s323 = smul.u32 2, %s23
        %p324 = scmp.lt.s32.totalorder %s22, 1
        %s325 = scalar_select %p324, %s22, 1
        %p326 = scmp.lt.s32.totalorder %s323, 1
        %s327 = scalar_select %p326, %s323, 1
        %s328 = smul.addr %s325, 2
        %s329 = sadd.s32 %s327, %s328
        %s330 = smul.addr %s329, 2
        %s331 = scalar_lea.vmem %s2, %s330
        %s332 = smul.u32 2, %s23
      $region32: #{spatial_path.10} parent=19 // pred_fallthru
        _
      // Predicated region
      $region33: #{spatial_path.10} parent=19 // pred_check
        %p333 = pneg %p133
      $region34: #{spatial_path.10} parent=19 // pred_check_branch
        %335 = sbr.rel (%p333) target = $region36
      $region35: #{spatial_path.10} parent=19 // pred_region
        %s336 = smul.u32 2, %s23
        %p337 = scmp.lt.s32.totalorder %s22, 1
        %s338 = scalar_select %p337, %s22, 1
        %p339 = scmp.lt.s32.totalorder %s336, 1
        %s340 = scalar_select %p339, %s336, 1
        %s341 = smul.addr %s338, 2
        %s342 = sadd.s32 %s340, %s341
        %s343 = smul.addr %s342, 2
        %s344 = scalar_lea.vmem %s3, %s343
        %s345 = smul.u32 2, %s23
      $region36: #{spatial_path.10} parent=19 // pred_fallthru
        _
      // Predicated region
      $region37: #{spatial_path.10} parent=19 // pred_check
        %p346 = pneg %p161
      $region38: #{spatial_path.10} parent=19 // pred_check_branch
        %348 = sbr.rel (%p346) target = $region40
      $region39: #{spatial_path.10} parent=19 // pred_region
        %s349 = smul.u32 2, %s23
        %p350 = scmp.lt.s32.totalorder %s22, 1
        %s351 = scalar_select %p350, %s22, 1
        %p352 = scmp.lt.s32.totalorder %s349, 1
        %s353 = scalar_select %p352, %s349, 1
        %s354 = smul.addr %s351, 2
        %s355 = sadd.s32 %s353, %s354
        %s356 = smul.addr %s355, 2
        %s357 = scalar_lea.vmem %s4, %s356
        %s358 = smul.u32 2, %s23
      $region40: #{spatial_path.10} parent=19 // pred_fallthru
        _
      // Predicated region
      $region41: #{spatial_path.10} parent=19 // pred_check
        %p359 = pneg %p189
      $region42: #{spatial_path.10} parent=19 // pred_check_branch
        %361 = sbr.rel (%p359) target = $region44
      $region43: #{spatial_path.10} parent=19 // pred_region
        %s362 = smul.u32 2, %s23
        %p363 = scmp.lt.s32.totalorder %s22, 1
        %s364 = scalar_select %p363, %s22, 1
        %p365 = scmp.lt.s32.totalorder %s362, 1
        %s366 = scalar_select %p365, %s362, 1
        %s367 = smul.addr %s364, 2
        %s368 = sadd.s32 %s366, %s367
        %s369 = smul.addr %s368, 2
        %s370 = scalar_lea.vmem %s5, %s369
        %s371 = smul.u32 2, %s23
      $region44: #{spatial_path.10} parent=19 // pred_fallthru
        _
    $region20: #{spatial_path.10} parent=5 // pred_fallthru
      _
    %p372 = scmp.le.s32.totalorder 1, %s15
    %p373 = scmp.lt.s32.totalorder %s15, 3
    %p374 = pnand %p372, %p373
    %p375 = pneg %p374
    // Predicated region
    $region45: #{spatial_path.10} parent=5 // pred_check
      _
    $region46: #{spatial_path.10} parent=5 // pred_check_branch
      %377 = sbr.rel (%p374) target = $region48
    $region47: #{spatial_path.10} parent=5 // pred_region
      %s378 = ssub.s32 %s15, 1
      %s379 = smul.u32 2, %s25
      %p380 = scmp.lt.s32.totalorder %s24, 1
      %s381 = scalar_select %p380, %s24, 1
      %p382 = scmp.lt.s32.totalorder %s379, 1
      %s383 = scalar_select %p382, %s379, 1
      %s384 = smul.addr %s381, 2
      %s385 = sadd.s32 %s383, %s384
      %s386 = smul.addr %s385, 2
      %s387 = scalar_lea.vmem %s0, %s386
      %p388 = pneg %p55
      %p389 = pneg %p52
      %s390 = smul.u32 2, %s25
      %p391 = scmp.lt.s32.totalorder %s24, 1
      %s392 = scalar_select %p391, %s24, 1
      %p393 = scmp.lt.s32.totalorder %s390, 1
      %s394 = scalar_select %p393, %s390, 1
      %s395 = smul.addr %s392, 2
      %s396 = sadd.s32 %s394, %s395
      %s397 = smul.addr %s396, 2
      %s398 = scalar_lea.vmem %s1, %s397
      %p399 = pneg %p83
      %p400 = pneg %p80
      %s401 = smul.u32 2, %s25
      %p402 = scmp.lt.s32.totalorder %s24, 1
      %s403 = scalar_select %p402, %s24, 1
      %p404 = scmp.lt.s32.totalorder %s401, 1
      %s405 = scalar_select %p404, %s401, 1
      %s406 = smul.addr %s403, 2
      %s407 = sadd.s32 %s405, %s406
      %s408 = smul.addr %s407, 2
      %s409 = scalar_lea.vmem %s2, %s408
      %p410 = pneg %p111
      %p411 = pneg %p108
      %s412 = smul.u32 2, %s25
      %p413 = scmp.lt.s32.totalorder %s24, 1
      %s414 = scalar_select %p413, %s24, 1
      %p415 = scmp.lt.s32.totalorder %s412, 1
      %s416 = scalar_select %p415, %s412, 1
      %s417 = smul.addr %s414, 2
      %s418 = sadd.s32 %s416, %s417
      %s419 = smul.addr %s418, 2
      %s420 = scalar_lea.vmem %s3, %s419
      %p421 = pneg %p139
      %p422 = pneg %p136
      %s423 = smul.u32 2, %s25
      %p424 = scmp.lt.s32.totalorder %s24, 1
      %s425 = scalar_select %p424, %s24, 1
      %p426 = scmp.lt.s32.totalorder %s423, 1
      %s427 = scalar_select %p426, %s423, 1
      %s428 = smul.addr %s425, 2
      %s429 = sadd.s32 %s427, %s428
      %s430 = smul.addr %s429, 2
      %s431 = scalar_lea.vmem %s4, %s430
      %p432 = pneg %p167
      %p433 = pneg %p164
      %s434 = smul.u32 2, %s25
      %p435 = scmp.lt.s32.totalorder %s24, 1
      %s436 = scalar_select %p435, %s24, 1
      %p437 = scmp.lt.s32.totalorder %s434, 1
      %s438 = scalar_select %p437, %s434, 1
      %s439 = smul.addr %s436, 2
      %s440 = sadd.s32 %s438, %s439
      %s441 = smul.addr %s440, 2
      %s442 = scalar_lea.vmem %s5, %s441
      %p443 = pneg %p195
      %p444 = pneg %p192
      %p445 = pneg %p216
      %p446 = pneg %p213
      %p447 = pneg %p244
      %p448 = pneg %p241
      %s449 = sadd.s32 %s24, %s25
      %p450 = scmp.lt.s32.totalorder %s449, 1
      %s451 = scalar_select %p450, %s449, 1
      %s452 = smul.addr %s451, 2
      %s453 = smul.addr %s452, 2
      %s454 = scalar_lea.vmem %s7, %s453
      %p455 = pneg %p272
      %p456 = pneg %p269
      %s457 = sadd.s32 %s24, %s25
      %p458 = scmp.lt.s32.totalorder %s457, 1
      %s459 = scalar_select %p458, %s457, 1
      %s460 = smul.addr %s459, 2
      %s461 = smul.addr %s460, 2
      %s462 = scalar_lea.vmem %s8, %s461
      %s463 = smul.u32 2, %s25
      %p464 = scmp.lt.s32.totalorder %s24, 1
      %s465 = scalar_select %p464, %s24, 1
      %p466 = scmp.lt.s32.totalorder %s463, 1
      %s467 = scalar_select %p466, %s463, 1
      %s468 = smul.addr %s465, 2
      %s469 = sadd.s32 %s467, %s468
      %s470 = smul.addr %s469, 2
      %s471 = scalar_lea.vmem %s0, %s470
      %s472 = smul.u32 2, %s25
      %s473 = smul.u32 2, %s25
      %p474 = scmp.lt.s32.totalorder %s24, 1
      %s475 = scalar_select %p474, %s24, 1
      %p476 = scmp.lt.s32.totalorder %s473, 1
      %s477 = scalar_select %p476, %s473, 1
      %s478 = smul.addr %s475, 2
      %s479 = sadd.s32 %s477, %s478
      %s480 = smul.addr %s479, 2
      %s481 = scalar_lea.vmem %s1, %s480
      %s482 = smul.u32 2, %s25
      %s483 = smul.u32 2, %s25
      %p484 = scmp.lt.s32.totalorder %s24, 1
      %s485 = scalar_select %p484, %s24, 1
      %p486 = scmp.lt.s32.totalorder %s483, 1
      %s487 = scalar_select %p486, %s483, 1
      %s488 = smul.addr %s485, 2
      %s489 = sadd.s32 %s487, %s488
      %s490 = smul.addr %s489, 2
      %s491 = scalar_lea.vmem %s2, %s490
      %s492 = smul.u32 2, %s25
      %s493 = smul.u32 2, %s25
      %p494 = scmp.lt.s32.totalorder %s24, 1
      %s495 = scalar_select %p494, %s24, 1
      %p496 = scmp.lt.s32.totalorder %s493, 1
      %s497 = scalar_select %p496, %s493, 1
      %s498 = smul.addr %s495, 2
      %s499 = sadd.s32 %s497, %s498
      %s500 = smul.addr %s499, 2
      %s501 = scalar_lea.vmem %s3, %s500
      %s502 = smul.u32 2, %s25
      %s503 = smul.u32 2, %s25
      %p504 = scmp.lt.s32.totalorder %s24, 1
      %s505 = scalar_select %p504, %s24, 1
      %p506 = scmp.lt.s32.totalorder %s503, 1
      %s507 = scalar_select %p506, %s503, 1
      %s508 = smul.addr %s505, 2
      %s509 = sadd.s32 %s507, %s508
      %s510 = smul.addr %s509, 2
      %s511 = scalar_lea.vmem %s4, %s510
      %s512 = smul.u32 2, %s25
      %s513 = smul.u32 2, %s25
      %p514 = scmp.lt.s32.totalorder %s24, 1
      %s515 = scalar_select %p514, %s24, 1
      %p516 = scmp.lt.s32.totalorder %s513, 1
      %s517 = scalar_select %p516, %s513, 1
      %s518 = smul.addr %s515, 2
      %s519 = sadd.s32 %s517, %s518
      %s520 = smul.addr %s519, 2
      %s521 = scalar_lea.vmem %s5, %s520
      %s522 = smul.u32 2, %s25
      %s523 = sadd.s32 %s24, %s25
      %p524 = scmp.lt.s32.totalorder %s523, 1
      %s525 = scalar_select %p524, %s523, 1
      %s526 = smul.addr %s525, 2
      %s527 = smul.addr %s526, 2
      %s528 = scalar_lea.vmem %s7, %s527
      %s529 = sadd.s32 %s24, %s25
      %s530 = sadd.s32 %s24, %s25
      %p531 = scmp.lt.s32.totalorder %s530, 1
      %s532 = scalar_select %p531, %s530, 1
      %s533 = smul.addr %s532, 2
      %s534 = smul.addr %s533, 2
      %s535 = scalar_lea.vmem %s8, %s534
      %s536 = sadd.s32 %s24, %s25
      %v538 = vld [vmem:[%s471] sm:$0x3]
      %v539 = vld [vmem:[%s471 + $0x2] sm:$0x3]
      %v540 = vld [vmem:[%s481] sm:$0x3]
      %v541 = vld [vmem:[%s481 + $0x2] sm:$0x3]
      %v542 = vld [vmem:[%s491] sm:$0x3]
      %v543 = vld [vmem:[%s491 + $0x2] sm:$0x3]
      %v544 = vld [vmem:[%s501] sm:$0x3]
      %v545 = vld [vmem:[%s501 + $0x2] sm:$0x3]
      %v546 = vld [vmem:[%s511] sm:$0x3]
      %v547 = vld [vmem:[%s511 + $0x2] sm:$0x3]
      %v548 = vld [vmem:[%s521] sm:$0x3]
      %v549 = vld [vmem:[%s521 + $0x2] sm:$0x3]
      %v550 = vld [vmem:[%s6] sm:$0xff]
      %v551 = vld [vmem:[%s6 + $0x8] sm:$0xff]
      %v552 = vld [vmem:[%s6 + $0x10] sm:$0xff]
      %v553 = vld [vmem:[%s6 + $0x18] sm:$0xff]
      %v554 = vld [vmem:[%s6 + $0x20] sm:$0xff]
      %v555 = vld [vmem:[%s6 + $0x28] sm:$0xff]
      %v556 = vld [vmem:[%s6 + $0x30] sm:$0xff]
      %v557 = vld [vmem:[%s6 + $0x38] sm:$0xff]
      %v558 = vld [vmem:[%s6 + $0x40] sm:$0xff]
      %v559 = vld [vmem:[%s6 + $0x48] sm:$0xff]
      %v560 = vld [vmem:[%s6 + $0x50] sm:$0xff]
      %v561 = vld [vmem:[%s6 + $0x58] sm:$0xff]
      %v562 = vld [vmem:[%s6 + $0x60] sm:$0xff]
      %v563 = vld [vmem:[%s6 + $0x68] sm:$0xff]
      %v564 = vld [vmem:[%s6 + $0x70] sm:$0xff]
      %v565 = vld [vmem:[%s6 + $0x78] sm:$0xff]
      %s566 = scalar_lea.vmem %s6, 128
      %v567 = vld [vmem:[%s566] sm:$0xff]
      %v568 = vld [vmem:[%s566 + $0x8] sm:$0xff]
      %v569 = vld [vmem:[%s566 + $0x10] sm:$0xff]
      %v570 = vld [vmem:[%s566 + $0x18] sm:$0xff]
      %v571 = vld [vmem:[%s566 + $0x20] sm:$0xff]
      %v572 = vld [vmem:[%s566 + $0x28] sm:$0xff]
      %v573 = vld [vmem:[%s566 + $0x30] sm:$0xff]
      %v574 = vld [vmem:[%s566 + $0x38] sm:$0xff]
      %v575 = vld [vmem:[%s566 + $0x40] sm:$0xff]
      %v576 = vld [vmem:[%s566 + $0x48] sm:$0xff]
      %v577 = vld [vmem:[%s566 + $0x50] sm:$0xff]
      %v578 = vld [vmem:[%s566 + $0x58] sm:$0xff]
      %v579 = vld [vmem:[%s566 + $0x60] sm:$0xff]
      %v580 = vld [vmem:[%s566 + $0x68] sm:$0xff]
      %v581 = vld [vmem:[%s566 + $0x70] sm:$0xff]
      %v582 = vld [vmem:[%s566 + $0x78] sm:$0xff]
      %v585 = vcombine.low %v540, %v541
      %v587 = vunpack.c.l.s4 1966171168
      %v588 = vunpack.c.0.s8 %v587
      %v589 = vlaneseq
      %v590 = vshrl.u32 %v589, 7
      %v591 = vsub.s32 %v588, %v590
      %v592 = vrot.slane %v585, %v591
      %v594 = vunpack.c.l.s4 1966171168
      %v595 = vunpack.c.0.s8 %v594
      %v596 = vlaneseq
      %v597 = vshrl.u32 %v596, 7
      %v598 = vsub.s32 %v595, %v597
      %v599 = vrot.slane %v592, %v598
      %v617 = vunpack.c.l.b16 %v567
      %v618 = vunpack.c.h.b16 %v567
      %v619 = vunpack.c.l.b16 %v568
      %v620 = vunpack.c.h.b16 %v568
      %v621 = vunpack.c.l.b16 %v569
      %v622 = vunpack.c.h.b16 %v569
      %v623 = vunpack.c.l.b16 %v570
      %v624 = vunpack.c.h.b16 %v570
      %v625 = vunpack.c.l.b16 %v571
      %v626 = vunpack.c.h.b16 %v571
      %v627 = vunpack.c.l.b16 %v572
      %v628 = vunpack.c.h.b16 %v572
      %v629 = vunpack.c.l.b16 %v573
      %v630 = vunpack.c.h.b16 %v573
      %v631 = vunpack.c.l.b16 %v574
      %v632 = vunpack.c.h.b16 %v574
      %v633 = vunpack.c.l.b16 %v575
      %v634 = vunpack.c.h.b16 %v575
      %v635 = vunpack.c.l.b16 %v576
      %v636 = vunpack.c.h.b16 %v576
      %v637 = vunpack.c.l.b16 %v577
      %v638 = vunpack.c.h.b16 %v577
      %v639 = vunpack.c.l.b16 %v578
      %v640 = vunpack.c.h.b16 %v578
      %v641 = vunpack.c.l.b16 %v579
      %v642 = vunpack.c.h.b16 %v579
      %v643 = vunpack.c.l.b16 %v580
      %v644 = vunpack.c.h.b16 %v580
      %v645 = vunpack.c.l.b16 %v581
      %v646 = vunpack.c.h.b16 %v581
      %v647 = vunpack.c.l.b16 %v582
      %v648 = vunpack.c.h.b16 %v582
      %v649 = vpack.c.b16 %v619, %v617
      %v650 = vpack.c.b16 %v620, %v618
      %v651 = vpack.c.b16 %v623, %v621
      %v652 = vpack.c.b16 %v624, %v622
      %v653 = vpack.c.b16 %v627, %v625
      %v654 = vpack.c.b16 %v628, %v626
      %v655 = vpack.c.b16 %v631, %v629
      %v656 = vpack.c.b16 %v632, %v630
      %v657 = vpack.c.b16 %v635, %v633
      %v658 = vpack.c.b16 %v636, %v634
      %v659 = vpack.c.b16 %v639, %v637
      %v660 = vpack.c.b16 %v640, %v638
      %v661 = vpack.c.b16 %v643, %v641
      %v662 = vpack.c.b16 %v644, %v642
      %v663 = vpack.c.b16 %v647, %v645
      %v664 = vpack.c.b16 %v648, %v646
      %681 = vmatprep.subr.bf16.mxu0 %v650
      %682 = vmatpush1.bf16.msra.mxu0 %v649
      %683 = vmatprep.subr.bf16.mxu0 %v652
      %684 = vmatpush1.bf16.msra.mxu0 %v651
      %685 = vmatprep.subr.bf16.mxu0 %v654
      %686 = vmatpush1.bf16.msra.mxu0 %v653
      %687 = vmatprep.subr.bf16.mxu0 %v656
      %688 = vmatpush1.bf16.msra.mxu0 %v655
      %689 = vmatprep.subr.bf16.mxu0 %v658
      %690 = vmatpush1.bf16.msra.mxu0 %v657
      %691 = vmatprep.subr.bf16.mxu0 %v660
      %692 = vmatpush1.bf16.msra.mxu0 %v659
      %693 = vmatprep.subr.bf16.mxu0 %v662
      %694 = vmatpush1.bf16.msra.mxu0 %v661
      %695 = vmatprep.subr.bf16.mxu0 %v664
      %696 = vmatpush1.bf16.msra.mxu0 %v663
      %697 = vmatprep.subr.bf16.mxu0 0
      %698 = vmatpush1.bf16.msra.mxu0 0
      %699 = vmatprep.subr.bf16.mxu0 0
      %700 = vmatpush1.bf16.msra.mxu0 0
      %701 = vmatprep.subr.bf16.mxu0 0
      %702 = vmatpush1.bf16.msra.mxu0 0
      %703 = vmatprep.subr.bf16.mxu0 0
      %704 = vmatpush1.bf16.msra.mxu0 0
      %705 = vmatprep.subr.bf16.mxu0 0
      %706 = vmatpush1.bf16.msra.mxu0 0
      %707 = vmatprep.subr.bf16.mxu0 0
      %708 = vmatpush1.bf16.msra.mxu0 0
      %709 = vmatprep.subr.bf16.mxu0 0
      %710 = vmatpush1.bf16.msra.mxu0 0
      %711 = vmatprep.subr.bf16.mxu0 0
      %712 = vmatpush1.bf16.msra.mxu0 0
      %713 = vmatprep.mubr.bf16.mxu0 0
      %714 = vmatmul.mubr.bf16.gmra.mrb[0].mxu0 %v599
      %v715 = vpop.f32.mrb[0].mxu0
      %v716 = vadd.f32 0.0, %v715
      %v717 = vpop.f32.mrb[0].mxu0
      %v718 = vadd.f32 0.0, %v717
      %v719 = vpop.f32.mrb[0].mxu0
      %v720 = vpop.f32.mrb[0].mxu0
      %721 = vdwg.mxu0
      %v724 = vcombine.low %v538, %v539
      %v726 = vunpack.c.l.s4 1966171168
      %v727 = vunpack.c.0.s8 %v726
      %v728 = vlaneseq
      %v729 = vshrl.u32 %v728, 7
      %v730 = vsub.s32 %v727, %v729
      %v731 = vrot.slane %v724, %v730
      %v733 = vunpack.c.l.s4 1966171168
      %v734 = vunpack.c.0.s8 %v733
      %v735 = vlaneseq
      %v736 = vshrl.u32 %v735, 7
      %v737 = vsub.s32 %v734, %v736
      %v738 = vrot.slane %v731, %v737
      %v756 = vunpack.c.l.b16 %v550
      %v757 = vunpack.c.h.b16 %v550
      %v758 = vunpack.c.l.b16 %v551
      %v759 = vunpack.c.h.b16 %v551
      %v760 = vunpack.c.l.b16 %v552
      %v761 = vunpack.c.h.b16 %v552
      %v762 = vunpack.c.l.b16 %v553
      %v763 = vunpack.c.h.b16 %v553
      %v764 = vunpack.c.l.b16 %v554
      %v765 = vunpack.c.h.b16 %v554
      %v766 = vunpack.c.l.b16 %v555
      %v767 = vunpack.c.h.b16 %v555
      %v768 = vunpack.c.l.b16 %v556
      %v769 = vunpack.c.h.b16 %v556
      %v770 = vunpack.c.l.b16 %v557
      %v771 = vunpack.c.h.b16 %v557
      %v772 = vunpack.c.l.b16 %v558
      %v773 = vunpack.c.h.b16 %v558
      %v774 = vunpack.c.l.b16 %v559
      %v775 = vunpack.c.h.b16 %v559
      %v776 = vunpack.c.l.b16 %v560
      %v777 = vunpack.c.h.b16 %v560
      %v778 = vunpack.c.l.b16 %v561
      %v779 = vunpack.c.h.b16 %v561
      %v780 = vunpack.c.l.b16 %v562
      %v781 = vunpack.c.h.b16 %v562
      %v782 = vunpack.c.l.b16 %v563
      %v783 = vunpack.c.h.b16 %v563
      %v784 = vunpack.c.l.b16 %v564
      %v785 = vunpack.c.h.b16 %v564
      %v786 = vunpack.c.l.b16 %v565
      %v787 = vunpack.c.h.b16 %v565
      %v788 = vpack.c.b16 %v758, %v756
      %v789 = vpack.c.b16 %v759, %v757
      %v790 = vpack.c.b16 %v762, %v760
      %v791 = vpack.c.b16 %v763, %v761
      %v792 = vpack.c.b16 %v766, %v764
      %v793 = vpack.c.b16 %v767, %v765
      %v794 = vpack.c.b16 %v770, %v768
      %v795 = vpack.c.b16 %v771, %v769
      %v796 = vpack.c.b16 %v774, %v772
      %v797 = vpack.c.b16 %v775, %v773
      %v798 = vpack.c.b16 %v778, %v776
      %v799 = vpack.c.b16 %v779, %v777
      %v800 = vpack.c.b16 %v782, %v780
      %v801 = vpack.c.b16 %v783, %v781
      %v802 = vpack.c.b16 %v786, %v784
      %v803 = vpack.c.b16 %v787, %v785
      %820 = vmatprep.subr.bf16.mxu0 %v789
      %821 = vmatpush1.bf16.msra.mxu0 %v788
      %822 = vmatprep.subr.bf16.mxu0 %v791
      %823 = vmatpush1.bf16.msra.mxu0 %v790
      %824 = vmatprep.subr.bf16.mxu0 %v793
      %825 = vmatpush1.bf16.msra.mxu0 %v792
      %826 = vmatprep.subr.bf16.mxu0 %v795
      %827 = vmatpush1.bf16.msra.mxu0 %v794
      %828 = vmatprep.subr.bf16.mxu0 %v797
      %829 = vmatpush1.bf16.msra.mxu0 %v796
      %830 = vmatprep.subr.bf16.mxu0 %v799
      %831 = vmatpush1.bf16.msra.mxu0 %v798
      %832 = vmatprep.subr.bf16.mxu0 %v801
      %833 = vmatpush1.bf16.msra.mxu0 %v800
      %834 = vmatprep.subr.bf16.mxu0 %v803
      %835 = vmatpush1.bf16.msra.mxu0 %v802
      %836 = vmatprep.subr.bf16.mxu0 0
      %837 = vmatpush1.bf16.msra.mxu0 0
      %838 = vmatprep.subr.bf16.mxu0 0
      %839 = vmatpush1.bf16.msra.mxu0 0
      %840 = vmatprep.subr.bf16.mxu0 0
      %841 = vmatpush1.bf16.msra.mxu0 0
      %842 = vmatprep.subr.bf16.mxu0 0
      %843 = vmatpush1.bf16.msra.mxu0 0
      %844 = vmatprep.subr.bf16.mxu0 0
      %845 = vmatpush1.bf16.msra.mxu0 0
      %846 = vmatprep.subr.bf16.mxu0 0
      %847 = vmatpush1.bf16.msra.mxu0 0
      %848 = vmatprep.subr.bf16.mxu0 0
      %849 = vmatpush1.bf16.msra.mxu0 0
      %850 = vmatprep.subr.bf16.mxu0 0
      %851 = vmatpush1.bf16.msra.mxu0 0
      %852 = vmatprep.mubr.bf16.mxu0 0
      %853 = vmatmul.mubr.bf16.gmra.mrb[0].mxu0 %v738
      %v854 = vpop.f32.mrb[0].mxu0
      %v855 = vadd.f32 %v716, %v854
      %v856 = vpop.f32.mrb[0].mxu0
      %v857 = vadd.f32 %v718, %v856
      %v858 = vpop.f32.mrb[0].mxu0
      %v859 = vpop.f32.mrb[0].mxu0
      %860 = vdwg.mxu0
      %v862 = vunpack.c.l.s4 1966171168
      %v863 = vunpack.c.0.s8 %v862
      %v864 = vlaneseq
      %v865 = vshrl.u32 %v864, 7
      %v866 = vsub.s32 %v863, %v865
      %v867 = vrot.slane %v538, %v866
      %v868 = vcombine.high %v867, %v867
      %v870 = vunpack.c.l.s4 1966171168
      %v871 = vunpack.c.0.s8 %v870
      %v872 = vlaneseq
      %v873 = vshrl.u32 %v872, 7
      %v874 = vsub.s32 %v871, %v873
      %v875 = vrot.slane %v539, %v874
      %v876 = vcombine.high %v875, %v875
      %vm877 = vsmask.f32 256
      %vm878 = vsmask.f32 1284
      %vm879 = vmor %vm877, %vm878
      %vm880 = vsmask.f32 2312
      %vm881 = vmor %vm879, %vm880
      %vm882 = vsmask.f32 3340
      %vm883 = vmor %vm881, %vm882
      %vm884 = vsmask.f32 4368
      %vm885 = vmor %vm883, %vm884
      %vm886 = vsmask.f32 5396
      %vm887 = vmor %vm885, %vm886
      %vm888 = vsmask.f32 6424
      %vm889 = vmor %vm887, %vm888
      %vm890 = vsmask.f32 7452
      %vm891 = vmor %vm889, %vm890
      %v893 = vshrl.u32 %v867, 16
      %v895 = vrot.slane %v893, 7
      %v896 = vrot.slane %v895, 1
      %v898 = vshll.u32 %v868, 16
      %v900 = vsel %vm891, %v896, %v898
      %v902 = vshrl.u32 %v875, 16
      %v904 = vrot.slane %v902, 7
      %v905 = vrot.slane %v904, 1
      %v907 = vshll.u32 %v876, 16
      %v909 = vsel %vm891, %v905, %v907
      %s910 = scalar_lea.vmem %s6, 256
      %v911 = vld [vmem:[%s910] sm:$0xff]
      %v912 = vld [vmem:[%s910 + $0x8] sm:$0xff]
      %v913 = vld [vmem:[%s910 + $0x10] sm:$0xff]
      %v914 = vld [vmem:[%s910 + $0x18] sm:$0xff]
      %v915 = vld [vmem:[%s910 + $0x20] sm:$0xff]
      %v916 = vld [vmem:[%s910 + $0x28] sm:$0xff]
      %v917 = vld [vmem:[%s910 + $0x30] sm:$0xff]
      %v918 = vld [vmem:[%s910 + $0x38] sm:$0xff]
      %v919 = vld [vmem:[%s910 + $0x40] sm:$0xff]
      %v920 = vld [vmem:[%s910 + $0x48] sm:$0xff]
      %v921 = vld [vmem:[%s910 + $0x50] sm:$0xff]
      %v922 = vld [vmem:[%s910 + $0x58] sm:$0xff]
      %v923 = vld [vmem:[%s910 + $0x60] sm:$0xff]
      %v924 = vld [vmem:[%s910 + $0x68] sm:$0xff]
      %v925 = vld [vmem:[%s910 + $0x70] sm:$0xff]
      %v926 = vld [vmem:[%s910 + $0x78] sm:$0xff]
      %v927 = vcombine.low %v900, %v909
      %v929 = vunpack.c.l.s4 1966171168
      %v930 = vunpack.c.0.s8 %v929
      %v931 = vlaneseq
      %v932 = vshrl.u32 %v931, 7
      %v933 = vsub.s32 %v930, %v932
      %v934 = vrot.slane %v927, %v933
      %v936 = vunpack.c.l.s4 1966171168
      %v937 = vunpack.c.0.s8 %v936
      %v938 = vlaneseq
      %v939 = vshrl.u32 %v938, 7
      %v940 = vsub.s32 %v937, %v939
      %v941 = vrot.slane %v934, %v940
      %v959 = vunpack.c.l.b16 %v911
      %v960 = vunpack.c.h.b16 %v911
      %v961 = vunpack.c.l.b16 %v912
      %v962 = vunpack.c.h.b16 %v912
      %v963 = vunpack.c.l.b16 %v913
      %v964 = vunpack.c.h.b16 %v913
      %v965 = vunpack.c.l.b16 %v914
      %v966 = vunpack.c.h.b16 %v914
      %v967 = vunpack.c.l.b16 %v915
      %v968 = vunpack.c.h.b16 %v915
      %v969 = vunpack.c.l.b16 %v916
      %v970 = vunpack.c.h.b16 %v916
      %v971 = vunpack.c.l.b16 %v917
      %v972 = vunpack.c.h.b16 %v917
      %v973 = vunpack.c.l.b16 %v918
      %v974 = vunpack.c.h.b16 %v918
      %v975 = vunpack.c.l.b16 %v919
      %v976 = vunpack.c.h.b16 %v919
      %v977 = vunpack.c.l.b16 %v920
      %v978 = vunpack.c.h.b16 %v920
      %v979 = vunpack.c.l.b16 %v921
      %v980 = vunpack.c.h.b16 %v921
      %v981 = vunpack.c.l.b16 %v922
      %v982 = vunpack.c.h.b16 %v922
      %v983 = vunpack.c.l.b16 %v923
      %v984 = vunpack.c.h.b16 %v923
      %v985 = vunpack.c.l.b16 %v924
      %v986 = vunpack.c.h.b16 %v924
      %v987 = vunpack.c.l.b16 %v925
      %v988 = vunpack.c.h.b16 %v925
      %v989 = vunpack.c.l.b16 %v926
      %v990 = vunpack.c.h.b16 %v926
      %v991 = vpack.c.b16 %v961, %v959
      %v992 = vpack.c.b16 %v962, %v960
      %v993 = vpack.c.b16 %v965, %v963
      %v994 = vpack.c.b16 %v966, %v964
      %v995 = vpack.c.b16 %v969, %v967
      %v996 = vpack.c.b16 %v970, %v968
      %v997 = vpack.c.b16 %v973, %v971
      %v998 = vpack.c.b16 %v974, %v972
      %v999 = vpack.c.b16 %v977, %v975
      %v1000 = vpack.c.b16 %v978, %v976
      %v1001 = vpack.c.b16 %v981, %v979
      %v1002 = vpack.c.b16 %v982, %v980
      %v1003 = vpack.c.b16 %v985, %v983
      %v1004 = vpack.c.b16 %v986, %v984
      %v1005 = vpack.c.b16 %v989, %v987
      %v1006 = vpack.c.b16 %v990, %v988
      %1023 = vmatprep.subr.bf16.mxu0 %v992
      %1024 = vmatpush1.bf16.msra.mxu0 %v991
      %1025 = vmatprep.subr.bf16.mxu0 %v994
      %1026 = vmatpush1.bf16.msra.mxu0 %v993
      %1027 = vmatprep.subr.bf16.mxu0 %v996
      %1028 = vmatpush1.bf16.msra.mxu0 %v995
      %1029 = vmatprep.subr.bf16.mxu0 %v998
      %1030 = vmatpush1.bf16.msra.mxu0 %v997
      %1031 = vmatprep.subr.bf16.mxu0 %v1000
      %1032 = vmatpush1.bf16.msra.mxu0 %v999
      %1033 = vmatprep.subr.bf16.mxu0 %v1002
      %1034 = vmatpush1.bf16.msra.mxu0 %v1001
      %1035 = vmatprep.subr.bf16.mxu0 %v1004
      %1036 = vmatpush1.bf16.msra.mxu0 %v1003
      %1037 = vmatprep.subr.bf16.mxu0 %v1006
      %1038 = vmatpush1.bf16.msra.mxu0 %v1005
      %1039 = vmatprep.subr.bf16.mxu0 0
      %1040 = vmatpush1.bf16.msra.mxu0 0
      %1041 = vmatprep.subr.bf16.mxu0 0
      %1042 = vmatpush1.bf16.msra.mxu0 0
      %1043 = vmatprep.subr.bf16.mxu0 0
      %1044 = vmatpush1.bf16.msra.mxu0 0
      %1045 = vmatprep.subr.bf16.mxu0 0
      %1046 = vmatpush1.bf16.msra.mxu0 0
      %1047 = vmatprep.subr.bf16.mxu0 0
      %1048 = vmatpush1.bf16.msra.mxu0 0
      %1049 = vmatprep.subr.bf16.mxu0 0
      %1050 = vmatpush1.bf16.msra.mxu0 0
      %1051 = vmatprep.subr.bf16.mxu0 0
      %1052 = vmatpush1.bf16.msra.mxu0 0
      %1053 = vmatprep.subr.bf16.mxu0 0
      %1054 = vmatpush1.bf16.msra.mxu0 0
      %1055 = vmatprep.mubr.bf16.mxu0 0
      %1056 = vmatmul.mubr.bf16.gmra.mrb[0].mxu0 %v941
      %v1057 = vpop.f32.mrb[0].mxu0
      %v1058 = vadd.f32 0.0, %v1057
      %v1059 = vpop.f32.mrb[0].mxu0
      %v1060 = vadd.f32 0.0, %v1059
      %v1061 = vpop.f32.mrb[0].mxu0
      %v1062 = vpop.f32.mrb[0].mxu0
      %1063 = vdwg.mxu0
      %v1064 = vadd.f32 %v855, %v1058
      %v1065 = vadd.f32 %v857, %v1060
      %s1066 = scalar_lea.vmem %s6, 384
      %v1067 = vld [vmem:[%s1066] sm:$0xff]
      %v1068 = vld [vmem:[%s1066 + $0x8] sm:$0xff]
      %v1069 = vld [vmem:[%s1066 + $0x10] sm:$0xff]
      %v1070 = vld [vmem:[%s1066 + $0x18] sm:$0xff]
      %v1071 = vld [vmem:[%s1066 + $0x20] sm:$0xff]
      %v1072 = vld [vmem:[%s1066 + $0x28] sm:$0xff]
      %v1073 = vld [vmem:[%s1066 + $0x30] sm:$0xff]
      %v1074 = vld [vmem:[%s1066 + $0x38] sm:$0xff]
      %v1075 = vld [vmem:[%s1066 + $0x40] sm:$0xff]
      %v1076 = vld [vmem:[%s1066 + $0x48] sm:$0xff]
      %v1077 = vld [vmem:[%s1066 + $0x50] sm:$0xff]
      %v1078 = vld [vmem:[%s1066 + $0x58] sm:$0xff]
      %v1079 = vld [vmem:[%s1066 + $0x60] sm:$0xff]
      %v1080 = vld [vmem:[%s1066 + $0x68] sm:$0xff]
      %v1081 = vld [vmem:[%s1066 + $0x70] sm:$0xff]
      %v1082 = vld [vmem:[%s1066 + $0x78] sm:$0xff]
      %v1085 = vcombine.low %v542, %v543
      %v1087 = vunpack.c.l.s4 1966171168
      %v1088 = vunpack.c.0.s8 %v1087
      %v1089 = vlaneseq
      %v1090 = vshrl.u32 %v1089, 7
      %v1091 = vsub.s32 %v1088, %v1090
      %v1092 = vrot.slane %v1085, %v1091
      %v1094 = vunpack.c.l.s4 1966171168
      %v1095 = vunpack.c.0.s8 %v1094
      %v1096 = vlaneseq
      %v1097 = vshrl.u32 %v1096, 7
      %v1098 = vsub.s32 %v1095, %v1097
      %v1099 = vrot.slane %v1092, %v1098
      %v1117 = vunpack.c.l.b16 %v1067
      %v1118 = vunpack.c.h.b16 %v1067
      %v1119 = vunpack.c.l.b16 %v1068
      %v1120 = vunpack.c.h.b16 %v1068
      %v1121 = vunpack.c.l.b16 %v1069
      %v1122 = vunpack.c.h.b16 %v1069
      %v1123 = vunpack.c.l.b16 %v1070
      %v1124 = vunpack.c.h.b16 %v1070
      %v1125 = vunpack.c.l.b16 %v1071
      %v1126 = vunpack.c.h.b16 %v1071
      %v1127 = vunpack.c.l.b16 %v1072
      %v1128 = vunpack.c.h.b16 %v1072
      %v1129 = vunpack.c.l.b16 %v1073
      %v1130 = vunpack.c.h.b16 %v1073
      %v1131 = vunpack.c.l.b16 %v1074
      %v1132 = vunpack.c.h.b16 %v1074
      %v1133 = vunpack.c.l.b16 %v1075
      %v1134 = vunpack.c.h.b16 %v1075
      %v1135 = vunpack.c.l.b16 %v1076
      %v1136 = vunpack.c.h.b16 %v1076
      %v1137 = vunpack.c.l.b16 %v1077
      %v1138 = vunpack.c.h.b16 %v1077
      %v1139 = vunpack.c.l.b16 %v1078
      %v1140 = vunpack.c.h.b16 %v1078
      %v1141 = vunpack.c.l.b16 %v1079
      %v1142 = vunpack.c.h.b16 %v1079
      %v1143 = vunpack.c.l.b16 %v1080
      %v1144 = vunpack.c.h.b16 %v1080
      %v1145 = vunpack.c.l.b16 %v1081
      %v1146 = vunpack.c.h.b16 %v1081
      %v1147 = vunpack.c.l.b16 %v1082
      %v1148 = vunpack.c.h.b16 %v1082
      %v1149 = vpack.c.b16 %v1119, %v1117
      %v1150 = vpack.c.b16 %v1120, %v1118
      %v1151 = vpack.c.b16 %v1123, %v1121
      %v1152 = vpack.c.b16 %v1124, %v1122
      %v1153 = vpack.c.b16 %v1127, %v1125
      %v1154 = vpack.c.b16 %v1128, %v1126
      %v1155 = vpack.c.b16 %v1131, %v1129
      %v1156 = vpack.c.b16 %v1132, %v1130
      %v1157 = vpack.c.b16 %v1135, %v1133
      %v1158 = vpack.c.b16 %v1136, %v1134
      %v1159 = vpack.c.b16 %v1139, %v1137
      %v1160 = vpack.c.b16 %v1140, %v1138
      %v1161 = vpack.c.b16 %v1143, %v1141
      %v1162 = vpack.c.b16 %v1144, %v1142
      %v1163 = vpack.c.b16 %v1147, %v1145
      %v1164 = vpack.c.b16 %v1148, %v1146
      %1181 = vmatprep.subr.bf16.mxu0 %v1150
      %1182 = vmatpush1.bf16.msra.mxu0 %v1149
      %1183 = vmatprep.subr.bf16.mxu0 %v1152
      %1184 = vmatpush1.bf16.msra.mxu0 %v1151
      %1185 = vmatprep.subr.bf16.mxu0 %v1154
      %1186 = vmatpush1.bf16.msra.mxu0 %v1153
      %1187 = vmatprep.subr.bf16.mxu0 %v1156
      %1188 = vmatpush1.bf16.msra.mxu0 %v1155
      %1189 = vmatprep.subr.bf16.mxu0 %v1158
      %1190 = vmatpush1.bf16.msra.mxu0 %v1157
      %1191 = vmatprep.subr.bf16.mxu0 %v1160
      %1192 = vmatpush1.bf16.msra.mxu0 %v1159
      %1193 = vmatprep.subr.bf16.mxu0 %v1162
      %1194 = vmatpush1.bf16.msra.mxu0 %v1161
      %1195 = vmatprep.subr.bf16.mxu0 %v1164
      %1196 = vmatpush1.bf16.msra.mxu0 %v1163
      %1197 = vmatprep.subr.bf16.mxu0 0
      %1198 = vmatpush1.bf16.msra.mxu0 0
      %1199 = vmatprep.subr.bf16.mxu0 0
      %1200 = vmatpush1.bf16.msra.mxu0 0
      %1201 = vmatprep.subr.bf16.mxu0 0
      %1202 = vmatpush1.bf16.msra.mxu0 0
      %1203 = vmatprep.subr.bf16.mxu0 0
      %1204 = vmatpush1.bf16.msra.mxu0 0
      %1205 = vmatprep.subr.bf16.mxu0 0
      %1206 = vmatpush1.bf16.msra.mxu0 0
      %1207 = vmatprep.subr.bf16.mxu0 0
      %1208 = vmatpush1.bf16.msra.mxu0 0
      %1209 = vmatprep.subr.bf16.mxu0 0
      %1210 = vmatpush1.bf16.msra.mxu0 0
      %1211 = vmatprep.subr.bf16.mxu0 0
      %1212 = vmatpush1.bf16.msra.mxu0 0
      %1213 = vmatprep.mubr.bf16.mxu0 0
      %1214 = vmatmul.mubr.bf16.gmra.mrb[0].mxu0 %v1099
      %v1215 = vpop.f32.mrb[0].mxu0
      %v1216 = vadd.f32 0.0, %v1215
      %v1217 = vpop.f32.mrb[0].mxu0
      %v1218 = vadd.f32 0.0, %v1217
      %v1219 = vpop.f32.mrb[0].mxu0
      %v1220 = vpop.f32.mrb[0].mxu0
      %1221 = vdwg.mxu0
      %v1222 = vadd.f32 %v1064, %v1216
      %v1223 = vadd.f32 %v1065, %v1218
      %s1224 = scalar_lea.vmem %s6, 512
      %v1225 = vld [vmem:[%s1224] sm:$0xff]
      %v1226 = vld [vmem:[%s1224 + $0x8] sm:$0xff]
      %v1227 = vld [vmem:[%s1224 + $0x10] sm:$0xff]
      %v1228 = vld [vmem:[%s1224 + $0x18] sm:$0xff]
      %v1229 = vld [vmem:[%s1224 + $0x20] sm:$0xff]
      %v1230 = vld [vmem:[%s1224 + $0x28] sm:$0xff]
      %v1231 = vld [vmem:[%s1224 + $0x30] sm:$0xff]
      %v1232 = vld [vmem:[%s1224 + $0x38] sm:$0xff]
      %v1233 = vld [vmem:[%s1224 + $0x40] sm:$0xff]
      %v1234 = vld [vmem:[%s1224 + $0x48] sm:$0xff]
      %v1235 = vld [vmem:[%s1224 + $0x50] sm:$0xff]
      %v1236 = vld [vmem:[%s1224 + $0x58] sm:$0xff]
      %v1237 = vld [vmem:[%s1224 + $0x60] sm:$0xff]
      %v1238 = vld [vmem:[%s1224 + $0x68] sm:$0xff]
      %v1239 = vld [vmem:[%s1224 + $0x70] sm:$0xff]
      %v1240 = vld [vmem:[%s1224 + $0x78] sm:$0xff]
      %v1243 = vcombine.low %v544, %v545
      %v1245 = vunpack.c.l.s4 1966171168
      %v1246 = vunpack.c.0.s8 %v1245
      %v1247 = vlaneseq
      %v1248 = vshrl.u32 %v1247, 7
      %v1249 = vsub.s32 %v1246, %v1248
      %v1250 = vrot.slane %v1243, %v1249
      %v1252 = vunpack.c.l.s4 1966171168
      %v1253 = vunpack.c.0.s8 %v1252
      %v1254 = vlaneseq
      %v1255 = vshrl.u32 %v1254, 7
      %v1256 = vsub.s32 %v1253, %v1255
      %v1257 = vrot.slane %v1250, %v1256
      %v1275 = vunpack.c.l.b16 %v1225
      %v1276 = vunpack.c.h.b16 %v1225
      %v1277 = vunpack.c.l.b16 %v1226
      %v1278 = vunpack.c.h.b16 %v1226
      %v1279 = vunpack.c.l.b16 %v1227
      %v1280 = vunpack.c.h.b16 %v1227
      %v1281 = vunpack.c.l.b16 %v1228
      %v1282 = vunpack.c.h.b16 %v1228
      %v1283 = vunpack.c.l.b16 %v1229
      %v1284 = vunpack.c.h.b16 %v1229
      %v1285 = vunpack.c.l.b16 %v1230
      %v1286 = vunpack.c.h.b16 %v1230
      %v1287 = vunpack.c.l.b16 %v1231
      %v1288 = vunpack.c.h.b16 %v1231
      %v1289 = vunpack.c.l.b16 %v1232
      %v1290 = vunpack.c.h.b16 %v1232
      %v1291 = vunpack.c.l.b16 %v1233
      %v1292 = vunpack.c.h.b16 %v1233
      %v1293 = vunpack.c.l.b16 %v1234
      %v1294 = vunpack.c.h.b16 %v1234
      %v1295 = vunpack.c.l.b16 %v1235
      %v1296 = vunpack.c.h.b16 %v1235
      %v1297 = vunpack.c.l.b16 %v1236
      %v1298 = vunpack.c.h.b16 %v1236
      %v1299 = vunpack.c.l.b16 %v1237
      %v1300 = vunpack.c.h.b16 %v1237
      %v1301 = vunpack.c.l.b16 %v1238
      %v1302 = vunpack.c.h.b16 %v1238
      %v1303 = vunpack.c.l.b16 %v1239
      %v1304 = vunpack.c.h.b16 %v1239
      %v1305 = vunpack.c.l.b16 %v1240
      %v1306 = vunpack.c.h.b16 %v1240
      %v1307 = vpack.c.b16 %v1277, %v1275
      %v1308 = vpack.c.b16 %v1278, %v1276
      %v1309 = vpack.c.b16 %v1281, %v1279
      %v1310 = vpack.c.b16 %v1282, %v1280
      %v1311 = vpack.c.b16 %v1285, %v1283
      %v1312 = vpack.c.b16 %v1286, %v1284
      %v1313 = vpack.c.b16 %v1289, %v1287
      %v1314 = vpack.c.b16 %v1290, %v1288
      %v1315 = vpack.c.b16 %v1293, %v1291
      %v1316 = vpack.c.b16 %v1294, %v1292
      %v1317 = vpack.c.b16 %v1297, %v1295
      %v1318 = vpack.c.b16 %v1298, %v1296
      %v1319 = vpack.c.b16 %v1301, %v1299
      %v1320 = vpack.c.b16 %v1302, %v1300
      %v1321 = vpack.c.b16 %v1305, %v1303
      %v1322 = vpack.c.b16 %v1306, %v1304
      %1339 = vmatprep.subr.bf16.mxu0 %v1308
      %1340 = vmatpush1.bf16.msra.mxu0 %v1307
      %1341 = vmatprep.subr.bf16.mxu0 %v1310
      %1342 = vmatpush1.bf16.msra.mxu0 %v1309
      %1343 = vmatprep.subr.bf16.mxu0 %v1312
      %1344 = vmatpush1.bf16.msra.mxu0 %v1311
      %1345 = vmatprep.subr.bf16.mxu0 %v1314
      %1346 = vmatpush1.bf16.msra.mxu0 %v1313
      %1347 = vmatprep.subr.bf16.mxu0 %v1316
      %1348 = vmatpush1.bf16.msra.mxu0 %v1315
      %1349 = vmatprep.subr.bf16.mxu0 %v1318
      %1350 = vmatpush1.bf16.msra.mxu0 %v1317
      %1351 = vmatprep.subr.bf16.mxu0 %v1320
      %1352 = vmatpush1.bf16.msra.mxu0 %v1319
      %1353 = vmatprep.subr.bf16.mxu0 %v1322
      %1354 = vmatpush1.bf16.msra.mxu0 %v1321
      %1355 = vmatprep.subr.bf16.mxu0 0
      %1356 = vmatpush1.bf16.msra.mxu0 0
      %1357 = vmatprep.subr.bf16.mxu0 0
      %1358 = vmatpush1.bf16.msra.mxu0 0
      %1359 = vmatprep.subr.bf16.mxu0 0
      %1360 = vmatpush1.bf16.msra.mxu0 0
      %1361 = vmatprep.subr.bf16.mxu0 0
      %1362 = vmatpush1.bf16.msra.mxu0 0
      %1363 = vmatprep.subr.bf16.mxu0 0
      %1364 = vmatpush1.bf16.msra.mxu0 0
      %1365 = vmatprep.subr.bf16.mxu0 0
      %1366 = vmatpush1.bf16.msra.mxu0 0
      %1367 = vmatprep.subr.bf16.mxu0 0
      %1368 = vmatpush1.bf16.msra.mxu0 0
      %1369 = vmatprep.subr.bf16.mxu0 0
      %1370 = vmatpush1.bf16.msra.mxu0 0
      %1371 = vmatprep.mubr.bf16.mxu0 0
      %1372 = vmatmul.mubr.bf16.gmra.mrb[0].mxu0 %v1257
      %v1373 = vpop.f32.mrb[0].mxu0
      %v1374 = vadd.f32 0.0, %v1373
      %v1375 = vpop.f32.mrb[0].mxu0
      %v1376 = vadd.f32 0.0, %v1375
      %v1377 = vpop.f32.mrb[0].mxu0
      %v1378 = vpop.f32.mrb[0].mxu0
      %1379 = vdwg.mxu0
      %v1380 = vadd.f32 %v1222, %v1374
      %v1381 = vadd.f32 %v1223, %v1376
      %v1383 = vunpack.c.l.s4 1966171168
      %v1384 = vunpack.c.0.s8 %v1383
      %v1385 = vlaneseq
      %v1386 = vshrl.u32 %v1385, 7
      %v1387 = vsub.s32 %v1384, %v1386
      %v1388 = vrot.slane %v542, %v1387
      %v1389 = vcombine.high %v1388, %v1388
      %v1391 = vunpack.c.l.s4 1966171168
      %v1392 = vunpack.c.0.s8 %v1391
      %v1393 = vlaneseq
      %v1394 = vshrl.u32 %v1393, 7
      %v1395 = vsub.s32 %v1392, %v1394
      %v1396 = vrot.slane %v543, %v1395
      %v1397 = vcombine.high %v1396, %v1396
      %v1399 = vshrl.u32 %v1388, 16
      %v1401 = vrot.slane %v1399, 7
      %v1402 = vrot.slane %v1401, 1
      %v1404 = vshll.u32 %v1389, 16
      %v1406 = vsel %vm891, %v1402, %v1404
      %v1408 = vshrl.u32 %v1396, 16
      %v1410 = vrot.slane %v1408, 7
      %v1411 = vrot.slane %v1410, 1
      %v1413 = vshll.u32 %v1397, 16
      %v1415 = vsel %vm891, %v1411, %v1413
      %s1416 = scalar_lea.vmem %s6, 640
      %v1417 = vld [vmem:[%s1416] sm:$0xff]
      %v1418 = vld [vmem:[%s1416 + $0x8] sm:$0xff]
      %v1419 = vld [vmem:[%s1416 + $0x10] sm:$0xff]
      %v1420 = vld [vmem:[%s1416 + $0x18] sm:$0xff]
      %v1421 = vld [vmem:[%s1416 + $0x20] sm:$0xff]
      %v1422 = vld [vmem:[%s1416 + $0x28] sm:$0xff]
      %v1423 = vld [vmem:[%s1416 + $0x30] sm:$0xff]
      %v1424 = vld [vmem:[%s1416 + $0x38] sm:$0xff]
      %v1425 = vld [vmem:[%s1416 + $0x40] sm:$0xff]
      %v1426 = vld [vmem:[%s1416 + $0x48] sm:$0xff]
      %v1427 = vld [vmem:[%s1416 + $0x50] sm:$0xff]
      %v1428 = vld [vmem:[%s1416 + $0x58] sm:$0xff]
      %v1429 = vld [vmem:[%s1416 + $0x60] sm:$0xff]
      %v1430 = vld [vmem:[%s1416 + $0x68] sm:$0xff]
      %v1431 = vld [vmem:[%s1416 + $0x70] sm:$0xff]
      %v1432 = vld [vmem:[%s1416 + $0x78] sm:$0xff]
      %v1433 = vcombine.low %v1406, %v1415
      %v1435 = vunpack.c.l.s4 1966171168
      %v1436 = vunpack.c.0.s8 %v1435
      %v1437 = vlaneseq
      %v1438 = vshrl.u32 %v1437, 7
      %v1439 = vsub.s32 %v1436, %v1438
      %v1440 = vrot.slane %v1433, %v1439
      %v1442 = vunpack.c.l.s4 1966171168
      %v1443 = vunpack.c.0.s8 %v1442
      %v1444 = vlaneseq
      %v1445 = vshrl.u32 %v1444, 7
      %v1446 = vsub.s32 %v1443, %v1445
      %v1447 = vrot.slane %v1440, %v1446
      %v1465 = vunpack.c.l.b16 %v1417
      %v1466 = vunpack.c.h.b16 %v1417
      %v1467 = vunpack.c.l.b16 %v1418
      %v1468 = vunpack.c.h.b16 %v1418
      %v1469 = vunpack.c.l.b16 %v1419
      %v1470 = vunpack.c.h.b16 %v1419
      %v1471 = vunpack.c.l.b16 %v1420
      %v1472 = vunpack.c.h.b16 %v1420
      %v1473 = vunpack.c.l.b16 %v1421
      %v1474 = vunpack.c.h.b16 %v1421
      %v1475 = vunpack.c.l.b16 %v1422
      %v1476 = vunpack.c.h.b16 %v1422
      %v1477 = vunpack.c.l.b16 %v1423
      %v1478 = vunpack.c.h.b16 %v1423
      %v1479 = vunpack.c.l.b16 %v1424
      %v1480 = vunpack.c.h.b16 %v1424
      %v1481 = vunpack.c.l.b16 %v1425
      %v1482 = vunpack.c.h.b16 %v1425
      %v1483 = vunpack.c.l.b16 %v1426
      %v1484 = vunpack.c.h.b16 %v1426
      %v1485 = vunpack.c.l.b16 %v1427
      %v1486 = vunpack.c.h.b16 %v1427
      %v1487 = vunpack.c.l.b16 %v1428
      %v1488 = vunpack.c.h.b16 %v1428
      %v1489 = vunpack.c.l.b16 %v1429
      %v1490 = vunpack.c.h.b16 %v1429
      %v1491 = vunpack.c.l.b16 %v1430
      %v1492 = vunpack.c.h.b16 %v1430
      %v1493 = vunpack.c.l.b16 %v1431
      %v1494 = vunpack.c.h.b16 %v1431
      %v1495 = vunpack.c.l.b16 %v1432
      %v1496 = vunpack.c.h.b16 %v1432
      %v1497 = vpack.c.b16 %v1467, %v1465
      %v1498 = vpack.c.b16 %v1468, %v1466
      %v1499 = vpack.c.b16 %v1471, %v1469
      %v1500 = vpack.c.b16 %v1472, %v1470
      %v1501 = vpack.c.b16 %v1475, %v1473
      %v1502 = vpack.c.b16 %v1476, %v1474
      %v1503 = vpack.c.b16 %v1479, %v1477
      %v1504 = vpack.c.b16 %v1480, %v1478
      %v1505 = vpack.c.b16 %v1483, %v1481
      %v1506 = vpack.c.b16 %v1484, %v1482
      %v1507 = vpack.c.b16 %v1487, %v1485
      %v1508 = vpack.c.b16 %v1488, %v1486
      %v1509 = vpack.c.b16 %v1491, %v1489
      %v1510 = vpack.c.b16 %v1492, %v1490
      %v1511 = vpack.c.b16 %v1495, %v1493
      %v1512 = vpack.c.b16 %v1496, %v1494
      %1529 = vmatprep.subr.bf16.mxu0 %v1498
      %1530 = vmatpush1.bf16.msra.mxu0 %v1497
      %1531 = vmatprep.subr.bf16.mxu0 %v1500
      %1532 = vmatpush1.bf16.msra.mxu0 %v1499
      %1533 = vmatprep.subr.bf16.mxu0 %v1502
      %1534 = vmatpush1.bf16.msra.mxu0 %v1501
      %1535 = vmatprep.subr.bf16.mxu0 %v1504
      %1536 = vmatpush1.bf16.msra.mxu0 %v1503
      %1537 = vmatprep.subr.bf16.mxu0 %v1506
      %1538 = vmatpush1.bf16.msra.mxu0 %v1505
      %1539 = vmatprep.subr.bf16.mxu0 %v1508
      %1540 = vmatpush1.bf16.msra.mxu0 %v1507
      %1541 = vmatprep.subr.bf16.mxu0 %v1510
      %1542 = vmatpush1.bf16.msra.mxu0 %v1509
      %1543 = vmatprep.subr.bf16.mxu0 %v1512
      %1544 = vmatpush1.bf16.msra.mxu0 %v1511
      %1545 = vmatprep.subr.bf16.mxu0 0
      %1546 = vmatpush1.bf16.msra.mxu0 0
      %1547 = vmatprep.subr.bf16.mxu0 0
      %1548 = vmatpush1.bf16.msra.mxu0 0
      %1549 = vmatprep.subr.bf16.mxu0 0
      %1550 = vmatpush1.bf16.msra.mxu0 0
      %1551 = vmatprep.subr.bf16.mxu0 0
      %1552 = vmatpush1.bf16.msra.mxu0 0
      %1553 = vmatprep.subr.bf16.mxu0 0
      %1554 = vmatpush1.bf16.msra.mxu0 0
      %1555 = vmatprep.subr.bf16.mxu0 0
      %1556 = vmatpush1.bf16.msra.mxu0 0
      %1557 = vmatprep.subr.bf16.mxu0 0
      %1558 = vmatpush1.bf16.msra.mxu0 0
      %1559 = vmatprep.subr.bf16.mxu0 0
      %1560 = vmatpush1.bf16.msra.mxu0 0
      %1561 = vmatprep.mubr.bf16.mxu0 0
      %1562 = vmatmul.mubr.bf16.gmra.mrb[0].mxu0 %v1447
      %v1563 = vpop.f32.mrb[0].mxu0
      %v1564 = vadd.f32 0.0, %v1563
      %v1565 = vpop.f32.mrb[0].mxu0
      %v1566 = vadd.f32 0.0, %v1565
      %v1567 = vpop.f32.mrb[0].mxu0
      %v1568 = vpop.f32.mrb[0].mxu0
      %1569 = vdwg.mxu0
      %v1570 = vadd.f32 %v1380, %v1564
      %v1571 = vadd.f32 %v1381, %v1566
      %s1572 = scalar_lea.vmem %s6, 768
      %v1573 = vld [vmem:[%s1572] sm:$0xff]
      %v1574 = vld [vmem:[%s1572 + $0x8] sm:$0xff]
      %v1575 = vld [vmem:[%s1572 + $0x10] sm:$0xff]
      %v1576 = vld [vmem:[%s1572 + $0x18] sm:$0xff]
      %v1577 = vld [vmem:[%s1572 + $0x20] sm:$0xff]
      %v1578 = vld [vmem:[%s1572 + $0x28] sm:$0xff]
      %v1579 = vld [vmem:[%s1572 + $0x30] sm:$0xff]
      %v1580 = vld [vmem:[%s1572 + $0x38] sm:$0xff]
      %v1581 = vld [vmem:[%s1572 + $0x40] sm:$0xff]
      %v1582 = vld [vmem:[%s1572 + $0x48] sm:$0xff]
      %v1583 = vld [vmem:[%s1572 + $0x50] sm:$0xff]
      %v1584 = vld [vmem:[%s1572 + $0x58] sm:$0xff]
      %v1585 = vld [vmem:[%s1572 + $0x60] sm:$0xff]
      %v1586 = vld [vmem:[%s1572 + $0x68] sm:$0xff]
      %v1587 = vld [vmem:[%s1572 + $0x70] sm:$0xff]
      %v1588 = vld [vmem:[%s1572 + $0x78] sm:$0xff]
      %v1591 = vcombine.low %v546, %v547
      %v1593 = vunpack.c.l.s4 1966171168
      %v1594 = vunpack.c.0.s8 %v1593
      %v1595 = vlaneseq
      %v1596 = vshrl.u32 %v1595, 7
      %v1597 = vsub.s32 %v1594, %v1596
      %v1598 = vrot.slane %v1591, %v1597
      %v1600 = vunpack.c.l.s4 1966171168
      %v1601 = vunpack.c.0.s8 %v1600
      %v1602 = vlaneseq
      %v1603 = vshrl.u32 %v1602, 7
      %v1604 = vsub.s32 %v1601, %v1603
      %v1605 = vrot.slane %v1598, %v1604
      %v1623 = vunpack.c.l.b16 %v1573
      %v1624 = vunpack.c.h.b16 %v1573
      %v1625 = vunpack.c.l.b16 %v1574
      %v1626 = vunpack.c.h.b16 %v1574
      %v1627 = vunpack.c.l.b16 %v1575
      %v1628 = vunpack.c.h.b16 %v1575
      %v1629 = vunpack.c.l.b16 %v1576
      %v1630 = vunpack.c.h.b16 %v1576
      %v1631 = vunpack.c.l.b16 %v1577
      %v1632 = vunpack.c.h.b16 %v1577
      %v1633 = vunpack.c.l.b16 %v1578
      %v1634 = vunpack.c.h.b16 %v1578
      %v1635 = vunpack.c.l.b16 %v1579
      %v1636 = vunpack.c.h.b16 %v1579
      %v1637 = vunpack.c.l.b16 %v1580
      %v1638 = vunpack.c.h.b16 %v1580
      %v1639 = vunpack.c.l.b16 %v1581
      %v1640 = vunpack.c.h.b16 %v1581
      %v1641 = vunpack.c.l.b16 %v1582
      %v1642 = vunpack.c.h.b16 %v1582
      %v1643 = vunpack.c.l.b16 %v1583
      %v1644 = vunpack.c.h.b16 %v1583
      %v1645 = vunpack.c.l.b16 %v1584
      %v1646 = vunpack.c.h.b16 %v1584
      %v1647 = vunpack.c.l.b16 %v1585
      %v1648 = vunpack.c.h.b16 %v1585
      %v1649 = vunpack.c.l.b16 %v1586
      %v1650 = vunpack.c.h.b16 %v1586
      %v1651 = vunpack.c.l.b16 %v1587
      %v1652 = vunpack.c.h.b16 %v1587
      %v1653 = vunpack.c.l.b16 %v1588
      %v1654 = vunpack.c.h.b16 %v1588
      %v1655 = vpack.c.b16 %v1625, %v1623
      %v1656 = vpack.c.b16 %v1626, %v1624
      %v1657 = vpack.c.b16 %v1629, %v1627
      %v1658 = vpack.c.b16 %v1630, %v1628
      %v1659 = vpack.c.b16 %v1633, %v1631
      %v1660 = vpack.c.b16 %v1634, %v1632
      %v1661 = vpack.c.b16 %v1637, %v1635
      %v1662 = vpack.c.b16 %v1638, %v1636
      %v1663 = vpack.c.b16 %v1641, %v1639
      %v1664 = vpack.c.b16 %v1642, %v1640
      %v1665 = vpack.c.b16 %v1645, %v1643
      %v1666 = vpack.c.b16 %v1646, %v1644
      %v1667 = vpack.c.b16 %v1649, %v1647
      %v1668 = vpack.c.b16 %v1650, %v1648
      %v1669 = vpack.c.b16 %v1653, %v1651
      %v1670 = vpack.c.b16 %v1654, %v1652
      %1687 = vmatprep.subr.bf16.mxu0 %v1656
      %1688 = vmatpush1.bf16.msra.mxu0 %v1655
      %1689 = vmatprep.subr.bf16.mxu0 %v1658
      %1690 = vmatpush1.bf16.msra.mxu0 %v1657
      %1691 = vmatprep.subr.bf16.mxu0 %v1660
      %1692 = vmatpush1.bf16.msra.mxu0 %v1659
      %1693 = vmatprep.subr.bf16.mxu0 %v1662
      %1694 = vmatpush1.bf16.msra.mxu0 %v1661
      %1695 = vmatprep.subr.bf16.mxu0 %v1664
      %1696 = vmatpush1.bf16.msra.mxu0 %v1663
      %1697 = vmatprep.subr.bf16.mxu0 %v1666
      %1698 = vmatpush1.bf16.msra.mxu0 %v1665
      %1699 = vmatprep.subr.bf16.mxu0 %v1668
      %1700 = vmatpush1.bf16.msra.mxu0 %v1667
      %1701 = vmatprep.subr.bf16.mxu0 %v1670
      %1702 = vmatpush1.bf16.msra.mxu0 %v1669
      %1703 = vmatprep.subr.bf16.mxu0 0
      %1704 = vmatpush1.bf16.msra.mxu0 0
      %1705 = vmatprep.subr.bf16.mxu0 0
      %1706 = vmatpush1.bf16.msra.mxu0 0
      %1707 = vmatprep.subr.bf16.mxu0 0
      %1708 = vmatpush1.bf16.msra.mxu0 0
      %1709 = vmatprep.subr.bf16.mxu0 0
      %1710 = vmatpush1.bf16.msra.mxu0 0
      %1711 = vmatprep.subr.bf16.mxu0 0
      %1712 = vmatpush1.bf16.msra.mxu0 0
      %1713 = vmatprep.subr.bf16.mxu0 0
      %1714 = vmatpush1.bf16.msra.mxu0 0
      %1715 = vmatprep.subr.bf16.mxu0 0
      %1716 = vmatpush1.bf16.msra.mxu0 0
      %1717 = vmatprep.subr.bf16.mxu0 0
      %1718 = vmatpush1.bf16.msra.mxu0 0
      %1719 = vmatprep.mubr.bf16.mxu0 0
      %1720 = vmatmul.mubr.bf16.gmra.mrb[0].mxu0 %v1605
      %v1721 = vpop.f32.mrb[0].mxu0
      %v1722 = vadd.f32 0.0, %v1721
      %v1723 = vpop.f32.mrb[0].mxu0
      %v1724 = vadd.f32 0.0, %v1723
      %v1725 = vpop.f32.mrb[0].mxu0
      %v1726 = vpop.f32.mrb[0].mxu0
      %1727 = vdwg.mxu0
      %v1728 = vadd.f32 %v1570, %v1722
      %v1729 = vadd.f32 %v1571, %v1724
      %s1730 = scalar_lea.vmem %s6, 896
      %v1731 = vld [vmem:[%s1730] sm:$0xff]
      %v1732 = vld [vmem:[%s1730 + $0x8] sm:$0xff]
      %v1733 = vld [vmem:[%s1730 + $0x10] sm:$0xff]
      %v1734 = vld [vmem:[%s1730 + $0x18] sm:$0xff]
      %v1735 = vld [vmem:[%s1730 + $0x20] sm:$0xff]
      %v1736 = vld [vmem:[%s1730 + $0x28] sm:$0xff]
      %v1737 = vld [vmem:[%s1730 + $0x30] sm:$0xff]
      %v1738 = vld [vmem:[%s1730 + $0x38] sm:$0xff]
      %v1739 = vld [vmem:[%s1730 + $0x40] sm:$0xff]
      %v1740 = vld [vmem:[%s1730 + $0x48] sm:$0xff]
      %v1741 = vld [vmem:[%s1730 + $0x50] sm:$0xff]
      %v1742 = vld [vmem:[%s1730 + $0x58] sm:$0xff]
      %v1743 = vld [vmem:[%s1730 + $0x60] sm:$0xff]
      %v1744 = vld [vmem:[%s1730 + $0x68] sm:$0xff]
      %v1745 = vld [vmem:[%s1730 + $0x70] sm:$0xff]
      %v1746 = vld [vmem:[%s1730 + $0x78] sm:$0xff]
      %v1749 = vcombine.low %v548, %v549
      %v1751 = vunpack.c.l.s4 1966171168
      %v1752 = vunpack.c.0.s8 %v1751
      %v1753 = vlaneseq
      %v1754 = vshrl.u32 %v1753, 7
      %v1755 = vsub.s32 %v1752, %v1754
      %v1756 = vrot.slane %v1749, %v1755
      %v1758 = vunpack.c.l.s4 1966171168
      %v1759 = vunpack.c.0.s8 %v1758
      %v1760 = vlaneseq
      %v1761 = vshrl.u32 %v1760, 7
      %v1762 = vsub.s32 %v1759, %v1761
      %v1763 = vrot.slane %v1756, %v1762
      %v1781 = vunpack.c.l.b16 %v1731
      %v1782 = vunpack.c.h.b16 %v1731
      %v1783 = vunpack.c.l.b16 %v1732
      %v1784 = vunpack.c.h.b16 %v1732
      %v1785 = vunpack.c.l.b16 %v1733
      %v1786 = vunpack.c.h.b16 %v1733
      %v1787 = vunpack.c.l.b16 %v1734
      %v1788 = vunpack.c.h.b16 %v1734
      %v1789 = vunpack.c.l.b16 %v1735
      %v1790 = vunpack.c.h.b16 %v1735
      %v1791 = vunpack.c.l.b16 %v1736
      %v1792 = vunpack.c.h.b16 %v1736
      %v1793 = vunpack.c.l.b16 %v1737
      %v1794 = vunpack.c.h.b16 %v1737
      %v1795 = vunpack.c.l.b16 %v1738
      %v1796 = vunpack.c.h.b16 %v1738
      %v1797 = vunpack.c.l.b16 %v1739
      %v1798 = vunpack.c.h.b16 %v1739
      %v1799 = vunpack.c.l.b16 %v1740
      %v1800 = vunpack.c.h.b16 %v1740
      %v1801 = vunpack.c.l.b16 %v1741
      %v1802 = vunpack.c.h.b16 %v1741
      %v1803 = vunpack.c.l.b16 %v1742
      %v1804 = vunpack.c.h.b16 %v1742
      %v1805 = vunpack.c.l.b16 %v1743
      %v1806 = vunpack.c.h.b16 %v1743
      %v1807 = vunpack.c.l.b16 %v1744
      %v1808 = vunpack.c.h.b16 %v1744
      %v1809 = vunpack.c.l.b16 %v1745
      %v1810 = vunpack.c.h.b16 %v1745
      %v1811 = vunpack.c.l.b16 %v1746
      %v1812 = vunpack.c.h.b16 %v1746
      %v1813 = vpack.c.b16 %v1783, %v1781
      %v1814 = vpack.c.b16 %v1784, %v1782
      %v1815 = vpack.c.b16 %v1787, %v1785
      %v1816 = vpack.c.b16 %v1788, %v1786
      %v1817 = vpack.c.b16 %v1791, %v1789
      %v1818 = vpack.c.b16 %v1792, %v1790
      %v1819 = vpack.c.b16 %v1795, %v1793
      %v1820 = vpack.c.b16 %v1796, %v1794
      %v1821 = vpack.c.b16 %v1799, %v1797
      %v1822 = vpack.c.b16 %v1800, %v1798
      %v1823 = vpack.c.b16 %v1803, %v1801
      %v1824 = vpack.c.b16 %v1804, %v1802
      %v1825 = vpack.c.b16 %v1807, %v1805
      %v1826 = vpack.c.b16 %v1808, %v1806
      %v1827 = vpack.c.b16 %v1811, %v1809
      %v1828 = vpack.c.b16 %v1812, %v1810
      %1845 = vmatprep.subr.bf16.mxu0 %v1814
      %1846 = vmatpush1.bf16.msra.mxu0 %v1813
      %1847 = vmatprep.subr.bf16.mxu0 %v1816
      %1848 = vmatpush1.bf16.msra.mxu0 %v1815
      %1849 = vmatprep.subr.bf16.mxu0 %v1818
      %1850 = vmatpush1.bf16.msra.mxu0 %v1817
      %1851 = vmatprep.subr.bf16.mxu0 %v1820
      %1852 = vmatpush1.bf16.msra.mxu0 %v1819
      %1853 = vmatprep.subr.bf16.mxu0 %v1822
      %1854 = vmatpush1.bf16.msra.mxu0 %v1821
      %1855 = vmatprep.subr.bf16.mxu0 %v1824
      %1856 = vmatpush1.bf16.msra.mxu0 %v1823
      %1857 = vmatprep.subr.bf16.mxu0 %v1826
      %1858 = vmatpush1.bf16.msra.mxu0 %v1825
      %1859 = vmatprep.subr.bf16.mxu0 %v1828
      %1860 = vmatpush1.bf16.msra.mxu0 %v1827
      %1861 = vmatprep.subr.bf16.mxu0 0
      %1862 = vmatpush1.bf16.msra.mxu0 0
      %1863 = vmatprep.subr.bf16.mxu0 0
      %1864 = vmatpush1.bf16.msra.mxu0 0
      %1865 = vmatprep.subr.bf16.mxu0 0
      %1866 = vmatpush1.bf16.msra.mxu0 0
      %1867 = vmatprep.subr.bf16.mxu0 0
      %1868 = vmatpush1.bf16.msra.mxu0 0
      %1869 = vmatprep.subr.bf16.mxu0 0
      %1870 = vmatpush1.bf16.msra.mxu0 0
      %1871 = vmatprep.subr.bf16.mxu0 0
      %1872 = vmatpush1.bf16.msra.mxu0 0
      %1873 = vmatprep.subr.bf16.mxu0 0
      %1874 = vmatpush1.bf16.msra.mxu0 0
      %1875 = vmatprep.subr.bf16.mxu0 0
      %1876 = vmatpush1.bf16.msra.mxu0 0
      %1877 = vmatprep.mubr.bf16.mxu0 0
      %1878 = vmatmul.mubr.bf16.gmra.mrb[0].mxu0 %v1763
      %v1879 = vpop.f32.mrb[0].mxu0
      %v1880 = vadd.f32 0.0, %v1879
      %v1881 = vpop.f32.mrb[0].mxu0
      %v1882 = vadd.f32 0.0, %v1881
      %v1883 = vpop.f32.mrb[0].mxu0
      %v1884 = vpop.f32.mrb[0].mxu0
      %1885 = vdwg.mxu0
      %v1886 = vadd.f32 %v1728, %v1880
      %v1887 = vadd.f32 %v1729, %v1882
      %v1889 = vunpack.c.l.s4 1966171168
      %v1890 = vunpack.c.0.s8 %v1889
      %v1891 = vlaneseq
      %v1892 = vshrl.u32 %v1891, 7
      %v1893 = vsub.s32 %v1890, %v1892
      %v1894 = vrot.slane %v546, %v1893
      %v1895 = vcombine.high %v1894, %v1894
      %v1897 = vunpack.c.l.s4 1966171168
      %v1898 = vunpack.c.0.s8 %v1897
      %v1899 = vlaneseq
      %v1900 = vshrl.u32 %v1899, 7
      %v1901 = vsub.s32 %v1898, %v1900
      %v1902 = vrot.slane %v547, %v1901
      %v1903 = vcombine.high %v1902, %v1902
      %v1905 = vshrl.u32 %v1894, 16
      %v1907 = vrot.slane %v1905, 7
      %v1908 = vrot.slane %v1907, 1
      %v1910 = vshll.u32 %v1895, 16
      %v1912 = vsel %vm891, %v1908, %v1910
      %v1914 = vshrl.u32 %v1902, 16
      %v1916 = vrot.slane %v1914, 7
      %v1917 = vrot.slane %v1916, 1
      %v1919 = vshll.u32 %v1903, 16
      %v1921 = vsel %vm891, %v1917, %v1919
      %s1922 = scalar_lea.vmem %s6, 1024
      %v1923 = vld [vmem:[%s1922] sm:$0xff]
      %v1924 = vld [vmem:[%s1922 + $0x8] sm:$0xff]
      %v1925 = vld [vmem:[%s1922 + $0x10] sm:$0xff]
      %v1926 = vld [vmem:[%s1922 + $0x18] sm:$0xff]
      %v1927 = vld [vmem:[%s1922 + $0x20] sm:$0xff]
      %v1928 = vld [vmem:[%s1922 + $0x28] sm:$0xff]
      %v1929 = vld [vmem:[%s1922 + $0x30] sm:$0xff]
      %v1930 = vld [vmem:[%s1922 + $0x38] sm:$0xff]
      %v1931 = vld [vmem:[%s1922 + $0x40] sm:$0xff]
      %v1932 = vld [vmem:[%s1922 + $0x48] sm:$0xff]
      %v1933 = vld [vmem:[%s1922 + $0x50] sm:$0xff]
      %v1934 = vld [vmem:[%s1922 + $0x58] sm:$0xff]
      %v1935 = vld [vmem:[%s1922 + $0x60] sm:$0xff]
      %v1936 = vld [vmem:[%s1922 + $0x68] sm:$0xff]
      %v1937 = vld [vmem:[%s1922 + $0x70] sm:$0xff]
      %v1938 = vld [vmem:[%s1922 + $0x78] sm:$0xff]
      %v1939 = vcombine.low %v1912, %v1921
      %v1941 = vunpack.c.l.s4 1966171168
      %v1942 = vunpack.c.0.s8 %v1941
      %v1943 = vlaneseq
      %v1944 = vshrl.u32 %v1943, 7
      %v1945 = vsub.s32 %v1942, %v1944
      %v1946 = vrot.slane %v1939, %v1945
      %v1948 = vunpack.c.l.s4 1966171168
      %v1949 = vunpack.c.0.s8 %v1948
      %v1950 = vlaneseq
      %v1951 = vshrl.u32 %v1950, 7
      %v1952 = vsub.s32 %v1949, %v1951
      %v1953 = vrot.slane %v1946, %v1952
      %v1971 = vunpack.c.l.b16 %v1923
      %v1972 = vunpack.c.h.b16 %v1923
      %v1973 = vunpack.c.l.b16 %v1924
      %v1974 = vunpack.c.h.b16 %v1924
      %v1975 = vunpack.c.l.b16 %v1925
      %v1976 = vunpack.c.h.b16 %v1925
      %v1977 = vunpack.c.l.b16 %v1926
      %v1978 = vunpack.c.h.b16 %v1926
      %v1979 = vunpack.c.l.b16 %v1927
      %v1980 = vunpack.c.h.b16 %v1927
      %v1981 = vunpack.c.l.b16 %v1928
      %v1982 = vunpack.c.h.b16 %v1928
      %v1983 = vunpack.c.l.b16 %v1929
      %v1984 = vunpack.c.h.b16 %v1929
      %v1985 = vunpack.c.l.b16 %v1930
      %v1986 = vunpack.c.h.b16 %v1930
      %v1987 = vunpack.c.l.b16 %v1931
      %v1988 = vunpack.c.h.b16 %v1931
      %v1989 = vunpack.c.l.b16 %v1932
      %v1990 = vunpack.c.h.b16 %v1932
      %v1991 = vunpack.c.l.b16 %v1933
      %v1992 = vunpack.c.h.b16 %v1933
      %v1993 = vunpack.c.l.b16 %v1934
      %v1994 = vunpack.c.h.b16 %v1934
      %v1995 = vunpack.c.l.b16 %v1935
      %v1996 = vunpack.c.h.b16 %v1935
      %v1997 = vunpack.c.l.b16 %v1936
      %v1998 = vunpack.c.h.b16 %v1936
      %v1999 = vunpack.c.l.b16 %v1937
      %v2000 = vunpack.c.h.b16 %v1937
      %v2001 = vunpack.c.l.b16 %v1938
      %v2002 = vunpack.c.h.b16 %v1938
      %v2003 = vpack.c.b16 %v1973, %v1971
      %v2004 = vpack.c.b16 %v1974, %v1972
      %v2005 = vpack.c.b16 %v1977, %v1975
      %v2006 = vpack.c.b16 %v1978, %v1976
      %v2007 = vpack.c.b16 %v1981, %v1979
      %v2008 = vpack.c.b16 %v1982, %v1980
      %v2009 = vpack.c.b16 %v1985, %v1983
      %v2010 = vpack.c.b16 %v1986, %v1984
      %v2011 = vpack.c.b16 %v1989, %v1987
      %v2012 = vpack.c.b16 %v1990, %v1988
      %v2013 = vpack.c.b16 %v1993, %v1991
      %v2014 = vpack.c.b16 %v1994, %v1992
      %v2015 = vpack.c.b16 %v1997, %v1995
      %v2016 = vpack.c.b16 %v1998, %v1996
      %v2017 = vpack.c.b16 %v2001, %v1999
      %v2018 = vpack.c.b16 %v2002, %v2000
      %2035 = vmatprep.subr.bf16.mxu0 %v2004
      %2036 = vmatpush1.bf16.msra.mxu0 %v2003
      %2037 = vmatprep.subr.bf16.mxu0 %v2006
      %2038 = vmatpush1.bf16.msra.mxu0 %v2005
      %2039 = vmatprep.subr.bf16.mxu0 %v2008
      %2040 = vmatpush1.bf16.msra.mxu0 %v2007
      %2041 = vmatprep.subr.bf16.mxu0 %v2010
      %2042 = vmatpush1.bf16.msra.mxu0 %v2009
      %2043 = vmatprep.subr.bf16.mxu0 %v2012
      %2044 = vmatpush1.bf16.msra.mxu0 %v2011
      %2045 = vmatprep.subr.bf16.mxu0 %v2014
      %2046 = vmatpush1.bf16.msra.mxu0 %v2013
      %2047 = vmatprep.subr.bf16.mxu0 %v2016
      %2048 = vmatpush1.bf16.msra.mxu0 %v2015
      %2049 = vmatprep.subr.bf16.mxu0 %v2018
      %2050 = vmatpush1.bf16.msra.mxu0 %v2017
      %2051 = vmatprep.subr.bf16.mxu0 0
      %2052 = vmatpush1.bf16.msra.mxu0 0
      %2053 = vmatprep.subr.bf16.mxu0 0
      %2054 = vmatpush1.bf16.msra.mxu0 0
      %2055 = vmatprep.subr.bf16.mxu0 0
      %2056 = vmatpush1.bf16.msra.mxu0 0
      %2057 = vmatprep.subr.bf16.mxu0 0
      %2058 = vmatpush1.bf16.msra.mxu0 0
      %2059 = vmatprep.subr.bf16.mxu0 0
      %2060 = vmatpush1.bf16.msra.mxu0 0
      %2061 = vmatprep.subr.bf16.mxu0 0
      %2062 = vmatpush1.bf16.msra.mxu0 0
      %2063 = vmatprep.subr.bf16.mxu0 0
      %2064 = vmatpush1.bf16.msra.mxu0 0
      %2065 = vmatprep.subr.bf16.mxu0 0
      %2066 = vmatpush1.bf16.msra.mxu0 0
      %2067 = vmatprep.mubr.bf16.mxu0 0
      %2068 = vmatmul.mubr.bf16.gmra.mrb[0].mxu0 %v1953
      %v2069 = vpop.f32.mrb[0].mxu0
      %v2070 = vadd.f32 0.0, %v2069
      %v2071 = vpop.f32.mrb[0].mxu0
      %v2072 = vadd.f32 0.0, %v2071
      %v2073 = vpop.f32.mrb[0].mxu0
      %v2074 = vpop.f32.mrb[0].mxu0
      %2075 = vdwg.mxu0
      %v2076 = vadd.f32 %v1886, %v2070
      %v2077 = vadd.f32 %v1887, %v2072
      %v2078 = vpack.c.bf16 %v2076, %v2076
      %v2079 = vpack.c.bf16 %v2077, %v2077
      %v2082 = vcombine.low %v2078, %v2079
      %v2084 = vunpack.c.l.s4 1983009808
      %v2085 = vunpack.c.0.s8 %v2084
      %v2086 = vlaneseq
      %v2087 = vshrl.u32 %v2086, 7
      %v2088 = vsub.s32 %v2085, %v2087
      %v2089 = vrot.slane %v2082, %v2088
      %2091 = vst [vmem:[%s528] sm:$0xf] %v2089
      %vm2092 = vcmask 1043456
      %v2093 = vsel %vm2092, %v2076, 0.0
      %v2094 = vrot.slane %v2093, 4
      %v2095 = vadd.f32 %v2093, %v2094
      %v2096 = vrot.slane %v2095, 2
      %v2097 = vadd.f32 %v2095, %v2096
      %v2098 = vrot.slane %v2097, 1
      %v2099 = vadd.f32 %v2097, %v2098
      %v2100 = vsel %vm2092, %v2077, 0.0
      %v2101 = vrot.slane %v2100, 4
      %v2102 = vadd.f32 %v2100, %v2101
      %v2103 = vrot.slane %v2102, 2
      %v2104 = vadd.f32 %v2102, %v2103
      %v2105 = vrot.slane %v2104, 1
      %v2106 = vadd.f32 %v2104, %v2105
      %v2109 = vcombine.low %v2099, %v2106
      %v2111 = vunpack.c.l.s4 1966171168
      %v2112 = vunpack.c.0.s8 %v2111
      %v2113 = vlaneseq
      %v2114 = vshrl.u32 %v2113, 7
      %v2115 = vsub.s32 %v2112, %v2114
      %v2116 = vrot.slane %v2109, %v2115
      %v2118 = vunpack.c.l.s4 1966171168
      %v2119 = vunpack.c.0.s8 %v2118
      %v2120 = vlaneseq
      %v2121 = vshrl.u32 %v2120, 7
      %v2122 = vsub.s32 %v2119, %v2121
      %v2123 = vrot.slane %v2116, %v2122
      %v2125 = vlaneseq
      %vm2126 = vcmp.ge.s32.totalorder %v2125, 0
      %vm2127 = vcmp.lt.s32.totalorder %v2125, 256
      %vm2128 = vmand %vm2126, %vm2127
      %2129 = vst.msk [vmem:[%s535] ss:$2 sm:$0x3] %vm2128, %v2123
      %v2130 = vmul.f32 %v2076, %v2076
      %v2131 = vmul.f32 %v2077, %v2077
      %v2132 = vsel %vm2092, %v2130, 0.0
      %v2133 = vrot.slane %v2132, 4
      %v2134 = vadd.f32 %v2132, %v2133
      %v2135 = vrot.slane %v2134, 2
      %v2136 = vadd.f32 %v2134, %v2135
      %v2137 = vrot.slane %v2136, 1
      %v2138 = vadd.f32 %v2136, %v2137
      %v2139 = vsel %vm2092, %v2131, 0.0
      %v2140 = vrot.slane %v2139, 4
      %v2141 = vadd.f32 %v2139, %v2140
      %v2142 = vrot.slane %v2141, 2
      %v2143 = vadd.f32 %v2141, %v2142
      %v2144 = vrot.slane %v2143, 1
      %v2145 = vadd.f32 %v2143, %v2144
      %v2148 = vcombine.low %v2138, %v2145
      %v2150 = vunpack.c.l.s4 1966171168
      %v2151 = vunpack.c.0.s8 %v2150
      %v2152 = vlaneseq
      %v2153 = vshrl.u32 %v2152, 7
      %v2154 = vsub.s32 %v2151, %v2153
      %v2155 = vrot.slane %v2148, %v2154
      %v2157 = vunpack.c.l.s4 1966171168
      %v2158 = vunpack.c.0.s8 %v2157
      %v2159 = vlaneseq
      %v2160 = vshrl.u32 %v2159, 7
      %v2161 = vsub.s32 %v2158, %v2160
      %v2162 = vrot.slane %v2155, %v2161
      %s2164 = scalar_lea.vmem %s535, 1
      %2165 = vst.msk [vmem:[%s2164] ss:$2 sm:$0x3] %vm2128, %v2162
      %s2166 = sadd.s32 %s24, %s25
      %p2167 = scmp.lt.s32.totalorder %s2166, 1
      %s2168 = scalar_select %p2167, %s2166, 1
      %s2169 = smul.addr %s2168, 2
      %s2170 = smul.addr %s2169, 2
      %s2171 = scalar_lea.vmem %s7, %s2170
      %s2172 = sadd.s32 %s24, %s25
      %p2173 = scmp.lt.s32.totalorder %s2172, 1
      %s2174 = scalar_select %p2173, %s2172, 1
      %s2175 = smul.addr %s2174, 2
      %s2176 = smul.addr %s2175, 2
      %s2177 = scalar_lea.vmem %s8, %s2176
      // Predicated region
      $region49: #{spatial_path.10} parent=47 // pred_check
        %p2178 = pneg %p241
      $region50: #{spatial_path.10} parent=47 // pred_check_branch
        %2180 = sbr.rel (%p2178) target = $region52
      $region51: #{spatial_path.10} parent=47 // pred_region
        %s2181 = sadd.s32 %s24, %s25
      $region52: #{spatial_path.10} parent=47 // pred_fallthru
        _
      // Predicated region
      $region53: #{spatial_path.10} parent=47 // pred_check
        %p2182 = pneg %p269
      $region54: #{spatial_path.10} parent=47 // pred_check_branch
        %2184 = sbr.rel (%p2182) target = $region56
      $region55: #{spatial_path.10} parent=47 // pred_region
        %s2185 = sadd.s32 %s24, %s25
      $region56: #{spatial_path.10} parent=47 // pred_fallthru
        _
    $region48: #{spatial_path.10} parent=5 // pred_fallthru
      _
    %p2186 = scmp.le.s32.totalorder 2, %s15
    // Predicated region
    $region57: #{spatial_path.10} parent=5 // pred_check
      %p2187 = pneg %p2186
    $region58: #{spatial_path.10} parent=5 // pred_check_branch
      %2189 = sbr.rel (%p2187) target = $region60
    $region59: #{spatial_path.10} parent=5 // pred_region
      %s2190 = ssub.s32 %s15, 2
      // Predicated region
      $region61: #{spatial_path.10} parent=59 // pred_check
        %p2191 = pneg %p247
      $region62: #{spatial_path.10} parent=59 // pred_check_branch
        %2193 = sbr.rel (%p2191) target = $region64
      $region63: #{spatial_path.10} parent=59 // pred_region
        %s2194 = sadd.s32 %s26, %s27
        %p2195 = scmp.lt.s32.totalorder %s2194, 1
        %s2196 = scalar_select %p2195, %s2194, 1
        %s2197 = smul.addr %s2196, 2
        %s2198 = smul.addr %s2197, 2
        %s2199 = scalar_lea.vmem %s7, %s2198
      $region64: #{spatial_path.10} parent=59 // pred_fallthru
        _
      // Predicated region
      $region65: #{spatial_path.10} parent=59 // pred_check
        %p2200 = pneg %p275
      $region66: #{spatial_path.10} parent=59 // pred_check_branch
        %2202 = sbr.rel (%p2200) target = $region68
      $region67: #{spatial_path.10} parent=59 // pred_region
        %s2203 = sadd.s32 %s26, %s27
        %p2204 = scmp.lt.s32.totalorder %s2203, 1
        %s2205 = scalar_select %p2204, %s2203, 1
        %s2206 = smul.addr %s2205, 2
        %s2207 = smul.addr %s2206, 2
        %s2208 = scalar_lea.vmem %s8, %s2207
      $region68: #{spatial_path.10} parent=59 // pred_fallthru
        _
    $region60: #{spatial_path.10} parent=5 // pred_fallthru
      _
  $region6: #{spatial_path.10} parent=0 // loop_footer
    %s19 = sadd.s32 1, %s15
  $region7: #{spatial_path.10} parent=0 // loop_footer_branch
    %14 = sbr.rel target = $region3
  $region8: #{spatial_path.10} parent=0 // loop_exit
    _

</llo_original>
